<compile_context>
chip_gen: v5e
topology: v5e:2x2
jax: 0.10.0
libtpu: 0.0.40
codegen_flags: <defaults>
</compile_context>

<pallas_src>
import jax
import jax.numpy as jnp
from jax.experimental import pallas as pl
from jax.experimental.pallas import tpu as pltpu


# ---------------------------------------------------------------------------
# Fused kernel: n_layers x LSTM recurrence + classifier head
# ---------------------------------------------------------------------------
def _make_fused_kernel(n_layers: int, seq_len: int, hidden: int):
    """Build a kernel closed over the static model structure."""

    def kernel(*refs):
        # refs = [src, (wih, whh, b) * n_layers, w1, b1, w2, b2, w3, b3,
        #         pred_out, feat_out]
        src_ref = refs[0]
        lstm_refs = refs[1:1 + 3 * n_layers]
        clf_refs = refs[1 + 3 * n_layers:1 + 3 * n_layers + 6]
        pred_ref = refs[-2]
        feat_ref = refs[-1]

        # Load the whole (B, T, I) input once; take time steps as static
        # sublane slices (no per-step DMA, no host-side transpose).
        x_all = src_ref[...].astype(jnp.float32)          # (B, T, I)
        batch = x_all.shape[0]
        x_seq = [x_all[:, t, :] for t in range(seq_len)]  # T x (B, I)

        for layer in range(n_layers):
            wih = lstm_refs[3 * layer][...]       # (I, 4H)
            whh = lstm_refs[3 * layer + 1][...]   # (H, 4H)
            b = lstm_refs[3 * layer + 2][...]     # (1, 4H) == b_ih + b_hh

            # Hoisted input projection: independent of the recurrence, so it
            # sits off the serial h-dependence chain (fully unrolled -> the
            # scheduler overlaps these with the recurrence matmuls).
            xp = [
                jnp.dot(x_t, wih, preferred_element_type=jnp.float32) + b
                for x_t in x_seq
            ]

            h = jnp.zeros((batch, hidden), jnp.float32)
            c = jnp.zeros((batch, hidden), jnp.float32)
            outs = []
            for t in range(seq_len):
                # Only matmul on the serial critical path: h_{t-1} @ W_hh.
                gates = xp[t] + jnp.dot(h, whh,
                                        preferred_element_type=jnp.float32)
                # Activations on the full (B, 4H) lane-aligned slab, slice after.
                sig = jax.nn.sigmoid(gates)   # i, f, o gates
                tnh = jnp.tanh(gates)         # g gate
                i_g = sig[:, 0 * hidden:1 * hidden]
                f_g = sig[:, 1 * hidden:2 * hidden]
                g_g = tnh[:, 2 * hidden:3 * hidden]
                o_g = sig[:, 3 * hidden:4 * hidden]
                c = f_g * c + i_g * g_g
                h = o_g * jnp.tanh(c)
                outs.append(h)
            # Next layer consumes the full hidden sequence (stays in VMEM/vregs).
            x_seq = outs
            # TODO(synk): inter-layer dropout skipped (inference semantics).

        # encoder_outputs[:, -1:].squeeze() -> last time step of the top layer.
        features = x_seq[-1]                              # (B, H)
        feat_ref[...] = features.astype(feat_ref.dtype)

        # Classifier head: Linear -> ReLU -> Linear -> ReLU -> Linear(11)
        # (dropout is an inference no-op).
        w1, b1, w2, b2, w3, b3 = [r[...] for r in clf_refs]
        h1 = jnp.maximum(
            jnp.dot(features, w1, preferred_element_type=jnp.float32) + b1, 0.0)
        h2 = jnp.maximum(
            jnp.dot(h1, w2, preferred_element_type=jnp.float32) + b2, 0.0)
        pred = jnp.dot(h2, w3, preferred_element_type=jnp.float32) + b3
        pred_ref[...] = pred.astype(pred_ref.dtype)

    return kernel


def lstm_shm_forward(src, lstm_params, clf_params):
    """src: (B, T, input_dim) batch-first, like nn.LSTM(batch_first=True).

    lstm_params: list of (w_ih_t (I,4H), w_hh_t (H,4H), bias (1,4H)) per layer.
    clf_params:  (w1 (H,H), b1 (1,H), w2 (H,H//2), b2 (1,H//2), w3 (H//2,11), b3 (1,11)).
    Returns (predictions (B, 11), features (B, H)).
    """
    batch, seq_len, _ = src.shape
    n_layers = len(lstm_params)
    hidden = lstm_params[0][1].shape[0]
    n_out = clf_params[4].shape[1]

    flat_in = [src]
    for p in lstm_params:
        flat_in.extend(p)
    flat_in.extend(clf_params)

    vmem = pltpu.MemorySpace.VMEM
    kernel = _make_fused_kernel(n_layers, seq_len, hidden)
    predictions, features = pl.pallas_call(
        kernel,
        out_shape=(jax.ShapeDtypeStruct((batch, n_out), jnp.float32),
                   jax.ShapeDtypeStruct((batch, hidden), jnp.float32)),
        in_specs=[pl.BlockSpec(memory_space=vmem) for _ in flat_in],
        out_specs=(pl.BlockSpec(memory_space=vmem),
                   pl.BlockSpec(memory_space=vmem)),
    )(*flat_in)
    # TODO(synk): PyTorch's `.squeeze()` would also drop the batch dim when
    # B == 1 (returning shape (H,)); here features is always (B, H).
    # TODO(synk): bidirectional (bid=True) path not implemented; bid=False here.
    return predictions, features


# ---------------------------------------------------------------------------
# Pure-JAX reference (lax.scan LSTM + MLP) for correctness check
# ---------------------------------------------------------------------------
def _lstm_layer_ref(x_tm, w_ih_t, w_hh_t, bias):
    _, batch, _ = x_tm.shape
    hidden = w_hh_t.shape[0]

    def step(carry, x_t):
        h, c = carry
        gates = x_t @ w_ih_t + h @ w_hh_t + bias
        i = jax.nn.sigmoid(gates[:, :hidden])
        f = jax.nn.sigmoid(gates[:, hidden:2 * hidden])
        g = jnp.tanh(gates[:, 2 * hidden:3 * hidden])
        o = jax.nn.sigmoid(gates[:, 3 * hidden:])
        c = f * c + i * g
        h = o * jnp.tanh(c)
        return (h, c), h

    init = (jnp.zeros((batch, hidden), jnp.float32),
            jnp.zeros((batch, hidden), jnp.float32))
    _, hs = jax.lax.scan(step, init, x_tm)
    return hs


def _forward_ref(src, lstm_params, clf_params):
    x_tm = jnp.transpose(src, (1, 0, 2))
    for (w_ih_t, w_hh_t, bias) in lstm_params:
        x_tm = _lstm_layer_ref(x_tm, w_ih_t, w_hh_t, bias)
    features = x_tm[-1]
    w1, b1, w2, b2, w3, b3 = clf_params
    h1 = jnp.maximum(features @ w1 + b1, 0.0)
    h2 = jnp.maximum(h1 @ w2 + b2, 0.0)
    return h2 @ w3 + b3, features


# ---------------------------------------------------------------------------
if __name__ == "__main__":
    jax.config.update("jax_default_matmul_precision", "highest")

    key = jax.random.PRNGKey(0)

    # Small shapes consistent with the module's forward.
    batch, seq_len = 2, 8
    input_dim, hidden_dim = 4, 32
    n_layers = 2
    n_classes = 11
    # bid = False (unidirectional); dropout skipped at inference.

    def uniform(k, shape, scale):
        return jax.random.uniform(k, shape, jnp.float32, -scale, scale)

    keys = jax.random.split(key, 4 * n_layers + 7)
    kit = iter(keys)

    # LSTM parameters per layer (PyTorch layout, then transposed for the kernel).
    scale = 1.0 / (hidden_dim ** 0.5)
    lstm_params = []
    for layer in range(n_layers):
        in_d = input_dim if layer == 0 else hidden_dim
        w_ih = uniform(next(kit), (4 * hidden_dim, in_d), scale)        # (4H, I)
        w_hh = uniform(next(kit), (4 * hidden_dim, hidden_dim), scale)  # (4H, H)
        b_ih = uniform(next(kit), (4 * hidden_dim,), scale)
        b_hh = uniform(next(kit), (4 * hidden_dim,), scale)
        lstm_params.append((w_ih.T, w_hh.T, (b_ih + b_hh)[None, :]))

    # Classifier head parameters (stored as (in, out) for x @ W).
    w1 = uniform(next(kit), (hidden_dim, hidden_dim), scale)
    b1 = uniform(next(kit), (1, hidden_dim), scale)
    w2 = uniform(next(kit), (hidden_dim, hidden_dim // 2), scale)
    b2 = uniform(next(kit), (1, hidden_dim // 2), scale)
    w3 = uniform(next(kit), (hidden_dim // 2, n_classes), scale)
    b3 = uniform(next(kit), (1, n_classes), scale)
    clf_params = (w1, b1, w2, b2, w3, b3)

    src = jax.random.normal(next(kit), (batch, seq_len, input_dim), jnp.float32)

    predictions, features = lstm_shm_forward(src, lstm_params, clf_params)
    predictions = jax.block_until_ready(predictions)
    features = jax.block_until_ready(features)

    # Reference check.
    pred_ref, feat_ref = _forward_ref(src, lstm_params, clf_params)

    assert predictions.shape == (batch, n_classes)
    assert features.shape == (batch, hidden_dim)
    assert jnp.allclose(features, feat_ref, atol=1e-4, rtol=1e-4), (
        jnp.max(jnp.abs(features - feat_ref)))
    assert jnp.allclose(predictions, pred_ref, atol=1e-4, rtol=1e-4), (
        jnp.max(jnp.abs(predictions - pred_ref)))

    print("KERNEL_OK")
</pallas_src>

<mosaic_0001>
module attributes {stable_mosaic.version = 11 : i64} {
  func.func @kernel(%arg0: memref<2x8x4xf32, #tpu.memory_space<vmem>>, %arg1: memref<4x128xf32, #tpu.memory_space<vmem>>, %arg2: memref<32x128xf32, #tpu.memory_space<vmem>>, %arg3: memref<1x128xf32, #tpu.memory_space<vmem>>, %arg4: memref<32x128xf32, #tpu.memory_space<vmem>>, %arg5: memref<32x128xf32, #tpu.memory_space<vmem>>, %arg6: memref<1x128xf32, #tpu.memory_space<vmem>>, %arg7: memref<32x32xf32, #tpu.memory_space<vmem>>, %arg8: memref<1x32xf32, #tpu.memory_space<vmem>>, %arg9: memref<32x16xf32, #tpu.memory_space<vmem>>, %arg10: memref<1x16xf32, #tpu.memory_space<vmem>>, %arg11: memref<16x11xf32, #tpu.memory_space<vmem>>, %arg12: memref<1x11xf32, #tpu.memory_space<vmem>>, %arg13: memref<2x11xf32, #tpu.memory_space<vmem>>, %arg14: memref<2x32xf32, #tpu.memory_space<vmem>>) attributes {dimension_semantics = [], scalar_prefetch = 0 : i64, scratch_operands = 0 : i64, tpu.core_type = #tpu.core_type<tc>} {
    %c0 = arith.constant 0 : index
    %c0_0 = arith.constant 0 : index
    %c0_1 = arith.constant 0 : index
    %0 = vector.load %arg0[%c0, %c0_0, %c0_1] : memref<2x8x4xf32, #tpu.memory_space<vmem>>, vector<2x8x4xf32>
    %1 = vector.extract_strided_slice %0 {offsets = [0, 0, 0], sizes = [2, 1, 4], strides = [1, 1, 1]} : vector<2x8x4xf32> to vector<2x1x4xf32>
    %2 = vector.shape_cast %1 : vector<2x1x4xf32> to vector<2x4xf32>
    %3 = vector.extract_strided_slice %0 {offsets = [0, 1, 0], sizes = [2, 1, 4], strides = [1, 1, 1]} : vector<2x8x4xf32> to vector<2x1x4xf32>
    %4 = vector.shape_cast %3 : vector<2x1x4xf32> to vector<2x4xf32>
    %5 = vector.extract_strided_slice %0 {offsets = [0, 2, 0], sizes = [2, 1, 4], strides = [1, 1, 1]} : vector<2x8x4xf32> to vector<2x1x4xf32>
    %6 = vector.shape_cast %5 : vector<2x1x4xf32> to vector<2x4xf32>
    %7 = vector.extract_strided_slice %0 {offsets = [0, 3, 0], sizes = [2, 1, 4], strides = [1, 1, 1]} : vector<2x8x4xf32> to vector<2x1x4xf32>
    %8 = vector.shape_cast %7 : vector<2x1x4xf32> to vector<2x4xf32>
    %9 = vector.extract_strided_slice %0 {offsets = [0, 4, 0], sizes = [2, 1, 4], strides = [1, 1, 1]} : vector<2x8x4xf32> to vector<2x1x4xf32>
    %10 = vector.shape_cast %9 : vector<2x1x4xf32> to vector<2x4xf32>
    %11 = vector.extract_strided_slice %0 {offsets = [0, 5, 0], sizes = [2, 1, 4], strides = [1, 1, 1]} : vector<2x8x4xf32> to vector<2x1x4xf32>
    %12 = vector.shape_cast %11 : vector<2x1x4xf32> to vector<2x4xf32>
    %13 = vector.extract_strided_slice %0 {offsets = [0, 6, 0], sizes = [2, 1, 4], strides = [1, 1, 1]} : vector<2x8x4xf32> to vector<2x1x4xf32>
    %14 = vector.shape_cast %13 : vector<2x1x4xf32> to vector<2x4xf32>
    %15 = vector.extract_strided_slice %0 {offsets = [0, 7, 0], sizes = [2, 1, 4], strides = [1, 1, 1]} : vector<2x8x4xf32> to vector<2x1x4xf32>
    %16 = vector.shape_cast %15 : vector<2x1x4xf32> to vector<2x4xf32>
    %c0_2 = arith.constant 0 : index
    %c0_3 = arith.constant 0 : index
    %17 = vector.load %arg1[%c0_2, %c0_3] : memref<4x128xf32, #tpu.memory_space<vmem>>, vector<4x128xf32>
    %c0_4 = arith.constant 0 : index
    %c0_5 = arith.constant 0 : index
    %18 = vector.load %arg2[%c0_4, %c0_5] : memref<32x128xf32, #tpu.memory_space<vmem>>, vector<32x128xf32>
    %c0_6 = arith.constant 0 : index
    %c0_7 = arith.constant 0 : index
    %19 = vector.load %arg3[%c0_6, %c0_7] : memref<1x128xf32, #tpu.memory_space<vmem>>, vector<1x128xf32>
    %cst = arith.constant dense<0.000000e+00> : vector<2x128xf32>
    %20 = tpu.matmul %2, %17, %cst {dimension_numbers = #tpu.dot_dimension_numbers<[1], [0], [0], [1], [0, 0, 1, 1], [], []>, precision = #tpu.contract_precision<fp32>} : vector<2x4xf32>, vector<4x128xf32>, vector<2x128xf32> -> vector<2x128xf32>
    %21 = vector.broadcast %19 : vector<1x128xf32> to vector<2x128xf32>
    %22 = arith.addf %20, %21 : vector<2x128xf32>
    %cst_8 = arith.constant dense<0.000000e+00> : vector<2x128xf32>
    %23 = tpu.matmul %4, %17, %cst_8 {dimension_numbers = #tpu.dot_dimension_numbers<[1], [0], [0], [1], [0, 0, 1, 1], [], []>, precision = #tpu.contract_precision<fp32>} : vector<2x4xf32>, vector<4x128xf32>, vector<2x128xf32> -> vector<2x128xf32>
    %24 = vector.broadcast %19 : vector<1x128xf32> to vector<2x128xf32>
    %25 = arith.addf %23, %24 : vector<2x128xf32>
    %cst_9 = arith.constant dense<0.000000e+00> : vector<2x128xf32>
    %26 = tpu.matmul %6, %17, %cst_9 {dimension_numbers = #tpu.dot_dimension_numbers<[1], [0], [0], [1], [0, 0, 1, 1], [], []>, precision = #tpu.contract_precision<fp32>} : vector<2x4xf32>, vector<4x128xf32>, vector<2x128xf32> -> vector<2x128xf32>
    %27 = vector.broadcast %19 : vector<1x128xf32> to vector<2x128xf32>
    %28 = arith.addf %26, %27 : vector<2x128xf32>
    %cst_10 = arith.constant dense<0.000000e+00> : vector<2x128xf32>
    %29 = tpu.matmul %8, %17, %cst_10 {dimension_numbers = #tpu.dot_dimension_numbers<[1], [0], [0], [1], [0, 0, 1, 1], [], []>, precision = #tpu.contract_precision<fp32>} : vector<2x4xf32>, vector<4x128xf32>, vector<2x128xf32> -> vector<2x128xf32>
    %30 = vector.broadcast %19 : vector<1x128xf32> to vector<2x128xf32>
    %31 = arith.addf %29, %30 : vector<2x128xf32>
    %cst_11 = arith.constant dense<0.000000e+00> : vector<2x128xf32>
    %32 = tpu.matmul %10, %17, %cst_11 {dimension_numbers = #tpu.dot_dimension_numbers<[1], [0], [0], [1], [0, 0, 1, 1], [], []>, precision = #tpu.contract_precision<fp32>} : vector<2x4xf32>, vector<4x128xf32>, vector<2x128xf32> -> vector<2x128xf32>
    %33 = vector.broadcast %19 : vector<1x128xf32> to vector<2x128xf32>
    %34 = arith.addf %32, %33 : vector<2x128xf32>
    %cst_12 = arith.constant dense<0.000000e+00> : vector<2x128xf32>
    %35 = tpu.matmul %12, %17, %cst_12 {dimension_numbers = #tpu.dot_dimension_numbers<[1], [0], [0], [1], [0, 0, 1, 1], [], []>, precision = #tpu.contract_precision<fp32>} : vector<2x4xf32>, vector<4x128xf32>, vector<2x128xf32> -> vector<2x128xf32>
    %36 = vector.broadcast %19 : vector<1x128xf32> to vector<2x128xf32>
    %37 = arith.addf %35, %36 : vector<2x128xf32>
    %cst_13 = arith.constant dense<0.000000e+00> : vector<2x128xf32>
    %38 = tpu.matmul %14, %17, %cst_13 {dimension_numbers = #tpu.dot_dimension_numbers<[1], [0], [0], [1], [0, 0, 1, 1], [], []>, precision = #tpu.contract_precision<fp32>} : vector<2x4xf32>, vector<4x128xf32>, vector<2x128xf32> -> vector<2x128xf32>
    %39 = vector.broadcast %19 : vector<1x128xf32> to vector<2x128xf32>
    %40 = arith.addf %38, %39 : vector<2x128xf32>
    %cst_14 = arith.constant dense<0.000000e+00> : vector<2x128xf32>
    %41 = tpu.matmul %16, %17, %cst_14 {dimension_numbers = #tpu.dot_dimension_numbers<[1], [0], [0], [1], [0, 0, 1, 1], [], []>, precision = #tpu.contract_precision<fp32>} : vector<2x4xf32>, vector<4x128xf32>, vector<2x128xf32> -> vector<2x128xf32>
    %42 = vector.broadcast %19 : vector<1x128xf32> to vector<2x128xf32>
    %43 = arith.addf %41, %42 : vector<2x128xf32>
    %cst_15 = arith.constant 0.000000e+00 : f32
    %44 = vector.broadcast %cst_15 : f32 to vector<2x32xf32>
    %cst_16 = arith.constant 0.000000e+00 : f32
    %45 = vector.broadcast %cst_16 : f32 to vector<2x32xf32>
    %cst_17 = arith.constant dense<0.000000e+00> : vector<2x128xf32>
    %46 = tpu.matmul %44, %18, %cst_17 {dimension_numbers = #tpu.dot_dimension_numbers<[1], [0], [0], [1], [0, 0, 1, 1], [], []>, precision = #tpu.contract_precision<fp32>} : vector<2x32xf32>, vector<32x128xf32>, vector<2x128xf32> -> vector<2x128xf32>
    %47 = arith.addf %22, %46 : vector<2x128xf32>
    %48 = arith.negf %47 : vector<2x128xf32>
    %49 = math.exp %48 : vector<2x128xf32>
    %cst_18 = arith.constant 1.000000e+00 : f32
    %50 = vector.broadcast %cst_18 : f32 to vector<2x128xf32>
    %51 = arith.addf %50, %49 : vector<2x128xf32>
    %52 = arith.divf %50, %51 : vector<2x128xf32>
    %53 = math.tanh %47 : vector<2x128xf32>
    %54 = vector.extract_strided_slice %52 {offsets = [0, 0], sizes = [2, 32], strides = [1, 1]} : vector<2x128xf32> to vector<2x32xf32>
    %55 = vector.extract_strided_slice %52 {offsets = [0, 32], sizes = [2, 32], strides = [1, 1]} : vector<2x128xf32> to vector<2x32xf32>
    %56 = vector.extract_strided_slice %53 {offsets = [0, 64], sizes = [2, 32], strides = [1, 1]} : vector<2x128xf32> to vector<2x32xf32>
    %57 = vector.extract_strided_slice %52 {offsets = [0, 96], sizes = [2, 32], strides = [1, 1]} : vector<2x128xf32> to vector<2x32xf32>
    %58 = arith.mulf %55, %45 : vector<2x32xf32>
    %59 = arith.mulf %54, %56 : vector<2x32xf32>
    %60 = arith.addf %58, %59 : vector<2x32xf32>
    %61 = math.tanh %60 : vector<2x32xf32>
    %62 = arith.mulf %57, %61 : vector<2x32xf32>
    %cst_19 = arith.constant dense<0.000000e+00> : vector<2x128xf32>
    %63 = tpu.matmul %62, %18, %cst_19 {dimension_numbers = #tpu.dot_dimension_numbers<[1], [0], [0], [1], [0, 0, 1, 1], [], []>, precision = #tpu.contract_precision<fp32>} : vector<2x32xf32>, vector<32x128xf32>, vector<2x128xf32> -> vector<2x128xf32>
    %64 = arith.addf %25, %63 : vector<2x128xf32>
    %65 = arith.negf %64 : vector<2x128xf32>
    %66 = math.exp %65 : vector<2x128xf32>
    %cst_20 = arith.constant 1.000000e+00 : f32
    %67 = vector.broadcast %cst_20 : f32 to vector<2x128xf32>
    %68 = arith.addf %67, %66 : vector<2x128xf32>
    %69 = arith.divf %67, %68 : vector<2x128xf32>
    %70 = math.tanh %64 : vector<2x128xf32>
    %71 = vector.extract_strided_slice %69 {offsets = [0, 0], sizes = [2, 32], strides = [1, 1]} : vector<2x128xf32> to vector<2x32xf32>
    %72 = vector.extract_strided_slice %69 {offsets = [0, 32], sizes = [2, 32], strides = [1, 1]} : vector<2x128xf32> to vector<2x32xf32>
    %73 = vector.extract_strided_slice %70 {offsets = [0, 64], sizes = [2, 32], strides = [1, 1]} : vector<2x128xf32> to vector<2x32xf32>
    %74 = vector.extract_strided_slice %69 {offsets = [0, 96], sizes = [2, 32], strides = [1, 1]} : vector<2x128xf32> to vector<2x32xf32>
    %75 = arith.mulf %72, %60 : vector<2x32xf32>
    %76 = arith.mulf %71, %73 : vector<2x32xf32>
    %77 = arith.addf %75, %76 : vector<2x32xf32>
    %78 = math.tanh %77 : vector<2x32xf32>
    %79 = arith.mulf %74, %78 : vector<2x32xf32>
    %cst_21 = arith.constant dense<0.000000e+00> : vector<2x128xf32>
    %80 = tpu.matmul %79, %18, %cst_21 {dimension_numbers = #tpu.dot_dimension_numbers<[1], [0], [0], [1], [0, 0, 1, 1], [], []>, precision = #tpu.contract_precision<fp32>} : vector<2x32xf32>, vector<32x128xf32>, vector<2x128xf32> -> vector<2x128xf32>
    %81 = arith.addf %28, %80 : vector<2x128xf32>
    %82 = arith.negf %81 : vector<2x128xf32>
    %83 = math.exp %82 : vector<2x128xf32>
    %cst_22 = arith.constant 1.000000e+00 : f32
    %84 = vector.broadcast %cst_22 : f32 to vector<2x128xf32>
    %85 = arith.addf %84, %83 : vector<2x128xf32>
    %86 = arith.divf %84, %85 : vector<2x128xf32>
    %87 = math.tanh %81 : vector<2x128xf32>
    %88 = vector.extract_strided_slice %86 {offsets = [0, 0], sizes = [2, 32], strides = [1, 1]} : vector<2x128xf32> to vector<2x32xf32>
    %89 = vector.extract_strided_slice %86 {offsets = [0, 32], sizes = [2, 32], strides = [1, 1]} : vector<2x128xf32> to vector<2x32xf32>
    %90 = vector.extract_strided_slice %87 {offsets = [0, 64], sizes = [2, 32], strides = [1, 1]} : vector<2x128xf32> to vector<2x32xf32>
    %91 = vector.extract_strided_slice %86 {offsets = [0, 96], sizes = [2, 32], strides = [1, 1]} : vector<2x128xf32> to vector<2x32xf32>
    %92 = arith.mulf %89, %77 : vector<2x32xf32>
    %93 = arith.mulf %88, %90 : vector<2x32xf32>
    %94 = arith.addf %92, %93 : vector<2x32xf32>
    %95 = math.tanh %94 : vector<2x32xf32>
    %96 = arith.mulf %91, %95 : vector<2x32xf32>
    %cst_23 = arith.constant dense<0.000000e+00> : vector<2x128xf32>
    %97 = tpu.matmul %96, %18, %cst_23 {dimension_numbers = #tpu.dot_dimension_numbers<[1], [0], [0], [1], [0, 0, 1, 1], [], []>, precision = #tpu.contract_precision<fp32>} : vector<2x32xf32>, vector<32x128xf32>, vector<2x128xf32> -> vector<2x128xf32>
    %98 = arith.addf %31, %97 : vector<2x128xf32>
    %99 = arith.negf %98 : vector<2x128xf32>
    %100 = math.exp %99 : vector<2x128xf32>
    %cst_24 = arith.constant 1.000000e+00 : f32
    %101 = vector.broadcast %cst_24 : f32 to vector<2x128xf32>
    %102 = arith.addf %101, %100 : vector<2x128xf32>
    %103 = arith.divf %101, %102 : vector<2x128xf32>
    %104 = math.tanh %98 : vector<2x128xf32>
    %105 = vector.extract_strided_slice %103 {offsets = [0, 0], sizes = [2, 32], strides = [1, 1]} : vector<2x128xf32> to vector<2x32xf32>
    %106 = vector.extract_strided_slice %103 {offsets = [0, 32], sizes = [2, 32], strides = [1, 1]} : vector<2x128xf32> to vector<2x32xf32>
    %107 = vector.extract_strided_slice %104 {offsets = [0, 64], sizes = [2, 32], strides = [1, 1]} : vector<2x128xf32> to vector<2x32xf32>
    %108 = vector.extract_strided_slice %103 {offsets = [0, 96], sizes = [2, 32], strides = [1, 1]} : vector<2x128xf32> to vector<2x32xf32>
    %109 = arith.mulf %106, %94 : vector<2x32xf32>
    %110 = arith.mulf %105, %107 : vector<2x32xf32>
    %111 = arith.addf %109, %110 : vector<2x32xf32>
    %112 = math.tanh %111 : vector<2x32xf32>
    %113 = arith.mulf %108, %112 : vector<2x32xf32>
    %cst_25 = arith.constant dense<0.000000e+00> : vector<2x128xf32>
    %114 = tpu.matmul %113, %18, %cst_25 {dimension_numbers = #tpu.dot_dimension_numbers<[1], [0], [0], [1], [0, 0, 1, 1], [], []>, precision = #tpu.contract_precision<fp32>} : vector<2x32xf32>, vector<32x128xf32>, vector<2x128xf32> -> vector<2x128xf32>
    %115 = arith.addf %34, %114 : vector<2x128xf32>
    %116 = arith.negf %115 : vector<2x128xf32>
    %117 = math.exp %116 : vector<2x128xf32>
    %cst_26 = arith.constant 1.000000e+00 : f32
    %118 = vector.broadcast %cst_26 : f32 to vector<2x128xf32>
    %119 = arith.addf %118, %117 : vector<2x128xf32>
    %120 = arith.divf %118, %119 : vector<2x128xf32>
    %121 = math.tanh %115 : vector<2x128xf32>
    %122 = vector.extract_strided_slice %120 {offsets = [0, 0], sizes = [2, 32], strides = [1, 1]} : vector<2x128xf32> to vector<2x32xf32>
    %123 = vector.extract_strided_slice %120 {offsets = [0, 32], sizes = [2, 32], strides = [1, 1]} : vector<2x128xf32> to vector<2x32xf32>
    %124 = vector.extract_strided_slice %121 {offsets = [0, 64], sizes = [2, 32], strides = [1, 1]} : vector<2x128xf32> to vector<2x32xf32>
    %125 = vector.extract_strided_slice %120 {offsets = [0, 96], sizes = [2, 32], strides = [1, 1]} : vector<2x128xf32> to vector<2x32xf32>
    %126 = arith.mulf %123, %111 : vector<2x32xf32>
    %127 = arith.mulf %122, %124 : vector<2x32xf32>
    %128 = arith.addf %126, %127 : vector<2x32xf32>
    %129 = math.tanh %128 : vector<2x32xf32>
    %130 = arith.mulf %125, %129 : vector<2x32xf32>
    %cst_27 = arith.constant dense<0.000000e+00> : vector<2x128xf32>
    %131 = tpu.matmul %130, %18, %cst_27 {dimension_numbers = #tpu.dot_dimension_numbers<[1], [0], [0], [1], [0, 0, 1, 1], [], []>, precision = #tpu.contract_precision<fp32>} : vector<2x32xf32>, vector<32x128xf32>, vector<2x128xf32> -> vector<2x128xf32>
    %132 = arith.addf %37, %131 : vector<2x128xf32>
    %133 = arith.negf %132 : vector<2x128xf32>
    %134 = math.exp %133 : vector<2x128xf32>
    %cst_28 = arith.constant 1.000000e+00 : f32
    %135 = vector.broadcast %cst_28 : f32 to vector<2x128xf32>
    %136 = arith.addf %135, %134 : vector<2x128xf32>
    %137 = arith.divf %135, %136 : vector<2x128xf32>
    %138 = math.tanh %132 : vector<2x128xf32>
    %139 = vector.extract_strided_slice %137 {offsets = [0, 0], sizes = [2, 32], strides = [1, 1]} : vector<2x128xf32> to vector<2x32xf32>
    %140 = vector.extract_strided_slice %137 {offsets = [0, 32], sizes = [2, 32], strides = [1, 1]} : vector<2x128xf32> to vector<2x32xf32>
    %141 = vector.extract_strided_slice %138 {offsets = [0, 64], sizes = [2, 32], strides = [1, 1]} : vector<2x128xf32> to vector<2x32xf32>
    %142 = vector.extract_strided_slice %137 {offsets = [0, 96], sizes = [2, 32], strides = [1, 1]} : vector<2x128xf32> to vector<2x32xf32>
    %143 = arith.mulf %140, %128 : vector<2x32xf32>
    %144 = arith.mulf %139, %141 : vector<2x32xf32>
    %145 = arith.addf %143, %144 : vector<2x32xf32>
    %146 = math.tanh %145 : vector<2x32xf32>
    %147 = arith.mulf %142, %146 : vector<2x32xf32>
    %cst_29 = arith.constant dense<0.000000e+00> : vector<2x128xf32>
    %148 = tpu.matmul %147, %18, %cst_29 {dimension_numbers = #tpu.dot_dimension_numbers<[1], [0], [0], [1], [0, 0, 1, 1], [], []>, precision = #tpu.contract_precision<fp32>} : vector<2x32xf32>, vector<32x128xf32>, vector<2x128xf32> -> vector<2x128xf32>
    %149 = arith.addf %40, %148 : vector<2x128xf32>
    %150 = arith.negf %149 : vector<2x128xf32>
    %151 = math.exp %150 : vector<2x128xf32>
    %cst_30 = arith.constant 1.000000e+00 : f32
    %152 = vector.broadcast %cst_30 : f32 to vector<2x128xf32>
    %153 = arith.addf %152, %151 : vector<2x128xf32>
    %154 = arith.divf %152, %153 : vector<2x128xf32>
    %155 = math.tanh %149 : vector<2x128xf32>
    %156 = vector.extract_strided_slice %154 {offsets = [0, 0], sizes = [2, 32], strides = [1, 1]} : vector<2x128xf32> to vector<2x32xf32>
    %157 = vector.extract_strided_slice %154 {offsets = [0, 32], sizes = [2, 32], strides = [1, 1]} : vector<2x128xf32> to vector<2x32xf32>
    %158 = vector.extract_strided_slice %155 {offsets = [0, 64], sizes = [2, 32], strides = [1, 1]} : vector<2x128xf32> to vector<2x32xf32>
    %159 = vector.extract_strided_slice %154 {offsets = [0, 96], sizes = [2, 32], strides = [1, 1]} : vector<2x128xf32> to vector<2x32xf32>
    %160 = arith.mulf %157, %145 : vector<2x32xf32>
    %161 = arith.mulf %156, %158 : vector<2x32xf32>
    %162 = arith.addf %160, %161 : vector<2x32xf32>
    %163 = math.tanh %162 : vector<2x32xf32>
    %164 = arith.mulf %159, %163 : vector<2x32xf32>
    %cst_31 = arith.constant dense<0.000000e+00> : vector<2x128xf32>
    %165 = tpu.matmul %164, %18, %cst_31 {dimension_numbers = #tpu.dot_dimension_numbers<[1], [0], [0], [1], [0, 0, 1, 1], [], []>, precision = #tpu.contract_precision<fp32>} : vector<2x32xf32>, vector<32x128xf32>, vector<2x128xf32> -> vector<2x128xf32>
    %166 = arith.addf %43, %165 : vector<2x128xf32>
    %167 = arith.negf %166 : vector<2x128xf32>
    %168 = math.exp %167 : vector<2x128xf32>
    %cst_32 = arith.constant 1.000000e+00 : f32
    %169 = vector.broadcast %cst_32 : f32 to vector<2x128xf32>
    %170 = arith.addf %169, %168 : vector<2x128xf32>
    %171 = arith.divf %169, %170 : vector<2x128xf32>
    %172 = math.tanh %166 : vector<2x128xf32>
    %173 = vector.extract_strided_slice %171 {offsets = [0, 0], sizes = [2, 32], strides = [1, 1]} : vector<2x128xf32> to vector<2x32xf32>
    %174 = vector.extract_strided_slice %171 {offsets = [0, 32], sizes = [2, 32], strides = [1, 1]} : vector<2x128xf32> to vector<2x32xf32>
    %175 = vector.extract_strided_slice %172 {offsets = [0, 64], sizes = [2, 32], strides = [1, 1]} : vector<2x128xf32> to vector<2x32xf32>
    %176 = vector.extract_strided_slice %171 {offsets = [0, 96], sizes = [2, 32], strides = [1, 1]} : vector<2x128xf32> to vector<2x32xf32>
    %177 = arith.mulf %174, %162 : vector<2x32xf32>
    %178 = arith.mulf %173, %175 : vector<2x32xf32>
    %179 = arith.addf %177, %178 : vector<2x32xf32>
    %180 = math.tanh %179 : vector<2x32xf32>
    %181 = arith.mulf %176, %180 : vector<2x32xf32>
    %c0_33 = arith.constant 0 : index
    %c0_34 = arith.constant 0 : index
    %182 = vector.load %arg4[%c0_33, %c0_34] : memref<32x128xf32, #tpu.memory_space<vmem>>, vector<32x128xf32>
    %c0_35 = arith.constant 0 : index
    %c0_36 = arith.constant 0 : index
    %183 = vector.load %arg5[%c0_35, %c0_36] : memref<32x128xf32, #tpu.memory_space<vmem>>, vector<32x128xf32>
    %c0_37 = arith.constant 0 : index
    %c0_38 = arith.constant 0 : index
    %184 = vector.load %arg6[%c0_37, %c0_38] : memref<1x128xf32, #tpu.memory_space<vmem>>, vector<1x128xf32>
    %cst_39 = arith.constant dense<0.000000e+00> : vector<2x128xf32>
    %185 = tpu.matmul %62, %182, %cst_39 {dimension_numbers = #tpu.dot_dimension_numbers<[1], [0], [0], [1], [0, 0, 1, 1], [], []>, precision = #tpu.contract_precision<fp32>} : vector<2x32xf32>, vector<32x128xf32>, vector<2x128xf32> -> vector<2x128xf32>
    %186 = vector.broadcast %184 : vector<1x128xf32> to vector<2x128xf32>
    %187 = arith.addf %185, %186 : vector<2x128xf32>
    %cst_40 = arith.constant dense<0.000000e+00> : vector<2x128xf32>
    %188 = tpu.matmul %79, %182, %cst_40 {dimension_numbers = #tpu.dot_dimension_numbers<[1], [0], [0], [1], [0, 0, 1, 1], [], []>, precision = #tpu.contract_precision<fp32>} : vector<2x32xf32>, vector<32x128xf32>, vector<2x128xf32> -> vector<2x128xf32>
    %189 = vector.broadcast %184 : vector<1x128xf32> to vector<2x128xf32>
    %190 = arith.addf %188, %189 : vector<2x128xf32>
    %cst_41 = arith.constant dense<0.000000e+00> : vector<2x128xf32>
    %191 = tpu.matmul %96, %182, %cst_41 {dimension_numbers = #tpu.dot_dimension_numbers<[1], [0], [0], [1], [0, 0, 1, 1], [], []>, precision = #tpu.contract_precision<fp32>} : vector<2x32xf32>, vector<32x128xf32>, vector<2x128xf32> -> vector<2x128xf32>
    %192 = vector.broadcast %184 : vector<1x128xf32> to vector<2x128xf32>
    %193 = arith.addf %191, %192 : vector<2x128xf32>
    %cst_42 = arith.constant dense<0.000000e+00> : vector<2x128xf32>
    %194 = tpu.matmul %113, %182, %cst_42 {dimension_numbers = #tpu.dot_dimension_numbers<[1], [0], [0], [1], [0, 0, 1, 1], [], []>, precision = #tpu.contract_precision<fp32>} : vector<2x32xf32>, vector<32x128xf32>, vector<2x128xf32> -> vector<2x128xf32>
    %195 = vector.broadcast %184 : vector<1x128xf32> to vector<2x128xf32>
    %196 = arith.addf %194, %195 : vector<2x128xf32>
    %cst_43 = arith.constant dense<0.000000e+00> : vector<2x128xf32>
    %197 = tpu.matmul %130, %182, %cst_43 {dimension_numbers = #tpu.dot_dimension_numbers<[1], [0], [0], [1], [0, 0, 1, 1], [], []>, precision = #tpu.contract_precision<fp32>} : vector<2x32xf32>, vector<32x128xf32>, vector<2x128xf32> -> vector<2x128xf32>
    %198 = vector.broadcast %184 : vector<1x128xf32> to vector<2x128xf32>
    %199 = arith.addf %197, %198 : vector<2x128xf32>
    %cst_44 = arith.constant dense<0.000000e+00> : vector<2x128xf32>
    %200 = tpu.matmul %147, %182, %cst_44 {dimension_numbers = #tpu.dot_dimension_numbers<[1], [0], [0], [1], [0, 0, 1, 1], [], []>, precision = #tpu.contract_precision<fp32>} : vector<2x32xf32>, vector<32x128xf32>, vector<2x128xf32> -> vector<2x128xf32>
    %201 = vector.broadcast %184 : vector<1x128xf32> to vector<2x128xf32>
    %202 = arith.addf %200, %201 : vector<2x128xf32>
    %cst_45 = arith.constant dense<0.000000e+00> : vector<2x128xf32>
    %203 = tpu.matmul %164, %182, %cst_45 {dimension_numbers = #tpu.dot_dimension_numbers<[1], [0], [0], [1], [0, 0, 1, 1], [], []>, precision = #tpu.contract_precision<fp32>} : vector<2x32xf32>, vector<32x128xf32>, vector<2x128xf32> -> vector<2x128xf32>
    %204 = vector.broadcast %184 : vector<1x128xf32> to vector<2x128xf32>
    %205 = arith.addf %203, %204 : vector<2x128xf32>
    %cst_46 = arith.constant dense<0.000000e+00> : vector<2x128xf32>
    %206 = tpu.matmul %181, %182, %cst_46 {dimension_numbers = #tpu.dot_dimension_numbers<[1], [0], [0], [1], [0, 0, 1, 1], [], []>, precision = #tpu.contract_precision<fp32>} : vector<2x32xf32>, vector<32x128xf32>, vector<2x128xf32> -> vector<2x128xf32>
    %207 = vector.broadcast %184 : vector<1x128xf32> to vector<2x128xf32>
    %208 = arith.addf %206, %207 : vector<2x128xf32>
    %cst_47 = arith.constant 0.000000e+00 : f32
    %209 = vector.broadcast %cst_47 : f32 to vector<2x32xf32>
    %cst_48 = arith.constant 0.000000e+00 : f32
    %210 = vector.broadcast %cst_48 : f32 to vector<2x32xf32>
    %cst_49 = arith.constant dense<0.000000e+00> : vector<2x128xf32>
    %211 = tpu.matmul %209, %183, %cst_49 {dimension_numbers = #tpu.dot_dimension_numbers<[1], [0], [0], [1], [0, 0, 1, 1], [], []>, precision = #tpu.contract_precision<fp32>} : vector<2x32xf32>, vector<32x128xf32>, vector<2x128xf32> -> vector<2x128xf32>
    %212 = arith.addf %187, %211 : vector<2x128xf32>
    %213 = arith.negf %212 : vector<2x128xf32>
    %214 = math.exp %213 : vector<2x128xf32>
    %cst_50 = arith.constant 1.000000e+00 : f32
    %215 = vector.broadcast %cst_50 : f32 to vector<2x128xf32>
    %216 = arith.addf %215, %214 : vector<2x128xf32>
    %217 = arith.divf %215, %216 : vector<2x128xf32>
    %218 = math.tanh %212 : vector<2x128xf32>
    %219 = vector.extract_strided_slice %217 {offsets = [0, 0], sizes = [2, 32], strides = [1, 1]} : vector<2x128xf32> to vector<2x32xf32>
    %220 = vector.extract_strided_slice %217 {offsets = [0, 32], sizes = [2, 32], strides = [1, 1]} : vector<2x128xf32> to vector<2x32xf32>
    %221 = vector.extract_strided_slice %218 {offsets = [0, 64], sizes = [2, 32], strides = [1, 1]} : vector<2x128xf32> to vector<2x32xf32>
    %222 = vector.extract_strided_slice %217 {offsets = [0, 96], sizes = [2, 32], strides = [1, 1]} : vector<2x128xf32> to vector<2x32xf32>
    %223 = arith.mulf %220, %210 : vector<2x32xf32>
    %224 = arith.mulf %219, %221 : vector<2x32xf32>
    %225 = arith.addf %223, %224 : vector<2x32xf32>
    %226 = math.tanh %225 : vector<2x32xf32>
    %227 = arith.mulf %222, %226 : vector<2x32xf32>
    %cst_51 = arith.constant dense<0.000000e+00> : vector<2x128xf32>
    %228 = tpu.matmul %227, %183, %cst_51 {dimension_numbers = #tpu.dot_dimension_numbers<[1], [0], [0], [1], [0, 0, 1, 1], [], []>, precision = #tpu.contract_precision<fp32>} : vector<2x32xf32>, vector<32x128xf32>, vector<2x128xf32> -> vector<2x128xf32>
    %229 = arith.addf %190, %228 : vector<2x128xf32>
    %230 = arith.negf %229 : vector<2x128xf32>
    %231 = math.exp %230 : vector<2x128xf32>
    %cst_52 = arith.constant 1.000000e+00 : f32
    %232 = vector.broadcast %cst_52 : f32 to vector<2x128xf32>
    %233 = arith.addf %232, %231 : vector<2x128xf32>
    %234 = arith.divf %232, %233 : vector<2x128xf32>
    %235 = math.tanh %229 : vector<2x128xf32>
    %236 = vector.extract_strided_slice %234 {offsets = [0, 0], sizes = [2, 32], strides = [1, 1]} : vector<2x128xf32> to vector<2x32xf32>
    %237 = vector.extract_strided_slice %234 {offsets = [0, 32], sizes = [2, 32], strides = [1, 1]} : vector<2x128xf32> to vector<2x32xf32>
    %238 = vector.extract_strided_slice %235 {offsets = [0, 64], sizes = [2, 32], strides = [1, 1]} : vector<2x128xf32> to vector<2x32xf32>
    %239 = vector.extract_strided_slice %234 {offsets = [0, 96], sizes = [2, 32], strides = [1, 1]} : vector<2x128xf32> to vector<2x32xf32>
    %240 = arith.mulf %237, %225 : vector<2x32xf32>
    %241 = arith.mulf %236, %238 : vector<2x32xf32>
    %242 = arith.addf %240, %241 : vector<2x32xf32>
    %243 = math.tanh %242 : vector<2x32xf32>
    %244 = arith.mulf %239, %243 : vector<2x32xf32>
    %cst_53 = arith.constant dense<0.000000e+00> : vector<2x128xf32>
    %245 = tpu.matmul %244, %183, %cst_53 {dimension_numbers = #tpu.dot_dimension_numbers<[1], [0], [0], [1], [0, 0, 1, 1], [], []>, precision = #tpu.contract_precision<fp32>} : vector<2x32xf32>, vector<32x128xf32>, vector<2x128xf32> -> vector<2x128xf32>
    %246 = arith.addf %193, %245 : vector<2x128xf32>
    %247 = arith.negf %246 : vector<2x128xf32>
    %248 = math.exp %247 : vector<2x128xf32>
    %cst_54 = arith.constant 1.000000e+00 : f32
    %249 = vector.broadcast %cst_54 : f32 to vector<2x128xf32>
    %250 = arith.addf %249, %248 : vector<2x128xf32>
    %251 = arith.divf %249, %250 : vector<2x128xf32>
    %252 = math.tanh %246 : vector<2x128xf32>
    %253 = vector.extract_strided_slice %251 {offsets = [0, 0], sizes = [2, 32], strides = [1, 1]} : vector<2x128xf32> to vector<2x32xf32>
    %254 = vector.extract_strided_slice %251 {offsets = [0, 32], sizes = [2, 32], strides = [1, 1]} : vector<2x128xf32> to vector<2x32xf32>
    %255 = vector.extract_strided_slice %252 {offsets = [0, 64], sizes = [2, 32], strides = [1, 1]} : vector<2x128xf32> to vector<2x32xf32>
    %256 = vector.extract_strided_slice %251 {offsets = [0, 96], sizes = [2, 32], strides = [1, 1]} : vector<2x128xf32> to vector<2x32xf32>
    %257 = arith.mulf %254, %242 : vector<2x32xf32>
    %258 = arith.mulf %253, %255 : vector<2x32xf32>
    %259 = arith.addf %257, %258 : vector<2x32xf32>
    %260 = math.tanh %259 : vector<2x32xf32>
    %261 = arith.mulf %256, %260 : vector<2x32xf32>
    %cst_55 = arith.constant dense<0.000000e+00> : vector<2x128xf32>
    %262 = tpu.matmul %261, %183, %cst_55 {dimension_numbers = #tpu.dot_dimension_numbers<[1], [0], [0], [1], [0, 0, 1, 1], [], []>, precision = #tpu.contract_precision<fp32>} : vector<2x32xf32>, vector<32x128xf32>, vector<2x128xf32> -> vector<2x128xf32>
    %263 = arith.addf %196, %262 : vector<2x128xf32>
    %264 = arith.negf %263 : vector<2x128xf32>
    %265 = math.exp %264 : vector<2x128xf32>
    %cst_56 = arith.constant 1.000000e+00 : f32
    %266 = vector.broadcast %cst_56 : f32 to vector<2x128xf32>
    %267 = arith.addf %266, %265 : vector<2x128xf32>
    %268 = arith.divf %266, %267 : vector<2x128xf32>
    %269 = math.tanh %263 : vector<2x128xf32>
    %270 = vector.extract_strided_slice %268 {offsets = [0, 0], sizes = [2, 32], strides = [1, 1]} : vector<2x128xf32> to vector<2x32xf32>
    %271 = vector.extract_strided_slice %268 {offsets = [0, 32], sizes = [2, 32], strides = [1, 1]} : vector<2x128xf32> to vector<2x32xf32>
    %272 = vector.extract_strided_slice %269 {offsets = [0, 64], sizes = [2, 32], strides = [1, 1]} : vector<2x128xf32> to vector<2x32xf32>
    %273 = vector.extract_strided_slice %268 {offsets = [0, 96], sizes = [2, 32], strides = [1, 1]} : vector<2x128xf32> to vector<2x32xf32>
    %274 = arith.mulf %271, %259 : vector<2x32xf32>
    %275 = arith.mulf %270, %272 : vector<2x32xf32>
    %276 = arith.addf %274, %275 : vector<2x32xf32>
    %277 = math.tanh %276 : vector<2x32xf32>
    %278 = arith.mulf %273, %277 : vector<2x32xf32>
    %cst_57 = arith.constant dense<0.000000e+00> : vector<2x128xf32>
    %279 = tpu.matmul %278, %183, %cst_57 {dimension_numbers = #tpu.dot_dimension_numbers<[1], [0], [0], [1], [0, 0, 1, 1], [], []>, precision = #tpu.contract_precision<fp32>} : vector<2x32xf32>, vector<32x128xf32>, vector<2x128xf32> -> vector<2x128xf32>
    %280 = arith.addf %199, %279 : vector<2x128xf32>
    %281 = arith.negf %280 : vector<2x128xf32>
    %282 = math.exp %281 : vector<2x128xf32>
    %cst_58 = arith.constant 1.000000e+00 : f32
    %283 = vector.broadcast %cst_58 : f32 to vector<2x128xf32>
    %284 = arith.addf %283, %282 : vector<2x128xf32>
    %285 = arith.divf %283, %284 : vector<2x128xf32>
    %286 = math.tanh %280 : vector<2x128xf32>
    %287 = vector.extract_strided_slice %285 {offsets = [0, 0], sizes = [2, 32], strides = [1, 1]} : vector<2x128xf32> to vector<2x32xf32>
    %288 = vector.extract_strided_slice %285 {offsets = [0, 32], sizes = [2, 32], strides = [1, 1]} : vector<2x128xf32> to vector<2x32xf32>
    %289 = vector.extract_strided_slice %286 {offsets = [0, 64], sizes = [2, 32], strides = [1, 1]} : vector<2x128xf32> to vector<2x32xf32>
    %290 = vector.extract_strided_slice %285 {offsets = [0, 96], sizes = [2, 32], strides = [1, 1]} : vector<2x128xf32> to vector<2x32xf32>
    %291 = arith.mulf %288, %276 : vector<2x32xf32>
    %292 = arith.mulf %287, %289 : vector<2x32xf32>
    %293 = arith.addf %291, %292 : vector<2x32xf32>
    %294 = math.tanh %293 : vector<2x32xf32>
    %295 = arith.mulf %290, %294 : vector<2x32xf32>
    %cst_59 = arith.constant dense<0.000000e+00> : vector<2x128xf32>
    %296 = tpu.matmul %295, %183, %cst_59 {dimension_numbers = #tpu.dot_dimension_numbers<[1], [0], [0], [1], [0, 0, 1, 1], [], []>, precision = #tpu.contract_precision<fp32>} : vector<2x32xf32>, vector<32x128xf32>, vector<2x128xf32> -> vector<2x128xf32>
    %297 = arith.addf %202, %296 : vector<2x128xf32>
    %298 = arith.negf %297 : vector<2x128xf32>
    %299 = math.exp %298 : vector<2x128xf32>
    %cst_60 = arith.constant 1.000000e+00 : f32
    %300 = vector.broadcast %cst_60 : f32 to vector<2x128xf32>
    %301 = arith.addf %300, %299 : vector<2x128xf32>
    %302 = arith.divf %300, %301 : vector<2x128xf32>
    %303 = math.tanh %297 : vector<2x128xf32>
    %304 = vector.extract_strided_slice %302 {offsets = [0, 0], sizes = [2, 32], strides = [1, 1]} : vector<2x128xf32> to vector<2x32xf32>
    %305 = vector.extract_strided_slice %302 {offsets = [0, 32], sizes = [2, 32], strides = [1, 1]} : vector<2x128xf32> to vector<2x32xf32>
    %306 = vector.extract_strided_slice %303 {offsets = [0, 64], sizes = [2, 32], strides = [1, 1]} : vector<2x128xf32> to vector<2x32xf32>
    %307 = vector.extract_strided_slice %302 {offsets = [0, 96], sizes = [2, 32], strides = [1, 1]} : vector<2x128xf32> to vector<2x32xf32>
    %308 = arith.mulf %305, %293 : vector<2x32xf32>
    %309 = arith.mulf %304, %306 : vector<2x32xf32>
    %310 = arith.addf %308, %309 : vector<2x32xf32>
    %311 = math.tanh %310 : vector<2x32xf32>
    %312 = arith.mulf %307, %311 : vector<2x32xf32>
    %cst_61 = arith.constant dense<0.000000e+00> : vector<2x128xf32>
    %313 = tpu.matmul %312, %183, %cst_61 {dimension_numbers = #tpu.dot_dimension_numbers<[1], [0], [0], [1], [0, 0, 1, 1], [], []>, precision = #tpu.contract_precision<fp32>} : vector<2x32xf32>, vector<32x128xf32>, vector<2x128xf32> -> vector<2x128xf32>
    %314 = arith.addf %205, %313 : vector<2x128xf32>
    %315 = arith.negf %314 : vector<2x128xf32>
    %316 = math.exp %315 : vector<2x128xf32>
    %cst_62 = arith.constant 1.000000e+00 : f32
    %317 = vector.broadcast %cst_62 : f32 to vector<2x128xf32>
    %318 = arith.addf %317, %316 : vector<2x128xf32>
    %319 = arith.divf %317, %318 : vector<2x128xf32>
    %320 = math.tanh %314 : vector<2x128xf32>
    %321 = vector.extract_strided_slice %319 {offsets = [0, 0], sizes = [2, 32], strides = [1, 1]} : vector<2x128xf32> to vector<2x32xf32>
    %322 = vector.extract_strided_slice %319 {offsets = [0, 32], sizes = [2, 32], strides = [1, 1]} : vector<2x128xf32> to vector<2x32xf32>
    %323 = vector.extract_strided_slice %320 {offsets = [0, 64], sizes = [2, 32], strides = [1, 1]} : vector<2x128xf32> to vector<2x32xf32>
    %324 = vector.extract_strided_slice %319 {offsets = [0, 96], sizes = [2, 32], strides = [1, 1]} : vector<2x128xf32> to vector<2x32xf32>
    %325 = arith.mulf %322, %310 : vector<2x32xf32>
    %326 = arith.mulf %321, %323 : vector<2x32xf32>
    %327 = arith.addf %325, %326 : vector<2x32xf32>
    %328 = math.tanh %327 : vector<2x32xf32>
    %329 = arith.mulf %324, %328 : vector<2x32xf32>
    %cst_63 = arith.constant dense<0.000000e+00> : vector<2x128xf32>
    %330 = tpu.matmul %329, %183, %cst_63 {dimension_numbers = #tpu.dot_dimension_numbers<[1], [0], [0], [1], [0, 0, 1, 1], [], []>, precision = #tpu.contract_precision<fp32>} : vector<2x32xf32>, vector<32x128xf32>, vector<2x128xf32> -> vector<2x128xf32>
    %331 = arith.addf %208, %330 : vector<2x128xf32>
    %332 = arith.negf %331 : vector<2x128xf32>
    %333 = math.exp %332 : vector<2x128xf32>
    %cst_64 = arith.constant 1.000000e+00 : f32
    %334 = vector.broadcast %cst_64 : f32 to vector<2x128xf32>
    %335 = arith.addf %334, %333 : vector<2x128xf32>
    %336 = arith.divf %334, %335 : vector<2x128xf32>
    %337 = math.tanh %331 : vector<2x128xf32>
    %338 = vector.extract_strided_slice %336 {offsets = [0, 0], sizes = [2, 32], strides = [1, 1]} : vector<2x128xf32> to vector<2x32xf32>
    %339 = vector.extract_strided_slice %336 {offsets = [0, 32], sizes = [2, 32], strides = [1, 1]} : vector<2x128xf32> to vector<2x32xf32>
    %340 = vector.extract_strided_slice %337 {offsets = [0, 64], sizes = [2, 32], strides = [1, 1]} : vector<2x128xf32> to vector<2x32xf32>
    %341 = vector.extract_strided_slice %336 {offsets = [0, 96], sizes = [2, 32], strides = [1, 1]} : vector<2x128xf32> to vector<2x32xf32>
    %342 = arith.mulf %339, %327 : vector<2x32xf32>
    %343 = arith.mulf %338, %340 : vector<2x32xf32>
    %344 = arith.addf %342, %343 : vector<2x32xf32>
    %345 = math.tanh %344 : vector<2x32xf32>
    %346 = arith.mulf %341, %345 : vector<2x32xf32>
    %c0_65 = arith.constant 0 : index
    %c0_66 = arith.constant 0 : index
    %347 = vector.load %arg14[%c0_65, %c0_66] : memref<2x32xf32, #tpu.memory_space<vmem>>, vector<2x32xf32>
    tpu.vector_store %arg14[%c0_65, %c0_66], %346 {strides = array<i32>} : memref<2x32xf32, #tpu.memory_space<vmem>>, vector<2x32xf32>,
    %c0_67 = arith.constant 0 : index
    %c0_68 = arith.constant 0 : index
    %348 = vector.load %arg7[%c0_67, %c0_68] : memref<32x32xf32, #tpu.memory_space<vmem>>, vector<32x32xf32>
    %c0_69 = arith.constant 0 : index
    %c0_70 = arith.constant 0 : index
    %349 = vector.load %arg8[%c0_69, %c0_70] : memref<1x32xf32, #tpu.memory_space<vmem>>, vector<1x32xf32>
    %c0_71 = arith.constant 0 : index
    %c0_72 = arith.constant 0 : index
    %350 = vector.load %arg9[%c0_71, %c0_72] : memref<32x16xf32, #tpu.memory_space<vmem>>, vector<32x16xf32>
    %c0_73 = arith.constant 0 : index
    %c0_74 = arith.constant 0 : index
    %351 = vector.load %arg10[%c0_73, %c0_74] : memref<1x16xf32, #tpu.memory_space<vmem>>, vector<1x16xf32>
    %c0_75 = arith.constant 0 : index
    %c0_76 = arith.constant 0 : index
    %352 = vector.load %arg11[%c0_75, %c0_76] : memref<16x11xf32, #tpu.memory_space<vmem>>, vector<16x11xf32>
    %c0_77 = arith.constant 0 : index
    %c0_78 = arith.constant 0 : index
    %353 = vector.load %arg12[%c0_77, %c0_78] : memref<1x11xf32, #tpu.memory_space<vmem>>, vector<1x11xf32>
    %cst_79 = arith.constant dense<0.000000e+00> : vector<2x32xf32>
    %354 = tpu.matmul %346, %348, %cst_79 {dimension_numbers = #tpu.dot_dimension_numbers<[1], [0], [0], [1], [0, 0, 1, 1], [], []>, precision = #tpu.contract_precision<fp32>} : vector<2x32xf32>, vector<32x32xf32>, vector<2x32xf32> -> vector<2x32xf32>
    %355 = vector.broadcast %349 : vector<1x32xf32> to vector<2x32xf32>
    %356 = arith.addf %354, %355 : vector<2x32xf32>
    %cst_80 = arith.constant 0.000000e+00 : f32
    %357 = vector.broadcast %cst_80 : f32 to vector<2x32xf32>
    %358 = arith.maximumf %356, %357 : vector<2x32xf32>
    %cst_81 = arith.constant dense<0.000000e+00> : vector<2x16xf32>
    %359 = tpu.matmul %358, %350, %cst_81 {dimension_numbers = #tpu.dot_dimension_numbers<[1], [0], [0], [1], [0, 0, 1, 1], [], []>, precision = #tpu.contract_precision<fp32>} : vector<2x32xf32>, vector<32x16xf32>, vector<2x16xf32> -> vector<2x16xf32>
    %360 = vector.broadcast %351 : vector<1x16xf32> to vector<2x16xf32>
    %361 = arith.addf %359, %360 : vector<2x16xf32>
    %cst_82 = arith.constant 0.000000e+00 : f32
    %362 = vector.broadcast %cst_82 : f32 to vector<2x16xf32>
    %363 = arith.maximumf %361, %362 : vector<2x16xf32>
    %cst_83 = arith.constant dense<0.000000e+00> : vector<2x11xf32>
    %364 = tpu.matmul %363, %352, %cst_83 {dimension_numbers = #tpu.dot_dimension_numbers<[1], [0], [0], [1], [0, 0, 1, 1], [], []>, precision = #tpu.contract_precision<fp32>} : vector<2x16xf32>, vector<16x11xf32>, vector<2x11xf32> -> vector<2x11xf32>
    %365 = vector.broadcast %353 : vector<1x11xf32> to vector<2x11xf32>
    %366 = arith.addf %364, %365 : vector<2x11xf32>
    %c0_84 = arith.constant 0 : index
    %c0_85 = arith.constant 0 : index
    %367 = vector.load %arg13[%c0_84, %c0_85] : memref<2x11xf32, #tpu.memory_space<vmem>>, vector<2x11xf32>
    tpu.vector_store %arg13[%c0_84, %c0_85], %366 {strides = array<i32>} : memref<2x11xf32, #tpu.memory_space<vmem>>, vector<2x11xf32>,
    return
  }
}

</mosaic_0001>

<llo_original>
// kernel: tpu_custom_call.1
$region0: #{tpu_custom_call.1}
  #allocation0 [shape = 'u32[]', space=smem, size = 0x4, offset = 0x4, fixed_abs, tag = 'smem constant byte address 0x4 - core index']
  #allocation1 [shape = 'u32[72,128]{1,0:T(1,128)}', space=vmem, size = 0x9000, scoped, tag = 'internal scratch']
  %s0 = inlined_call_operand.vmem [shape: f32[2,8,4], index: 0, kind: input, shape index: {}]
  %s1 = inlined_call_operand.vmem [shape: f32[4,128], index: 1, kind: input, shape index: {}]
  %s2 = inlined_call_operand.vmem [shape: f32[32,128], index: 2, kind: input, shape index: {}]
  %s3 = inlined_call_operand.vmem [shape: f32[1,128], index: 3, kind: input, shape index: {}]
  %s4 = inlined_call_operand.hbm [shape: f32[32,128], index: 4, kind: input, shape index: {}]
  %s5 = inlined_call_operand.hbm [shape: f32[32,128], index: 5, kind: input, shape index: {}]
  %s6 = inlined_call_operand.vmem [shape: f32[1,128], index: 6, kind: input, shape index: {}]
  %s7 = inlined_call_operand.hbm [shape: f32[32,32], index: 7, kind: input, shape index: {}]
  %s8 = inlined_call_operand.vmem [shape: f32[1,32], index: 8, kind: input, shape index: {}]
  %s9 = inlined_call_operand.vmem [shape: f32[32,16], index: 9, kind: input, shape index: {}]
  %s10 = inlined_call_operand.vmem [shape: f32[1,16], index: 10, kind: input, shape index: {}]
  %s11 = inlined_call_operand.vmem [shape: f32[16,11], index: 11, kind: input, shape index: {}]
  %s12 = inlined_call_operand.vmem [shape: f32[1,11], index: 12, kind: input, shape index: {}]
  %s13 = inlined_call_operand.hbm [shape: f32[2,11], index: 13, kind: output, shape index: {0}]
  %s14 = inlined_call_operand.hbm [shape: f32[2,32], index: 14, kind: output, shape index: {1}]
  %15 = xla_tuple %s13, %s14
  %s16 = sld [smem:[#allocation0]]
  $region82: #{tpu_custom_call.1} parent=0
    _
  %s18 = ssub.s32 1, %s16
  %s19 = scalar_select 0, %s18, %s16
  $region1: #{tpu_custom_call.1} parent=0
    #allocation2 [shape = 'u8[16384]{0}', space=vmem, size = 0x4000, scoped, tag = 'input window, operand 4, single buffered']
    #allocation3 [shape = 's32[1]{0}', space=sflag, size = 0x4, scoped, tag = 'scoped memory for tpu_custom_call.1']
    #allocation4 [shape = 's32[1]{0}', space=sflag, size = 0x4, scoped, tag = 'scoped memory for tpu_custom_call.1']
    #allocation5 [shape = 'u8[16384]{0}', space=vmem, size = 0x4000, scoped, tag = 'input window, operand 5, single buffered']
    #allocation6 [shape = 's32[1]{0}', space=sflag, size = 0x4, scoped, tag = 'scoped memory for tpu_custom_call.1']
    #allocation7 [shape = 'u8[16384]{0}', space=vmem, size = 0x4000, scoped, tag = 'input window, operand 7, single buffered']
    #allocation8 [shape = 'u8[1024]{0}', space=vmem, size = 0x400, scoped, tag = 'output window, operand 0, single buffered']
    #allocation9 [shape = 'u8[1024]{0}', space=vmem, size = 0x400, scoped, tag = 'output window, operand 1, single buffered']
    #allocation10 [shape = 's32[1]{0}', space=sflag, size = 0x4, scoped, tag = 'scoped memory for tpu_custom_call.1']
    %20 = vsyncpa [#allocation3], 0
    %21 = vsyncpa [#allocation6], 0
    %22 = vsyncpa [#allocation4], 0
    %23 = vsyncpa [#allocation10], 0
    // Predicated region
    $region2: #{tpu_custom_call.1} parent=1 // pred_check
      _
    $region3: #{tpu_custom_call.1} parent=1 // pred_check_branch
      %25 = sbr.rel (0) target = $region5
    $region4: #{tpu_custom_call.1} parent=1 // pred_region
      _
    $region5: #{tpu_custom_call.1} parent=1 // pred_fallthru
      _
    // Predicated region
    $region6: #{tpu_custom_call.1} parent=1 // pred_check
      _
    $region7: #{tpu_custom_call.1} parent=1 // pred_check_branch
      %27 = sbr.rel (0) target = $region9
    $region8: #{tpu_custom_call.1} parent=1 // pred_region
      _
    $region9: #{tpu_custom_call.1} parent=1 // pred_fallthru
      _
    // Predicated region
    $region10: #{tpu_custom_call.1} parent=1 // pred_check
      _
    $region11: #{tpu_custom_call.1} parent=1 // pred_check_branch
      %29 = sbr.rel (0) target = $region13
    $region12: #{tpu_custom_call.1} parent=1 // pred_region
      _
    $region13: #{tpu_custom_call.1} parent=1 // pred_fallthru
      _
    // Predicated region
    $region14: #{tpu_custom_call.1} parent=1 // pred_check
      _
    $region15: #{tpu_custom_call.1} parent=1 // pred_check_branch
      %31 = sbr.rel (0) target = $region17
    $region16: #{tpu_custom_call.1} parent=1 // pred_region
      _
    $region17: #{tpu_custom_call.1} parent=1 // pred_fallthru
      _
    // Predicated region
    $region18: #{tpu_custom_call.1} parent=1 // pred_check
      _
    $region19: #{tpu_custom_call.1} parent=1 // pred_check_branch
      %33 = sbr.rel (0) target = $region21
    $region20: #{tpu_custom_call.1} parent=1 // pred_region
      %35 = vsyncadd [#allocation3], 0
      %s36 = sshll.u32 %s4, 4
      %s37 = int_to_ptr.hbm [resolvable:$true] %s36
      %s38 = sshll.u32 [#allocation2], 4
      %s39 = int_to_ptr.vmem [resolvable:$true] %s38
      %44 = dma.hbm_to_vmem [thread:$0]  %s37, 512, %s39, [#allocation3], 128, 128, 8
    $region21: #{tpu_custom_call.1} parent=1 // pred_fallthru
      _
    // Predicated region
    $region22: #{tpu_custom_call.1} parent=1 // pred_check
      _
    $region23: #{tpu_custom_call.1} parent=1 // pred_check_branch
      %46 = sbr.rel (0) target = $region25
    $region24: #{tpu_custom_call.1} parent=1 // pred_region
      %48 = vsyncadd [#allocation6], 0
      %s49 = sshll.u32 %s5, 4
      %s50 = int_to_ptr.hbm [resolvable:$true] %s49
      %s51 = sshll.u32 [#allocation5], 4
      %s52 = int_to_ptr.vmem [resolvable:$true] %s51
      %57 = dma.hbm_to_vmem [thread:$0]  %s50, 512, %s52, [#allocation6], 128, 128, 8
    $region25: #{tpu_custom_call.1} parent=1 // pred_fallthru
      _
    // Predicated region
    $region26: #{tpu_custom_call.1} parent=1 // pred_check
      _
    $region27: #{tpu_custom_call.1} parent=1 // pred_check_branch
      %59 = sbr.rel (0) target = $region29
    $region28: #{tpu_custom_call.1} parent=1 // pred_region
      _
    $region29: #{tpu_custom_call.1} parent=1 // pred_fallthru
      _
    // Predicated region
    $region30: #{tpu_custom_call.1} parent=1 // pred_check
      _
    $region31: #{tpu_custom_call.1} parent=1 // pred_check_branch
      %61 = sbr.rel (0) target = $region33
    $region32: #{tpu_custom_call.1} parent=1 // pred_region
      %63 = vsyncadd [#allocation6], 0
      %s64 = sshll.u32 %s7, 4
      %s65 = int_to_ptr.hbm [resolvable:$true] %s64
      %s66 = sshll.u32 [#allocation7], 4
      %s67 = int_to_ptr.vmem [resolvable:$true] %s66
      %72 = dma.hbm_to_vmem [thread:$0]  %s65, 512, %s67, [#allocation6], 128, 128, 8
    $region33: #{tpu_custom_call.1} parent=1 // pred_fallthru
      _
    // Predicated region
    $region34: #{tpu_custom_call.1} parent=1 // pred_check
      _
    $region35: #{tpu_custom_call.1} parent=1 // pred_check_branch
      %74 = sbr.rel (0) target = $region37
    $region36: #{tpu_custom_call.1} parent=1 // pred_region
      _
    $region37: #{tpu_custom_call.1} parent=1 // pred_fallthru
      _
    // Predicated region
    $region38: #{tpu_custom_call.1} parent=1 // pred_check
      _
    $region39: #{tpu_custom_call.1} parent=1 // pred_check_branch
      %76 = sbr.rel (0) target = $region41
    $region40: #{tpu_custom_call.1} parent=1 // pred_region
      _
    $region41: #{tpu_custom_call.1} parent=1 // pred_fallthru
      _
    // Predicated region
    $region42: #{tpu_custom_call.1} parent=1 // pred_check
      _
    $region43: #{tpu_custom_call.1} parent=1 // pred_check_branch
      %78 = sbr.rel (0) target = $region45
    $region44: #{tpu_custom_call.1} parent=1 // pred_region
      _
    $region45: #{tpu_custom_call.1} parent=1 // pred_fallthru
      _
    // Predicated region
    $region46: #{tpu_custom_call.1} parent=1 // pred_check
      _
    $region47: #{tpu_custom_call.1} parent=1 // pred_check_branch
      %80 = sbr.rel (0) target = $region49
    $region48: #{tpu_custom_call.1} parent=1 // pred_region
      _
    $region49: #{tpu_custom_call.1} parent=1 // pred_fallthru
      _
    // Predicated region
    $region50: #{tpu_custom_call.1} parent=1 // pred_check
      _
    $region51: #{tpu_custom_call.1} parent=1 // pred_check_branch
      %82 = sbr.rel (0) target = $region53
    $region52: #{tpu_custom_call.1} parent=1 // pred_region
      _
    $region53: #{tpu_custom_call.1} parent=1 // pred_fallthru
      _
    // Predicated region
    $region54: #{tpu_custom_call.1} parent=1 // pred_check
      _
    $region55: #{tpu_custom_call.1} parent=1 // pred_check_branch
      %84 = sbr.rel (0) target = $region57
    $region56: #{tpu_custom_call.1} parent=1 // pred_region
      %86 = dma.done [#allocation3], 512
    $region57: #{tpu_custom_call.1} parent=1 // pred_fallthru
      _
    // Predicated region
    $region58: #{tpu_custom_call.1} parent=1 // pred_check
      _
    $region59: #{tpu_custom_call.1} parent=1 // pred_check_branch
      %88 = sbr.rel (0) target = $region61
    $region60: #{tpu_custom_call.1} parent=1 // pred_region
      %90 = dma.done [#allocation6], 512
    $region61: #{tpu_custom_call.1} parent=1 // pred_fallthru
      _
    // Predicated region
    $region62: #{tpu_custom_call.1} parent=1 // pred_check
      _
    $region63: #{tpu_custom_call.1} parent=1 // pred_check_branch
      %92 = sbr.rel (0) target = $region65
    $region64: #{tpu_custom_call.1} parent=1 // pred_region
      %94 = dma.done [#allocation6], 512
    $region65: #{tpu_custom_call.1} parent=1 // pred_fallthru
      _
    %v95 = vld [vmem:[%s0] sm:$0xff]
    %v96 = vld [vmem:[%s0 + $0x8] sm:$0xff]
    %v97 = vld [vmem:[%s1] sm:$0xf]
    %v98 = vld [vmem:[%s2] sm:$0xff]
    %v99 = vld [vmem:[%s2 + $0x8] sm:$0xff]
    %v100 = vld [vmem:[%s2 + $0x10] sm:$0xff]
    %v101 = vld [vmem:[%s2 + $0x18] sm:$0xff]
    %v102 = vld [vmem:[%s3] sm:$0x1]
    %v104 = vperm.slane %v102, 0
    %v108 = vrot.slane %v96, 7
    %vm109 = vcmask 1041409
    %v110 = vsel %vm109, %v108, %v95
    %vm111 = vcmask 31744
    %v112 = vsel %vm111, %v110, 0
    %vm114 = vcmask 1043456
    %v116 = vsel %vm114, %v97, 0
    %118 = vmatpush.msra.mxu0 0.0
    %119 = vmatpush.msra.mxu0 0.0
    %120 = vmatpush.msra.mxu0 0.0
    %121 = vmatpush.msra.mxu0 0.0
    %122 = vmatpush.msra.mxu0 0.0
    %123 = vmatpush.msra.mxu0 0.0
    %124 = vmatpush.msra.mxu0 0.0
    %125 = vmatpush.msra.mxu0 0.0
    %126 = vmatpush.msra.mxu0 0.0
    %127 = vmatpush.msra.mxu0 0.0
    %128 = vmatpush.msra.mxu0 0.0
    %129 = vmatpush.msra.mxu0 0.0
    %130 = vmatpush.msra.mxu0 0.0
    %131 = vmatpush.msra.mxu0 0.0
    %132 = vmatpush.msra.mxu0 0.0
    %v133 = vand.u32 %v116, 4294901760
    %134 = vmatpush.msra.mxu0 %v133
    %v135 = vand.u32 %v112, 4294901760
    %v136 = vsub.f32 %v112, %v135
    %v137 = vand.u32 %v136, 4294901760
    %v138 = vsub.f32 %v136, %v137
    %v139 = vand.u32 %v138, 4294901760
    %140 = vmatmul.f32.gmra.mxu0 %v139
    %v141 = vpop.f32.mrf.mxu0
    %v142 = vadd.f32 %v104, %v141
    %143 = vdwg.mxu0
    %144 = vmatpush.msra.mxu0 0.0
    %145 = vmatpush.msra.mxu0 0.0
    %146 = vmatpush.msra.mxu0 0.0
    %147 = vmatpush.msra.mxu0 0.0
    %148 = vmatpush.msra.mxu0 0.0
    %149 = vmatpush.msra.mxu0 0.0
    %150 = vmatpush.msra.mxu0 0.0
    %151 = vmatpush.msra.mxu0 0.0
    %152 = vmatpush.msra.mxu0 0.0
    %153 = vmatpush.msra.mxu0 0.0
    %154 = vmatpush.msra.mxu0 0.0
    %155 = vmatpush.msra.mxu0 0.0
    %156 = vmatpush.msra.mxu0 0.0
    %157 = vmatpush.msra.mxu0 0.0
    %158 = vmatpush.msra.mxu0 0.0
    %v159 = vand.u32 %v116, 4294901760
    %v160 = vsub.f32 %v116, %v159
    %v161 = vand.u32 %v160, 4294901760
    %v162 = vsub.f32 %v160, %v161
    %v163 = vand.u32 %v162, 4294901760
    %164 = vmatpush.msra.mxu0 %v163
    %v165 = vand.u32 %v112, 4294901760
    %166 = vmatmul.f32.gmra.mxu0 %v165
    %v167 = vpop.f32.mrf.mxu0
    %v168 = vadd.f32 %v142, %v167
    %169 = vdwg.mxu0
    %170 = vmatpush.msra.mxu0 0.0
    %171 = vmatpush.msra.mxu0 0.0
    %172 = vmatpush.msra.mxu0 0.0
    %173 = vmatpush.msra.mxu0 0.0
    %174 = vmatpush.msra.mxu0 0.0
    %175 = vmatpush.msra.mxu0 0.0
    %176 = vmatpush.msra.mxu0 0.0
    %177 = vmatpush.msra.mxu0 0.0
    %178 = vmatpush.msra.mxu0 0.0
    %179 = vmatpush.msra.mxu0 0.0
    %180 = vmatpush.msra.mxu0 0.0
    %181 = vmatpush.msra.mxu0 0.0
    %182 = vmatpush.msra.mxu0 0.0
    %183 = vmatpush.msra.mxu0 0.0
    %184 = vmatpush.msra.mxu0 0.0
    %v185 = vand.u32 %v116, 4294901760
    %v186 = vsub.f32 %v116, %v185
    %187 = vmatpush.msra.mxu0 %v186
    %v188 = vand.u32 %v112, 4294901760
    %v189 = vsub.f32 %v112, %v188
    %190 = vmatmul.f32.gmra.mxu0 %v189
    %v191 = vpop.f32.mrf.mxu0
    %v192 = vadd.f32 %v168, %v191
    %193 = vdwg.mxu0
    %194 = vmatpush.msra.mxu0 0.0
    %195 = vmatpush.msra.mxu0 0.0
    %196 = vmatpush.msra.mxu0 0.0
    %197 = vmatpush.msra.mxu0 0.0
    %198 = vmatpush.msra.mxu0 0.0
    %199 = vmatpush.msra.mxu0 0.0
    %200 = vmatpush.msra.mxu0 0.0
    %201 = vmatpush.msra.mxu0 0.0
    %202 = vmatpush.msra.mxu0 0.0
    %203 = vmatpush.msra.mxu0 0.0
    %204 = vmatpush.msra.mxu0 0.0
    %205 = vmatpush.msra.mxu0 0.0
    %206 = vmatpush.msra.mxu0 0.0
    %207 = vmatpush.msra.mxu0 0.0
    %208 = vmatpush.msra.mxu0 0.0
    %v209 = vand.u32 %v116, 4294901760
    %210 = vmatpush.msra.mxu0 %v209
    %v211 = vand.u32 %v112, 4294901760
    %v212 = vsub.f32 %v112, %v211
    %v213 = vand.u32 %v212, 4294901760
    %214 = vmatmul.f32.gmra.mxu0 %v213
    %v215 = vpop.f32.mrf.mxu0
    %v216 = vadd.f32 %v192, %v215
    %217 = vdwg.mxu0
    %218 = vmatpush.msra.mxu0 0.0
    %219 = vmatpush.msra.mxu0 0.0
    %220 = vmatpush.msra.mxu0 0.0
    %221 = vmatpush.msra.mxu0 0.0
    %222 = vmatpush.msra.mxu0 0.0
    %223 = vmatpush.msra.mxu0 0.0
    %224 = vmatpush.msra.mxu0 0.0
    %225 = vmatpush.msra.mxu0 0.0
    %226 = vmatpush.msra.mxu0 0.0
    %227 = vmatpush.msra.mxu0 0.0
    %228 = vmatpush.msra.mxu0 0.0
    %229 = vmatpush.msra.mxu0 0.0
    %230 = vmatpush.msra.mxu0 0.0
    %231 = vmatpush.msra.mxu0 0.0
    %232 = vmatpush.msra.mxu0 0.0
    %v233 = vand.u32 %v116, 4294901760
    %v234 = vsub.f32 %v116, %v233
    %v235 = vand.u32 %v234, 4294901760
    %236 = vmatpush.msra.mxu0 %v235
    %v237 = vand.u32 %v112, 4294901760
    %238 = vmatmul.f32.gmra.mxu0 %v237
    %v239 = vpop.f32.mrf.mxu0
    %v240 = vadd.f32 %v216, %v239
    %241 = vdwg.mxu0
    %242 = vmatpush.msra.mxu0 0.0
    %243 = vmatpush.msra.mxu0 0.0
    %244 = vmatpush.msra.mxu0 0.0
    %245 = vmatpush.msra.mxu0 0.0
    %246 = vmatpush.msra.mxu0 0.0
    %247 = vmatpush.msra.mxu0 0.0
    %248 = vmatpush.msra.mxu0 0.0
    %249 = vmatpush.msra.mxu0 0.0
    %250 = vmatpush.msra.mxu0 0.0
    %251 = vmatpush.msra.mxu0 0.0
    %252 = vmatpush.msra.mxu0 0.0
    %253 = vmatpush.msra.mxu0 0.0
    %254 = vmatpush.msra.mxu0 0.0
    %255 = vmatpush.msra.mxu0 0.0
    %256 = vmatpush.msra.mxu0 0.0
    %v257 = vand.u32 %v116, 4294901760
    %258 = vmatpush.msra.mxu0 %v257
    %v259 = vand.u32 %v112, 4294901760
    %260 = vmatmul.f32.gmra.mxu0 %v259
    %v261 = vpop.f32.mrf.mxu0
    %v262 = vadd.f32 %v240, %v261
    %263 = vdwg.mxu0
    %v264 = vrot.slane %v95, 1
    %v265 = vsel %vm109, %v96, %v264
    %v266 = vsel %vm111, %v265, 0
    %268 = vmatpush.msra.mxu0 0.0
    %269 = vmatpush.msra.mxu0 0.0
    %270 = vmatpush.msra.mxu0 0.0
    %271 = vmatpush.msra.mxu0 0.0
    %272 = vmatpush.msra.mxu0 0.0
    %273 = vmatpush.msra.mxu0 0.0
    %274 = vmatpush.msra.mxu0 0.0
    %275 = vmatpush.msra.mxu0 0.0
    %276 = vmatpush.msra.mxu0 0.0
    %277 = vmatpush.msra.mxu0 0.0
    %278 = vmatpush.msra.mxu0 0.0
    %279 = vmatpush.msra.mxu0 0.0
    %280 = vmatpush.msra.mxu0 0.0
    %281 = vmatpush.msra.mxu0 0.0
    %282 = vmatpush.msra.mxu0 0.0
    %v283 = vand.u32 %v116, 4294901760
    %284 = vmatpush.msra.mxu0 %v283
    %v285 = vand.u32 %v266, 4294901760
    %v286 = vsub.f32 %v266, %v285
    %v287 = vand.u32 %v286, 4294901760
    %v288 = vsub.f32 %v286, %v287
    %v289 = vand.u32 %v288, 4294901760
    %290 = vmatmul.f32.gmra.mxu0 %v289
    %v291 = vpop.f32.mrf.mxu0
    %v292 = vadd.f32 %v104, %v291
    %293 = vdwg.mxu0
    %294 = vmatpush.msra.mxu0 0.0
    %295 = vmatpush.msra.mxu0 0.0
    %296 = vmatpush.msra.mxu0 0.0
    %297 = vmatpush.msra.mxu0 0.0
    %298 = vmatpush.msra.mxu0 0.0
    %299 = vmatpush.msra.mxu0 0.0
    %300 = vmatpush.msra.mxu0 0.0
    %301 = vmatpush.msra.mxu0 0.0
    %302 = vmatpush.msra.mxu0 0.0
    %303 = vmatpush.msra.mxu0 0.0
    %304 = vmatpush.msra.mxu0 0.0
    %305 = vmatpush.msra.mxu0 0.0
    %306 = vmatpush.msra.mxu0 0.0
    %307 = vmatpush.msra.mxu0 0.0
    %308 = vmatpush.msra.mxu0 0.0
    %v309 = vand.u32 %v116, 4294901760
    %v310 = vsub.f32 %v116, %v309
    %v311 = vand.u32 %v310, 4294901760
    %v312 = vsub.f32 %v310, %v311
    %v313 = vand.u32 %v312, 4294901760
    %314 = vmatpush.msra.mxu0 %v313
    %v315 = vand.u32 %v266, 4294901760
    %316 = vmatmul.f32.gmra.mxu0 %v315
    %v317 = vpop.f32.mrf.mxu0
    %v318 = vadd.f32 %v292, %v317
    %319 = vdwg.mxu0
    %320 = vmatpush.msra.mxu0 0.0
    %321 = vmatpush.msra.mxu0 0.0
    %322 = vmatpush.msra.mxu0 0.0
    %323 = vmatpush.msra.mxu0 0.0
    %324 = vmatpush.msra.mxu0 0.0
    %325 = vmatpush.msra.mxu0 0.0
    %326 = vmatpush.msra.mxu0 0.0
    %327 = vmatpush.msra.mxu0 0.0
    %328 = vmatpush.msra.mxu0 0.0
    %329 = vmatpush.msra.mxu0 0.0
    %330 = vmatpush.msra.mxu0 0.0
    %331 = vmatpush.msra.mxu0 0.0
    %332 = vmatpush.msra.mxu0 0.0
    %333 = vmatpush.msra.mxu0 0.0
    %334 = vmatpush.msra.mxu0 0.0
    %v335 = vand.u32 %v116, 4294901760
    %v336 = vsub.f32 %v116, %v335
    %337 = vmatpush.msra.mxu0 %v336
    %v338 = vand.u32 %v266, 4294901760
    %v339 = vsub.f32 %v266, %v338
    %340 = vmatmul.f32.gmra.mxu0 %v339
    %v341 = vpop.f32.mrf.mxu0
    %v342 = vadd.f32 %v318, %v341
    %343 = vdwg.mxu0
    %344 = vmatpush.msra.mxu0 0.0
    %345 = vmatpush.msra.mxu0 0.0
    %346 = vmatpush.msra.mxu0 0.0
    %347 = vmatpush.msra.mxu0 0.0
    %348 = vmatpush.msra.mxu0 0.0
    %349 = vmatpush.msra.mxu0 0.0
    %350 = vmatpush.msra.mxu0 0.0
    %351 = vmatpush.msra.mxu0 0.0
    %352 = vmatpush.msra.mxu0 0.0
    %353 = vmatpush.msra.mxu0 0.0
    %354 = vmatpush.msra.mxu0 0.0
    %355 = vmatpush.msra.mxu0 0.0
    %356 = vmatpush.msra.mxu0 0.0
    %357 = vmatpush.msra.mxu0 0.0
    %358 = vmatpush.msra.mxu0 0.0
    %v359 = vand.u32 %v116, 4294901760
    %360 = vmatpush.msra.mxu0 %v359
    %v361 = vand.u32 %v266, 4294901760
    %v362 = vsub.f32 %v266, %v361
    %v363 = vand.u32 %v362, 4294901760
    %364 = vmatmul.f32.gmra.mxu0 %v363
    %v365 = vpop.f32.mrf.mxu0
    %v366 = vadd.f32 %v342, %v365
    %367 = vdwg.mxu0
    %368 = vmatpush.msra.mxu0 0.0
    %369 = vmatpush.msra.mxu0 0.0
    %370 = vmatpush.msra.mxu0 0.0
    %371 = vmatpush.msra.mxu0 0.0
    %372 = vmatpush.msra.mxu0 0.0
    %373 = vmatpush.msra.mxu0 0.0
    %374 = vmatpush.msra.mxu0 0.0
    %375 = vmatpush.msra.mxu0 0.0
    %376 = vmatpush.msra.mxu0 0.0
    %377 = vmatpush.msra.mxu0 0.0
    %378 = vmatpush.msra.mxu0 0.0
    %379 = vmatpush.msra.mxu0 0.0
    %380 = vmatpush.msra.mxu0 0.0
    %381 = vmatpush.msra.mxu0 0.0
    %382 = vmatpush.msra.mxu0 0.0
    %v383 = vand.u32 %v116, 4294901760
    %v384 = vsub.f32 %v116, %v383
    %v385 = vand.u32 %v384, 4294901760
    %386 = vmatpush.msra.mxu0 %v385
    %v387 = vand.u32 %v266, 4294901760
    %388 = vmatmul.f32.gmra.mxu0 %v387
    %v389 = vpop.f32.mrf.mxu0
    %v390 = vadd.f32 %v366, %v389
    %391 = vdwg.mxu0
    %392 = vmatpush.msra.mxu0 0.0
    %393 = vmatpush.msra.mxu0 0.0
    %394 = vmatpush.msra.mxu0 0.0
    %395 = vmatpush.msra.mxu0 0.0
    %396 = vmatpush.msra.mxu0 0.0
    %397 = vmatpush.msra.mxu0 0.0
    %398 = vmatpush.msra.mxu0 0.0
    %399 = vmatpush.msra.mxu0 0.0
    %400 = vmatpush.msra.mxu0 0.0
    %401 = vmatpush.msra.mxu0 0.0
    %402 = vmatpush.msra.mxu0 0.0
    %403 = vmatpush.msra.mxu0 0.0
    %404 = vmatpush.msra.mxu0 0.0
    %405 = vmatpush.msra.mxu0 0.0
    %406 = vmatpush.msra.mxu0 0.0
    %v407 = vand.u32 %v116, 4294901760
    %408 = vmatpush.msra.mxu0 %v407
    %v409 = vand.u32 %v266, 4294901760
    %410 = vmatmul.f32.gmra.mxu0 %v409
    %v411 = vpop.f32.mrf.mxu0
    %v412 = vadd.f32 %v390, %v411
    %413 = vdwg.mxu0
    %v414 = vrot.slane %v95, 2
    %v415 = vrot.slane %v96, 1
    %v416 = vsel %vm109, %v415, %v414
    %v417 = vsel %vm111, %v416, 0
    %419 = vmatpush.msra.mxu0 0.0
    %420 = vmatpush.msra.mxu0 0.0
    %421 = vmatpush.msra.mxu0 0.0
    %422 = vmatpush.msra.mxu0 0.0
    %423 = vmatpush.msra.mxu0 0.0
    %424 = vmatpush.msra.mxu0 0.0
    %425 = vmatpush.msra.mxu0 0.0
    %426 = vmatpush.msra.mxu0 0.0
    %427 = vmatpush.msra.mxu0 0.0
    %428 = vmatpush.msra.mxu0 0.0
    %429 = vmatpush.msra.mxu0 0.0
    %430 = vmatpush.msra.mxu0 0.0
    %431 = vmatpush.msra.mxu0 0.0
    %432 = vmatpush.msra.mxu0 0.0
    %433 = vmatpush.msra.mxu0 0.0
    %v434 = vand.u32 %v116, 4294901760
    %435 = vmatpush.msra.mxu0 %v434
    %v436 = vand.u32 %v417, 4294901760
    %v437 = vsub.f32 %v417, %v436
    %v438 = vand.u32 %v437, 4294901760
    %v439 = vsub.f32 %v437, %v438
    %v440 = vand.u32 %v439, 4294901760
    %441 = vmatmul.f32.gmra.mxu0 %v440
    %v442 = vpop.f32.mrf.mxu0
    %v443 = vadd.f32 %v104, %v442
    %444 = vdwg.mxu0
    %445 = vmatpush.msra.mxu0 0.0
    %446 = vmatpush.msra.mxu0 0.0
    %447 = vmatpush.msra.mxu0 0.0
    %448 = vmatpush.msra.mxu0 0.0
    %449 = vmatpush.msra.mxu0 0.0
    %450 = vmatpush.msra.mxu0 0.0
    %451 = vmatpush.msra.mxu0 0.0
    %452 = vmatpush.msra.mxu0 0.0
    %453 = vmatpush.msra.mxu0 0.0
    %454 = vmatpush.msra.mxu0 0.0
    %455 = vmatpush.msra.mxu0 0.0
    %456 = vmatpush.msra.mxu0 0.0
    %457 = vmatpush.msra.mxu0 0.0
    %458 = vmatpush.msra.mxu0 0.0
    %459 = vmatpush.msra.mxu0 0.0
    %v460 = vand.u32 %v116, 4294901760
    %v461 = vsub.f32 %v116, %v460
    %v462 = vand.u32 %v461, 4294901760
    %v463 = vsub.f32 %v461, %v462
    %v464 = vand.u32 %v463, 4294901760
    %465 = vmatpush.msra.mxu0 %v464
    %v466 = vand.u32 %v417, 4294901760
    %467 = vmatmul.f32.gmra.mxu0 %v466
    %v468 = vpop.f32.mrf.mxu0
    %v469 = vadd.f32 %v443, %v468
    %470 = vdwg.mxu0
    %471 = vmatpush.msra.mxu0 0.0
    %472 = vmatpush.msra.mxu0 0.0
    %473 = vmatpush.msra.mxu0 0.0
    %474 = vmatpush.msra.mxu0 0.0
    %475 = vmatpush.msra.mxu0 0.0
    %476 = vmatpush.msra.mxu0 0.0
    %477 = vmatpush.msra.mxu0 0.0
    %478 = vmatpush.msra.mxu0 0.0
    %479 = vmatpush.msra.mxu0 0.0
    %480 = vmatpush.msra.mxu0 0.0
    %481 = vmatpush.msra.mxu0 0.0
    %482 = vmatpush.msra.mxu0 0.0
    %483 = vmatpush.msra.mxu0 0.0
    %484 = vmatpush.msra.mxu0 0.0
    %485 = vmatpush.msra.mxu0 0.0
    %v486 = vand.u32 %v116, 4294901760
    %v487 = vsub.f32 %v116, %v486
    %488 = vmatpush.msra.mxu0 %v487
    %v489 = vand.u32 %v417, 4294901760
    %v490 = vsub.f32 %v417, %v489
    %491 = vmatmul.f32.gmra.mxu0 %v490
    %v492 = vpop.f32.mrf.mxu0
    %v493 = vadd.f32 %v469, %v492
    %494 = vdwg.mxu0
    %495 = vmatpush.msra.mxu0 0.0
    %496 = vmatpush.msra.mxu0 0.0
    %497 = vmatpush.msra.mxu0 0.0
    %498 = vmatpush.msra.mxu0 0.0
    %499 = vmatpush.msra.mxu0 0.0
    %500 = vmatpush.msra.mxu0 0.0
    %501 = vmatpush.msra.mxu0 0.0
    %502 = vmatpush.msra.mxu0 0.0
    %503 = vmatpush.msra.mxu0 0.0
    %504 = vmatpush.msra.mxu0 0.0
    %505 = vmatpush.msra.mxu0 0.0
    %506 = vmatpush.msra.mxu0 0.0
    %507 = vmatpush.msra.mxu0 0.0
    %508 = vmatpush.msra.mxu0 0.0
    %509 = vmatpush.msra.mxu0 0.0
    %v510 = vand.u32 %v116, 4294901760
    %511 = vmatpush.msra.mxu0 %v510
    %v512 = vand.u32 %v417, 4294901760
    %v513 = vsub.f32 %v417, %v512
    %v514 = vand.u32 %v513, 4294901760
    %515 = vmatmul.f32.gmra.mxu0 %v514
    %v516 = vpop.f32.mrf.mxu0
    %v517 = vadd.f32 %v493, %v516
    %518 = vdwg.mxu0
    %519 = vmatpush.msra.mxu0 0.0
    %520 = vmatpush.msra.mxu0 0.0
    %521 = vmatpush.msra.mxu0 0.0
    %522 = vmatpush.msra.mxu0 0.0
    %523 = vmatpush.msra.mxu0 0.0
    %524 = vmatpush.msra.mxu0 0.0
    %525 = vmatpush.msra.mxu0 0.0
    %526 = vmatpush.msra.mxu0 0.0
    %527 = vmatpush.msra.mxu0 0.0
    %528 = vmatpush.msra.mxu0 0.0
    %529 = vmatpush.msra.mxu0 0.0
    %530 = vmatpush.msra.mxu0 0.0
    %531 = vmatpush.msra.mxu0 0.0
    %532 = vmatpush.msra.mxu0 0.0
    %533 = vmatpush.msra.mxu0 0.0
    %v534 = vand.u32 %v116, 4294901760
    %v535 = vsub.f32 %v116, %v534
    %v536 = vand.u32 %v535, 4294901760
    %537 = vmatpush.msra.mxu0 %v536
    %v538 = vand.u32 %v417, 4294901760
    %539 = vmatmul.f32.gmra.mxu0 %v538
    %v540 = vpop.f32.mrf.mxu0
    %v541 = vadd.f32 %v517, %v540
    %542 = vdwg.mxu0
    %543 = vmatpush.msra.mxu0 0.0
    %544 = vmatpush.msra.mxu0 0.0
    %545 = vmatpush.msra.mxu0 0.0
    %546 = vmatpush.msra.mxu0 0.0
    %547 = vmatpush.msra.mxu0 0.0
    %548 = vmatpush.msra.mxu0 0.0
    %549 = vmatpush.msra.mxu0 0.0
    %550 = vmatpush.msra.mxu0 0.0
    %551 = vmatpush.msra.mxu0 0.0
    %552 = vmatpush.msra.mxu0 0.0
    %553 = vmatpush.msra.mxu0 0.0
    %554 = vmatpush.msra.mxu0 0.0
    %555 = vmatpush.msra.mxu0 0.0
    %556 = vmatpush.msra.mxu0 0.0
    %557 = vmatpush.msra.mxu0 0.0
    %v558 = vand.u32 %v116, 4294901760
    %559 = vmatpush.msra.mxu0 %v558
    %v560 = vand.u32 %v417, 4294901760
    %561 = vmatmul.f32.gmra.mxu0 %v560
    %v562 = vpop.f32.mrf.mxu0
    %v563 = vadd.f32 %v541, %v562
    %564 = vdwg.mxu0
    %v565 = vrot.slane %v95, 3
    %v566 = vrot.slane %v96, 2
    %v567 = vsel %vm109, %v566, %v565
    %v568 = vsel %vm111, %v567, 0
    %570 = vmatpush.msra.mxu0 0.0
    %571 = vmatpush.msra.mxu0 0.0
    %572 = vmatpush.msra.mxu0 0.0
    %573 = vmatpush.msra.mxu0 0.0
    %574 = vmatpush.msra.mxu0 0.0
    %575 = vmatpush.msra.mxu0 0.0
    %576 = vmatpush.msra.mxu0 0.0
    %577 = vmatpush.msra.mxu0 0.0
    %578 = vmatpush.msra.mxu0 0.0
    %579 = vmatpush.msra.mxu0 0.0
    %580 = vmatpush.msra.mxu0 0.0
    %581 = vmatpush.msra.mxu0 0.0
    %582 = vmatpush.msra.mxu0 0.0
    %583 = vmatpush.msra.mxu0 0.0
    %584 = vmatpush.msra.mxu0 0.0
    %v585 = vand.u32 %v116, 4294901760
    %586 = vmatpush.msra.mxu0 %v585
    %v587 = vand.u32 %v568, 4294901760
    %v588 = vsub.f32 %v568, %v587
    %v589 = vand.u32 %v588, 4294901760
    %v590 = vsub.f32 %v588, %v589
    %v591 = vand.u32 %v590, 4294901760
    %592 = vmatmul.f32.gmra.mxu0 %v591
    %v593 = vpop.f32.mrf.mxu0
    %v594 = vadd.f32 %v104, %v593
    %595 = vdwg.mxu0
    %596 = vmatpush.msra.mxu0 0.0
    %597 = vmatpush.msra.mxu0 0.0
    %598 = vmatpush.msra.mxu0 0.0
    %599 = vmatpush.msra.mxu0 0.0
    %600 = vmatpush.msra.mxu0 0.0
    %601 = vmatpush.msra.mxu0 0.0
    %602 = vmatpush.msra.mxu0 0.0
    %603 = vmatpush.msra.mxu0 0.0
    %604 = vmatpush.msra.mxu0 0.0
    %605 = vmatpush.msra.mxu0 0.0
    %606 = vmatpush.msra.mxu0 0.0
    %607 = vmatpush.msra.mxu0 0.0
    %608 = vmatpush.msra.mxu0 0.0
    %609 = vmatpush.msra.mxu0 0.0
    %610 = vmatpush.msra.mxu0 0.0
    %v611 = vand.u32 %v116, 4294901760
    %v612 = vsub.f32 %v116, %v611
    %v613 = vand.u32 %v612, 4294901760
    %v614 = vsub.f32 %v612, %v613
    %v615 = vand.u32 %v614, 4294901760
    %616 = vmatpush.msra.mxu0 %v615
    %v617 = vand.u32 %v568, 4294901760
    %618 = vmatmul.f32.gmra.mxu0 %v617
    %v619 = vpop.f32.mrf.mxu0
    %v620 = vadd.f32 %v594, %v619
    %621 = vdwg.mxu0
    %622 = vmatpush.msra.mxu0 0.0
    %623 = vmatpush.msra.mxu0 0.0
    %624 = vmatpush.msra.mxu0 0.0
    %625 = vmatpush.msra.mxu0 0.0
    %626 = vmatpush.msra.mxu0 0.0
    %627 = vmatpush.msra.mxu0 0.0
    %628 = vmatpush.msra.mxu0 0.0
    %629 = vmatpush.msra.mxu0 0.0
    %630 = vmatpush.msra.mxu0 0.0
    %631 = vmatpush.msra.mxu0 0.0
    %632 = vmatpush.msra.mxu0 0.0
    %633 = vmatpush.msra.mxu0 0.0
    %634 = vmatpush.msra.mxu0 0.0
    %635 = vmatpush.msra.mxu0 0.0
    %636 = vmatpush.msra.mxu0 0.0
    %v637 = vand.u32 %v116, 4294901760
    %v638 = vsub.f32 %v116, %v637
    %639 = vmatpush.msra.mxu0 %v638
    %v640 = vand.u32 %v568, 4294901760
    %v641 = vsub.f32 %v568, %v640
    %642 = vmatmul.f32.gmra.mxu0 %v641
    %v643 = vpop.f32.mrf.mxu0
    %v644 = vadd.f32 %v620, %v643
    %645 = vdwg.mxu0
    %646 = vmatpush.msra.mxu0 0.0
    %647 = vmatpush.msra.mxu0 0.0
    %648 = vmatpush.msra.mxu0 0.0
    %649 = vmatpush.msra.mxu0 0.0
    %650 = vmatpush.msra.mxu0 0.0
    %651 = vmatpush.msra.mxu0 0.0
    %652 = vmatpush.msra.mxu0 0.0
    %653 = vmatpush.msra.mxu0 0.0
    %654 = vmatpush.msra.mxu0 0.0
    %655 = vmatpush.msra.mxu0 0.0
    %656 = vmatpush.msra.mxu0 0.0
    %657 = vmatpush.msra.mxu0 0.0
    %658 = vmatpush.msra.mxu0 0.0
    %659 = vmatpush.msra.mxu0 0.0
    %660 = vmatpush.msra.mxu0 0.0
    %v661 = vand.u32 %v116, 4294901760
    %662 = vmatpush.msra.mxu0 %v661
    %v663 = vand.u32 %v568, 4294901760
    %v664 = vsub.f32 %v568, %v663
    %v665 = vand.u32 %v664, 4294901760
    %666 = vmatmul.f32.gmra.mxu0 %v665
    %v667 = vpop.f32.mrf.mxu0
    %v668 = vadd.f32 %v644, %v667
    %669 = vdwg.mxu0
    %670 = vmatpush.msra.mxu0 0.0
    %671 = vmatpush.msra.mxu0 0.0
    %672 = vmatpush.msra.mxu0 0.0
    %673 = vmatpush.msra.mxu0 0.0
    %674 = vmatpush.msra.mxu0 0.0
    %675 = vmatpush.msra.mxu0 0.0
    %676 = vmatpush.msra.mxu0 0.0
    %677 = vmatpush.msra.mxu0 0.0
    %678 = vmatpush.msra.mxu0 0.0
    %679 = vmatpush.msra.mxu0 0.0
    %680 = vmatpush.msra.mxu0 0.0
    %681 = vmatpush.msra.mxu0 0.0
    %682 = vmatpush.msra.mxu0 0.0
    %683 = vmatpush.msra.mxu0 0.0
    %684 = vmatpush.msra.mxu0 0.0
    %v685 = vand.u32 %v116, 4294901760
    %v686 = vsub.f32 %v116, %v685
    %v687 = vand.u32 %v686, 4294901760
    %688 = vmatpush.msra.mxu0 %v687
    %v689 = vand.u32 %v568, 4294901760
    %690 = vmatmul.f32.gmra.mxu0 %v689
    %v691 = vpop.f32.mrf.mxu0
    %v692 = vadd.f32 %v668, %v691
    %693 = vdwg.mxu0
    %694 = vmatpush.msra.mxu0 0.0
    %695 = vmatpush.msra.mxu0 0.0
    %696 = vmatpush.msra.mxu0 0.0
    %697 = vmatpush.msra.mxu0 0.0
    %698 = vmatpush.msra.mxu0 0.0
    %699 = vmatpush.msra.mxu0 0.0
    %700 = vmatpush.msra.mxu0 0.0
    %701 = vmatpush.msra.mxu0 0.0
    %702 = vmatpush.msra.mxu0 0.0
    %703 = vmatpush.msra.mxu0 0.0
    %704 = vmatpush.msra.mxu0 0.0
    %705 = vmatpush.msra.mxu0 0.0
    %706 = vmatpush.msra.mxu0 0.0
    %707 = vmatpush.msra.mxu0 0.0
    %708 = vmatpush.msra.mxu0 0.0
    %v709 = vand.u32 %v116, 4294901760
    %710 = vmatpush.msra.mxu0 %v709
    %v711 = vand.u32 %v568, 4294901760
    %712 = vmatmul.f32.gmra.mxu0 %v711
    %v713 = vpop.f32.mrf.mxu0
    %v714 = vadd.f32 %v692, %v713
    %715 = vdwg.mxu0
    %v716 = vrot.slane %v95, 4
    %v717 = vrot.slane %v96, 3
    %v718 = vsel %vm109, %v717, %v716
    %v719 = vsel %vm111, %v718, 0
    %721 = vmatpush.msra.mxu0 0.0
    %722 = vmatpush.msra.mxu0 0.0
    %723 = vmatpush.msra.mxu0 0.0
    %724 = vmatpush.msra.mxu0 0.0
    %725 = vmatpush.msra.mxu0 0.0
    %726 = vmatpush.msra.mxu0 0.0
    %727 = vmatpush.msra.mxu0 0.0
    %728 = vmatpush.msra.mxu0 0.0
    %729 = vmatpush.msra.mxu0 0.0
    %730 = vmatpush.msra.mxu0 0.0
    %731 = vmatpush.msra.mxu0 0.0
    %732 = vmatpush.msra.mxu0 0.0
    %733 = vmatpush.msra.mxu0 0.0
    %734 = vmatpush.msra.mxu0 0.0
    %735 = vmatpush.msra.mxu0 0.0
    %v736 = vand.u32 %v116, 4294901760
    %737 = vmatpush.msra.mxu0 %v736
    %v738 = vand.u32 %v719, 4294901760
    %v739 = vsub.f32 %v719, %v738
    %v740 = vand.u32 %v739, 4294901760
    %v741 = vsub.f32 %v739, %v740
    %v742 = vand.u32 %v741, 4294901760
    %743 = vmatmul.f32.gmra.mxu0 %v742
    %v744 = vpop.f32.mrf.mxu0
    %v745 = vadd.f32 %v104, %v744
    %746 = vdwg.mxu0
    %747 = vmatpush.msra.mxu0 0.0
    %748 = vmatpush.msra.mxu0 0.0
    %749 = vmatpush.msra.mxu0 0.0
    %750 = vmatpush.msra.mxu0 0.0
    %751 = vmatpush.msra.mxu0 0.0
    %752 = vmatpush.msra.mxu0 0.0
    %753 = vmatpush.msra.mxu0 0.0
    %754 = vmatpush.msra.mxu0 0.0
    %755 = vmatpush.msra.mxu0 0.0
    %756 = vmatpush.msra.mxu0 0.0
    %757 = vmatpush.msra.mxu0 0.0
    %758 = vmatpush.msra.mxu0 0.0
    %759 = vmatpush.msra.mxu0 0.0
    %760 = vmatpush.msra.mxu0 0.0
    %761 = vmatpush.msra.mxu0 0.0
    %v762 = vand.u32 %v116, 4294901760
    %v763 = vsub.f32 %v116, %v762
    %v764 = vand.u32 %v763, 4294901760
    %v765 = vsub.f32 %v763, %v764
    %v766 = vand.u32 %v765, 4294901760
    %767 = vmatpush.msra.mxu0 %v766
    %v768 = vand.u32 %v719, 4294901760
    %769 = vmatmul.f32.gmra.mxu0 %v768
    %v770 = vpop.f32.mrf.mxu0
    %v771 = vadd.f32 %v745, %v770
    %772 = vdwg.mxu0
    %773 = vmatpush.msra.mxu0 0.0
    %774 = vmatpush.msra.mxu0 0.0
    %775 = vmatpush.msra.mxu0 0.0
    %776 = vmatpush.msra.mxu0 0.0
    %777 = vmatpush.msra.mxu0 0.0
    %778 = vmatpush.msra.mxu0 0.0
    %779 = vmatpush.msra.mxu0 0.0
    %780 = vmatpush.msra.mxu0 0.0
    %781 = vmatpush.msra.mxu0 0.0
    %782 = vmatpush.msra.mxu0 0.0
    %783 = vmatpush.msra.mxu0 0.0
    %784 = vmatpush.msra.mxu0 0.0
    %785 = vmatpush.msra.mxu0 0.0
    %786 = vmatpush.msra.mxu0 0.0
    %787 = vmatpush.msra.mxu0 0.0
    %v788 = vand.u32 %v116, 4294901760
    %v789 = vsub.f32 %v116, %v788
    %790 = vmatpush.msra.mxu0 %v789
    %v791 = vand.u32 %v719, 4294901760
    %v792 = vsub.f32 %v719, %v791
    %793 = vmatmul.f32.gmra.mxu0 %v792
    %v794 = vpop.f32.mrf.mxu0
    %v795 = vadd.f32 %v771, %v794
    %796 = vdwg.mxu0
    %797 = vmatpush.msra.mxu0 0.0
    %798 = vmatpush.msra.mxu0 0.0
    %799 = vmatpush.msra.mxu0 0.0
    %800 = vmatpush.msra.mxu0 0.0
    %801 = vmatpush.msra.mxu0 0.0
    %802 = vmatpush.msra.mxu0 0.0
    %803 = vmatpush.msra.mxu0 0.0
    %804 = vmatpush.msra.mxu0 0.0
    %805 = vmatpush.msra.mxu0 0.0
    %806 = vmatpush.msra.mxu0 0.0
    %807 = vmatpush.msra.mxu0 0.0
    %808 = vmatpush.msra.mxu0 0.0
    %809 = vmatpush.msra.mxu0 0.0
    %810 = vmatpush.msra.mxu0 0.0
    %811 = vmatpush.msra.mxu0 0.0
    %v812 = vand.u32 %v116, 4294901760
    %813 = vmatpush.msra.mxu0 %v812
    %v814 = vand.u32 %v719, 4294901760
    %v815 = vsub.f32 %v719, %v814
    %v816 = vand.u32 %v815, 4294901760
    %817 = vmatmul.f32.gmra.mxu0 %v816
    %v818 = vpop.f32.mrf.mxu0
    %v819 = vadd.f32 %v795, %v818
    %820 = vdwg.mxu0
    %821 = vmatpush.msra.mxu0 0.0
    %822 = vmatpush.msra.mxu0 0.0
    %823 = vmatpush.msra.mxu0 0.0
    %824 = vmatpush.msra.mxu0 0.0
    %825 = vmatpush.msra.mxu0 0.0
    %826 = vmatpush.msra.mxu0 0.0
    %827 = vmatpush.msra.mxu0 0.0
    %828 = vmatpush.msra.mxu0 0.0
    %829 = vmatpush.msra.mxu0 0.0
    %830 = vmatpush.msra.mxu0 0.0
    %831 = vmatpush.msra.mxu0 0.0
    %832 = vmatpush.msra.mxu0 0.0
    %833 = vmatpush.msra.mxu0 0.0
    %834 = vmatpush.msra.mxu0 0.0
    %835 = vmatpush.msra.mxu0 0.0
    %v836 = vand.u32 %v116, 4294901760
    %v837 = vsub.f32 %v116, %v836
    %v838 = vand.u32 %v837, 4294901760
    %839 = vmatpush.msra.mxu0 %v838
    %v840 = vand.u32 %v719, 4294901760
    %841 = vmatmul.f32.gmra.mxu0 %v840
    %v842 = vpop.f32.mrf.mxu0
    %v843 = vadd.f32 %v819, %v842
    %844 = vdwg.mxu0
    %845 = vmatpush.msra.mxu0 0.0
    %846 = vmatpush.msra.mxu0 0.0
    %847 = vmatpush.msra.mxu0 0.0
    %848 = vmatpush.msra.mxu0 0.0
    %849 = vmatpush.msra.mxu0 0.0
    %850 = vmatpush.msra.mxu0 0.0
    %851 = vmatpush.msra.mxu0 0.0
    %852 = vmatpush.msra.mxu0 0.0
    %853 = vmatpush.msra.mxu0 0.0
    %854 = vmatpush.msra.mxu0 0.0
    %855 = vmatpush.msra.mxu0 0.0
    %856 = vmatpush.msra.mxu0 0.0
    %857 = vmatpush.msra.mxu0 0.0
    %858 = vmatpush.msra.mxu0 0.0
    %859 = vmatpush.msra.mxu0 0.0
    %v860 = vand.u32 %v116, 4294901760
    %861 = vmatpush.msra.mxu0 %v860
    %v862 = vand.u32 %v719, 4294901760
    %863 = vmatmul.f32.gmra.mxu0 %v862
    %v864 = vpop.f32.mrf.mxu0
    %v865 = vadd.f32 %v843, %v864
    %866 = vdwg.mxu0
    %v867 = vrot.slane %v95, 5
    %v868 = vrot.slane %v96, 4
    %v869 = vsel %vm109, %v868, %v867
    %v870 = vsel %vm111, %v869, 0
    %872 = vmatpush.msra.mxu0 0.0
    %873 = vmatpush.msra.mxu0 0.0
    %874 = vmatpush.msra.mxu0 0.0
    %875 = vmatpush.msra.mxu0 0.0
    %876 = vmatpush.msra.mxu0 0.0
    %877 = vmatpush.msra.mxu0 0.0
    %878 = vmatpush.msra.mxu0 0.0
    %879 = vmatpush.msra.mxu0 0.0
    %880 = vmatpush.msra.mxu0 0.0
    %881 = vmatpush.msra.mxu0 0.0
    %882 = vmatpush.msra.mxu0 0.0
    %883 = vmatpush.msra.mxu0 0.0
    %884 = vmatpush.msra.mxu0 0.0
    %885 = vmatpush.msra.mxu0 0.0
    %886 = vmatpush.msra.mxu0 0.0
    %v887 = vand.u32 %v116, 4294901760
    %888 = vmatpush.msra.mxu0 %v887
    %v889 = vand.u32 %v870, 4294901760
    %v890 = vsub.f32 %v870, %v889
    %v891 = vand.u32 %v890, 4294901760
    %v892 = vsub.f32 %v890, %v891
    %v893 = vand.u32 %v892, 4294901760
    %894 = vmatmul.f32.gmra.mxu0 %v893
    %v895 = vpop.f32.mrf.mxu0
    %v896 = vadd.f32 %v104, %v895
    %897 = vdwg.mxu0
    %898 = vmatpush.msra.mxu0 0.0
    %899 = vmatpush.msra.mxu0 0.0
    %900 = vmatpush.msra.mxu0 0.0
    %901 = vmatpush.msra.mxu0 0.0
    %902 = vmatpush.msra.mxu0 0.0
    %903 = vmatpush.msra.mxu0 0.0
    %904 = vmatpush.msra.mxu0 0.0
    %905 = vmatpush.msra.mxu0 0.0
    %906 = vmatpush.msra.mxu0 0.0
    %907 = vmatpush.msra.mxu0 0.0
    %908 = vmatpush.msra.mxu0 0.0
    %909 = vmatpush.msra.mxu0 0.0
    %910 = vmatpush.msra.mxu0 0.0
    %911 = vmatpush.msra.mxu0 0.0
    %912 = vmatpush.msra.mxu0 0.0
    %v913 = vand.u32 %v116, 4294901760
    %v914 = vsub.f32 %v116, %v913
    %v915 = vand.u32 %v914, 4294901760
    %v916 = vsub.f32 %v914, %v915
    %v917 = vand.u32 %v916, 4294901760
    %918 = vmatpush.msra.mxu0 %v917
    %v919 = vand.u32 %v870, 4294901760
    %920 = vmatmul.f32.gmra.mxu0 %v919
    %v921 = vpop.f32.mrf.mxu0
    %v922 = vadd.f32 %v896, %v921
    %923 = vdwg.mxu0
    %924 = vmatpush.msra.mxu0 0.0
    %925 = vmatpush.msra.mxu0 0.0
    %926 = vmatpush.msra.mxu0 0.0
    %927 = vmatpush.msra.mxu0 0.0
    %928 = vmatpush.msra.mxu0 0.0
    %929 = vmatpush.msra.mxu0 0.0
    %930 = vmatpush.msra.mxu0 0.0
    %931 = vmatpush.msra.mxu0 0.0
    %932 = vmatpush.msra.mxu0 0.0
    %933 = vmatpush.msra.mxu0 0.0
    %934 = vmatpush.msra.mxu0 0.0
    %935 = vmatpush.msra.mxu0 0.0
    %936 = vmatpush.msra.mxu0 0.0
    %937 = vmatpush.msra.mxu0 0.0
    %938 = vmatpush.msra.mxu0 0.0
    %v939 = vand.u32 %v116, 4294901760
    %v940 = vsub.f32 %v116, %v939
    %941 = vmatpush.msra.mxu0 %v940
    %v942 = vand.u32 %v870, 4294901760
    %v943 = vsub.f32 %v870, %v942
    %944 = vmatmul.f32.gmra.mxu0 %v943
    %v945 = vpop.f32.mrf.mxu0
    %v946 = vadd.f32 %v922, %v945
    %947 = vdwg.mxu0
    %948 = vmatpush.msra.mxu0 0.0
    %949 = vmatpush.msra.mxu0 0.0
    %950 = vmatpush.msra.mxu0 0.0
    %951 = vmatpush.msra.mxu0 0.0
    %952 = vmatpush.msra.mxu0 0.0
    %953 = vmatpush.msra.mxu0 0.0
    %954 = vmatpush.msra.mxu0 0.0
    %955 = vmatpush.msra.mxu0 0.0
    %956 = vmatpush.msra.mxu0 0.0
    %957 = vmatpush.msra.mxu0 0.0
    %958 = vmatpush.msra.mxu0 0.0
    %959 = vmatpush.msra.mxu0 0.0
    %960 = vmatpush.msra.mxu0 0.0
    %961 = vmatpush.msra.mxu0 0.0
    %962 = vmatpush.msra.mxu0 0.0
    %v963 = vand.u32 %v116, 4294901760
    %964 = vmatpush.msra.mxu0 %v963
    %v965 = vand.u32 %v870, 4294901760
    %v966 = vsub.f32 %v870, %v965
    %v967 = vand.u32 %v966, 4294901760
    %968 = vmatmul.f32.gmra.mxu0 %v967
    %v969 = vpop.f32.mrf.mxu0
    %v970 = vadd.f32 %v946, %v969
    %971 = vdwg.mxu0
    %972 = vmatpush.msra.mxu0 0.0
    %973 = vmatpush.msra.mxu0 0.0
    %974 = vmatpush.msra.mxu0 0.0
    %975 = vmatpush.msra.mxu0 0.0
    %976 = vmatpush.msra.mxu0 0.0
    %977 = vmatpush.msra.mxu0 0.0
    %978 = vmatpush.msra.mxu0 0.0
    %979 = vmatpush.msra.mxu0 0.0
    %980 = vmatpush.msra.mxu0 0.0
    %981 = vmatpush.msra.mxu0 0.0
    %982 = vmatpush.msra.mxu0 0.0
    %983 = vmatpush.msra.mxu0 0.0
    %984 = vmatpush.msra.mxu0 0.0
    %985 = vmatpush.msra.mxu0 0.0
    %986 = vmatpush.msra.mxu0 0.0
    %v987 = vand.u32 %v116, 4294901760
    %v988 = vsub.f32 %v116, %v987
    %v989 = vand.u32 %v988, 4294901760
    %990 = vmatpush.msra.mxu0 %v989
    %v991 = vand.u32 %v870, 4294901760
    %992 = vmatmul.f32.gmra.mxu0 %v991
    %v993 = vpop.f32.mrf.mxu0
    %v994 = vadd.f32 %v970, %v993
    %995 = vdwg.mxu0
    %996 = vmatpush.msra.mxu0 0.0
    %997 = vmatpush.msra.mxu0 0.0
    %998 = vmatpush.msra.mxu0 0.0
    %999 = vmatpush.msra.mxu0 0.0
    %1000 = vmatpush.msra.mxu0 0.0
    %1001 = vmatpush.msra.mxu0 0.0
    %1002 = vmatpush.msra.mxu0 0.0
    %1003 = vmatpush.msra.mxu0 0.0
    %1004 = vmatpush.msra.mxu0 0.0
    %1005 = vmatpush.msra.mxu0 0.0
    %1006 = vmatpush.msra.mxu0 0.0
    %1007 = vmatpush.msra.mxu0 0.0
    %1008 = vmatpush.msra.mxu0 0.0
    %1009 = vmatpush.msra.mxu0 0.0
    %1010 = vmatpush.msra.mxu0 0.0
    %v1011 = vand.u32 %v116, 4294901760
    %1012 = vmatpush.msra.mxu0 %v1011
    %v1013 = vand.u32 %v870, 4294901760
    %1014 = vmatmul.f32.gmra.mxu0 %v1013
    %v1015 = vpop.f32.mrf.mxu0
    %v1016 = vadd.f32 %v994, %v1015
    %1017 = vdwg.mxu0
    %v1018 = vrot.slane %v95, 6
    %v1019 = vrot.slane %v96, 5
    %v1020 = vsel %vm109, %v1019, %v1018
    %v1021 = vsel %vm111, %v1020, 0
    %1023 = vmatpush.msra.mxu0 0.0
    %1024 = vmatpush.msra.mxu0 0.0
    %1025 = vmatpush.msra.mxu0 0.0
    %1026 = vmatpush.msra.mxu0 0.0
    %1027 = vmatpush.msra.mxu0 0.0
    %1028 = vmatpush.msra.mxu0 0.0
    %1029 = vmatpush.msra.mxu0 0.0
    %1030 = vmatpush.msra.mxu0 0.0
    %1031 = vmatpush.msra.mxu0 0.0
    %1032 = vmatpush.msra.mxu0 0.0
    %1033 = vmatpush.msra.mxu0 0.0
    %1034 = vmatpush.msra.mxu0 0.0
    %1035 = vmatpush.msra.mxu0 0.0
    %1036 = vmatpush.msra.mxu0 0.0
    %1037 = vmatpush.msra.mxu0 0.0
    %v1038 = vand.u32 %v116, 4294901760
    %1039 = vmatpush.msra.mxu0 %v1038
    %v1040 = vand.u32 %v1021, 4294901760
    %v1041 = vsub.f32 %v1021, %v1040
    %v1042 = vand.u32 %v1041, 4294901760
    %v1043 = vsub.f32 %v1041, %v1042
    %v1044 = vand.u32 %v1043, 4294901760
    %1045 = vmatmul.f32.gmra.mxu0 %v1044
    %v1046 = vpop.f32.mrf.mxu0
    %v1047 = vadd.f32 %v104, %v1046
    %1048 = vdwg.mxu0
    %1049 = vmatpush.msra.mxu0 0.0
    %1050 = vmatpush.msra.mxu0 0.0
    %1051 = vmatpush.msra.mxu0 0.0
    %1052 = vmatpush.msra.mxu0 0.0
    %1053 = vmatpush.msra.mxu0 0.0
    %1054 = vmatpush.msra.mxu0 0.0
    %1055 = vmatpush.msra.mxu0 0.0
    %1056 = vmatpush.msra.mxu0 0.0
    %1057 = vmatpush.msra.mxu0 0.0
    %1058 = vmatpush.msra.mxu0 0.0
    %1059 = vmatpush.msra.mxu0 0.0
    %1060 = vmatpush.msra.mxu0 0.0
    %1061 = vmatpush.msra.mxu0 0.0
    %1062 = vmatpush.msra.mxu0 0.0
    %1063 = vmatpush.msra.mxu0 0.0
    %v1064 = vand.u32 %v116, 4294901760
    %v1065 = vsub.f32 %v116, %v1064
    %v1066 = vand.u32 %v1065, 4294901760
    %v1067 = vsub.f32 %v1065, %v1066
    %v1068 = vand.u32 %v1067, 4294901760
    %1069 = vmatpush.msra.mxu0 %v1068
    %v1070 = vand.u32 %v1021, 4294901760
    %1071 = vmatmul.f32.gmra.mxu0 %v1070
    %v1072 = vpop.f32.mrf.mxu0
    %v1073 = vadd.f32 %v1047, %v1072
    %1074 = vdwg.mxu0
    %1075 = vmatpush.msra.mxu0 0.0
    %1076 = vmatpush.msra.mxu0 0.0
    %1077 = vmatpush.msra.mxu0 0.0
    %1078 = vmatpush.msra.mxu0 0.0
    %1079 = vmatpush.msra.mxu0 0.0
    %1080 = vmatpush.msra.mxu0 0.0
    %1081 = vmatpush.msra.mxu0 0.0
    %1082 = vmatpush.msra.mxu0 0.0
    %1083 = vmatpush.msra.mxu0 0.0
    %1084 = vmatpush.msra.mxu0 0.0
    %1085 = vmatpush.msra.mxu0 0.0
    %1086 = vmatpush.msra.mxu0 0.0
    %1087 = vmatpush.msra.mxu0 0.0
    %1088 = vmatpush.msra.mxu0 0.0
    %1089 = vmatpush.msra.mxu0 0.0
    %v1090 = vand.u32 %v116, 4294901760
    %v1091 = vsub.f32 %v116, %v1090
    %1092 = vmatpush.msra.mxu0 %v1091
    %v1093 = vand.u32 %v1021, 4294901760
    %v1094 = vsub.f32 %v1021, %v1093
    %1095 = vmatmul.f32.gmra.mxu0 %v1094
    %v1096 = vpop.f32.mrf.mxu0
    %v1097 = vadd.f32 %v1073, %v1096
    %1098 = vdwg.mxu0
    %1099 = vmatpush.msra.mxu0 0.0
    %1100 = vmatpush.msra.mxu0 0.0
    %1101 = vmatpush.msra.mxu0 0.0
    %1102 = vmatpush.msra.mxu0 0.0
    %1103 = vmatpush.msra.mxu0 0.0
    %1104 = vmatpush.msra.mxu0 0.0
    %1105 = vmatpush.msra.mxu0 0.0
    %1106 = vmatpush.msra.mxu0 0.0
    %1107 = vmatpush.msra.mxu0 0.0
    %1108 = vmatpush.msra.mxu0 0.0
    %1109 = vmatpush.msra.mxu0 0.0
    %1110 = vmatpush.msra.mxu0 0.0
    %1111 = vmatpush.msra.mxu0 0.0
    %1112 = vmatpush.msra.mxu0 0.0
    %1113 = vmatpush.msra.mxu0 0.0
    %v1114 = vand.u32 %v116, 4294901760
    %1115 = vmatpush.msra.mxu0 %v1114
    %v1116 = vand.u32 %v1021, 4294901760
    %v1117 = vsub.f32 %v1021, %v1116
    %v1118 = vand.u32 %v1117, 4294901760
    %1119 = vmatmul.f32.gmra.mxu0 %v1118
    %v1120 = vpop.f32.mrf.mxu0
    %v1121 = vadd.f32 %v1097, %v1120
    %1122 = vdwg.mxu0
    %1123 = vmatpush.msra.mxu0 0.0
    %1124 = vmatpush.msra.mxu0 0.0
    %1125 = vmatpush.msra.mxu0 0.0
    %1126 = vmatpush.msra.mxu0 0.0
    %1127 = vmatpush.msra.mxu0 0.0
    %1128 = vmatpush.msra.mxu0 0.0
    %1129 = vmatpush.msra.mxu0 0.0
    %1130 = vmatpush.msra.mxu0 0.0
    %1131 = vmatpush.msra.mxu0 0.0
    %1132 = vmatpush.msra.mxu0 0.0
    %1133 = vmatpush.msra.mxu0 0.0
    %1134 = vmatpush.msra.mxu0 0.0
    %1135 = vmatpush.msra.mxu0 0.0
    %1136 = vmatpush.msra.mxu0 0.0
    %1137 = vmatpush.msra.mxu0 0.0
    %v1138 = vand.u32 %v116, 4294901760
    %v1139 = vsub.f32 %v116, %v1138
    %v1140 = vand.u32 %v1139, 4294901760
    %1141 = vmatpush.msra.mxu0 %v1140
    %v1142 = vand.u32 %v1021, 4294901760
    %1143 = vmatmul.f32.gmra.mxu0 %v1142
    %v1144 = vpop.f32.mrf.mxu0
    %v1145 = vadd.f32 %v1121, %v1144
    %1146 = vdwg.mxu0
    %1147 = vmatpush.msra.mxu0 0.0
    %1148 = vmatpush.msra.mxu0 0.0
    %1149 = vmatpush.msra.mxu0 0.0
    %1150 = vmatpush.msra.mxu0 0.0
    %1151 = vmatpush.msra.mxu0 0.0
    %1152 = vmatpush.msra.mxu0 0.0
    %1153 = vmatpush.msra.mxu0 0.0
    %1154 = vmatpush.msra.mxu0 0.0
    %1155 = vmatpush.msra.mxu0 0.0
    %1156 = vmatpush.msra.mxu0 0.0
    %1157 = vmatpush.msra.mxu0 0.0
    %1158 = vmatpush.msra.mxu0 0.0
    %1159 = vmatpush.msra.mxu0 0.0
    %1160 = vmatpush.msra.mxu0 0.0
    %1161 = vmatpush.msra.mxu0 0.0
    %v1162 = vand.u32 %v116, 4294901760
    %1163 = vmatpush.msra.mxu0 %v1162
    %v1164 = vand.u32 %v1021, 4294901760
    %1165 = vmatmul.f32.gmra.mxu0 %v1164
    %v1166 = vpop.f32.mrf.mxu0
    %v1167 = vadd.f32 %v1145, %v1166
    %1168 = vdwg.mxu0
    %v1169 = vrot.slane %v95, 7
    %v1170 = vrot.slane %v96, 6
    %v1171 = vsel %vm109, %v1170, %v1169
    %v1172 = vsel %vm111, %v1171, 0
    %1174 = vmatpush.msra.mxu0 0.0
    %1175 = vmatpush.msra.mxu0 0.0
    %1176 = vmatpush.msra.mxu0 0.0
    %1177 = vmatpush.msra.mxu0 0.0
    %1178 = vmatpush.msra.mxu0 0.0
    %1179 = vmatpush.msra.mxu0 0.0
    %1180 = vmatpush.msra.mxu0 0.0
    %1181 = vmatpush.msra.mxu0 0.0
    %1182 = vmatpush.msra.mxu0 0.0
    %1183 = vmatpush.msra.mxu0 0.0
    %1184 = vmatpush.msra.mxu0 0.0
    %1185 = vmatpush.msra.mxu0 0.0
    %1186 = vmatpush.msra.mxu0 0.0
    %1187 = vmatpush.msra.mxu0 0.0
    %1188 = vmatpush.msra.mxu0 0.0
    %v1189 = vand.u32 %v116, 4294901760
    %1190 = vmatpush.msra.mxu0 %v1189
    %v1191 = vand.u32 %v1172, 4294901760
    %v1192 = vsub.f32 %v1172, %v1191
    %v1193 = vand.u32 %v1192, 4294901760
    %v1194 = vsub.f32 %v1192, %v1193
    %v1195 = vand.u32 %v1194, 4294901760
    %1196 = vmatmul.f32.gmra.mxu0 %v1195
    %v1197 = vpop.f32.mrf.mxu0
    %v1198 = vadd.f32 %v104, %v1197
    %1199 = vdwg.mxu0
    %1200 = vmatpush.msra.mxu0 0.0
    %1201 = vmatpush.msra.mxu0 0.0
    %1202 = vmatpush.msra.mxu0 0.0
    %1203 = vmatpush.msra.mxu0 0.0
    %1204 = vmatpush.msra.mxu0 0.0
    %1205 = vmatpush.msra.mxu0 0.0
    %1206 = vmatpush.msra.mxu0 0.0
    %1207 = vmatpush.msra.mxu0 0.0
    %1208 = vmatpush.msra.mxu0 0.0
    %1209 = vmatpush.msra.mxu0 0.0
    %1210 = vmatpush.msra.mxu0 0.0
    %1211 = vmatpush.msra.mxu0 0.0
    %1212 = vmatpush.msra.mxu0 0.0
    %1213 = vmatpush.msra.mxu0 0.0
    %1214 = vmatpush.msra.mxu0 0.0
    %v1215 = vand.u32 %v116, 4294901760
    %v1216 = vsub.f32 %v116, %v1215
    %v1217 = vand.u32 %v1216, 4294901760
    %v1218 = vsub.f32 %v1216, %v1217
    %v1219 = vand.u32 %v1218, 4294901760
    %1220 = vmatpush.msra.mxu0 %v1219
    %v1221 = vand.u32 %v1172, 4294901760
    %1222 = vmatmul.f32.gmra.mxu0 %v1221
    %v1223 = vpop.f32.mrf.mxu0
    %v1224 = vadd.f32 %v1198, %v1223
    %1225 = vdwg.mxu0
    %1226 = vmatpush.msra.mxu0 0.0
    %1227 = vmatpush.msra.mxu0 0.0
    %1228 = vmatpush.msra.mxu0 0.0
    %1229 = vmatpush.msra.mxu0 0.0
    %1230 = vmatpush.msra.mxu0 0.0
    %1231 = vmatpush.msra.mxu0 0.0
    %1232 = vmatpush.msra.mxu0 0.0
    %1233 = vmatpush.msra.mxu0 0.0
    %1234 = vmatpush.msra.mxu0 0.0
    %1235 = vmatpush.msra.mxu0 0.0
    %1236 = vmatpush.msra.mxu0 0.0
    %1237 = vmatpush.msra.mxu0 0.0
    %1238 = vmatpush.msra.mxu0 0.0
    %1239 = vmatpush.msra.mxu0 0.0
    %1240 = vmatpush.msra.mxu0 0.0
    %v1241 = vand.u32 %v116, 4294901760
    %v1242 = vsub.f32 %v116, %v1241
    %1243 = vmatpush.msra.mxu0 %v1242
    %v1244 = vand.u32 %v1172, 4294901760
    %v1245 = vsub.f32 %v1172, %v1244
    %1246 = vmatmul.f32.gmra.mxu0 %v1245
    %v1247 = vpop.f32.mrf.mxu0
    %v1248 = vadd.f32 %v1224, %v1247
    %1249 = vdwg.mxu0
    %1250 = vmatpush.msra.mxu0 0.0
    %1251 = vmatpush.msra.mxu0 0.0
    %1252 = vmatpush.msra.mxu0 0.0
    %1253 = vmatpush.msra.mxu0 0.0
    %1254 = vmatpush.msra.mxu0 0.0
    %1255 = vmatpush.msra.mxu0 0.0
    %1256 = vmatpush.msra.mxu0 0.0
    %1257 = vmatpush.msra.mxu0 0.0
    %1258 = vmatpush.msra.mxu0 0.0
    %1259 = vmatpush.msra.mxu0 0.0
    %1260 = vmatpush.msra.mxu0 0.0
    %1261 = vmatpush.msra.mxu0 0.0
    %1262 = vmatpush.msra.mxu0 0.0
    %1263 = vmatpush.msra.mxu0 0.0
    %1264 = vmatpush.msra.mxu0 0.0
    %v1265 = vand.u32 %v116, 4294901760
    %1266 = vmatpush.msra.mxu0 %v1265
    %v1267 = vand.u32 %v1172, 4294901760
    %v1268 = vsub.f32 %v1172, %v1267
    %v1269 = vand.u32 %v1268, 4294901760
    %1270 = vmatmul.f32.gmra.mxu0 %v1269
    %v1271 = vpop.f32.mrf.mxu0
    %v1272 = vadd.f32 %v1248, %v1271
    %1273 = vdwg.mxu0
    %1274 = vmatpush.msra.mxu0 0.0
    %1275 = vmatpush.msra.mxu0 0.0
    %1276 = vmatpush.msra.mxu0 0.0
    %1277 = vmatpush.msra.mxu0 0.0
    %1278 = vmatpush.msra.mxu0 0.0
    %1279 = vmatpush.msra.mxu0 0.0
    %1280 = vmatpush.msra.mxu0 0.0
    %1281 = vmatpush.msra.mxu0 0.0
    %1282 = vmatpush.msra.mxu0 0.0
    %1283 = vmatpush.msra.mxu0 0.0
    %1284 = vmatpush.msra.mxu0 0.0
    %1285 = vmatpush.msra.mxu0 0.0
    %1286 = vmatpush.msra.mxu0 0.0
    %1287 = vmatpush.msra.mxu0 0.0
    %1288 = vmatpush.msra.mxu0 0.0
    %v1289 = vand.u32 %v116, 4294901760
    %v1290 = vsub.f32 %v116, %v1289
    %v1291 = vand.u32 %v1290, 4294901760
    %1292 = vmatpush.msra.mxu0 %v1291
    %v1293 = vand.u32 %v1172, 4294901760
    %1294 = vmatmul.f32.gmra.mxu0 %v1293
    %v1295 = vpop.f32.mrf.mxu0
    %v1296 = vadd.f32 %v1272, %v1295
    %1297 = vdwg.mxu0
    %1298 = vmatpush.msra.mxu0 0.0
    %1299 = vmatpush.msra.mxu0 0.0
    %1300 = vmatpush.msra.mxu0 0.0
    %1301 = vmatpush.msra.mxu0 0.0
    %1302 = vmatpush.msra.mxu0 0.0
    %1303 = vmatpush.msra.mxu0 0.0
    %1304 = vmatpush.msra.mxu0 0.0
    %1305 = vmatpush.msra.mxu0 0.0
    %1306 = vmatpush.msra.mxu0 0.0
    %1307 = vmatpush.msra.mxu0 0.0
    %1308 = vmatpush.msra.mxu0 0.0
    %1309 = vmatpush.msra.mxu0 0.0
    %1310 = vmatpush.msra.mxu0 0.0
    %1311 = vmatpush.msra.mxu0 0.0
    %1312 = vmatpush.msra.mxu0 0.0
    %v1313 = vand.u32 %v116, 4294901760
    %1314 = vmatpush.msra.mxu0 %v1313
    %v1315 = vand.u32 %v1172, 4294901760
    %1316 = vmatmul.f32.gmra.mxu0 %v1315
    %v1317 = vpop.f32.mrf.mxu0
    %v1318 = vadd.f32 %v1296, %v1317
    %1319 = vdwg.mxu0
    %vm1320 = vcmask 261120
    %v1322 = vsel %vm1320, 0.0, 0
    %1324 = vmatpush.msra.mxu0 0.0
    %1325 = vmatpush.msra.mxu0 0.0
    %1326 = vmatpush.msra.mxu0 0.0
    %1327 = vmatpush.msra.mxu0 0.0
    %1328 = vmatpush.msra.mxu0 0.0
    %1329 = vmatpush.msra.mxu0 0.0
    %1330 = vmatpush.msra.mxu0 0.0
    %1331 = vmatpush.msra.mxu0 0.0
    %1332 = vmatpush.msra.mxu0 0.0
    %1333 = vmatpush.msra.mxu0 0.0
    %1334 = vmatpush.msra.mxu0 0.0
    %1335 = vmatpush.msra.mxu0 0.0
    %v1336 = vand.u32 %v101, 4294901760
    %1337 = vmatpush.msra.mxu0 %v1336
    %v1338 = vand.u32 %v100, 4294901760
    %1339 = vmatpush.msra.mxu0 %v1338
    %v1340 = vand.u32 %v99, 4294901760
    %1341 = vmatpush.msra.mxu0 %v1340
    %v1342 = vand.u32 %v98, 4294901760
    %1343 = vmatpush.msra.mxu0 %v1342
    %v1344 = vand.u32 %v1322, 4294901760
    %v1345 = vsub.f32 %v1322, %v1344
    %v1346 = vand.u32 %v1345, 4294901760
    %v1347 = vsub.f32 %v1345, %v1346
    %v1348 = vand.u32 %v1347, 4294901760
    %1349 = vmatmul.f32.gmra.mxu0 %v1348
    %v1350 = vpop.f32.mrf.mxu0
    %v1351 = vadd.f32 0.0, %v1350
    %1352 = vdwg.mxu0
    %1353 = vmatpush.msra.mxu0 0.0
    %1354 = vmatpush.msra.mxu0 0.0
    %1355 = vmatpush.msra.mxu0 0.0
    %1356 = vmatpush.msra.mxu0 0.0
    %1357 = vmatpush.msra.mxu0 0.0
    %1358 = vmatpush.msra.mxu0 0.0
    %1359 = vmatpush.msra.mxu0 0.0
    %1360 = vmatpush.msra.mxu0 0.0
    %1361 = vmatpush.msra.mxu0 0.0
    %1362 = vmatpush.msra.mxu0 0.0
    %1363 = vmatpush.msra.mxu0 0.0
    %1364 = vmatpush.msra.mxu0 0.0
    %v1365 = vand.u32 %v101, 4294901760
    %v1366 = vsub.f32 %v101, %v1365
    %v1367 = vand.u32 %v1366, 4294901760
    %v1368 = vsub.f32 %v1366, %v1367
    %v1369 = vand.u32 %v1368, 4294901760
    %1370 = vmatpush.msra.mxu0 %v1369
    %v1371 = vand.u32 %v100, 4294901760
    %v1372 = vsub.f32 %v100, %v1371
    %v1373 = vand.u32 %v1372, 4294901760
    %v1374 = vsub.f32 %v1372, %v1373
    %v1375 = vand.u32 %v1374, 4294901760
    %1376 = vmatpush.msra.mxu0 %v1375
    %v1377 = vand.u32 %v99, 4294901760
    %v1378 = vsub.f32 %v99, %v1377
    %v1379 = vand.u32 %v1378, 4294901760
    %v1380 = vsub.f32 %v1378, %v1379
    %v1381 = vand.u32 %v1380, 4294901760
    %1382 = vmatpush.msra.mxu0 %v1381
    %v1383 = vand.u32 %v98, 4294901760
    %v1384 = vsub.f32 %v98, %v1383
    %v1385 = vand.u32 %v1384, 4294901760
    %v1386 = vsub.f32 %v1384, %v1385
    %v1387 = vand.u32 %v1386, 4294901760
    %1388 = vmatpush.msra.mxu0 %v1387
    %v1389 = vand.u32 %v1322, 4294901760
    %1390 = vmatmul.f32.gmra.mxu0 %v1389
    %v1391 = vpop.f32.mrf.mxu0
    %v1392 = vadd.f32 %v1351, %v1391
    %1393 = vdwg.mxu0
    %1394 = vmatpush.msra.mxu0 0.0
    %1395 = vmatpush.msra.mxu0 0.0
    %1396 = vmatpush.msra.mxu0 0.0
    %1397 = vmatpush.msra.mxu0 0.0
    %1398 = vmatpush.msra.mxu0 0.0
    %1399 = vmatpush.msra.mxu0 0.0
    %1400 = vmatpush.msra.mxu0 0.0
    %1401 = vmatpush.msra.mxu0 0.0
    %1402 = vmatpush.msra.mxu0 0.0
    %1403 = vmatpush.msra.mxu0 0.0
    %1404 = vmatpush.msra.mxu0 0.0
    %1405 = vmatpush.msra.mxu0 0.0
    %v1406 = vand.u32 %v101, 4294901760
    %v1407 = vsub.f32 %v101, %v1406
    %1408 = vmatpush.msra.mxu0 %v1407
    %v1409 = vand.u32 %v100, 4294901760
    %v1410 = vsub.f32 %v100, %v1409
    %1411 = vmatpush.msra.mxu0 %v1410
    %v1412 = vand.u32 %v99, 4294901760
    %v1413 = vsub.f32 %v99, %v1412
    %1414 = vmatpush.msra.mxu0 %v1413
    %v1415 = vand.u32 %v98, 4294901760
    %v1416 = vsub.f32 %v98, %v1415
    %1417 = vmatpush.msra.mxu0 %v1416
    %v1418 = vand.u32 %v1322, 4294901760
    %v1419 = vsub.f32 %v1322, %v1418
    %1420 = vmatmul.f32.gmra.mxu0 %v1419
    %v1421 = vpop.f32.mrf.mxu0
    %v1422 = vadd.f32 %v1392, %v1421
    %1423 = vdwg.mxu0
    %1424 = vmatpush.msra.mxu0 0.0
    %1425 = vmatpush.msra.mxu0 0.0
    %1426 = vmatpush.msra.mxu0 0.0
    %1427 = vmatpush.msra.mxu0 0.0
    %1428 = vmatpush.msra.mxu0 0.0
    %1429 = vmatpush.msra.mxu0 0.0
    %1430 = vmatpush.msra.mxu0 0.0
    %1431 = vmatpush.msra.mxu0 0.0
    %1432 = vmatpush.msra.mxu0 0.0
    %1433 = vmatpush.msra.mxu0 0.0
    %1434 = vmatpush.msra.mxu0 0.0
    %1435 = vmatpush.msra.mxu0 0.0
    %v1436 = vand.u32 %v101, 4294901760
    %1437 = vmatpush.msra.mxu0 %v1436
    %v1438 = vand.u32 %v100, 4294901760
    %1439 = vmatpush.msra.mxu0 %v1438
    %v1440 = vand.u32 %v99, 4294901760
    %1441 = vmatpush.msra.mxu0 %v1440
    %v1442 = vand.u32 %v98, 4294901760
    %1443 = vmatpush.msra.mxu0 %v1442
    %v1444 = vand.u32 %v1322, 4294901760
    %v1445 = vsub.f32 %v1322, %v1444
    %v1446 = vand.u32 %v1445, 4294901760
    %1447 = vmatmul.f32.gmra.mxu0 %v1446
    %v1448 = vpop.f32.mrf.mxu0
    %v1449 = vadd.f32 %v1422, %v1448
    %1450 = vdwg.mxu0
    %1451 = vmatpush.msra.mxu0 0.0
    %1452 = vmatpush.msra.mxu0 0.0
    %1453 = vmatpush.msra.mxu0 0.0
    %1454 = vmatpush.msra.mxu0 0.0
    %1455 = vmatpush.msra.mxu0 0.0
    %1456 = vmatpush.msra.mxu0 0.0
    %1457 = vmatpush.msra.mxu0 0.0
    %1458 = vmatpush.msra.mxu0 0.0
    %1459 = vmatpush.msra.mxu0 0.0
    %1460 = vmatpush.msra.mxu0 0.0
    %1461 = vmatpush.msra.mxu0 0.0
    %1462 = vmatpush.msra.mxu0 0.0
    %v1463 = vand.u32 %v101, 4294901760
    %v1464 = vsub.f32 %v101, %v1463
    %v1465 = vand.u32 %v1464, 4294901760
    %1466 = vmatpush.msra.mxu0 %v1465
    %v1467 = vand.u32 %v100, 4294901760
    %v1468 = vsub.f32 %v100, %v1467
    %v1469 = vand.u32 %v1468, 4294901760
    %1470 = vmatpush.msra.mxu0 %v1469
    %v1471 = vand.u32 %v99, 4294901760
    %v1472 = vsub.f32 %v99, %v1471
    %v1473 = vand.u32 %v1472, 4294901760
    %1474 = vmatpush.msra.mxu0 %v1473
    %v1475 = vand.u32 %v98, 4294901760
    %v1476 = vsub.f32 %v98, %v1475
    %v1477 = vand.u32 %v1476, 4294901760
    %1478 = vmatpush.msra.mxu0 %v1477
    %v1479 = vand.u32 %v1322, 4294901760
    %1480 = vmatmul.f32.gmra.mxu0 %v1479
    %v1481 = vpop.f32.mrf.mxu0
    %v1482 = vadd.f32 %v1449, %v1481
    %1483 = vdwg.mxu0
    %1484 = vmatpush.msra.mxu0 0.0
    %1485 = vmatpush.msra.mxu0 0.0
    %1486 = vmatpush.msra.mxu0 0.0
    %1487 = vmatpush.msra.mxu0 0.0
    %1488 = vmatpush.msra.mxu0 0.0
    %1489 = vmatpush.msra.mxu0 0.0
    %1490 = vmatpush.msra.mxu0 0.0
    %1491 = vmatpush.msra.mxu0 0.0
    %1492 = vmatpush.msra.mxu0 0.0
    %1493 = vmatpush.msra.mxu0 0.0
    %1494 = vmatpush.msra.mxu0 0.0
    %1495 = vmatpush.msra.mxu0 0.0
    %v1496 = vand.u32 %v101, 4294901760
    %1497 = vmatpush.msra.mxu0 %v1496
    %v1498 = vand.u32 %v100, 4294901760
    %1499 = vmatpush.msra.mxu0 %v1498
    %v1500 = vand.u32 %v99, 4294901760
    %1501 = vmatpush.msra.mxu0 %v1500
    %v1502 = vand.u32 %v98, 4294901760
    %1503 = vmatpush.msra.mxu0 %v1502
    %v1504 = vand.u32 %v1322, 4294901760
    %1505 = vmatmul.f32.gmra.mxu0 %v1504
    %v1506 = vpop.f32.mrf.mxu0
    %v1507 = vadd.f32 %v1482, %v1506
    %1508 = vdwg.mxu0
    %v1509 = vadd.f32 %v262, %v1507
    %v1510 = vxor.u32 %v1509, 2147483648
    %v1511 = vmul.f32 %v1510, 1.442695
    %v1512 = vpow.pop %v1511
    %v1513 = vadd.f32 %v1512, 1.0
    %v1514 = vrcp.pop %v1513
    %v1515 = vmul.f32 %v1513, %v1514
    %v1516 = vsub.f32 1.0, %v1515
    %v1517 = vmul.f32 %v1514, %v1516
    %v1518 = vadd.f32 %v1514, %v1517
    %vm1519 = vweird.f32 %v1513
    %vm1520 = vweird.f32 %v1514
    %vm1521 = vmor %vm1519, %vm1520
    %v1522 = vsel %vm1521, %v1514, %v1518
    %v1523 = vand.u32 2147483647, %v1513
    %vm1524 = vcmp.eq.f32.partialorder %v1523, 8.507059e+37
    %v1525 = vand.u32 %v1513, 2147483648
    %v1526 = vor.u32 1.1754944e-38, %v1525
    %v1527 = vsel %vm1524, %v1526, %v1522
    %v1528 = vmul.f32 1.0, %v1527
    %v1529 = vtanh.pop %v1509
    %v1530 = vmul.f32 %v1528, 0.0
    %1532 = vrot.lane.b32.xlu0 %v1529, 64
    %v1533 = vpop.permute.xlu0 %1532
    %v1535 = vmul.f32 %v1528, %v1533
    %1537 = vrot.lane.b32.xlu0 %v1535, 32
    %v1538 = vpop.permute.xlu0 %1537
    %v1540 = vadd.f32 %v1530, %v1538
    %v1541 = vtanh.pop %v1540
    %1543 = vrot.lane.b32.xlu0 %v1541, 64
    %v1544 = vpop.permute.xlu0 %1543
    %v1546 = vmul.f32 %v1528, %v1544
    %1548 = vrot.lane.b32.xlu0 %v1546, 32
    %v1549 = vpop.permute.xlu0 %1548
    %v1550 = vsel %vm1320, %v1549, 0
    %1552 = vmatpush.msra.mxu0 0.0
    %1553 = vmatpush.msra.mxu0 0.0
    %1554 = vmatpush.msra.mxu0 0.0
    %1555 = vmatpush.msra.mxu0 0.0
    %1556 = vmatpush.msra.mxu0 0.0
    %1557 = vmatpush.msra.mxu0 0.0
    %1558 = vmatpush.msra.mxu0 0.0
    %1559 = vmatpush.msra.mxu0 0.0
    %1560 = vmatpush.msra.mxu0 0.0
    %1561 = vmatpush.msra.mxu0 0.0
    %1562 = vmatpush.msra.mxu0 0.0
    %1563 = vmatpush.msra.mxu0 0.0
    %v1564 = vand.u32 %v101, 4294901760
    %1565 = vmatpush.msra.mxu0 %v1564
    %v1566 = vand.u32 %v100, 4294901760
    %1567 = vmatpush.msra.mxu0 %v1566
    %v1568 = vand.u32 %v99, 4294901760
    %1569 = vmatpush.msra.mxu0 %v1568
    %v1570 = vand.u32 %v98, 4294901760
    %1571 = vmatpush.msra.mxu0 %v1570
    %v1572 = vand.u32 %v1550, 4294901760
    %v1573 = vsub.f32 %v1550, %v1572
    %v1574 = vand.u32 %v1573, 4294901760
    %v1575 = vsub.f32 %v1573, %v1574
    %v1576 = vand.u32 %v1575, 4294901760
    %1577 = vmatmul.f32.gmra.mxu0 %v1576
    %v1578 = vpop.f32.mrf.mxu0
    %v1579 = vadd.f32 0.0, %v1578
    %1580 = vdwg.mxu0
    %1581 = vmatpush.msra.mxu0 0.0
    %1582 = vmatpush.msra.mxu0 0.0
    %1583 = vmatpush.msra.mxu0 0.0
    %1584 = vmatpush.msra.mxu0 0.0
    %1585 = vmatpush.msra.mxu0 0.0
    %1586 = vmatpush.msra.mxu0 0.0
    %1587 = vmatpush.msra.mxu0 0.0
    %1588 = vmatpush.msra.mxu0 0.0
    %1589 = vmatpush.msra.mxu0 0.0
    %1590 = vmatpush.msra.mxu0 0.0
    %1591 = vmatpush.msra.mxu0 0.0
    %1592 = vmatpush.msra.mxu0 0.0
    %v1593 = vand.u32 %v101, 4294901760
    %v1594 = vsub.f32 %v101, %v1593
    %v1595 = vand.u32 %v1594, 4294901760
    %v1596 = vsub.f32 %v1594, %v1595
    %v1597 = vand.u32 %v1596, 4294901760
    %1598 = vmatpush.msra.mxu0 %v1597
    %v1599 = vand.u32 %v100, 4294901760
    %v1600 = vsub.f32 %v100, %v1599
    %v1601 = vand.u32 %v1600, 4294901760
    %v1602 = vsub.f32 %v1600, %v1601
    %v1603 = vand.u32 %v1602, 4294901760
    %1604 = vmatpush.msra.mxu0 %v1603
    %v1605 = vand.u32 %v99, 4294901760
    %v1606 = vsub.f32 %v99, %v1605
    %v1607 = vand.u32 %v1606, 4294901760
    %v1608 = vsub.f32 %v1606, %v1607
    %v1609 = vand.u32 %v1608, 4294901760
    %1610 = vmatpush.msra.mxu0 %v1609
    %v1611 = vand.u32 %v98, 4294901760
    %v1612 = vsub.f32 %v98, %v1611
    %v1613 = vand.u32 %v1612, 4294901760
    %v1614 = vsub.f32 %v1612, %v1613
    %v1615 = vand.u32 %v1614, 4294901760
    %1616 = vmatpush.msra.mxu0 %v1615
    %v1617 = vand.u32 %v1550, 4294901760
    %1618 = vmatmul.f32.gmra.mxu0 %v1617
    %v1619 = vpop.f32.mrf.mxu0
    %v1620 = vadd.f32 %v1579, %v1619
    %1621 = vdwg.mxu0
    %1622 = vmatpush.msra.mxu0 0.0
    %1623 = vmatpush.msra.mxu0 0.0
    %1624 = vmatpush.msra.mxu0 0.0
    %1625 = vmatpush.msra.mxu0 0.0
    %1626 = vmatpush.msra.mxu0 0.0
    %1627 = vmatpush.msra.mxu0 0.0
    %1628 = vmatpush.msra.mxu0 0.0
    %1629 = vmatpush.msra.mxu0 0.0
    %1630 = vmatpush.msra.mxu0 0.0
    %1631 = vmatpush.msra.mxu0 0.0
    %1632 = vmatpush.msra.mxu0 0.0
    %1633 = vmatpush.msra.mxu0 0.0
    %v1634 = vand.u32 %v101, 4294901760
    %v1635 = vsub.f32 %v101, %v1634
    %1636 = vmatpush.msra.mxu0 %v1635
    %v1637 = vand.u32 %v100, 4294901760
    %v1638 = vsub.f32 %v100, %v1637
    %1639 = vmatpush.msra.mxu0 %v1638
    %v1640 = vand.u32 %v99, 4294901760
    %v1641 = vsub.f32 %v99, %v1640
    %1642 = vmatpush.msra.mxu0 %v1641
    %v1643 = vand.u32 %v98, 4294901760
    %v1644 = vsub.f32 %v98, %v1643
    %1645 = vmatpush.msra.mxu0 %v1644
    %v1646 = vand.u32 %v1550, 4294901760
    %v1647 = vsub.f32 %v1550, %v1646
    %1648 = vmatmul.f32.gmra.mxu0 %v1647
    %v1649 = vpop.f32.mrf.mxu0
    %v1650 = vadd.f32 %v1620, %v1649
    %1651 = vdwg.mxu0
    %1652 = vmatpush.msra.mxu0 0.0
    %1653 = vmatpush.msra.mxu0 0.0
    %1654 = vmatpush.msra.mxu0 0.0
    %1655 = vmatpush.msra.mxu0 0.0
    %1656 = vmatpush.msra.mxu0 0.0
    %1657 = vmatpush.msra.mxu0 0.0
    %1658 = vmatpush.msra.mxu0 0.0
    %1659 = vmatpush.msra.mxu0 0.0
    %1660 = vmatpush.msra.mxu0 0.0
    %1661 = vmatpush.msra.mxu0 0.0
    %1662 = vmatpush.msra.mxu0 0.0
    %1663 = vmatpush.msra.mxu0 0.0
    %v1664 = vand.u32 %v101, 4294901760
    %1665 = vmatpush.msra.mxu0 %v1664
    %v1666 = vand.u32 %v100, 4294901760
    %1667 = vmatpush.msra.mxu0 %v1666
    %v1668 = vand.u32 %v99, 4294901760
    %1669 = vmatpush.msra.mxu0 %v1668
    %v1670 = vand.u32 %v98, 4294901760
    %1671 = vmatpush.msra.mxu0 %v1670
    %v1672 = vand.u32 %v1550, 4294901760
    %v1673 = vsub.f32 %v1550, %v1672
    %v1674 = vand.u32 %v1673, 4294901760
    %1675 = vmatmul.f32.gmra.mxu0 %v1674
    %v1676 = vpop.f32.mrf.mxu0
    %v1677 = vadd.f32 %v1650, %v1676
    %1678 = vdwg.mxu0
    %1679 = vmatpush.msra.mxu0 0.0
    %1680 = vmatpush.msra.mxu0 0.0
    %1681 = vmatpush.msra.mxu0 0.0
    %1682 = vmatpush.msra.mxu0 0.0
    %1683 = vmatpush.msra.mxu0 0.0
    %1684 = vmatpush.msra.mxu0 0.0
    %1685 = vmatpush.msra.mxu0 0.0
    %1686 = vmatpush.msra.mxu0 0.0
    %1687 = vmatpush.msra.mxu0 0.0
    %1688 = vmatpush.msra.mxu0 0.0
    %1689 = vmatpush.msra.mxu0 0.0
    %1690 = vmatpush.msra.mxu0 0.0
    %v1691 = vand.u32 %v101, 4294901760
    %v1692 = vsub.f32 %v101, %v1691
    %v1693 = vand.u32 %v1692, 4294901760
    %1694 = vmatpush.msra.mxu0 %v1693
    %v1695 = vand.u32 %v100, 4294901760
    %v1696 = vsub.f32 %v100, %v1695
    %v1697 = vand.u32 %v1696, 4294901760
    %1698 = vmatpush.msra.mxu0 %v1697
    %v1699 = vand.u32 %v99, 4294901760
    %v1700 = vsub.f32 %v99, %v1699
    %v1701 = vand.u32 %v1700, 4294901760
    %1702 = vmatpush.msra.mxu0 %v1701
    %v1703 = vand.u32 %v98, 4294901760
    %v1704 = vsub.f32 %v98, %v1703
    %v1705 = vand.u32 %v1704, 4294901760
    %1706 = vmatpush.msra.mxu0 %v1705
    %v1707 = vand.u32 %v1550, 4294901760
    %1708 = vmatmul.f32.gmra.mxu0 %v1707
    %v1709 = vpop.f32.mrf.mxu0
    %v1710 = vadd.f32 %v1677, %v1709
    %1711 = vdwg.mxu0
    %1712 = vmatpush.msra.mxu0 0.0
    %1713 = vmatpush.msra.mxu0 0.0
    %1714 = vmatpush.msra.mxu0 0.0
    %1715 = vmatpush.msra.mxu0 0.0
    %1716 = vmatpush.msra.mxu0 0.0
    %1717 = vmatpush.msra.mxu0 0.0
    %1718 = vmatpush.msra.mxu0 0.0
    %1719 = vmatpush.msra.mxu0 0.0
    %1720 = vmatpush.msra.mxu0 0.0
    %1721 = vmatpush.msra.mxu0 0.0
    %1722 = vmatpush.msra.mxu0 0.0
    %1723 = vmatpush.msra.mxu0 0.0
    %v1724 = vand.u32 %v101, 4294901760
    %1725 = vmatpush.msra.mxu0 %v1724
    %v1726 = vand.u32 %v100, 4294901760
    %1727 = vmatpush.msra.mxu0 %v1726
    %v1728 = vand.u32 %v99, 4294901760
    %1729 = vmatpush.msra.mxu0 %v1728
    %v1730 = vand.u32 %v98, 4294901760
    %1731 = vmatpush.msra.mxu0 %v1730
    %v1732 = vand.u32 %v1550, 4294901760
    %1733 = vmatmul.f32.gmra.mxu0 %v1732
    %v1734 = vpop.f32.mrf.mxu0
    %v1735 = vadd.f32 %v1710, %v1734
    %1736 = vdwg.mxu0
    %v1737 = vadd.f32 %v412, %v1735
    %v1738 = vxor.u32 %v1737, 2147483648
    %v1739 = vmul.f32 %v1738, 1.442695
    %v1740 = vpow.pop %v1739
    %v1741 = vadd.f32 %v1740, 1.0
    %v1742 = vrcp.pop %v1741
    %v1743 = vmul.f32 %v1741, %v1742
    %v1744 = vsub.f32 1.0, %v1743
    %v1745 = vmul.f32 %v1742, %v1744
    %v1746 = vadd.f32 %v1742, %v1745
    %vm1747 = vweird.f32 %v1741
    %vm1748 = vweird.f32 %v1742
    %vm1749 = vmor %vm1747, %vm1748
    %v1750 = vsel %vm1749, %v1742, %v1746
    %v1751 = vand.u32 2147483647, %v1741
    %vm1752 = vcmp.eq.f32.partialorder %v1751, 8.507059e+37
    %v1753 = vand.u32 %v1741, 2147483648
    %v1754 = vor.u32 1.1754944e-38, %v1753
    %v1755 = vsel %vm1752, %v1754, %v1750
    %v1756 = vmul.f32 1.0, %v1755
    %v1757 = vtanh.pop %v1737
    %v1758 = vmul.f32 %v1756, %v1540
    %1760 = vrot.lane.b32.xlu0 %v1757, 64
    %v1761 = vpop.permute.xlu0 %1760
    %v1763 = vmul.f32 %v1756, %v1761
    %1765 = vrot.lane.b32.xlu0 %v1763, 32
    %v1766 = vpop.permute.xlu0 %1765
    %v1768 = vadd.f32 %v1758, %v1766
    %v1769 = vtanh.pop %v1768
    %1771 = vrot.lane.b32.xlu0 %v1769, 64
    %v1772 = vpop.permute.xlu0 %1771
    %v1774 = vmul.f32 %v1756, %v1772
    %1776 = vrot.lane.b32.xlu0 %v1774, 32
    %v1777 = vpop.permute.xlu0 %1776
    %v1778 = vsel %vm1320, %v1777, 0
    %1780 = vmatpush.msra.mxu0 0.0
    %1781 = vmatpush.msra.mxu0 0.0
    %1782 = vmatpush.msra.mxu0 0.0
    %1783 = vmatpush.msra.mxu0 0.0
    %1784 = vmatpush.msra.mxu0 0.0
    %1785 = vmatpush.msra.mxu0 0.0
    %1786 = vmatpush.msra.mxu0 0.0
    %1787 = vmatpush.msra.mxu0 0.0
    %1788 = vmatpush.msra.mxu0 0.0
    %1789 = vmatpush.msra.mxu0 0.0
    %1790 = vmatpush.msra.mxu0 0.0
    %1791 = vmatpush.msra.mxu0 0.0
    %v1792 = vand.u32 %v101, 4294901760
    %1793 = vmatpush.msra.mxu0 %v1792
    %v1794 = vand.u32 %v100, 4294901760
    %1795 = vmatpush.msra.mxu0 %v1794
    %v1796 = vand.u32 %v99, 4294901760
    %1797 = vmatpush.msra.mxu0 %v1796
    %v1798 = vand.u32 %v98, 4294901760
    %1799 = vmatpush.msra.mxu0 %v1798
    %v1800 = vand.u32 %v1778, 4294901760
    %v1801 = vsub.f32 %v1778, %v1800
    %v1802 = vand.u32 %v1801, 4294901760
    %v1803 = vsub.f32 %v1801, %v1802
    %v1804 = vand.u32 %v1803, 4294901760
    %1805 = vmatmul.f32.gmra.mxu0 %v1804
    %v1806 = vpop.f32.mrf.mxu0
    %v1807 = vadd.f32 0.0, %v1806
    %1808 = vdwg.mxu0
    %1809 = vmatpush.msra.mxu0 0.0
    %1810 = vmatpush.msra.mxu0 0.0
    %1811 = vmatpush.msra.mxu0 0.0
    %1812 = vmatpush.msra.mxu0 0.0
    %1813 = vmatpush.msra.mxu0 0.0
    %1814 = vmatpush.msra.mxu0 0.0
    %1815 = vmatpush.msra.mxu0 0.0
    %1816 = vmatpush.msra.mxu0 0.0
    %1817 = vmatpush.msra.mxu0 0.0
    %1818 = vmatpush.msra.mxu0 0.0
    %1819 = vmatpush.msra.mxu0 0.0
    %1820 = vmatpush.msra.mxu0 0.0
    %v1821 = vand.u32 %v101, 4294901760
    %v1822 = vsub.f32 %v101, %v1821
    %v1823 = vand.u32 %v1822, 4294901760
    %v1824 = vsub.f32 %v1822, %v1823
    %v1825 = vand.u32 %v1824, 4294901760
    %1826 = vmatpush.msra.mxu0 %v1825
    %v1827 = vand.u32 %v100, 4294901760
    %v1828 = vsub.f32 %v100, %v1827
    %v1829 = vand.u32 %v1828, 4294901760
    %v1830 = vsub.f32 %v1828, %v1829
    %v1831 = vand.u32 %v1830, 4294901760
    %1832 = vmatpush.msra.mxu0 %v1831
    %v1833 = vand.u32 %v99, 4294901760
    %v1834 = vsub.f32 %v99, %v1833
    %v1835 = vand.u32 %v1834, 4294901760
    %v1836 = vsub.f32 %v1834, %v1835
    %v1837 = vand.u32 %v1836, 4294901760
    %1838 = vmatpush.msra.mxu0 %v1837
    %v1839 = vand.u32 %v98, 4294901760
    %v1840 = vsub.f32 %v98, %v1839
    %v1841 = vand.u32 %v1840, 4294901760
    %v1842 = vsub.f32 %v1840, %v1841
    %v1843 = vand.u32 %v1842, 4294901760
    %1844 = vmatpush.msra.mxu0 %v1843
    %v1845 = vand.u32 %v1778, 4294901760
    %1846 = vmatmul.f32.gmra.mxu0 %v1845
    %v1847 = vpop.f32.mrf.mxu0
    %v1848 = vadd.f32 %v1807, %v1847
    %1849 = vdwg.mxu0
    %1850 = vmatpush.msra.mxu0 0.0
    %1851 = vmatpush.msra.mxu0 0.0
    %1852 = vmatpush.msra.mxu0 0.0
    %1853 = vmatpush.msra.mxu0 0.0
    %1854 = vmatpush.msra.mxu0 0.0
    %1855 = vmatpush.msra.mxu0 0.0
    %1856 = vmatpush.msra.mxu0 0.0
    %1857 = vmatpush.msra.mxu0 0.0
    %1858 = vmatpush.msra.mxu0 0.0
    %1859 = vmatpush.msra.mxu0 0.0
    %1860 = vmatpush.msra.mxu0 0.0
    %1861 = vmatpush.msra.mxu0 0.0
    %v1862 = vand.u32 %v101, 4294901760
    %v1863 = vsub.f32 %v101, %v1862
    %1864 = vmatpush.msra.mxu0 %v1863
    %v1865 = vand.u32 %v100, 4294901760
    %v1866 = vsub.f32 %v100, %v1865
    %1867 = vmatpush.msra.mxu0 %v1866
    %v1868 = vand.u32 %v99, 4294901760
    %v1869 = vsub.f32 %v99, %v1868
    %1870 = vmatpush.msra.mxu0 %v1869
    %v1871 = vand.u32 %v98, 4294901760
    %v1872 = vsub.f32 %v98, %v1871
    %1873 = vmatpush.msra.mxu0 %v1872
    %v1874 = vand.u32 %v1778, 4294901760
    %v1875 = vsub.f32 %v1778, %v1874
    %1876 = vmatmul.f32.gmra.mxu0 %v1875
    %v1877 = vpop.f32.mrf.mxu0
    %v1878 = vadd.f32 %v1848, %v1877
    %1879 = vdwg.mxu0
    %1880 = vmatpush.msra.mxu0 0.0
    %1881 = vmatpush.msra.mxu0 0.0
    %1882 = vmatpush.msra.mxu0 0.0
    %1883 = vmatpush.msra.mxu0 0.0
    %1884 = vmatpush.msra.mxu0 0.0
    %1885 = vmatpush.msra.mxu0 0.0
    %1886 = vmatpush.msra.mxu0 0.0
    %1887 = vmatpush.msra.mxu0 0.0
    %1888 = vmatpush.msra.mxu0 0.0
    %1889 = vmatpush.msra.mxu0 0.0
    %1890 = vmatpush.msra.mxu0 0.0
    %1891 = vmatpush.msra.mxu0 0.0
    %v1892 = vand.u32 %v101, 4294901760
    %1893 = vmatpush.msra.mxu0 %v1892
    %v1894 = vand.u32 %v100, 4294901760
    %1895 = vmatpush.msra.mxu0 %v1894
    %v1896 = vand.u32 %v99, 4294901760
    %1897 = vmatpush.msra.mxu0 %v1896
    %v1898 = vand.u32 %v98, 4294901760
    %1899 = vmatpush.msra.mxu0 %v1898
    %v1900 = vand.u32 %v1778, 4294901760
    %v1901 = vsub.f32 %v1778, %v1900
    %v1902 = vand.u32 %v1901, 4294901760
    %1903 = vmatmul.f32.gmra.mxu0 %v1902
    %v1904 = vpop.f32.mrf.mxu0
    %v1905 = vadd.f32 %v1878, %v1904
    %1906 = vdwg.mxu0
    %1907 = vmatpush.msra.mxu0 0.0
    %1908 = vmatpush.msra.mxu0 0.0
    %1909 = vmatpush.msra.mxu0 0.0
    %1910 = vmatpush.msra.mxu0 0.0
    %1911 = vmatpush.msra.mxu0 0.0
    %1912 = vmatpush.msra.mxu0 0.0
    %1913 = vmatpush.msra.mxu0 0.0
    %1914 = vmatpush.msra.mxu0 0.0
    %1915 = vmatpush.msra.mxu0 0.0
    %1916 = vmatpush.msra.mxu0 0.0
    %1917 = vmatpush.msra.mxu0 0.0
    %1918 = vmatpush.msra.mxu0 0.0
    %v1919 = vand.u32 %v101, 4294901760
    %v1920 = vsub.f32 %v101, %v1919
    %v1921 = vand.u32 %v1920, 4294901760
    %1922 = vmatpush.msra.mxu0 %v1921
    %v1923 = vand.u32 %v100, 4294901760
    %v1924 = vsub.f32 %v100, %v1923
    %v1925 = vand.u32 %v1924, 4294901760
    %1926 = vmatpush.msra.mxu0 %v1925
    %v1927 = vand.u32 %v99, 4294901760
    %v1928 = vsub.f32 %v99, %v1927
    %v1929 = vand.u32 %v1928, 4294901760
    %1930 = vmatpush.msra.mxu0 %v1929
    %v1931 = vand.u32 %v98, 4294901760
    %v1932 = vsub.f32 %v98, %v1931
    %v1933 = vand.u32 %v1932, 4294901760
    %1934 = vmatpush.msra.mxu0 %v1933
    %v1935 = vand.u32 %v1778, 4294901760
    %1936 = vmatmul.f32.gmra.mxu0 %v1935
    %v1937 = vpop.f32.mrf.mxu0
    %v1938 = vadd.f32 %v1905, %v1937
    %1939 = vdwg.mxu0
    %1940 = vmatpush.msra.mxu0 0.0
    %1941 = vmatpush.msra.mxu0 0.0
    %1942 = vmatpush.msra.mxu0 0.0
    %1943 = vmatpush.msra.mxu0 0.0
    %1944 = vmatpush.msra.mxu0 0.0
    %1945 = vmatpush.msra.mxu0 0.0
    %1946 = vmatpush.msra.mxu0 0.0
    %1947 = vmatpush.msra.mxu0 0.0
    %1948 = vmatpush.msra.mxu0 0.0
    %1949 = vmatpush.msra.mxu0 0.0
    %1950 = vmatpush.msra.mxu0 0.0
    %1951 = vmatpush.msra.mxu0 0.0
    %v1952 = vand.u32 %v101, 4294901760
    %1953 = vmatpush.msra.mxu0 %v1952
    %v1954 = vand.u32 %v100, 4294901760
    %1955 = vmatpush.msra.mxu0 %v1954
    %v1956 = vand.u32 %v99, 4294901760
    %1957 = vmatpush.msra.mxu0 %v1956
    %v1958 = vand.u32 %v98, 4294901760
    %1959 = vmatpush.msra.mxu0 %v1958
    %v1960 = vand.u32 %v1778, 4294901760
    %1961 = vmatmul.f32.gmra.mxu0 %v1960
    %v1962 = vpop.f32.mrf.mxu0
    %v1963 = vadd.f32 %v1938, %v1962
    %1964 = vdwg.mxu0
    %v1965 = vadd.f32 %v563, %v1963
    %v1966 = vxor.u32 %v1965, 2147483648
    %v1967 = vmul.f32 %v1966, 1.442695
    %v1968 = vpow.pop %v1967
    %v1969 = vadd.f32 %v1968, 1.0
    %v1970 = vrcp.pop %v1969
    %v1971 = vmul.f32 %v1969, %v1970
    %v1972 = vsub.f32 1.0, %v1971
    %v1973 = vmul.f32 %v1970, %v1972
    %v1974 = vadd.f32 %v1970, %v1973
    %vm1975 = vweird.f32 %v1969
    %vm1976 = vweird.f32 %v1970
    %vm1977 = vmor %vm1975, %vm1976
    %v1978 = vsel %vm1977, %v1970, %v1974
    %v1979 = vand.u32 2147483647, %v1969
    %vm1980 = vcmp.eq.f32.partialorder %v1979, 8.507059e+37
    %v1981 = vand.u32 %v1969, 2147483648
    %v1982 = vor.u32 1.1754944e-38, %v1981
    %v1983 = vsel %vm1980, %v1982, %v1978
    %v1984 = vmul.f32 1.0, %v1983
    %v1985 = vtanh.pop %v1965
    %v1986 = vmul.f32 %v1984, %v1768
    %1988 = vrot.lane.b32.xlu0 %v1985, 64
    %v1989 = vpop.permute.xlu0 %1988
    %v1991 = vmul.f32 %v1984, %v1989
    %1993 = vrot.lane.b32.xlu0 %v1991, 32
    %v1994 = vpop.permute.xlu0 %1993
    %v1996 = vadd.f32 %v1986, %v1994
    %v1997 = vtanh.pop %v1996
    %1999 = vrot.lane.b32.xlu0 %v1997, 64
    %v2000 = vpop.permute.xlu0 %1999
    %v2002 = vmul.f32 %v1984, %v2000
    %2004 = vrot.lane.b32.xlu0 %v2002, 32
    %v2005 = vpop.permute.xlu0 %2004
    %v2006 = vsel %vm1320, %v2005, 0
    %2008 = vmatpush.msra.mxu0 0.0
    %2009 = vmatpush.msra.mxu0 0.0
    %2010 = vmatpush.msra.mxu0 0.0
    %2011 = vmatpush.msra.mxu0 0.0
    %2012 = vmatpush.msra.mxu0 0.0
    %2013 = vmatpush.msra.mxu0 0.0
    %2014 = vmatpush.msra.mxu0 0.0
    %2015 = vmatpush.msra.mxu0 0.0
    %2016 = vmatpush.msra.mxu0 0.0
    %2017 = vmatpush.msra.mxu0 0.0
    %2018 = vmatpush.msra.mxu0 0.0
    %2019 = vmatpush.msra.mxu0 0.0
    %v2020 = vand.u32 %v101, 4294901760
    %2021 = vmatpush.msra.mxu0 %v2020
    %v2022 = vand.u32 %v100, 4294901760
    %2023 = vmatpush.msra.mxu0 %v2022
    %v2024 = vand.u32 %v99, 4294901760
    %2025 = vmatpush.msra.mxu0 %v2024
    %v2026 = vand.u32 %v98, 4294901760
    %2027 = vmatpush.msra.mxu0 %v2026
    %v2028 = vand.u32 %v2006, 4294901760
    %v2029 = vsub.f32 %v2006, %v2028
    %v2030 = vand.u32 %v2029, 4294901760
    %v2031 = vsub.f32 %v2029, %v2030
    %v2032 = vand.u32 %v2031, 4294901760
    %2033 = vmatmul.f32.gmra.mxu0 %v2032
    %v2034 = vpop.f32.mrf.mxu0
    %v2035 = vadd.f32 0.0, %v2034
    %2036 = vdwg.mxu0
    %2037 = vmatpush.msra.mxu0 0.0
    %2038 = vmatpush.msra.mxu0 0.0
    %2039 = vmatpush.msra.mxu0 0.0
    %2040 = vmatpush.msra.mxu0 0.0
    %2041 = vmatpush.msra.mxu0 0.0
    %2042 = vmatpush.msra.mxu0 0.0
    %2043 = vmatpush.msra.mxu0 0.0
    %2044 = vmatpush.msra.mxu0 0.0
    %2045 = vmatpush.msra.mxu0 0.0
    %2046 = vmatpush.msra.mxu0 0.0
    %2047 = vmatpush.msra.mxu0 0.0
    %2048 = vmatpush.msra.mxu0 0.0
    %v2049 = vand.u32 %v101, 4294901760
    %v2050 = vsub.f32 %v101, %v2049
    %v2051 = vand.u32 %v2050, 4294901760
    %v2052 = vsub.f32 %v2050, %v2051
    %v2053 = vand.u32 %v2052, 4294901760
    %2054 = vmatpush.msra.mxu0 %v2053
    %v2055 = vand.u32 %v100, 4294901760
    %v2056 = vsub.f32 %v100, %v2055
    %v2057 = vand.u32 %v2056, 4294901760
    %v2058 = vsub.f32 %v2056, %v2057
    %v2059 = vand.u32 %v2058, 4294901760
    %2060 = vmatpush.msra.mxu0 %v2059
    %v2061 = vand.u32 %v99, 4294901760
    %v2062 = vsub.f32 %v99, %v2061
    %v2063 = vand.u32 %v2062, 4294901760
    %v2064 = vsub.f32 %v2062, %v2063
    %v2065 = vand.u32 %v2064, 4294901760
    %2066 = vmatpush.msra.mxu0 %v2065
    %v2067 = vand.u32 %v98, 4294901760
    %v2068 = vsub.f32 %v98, %v2067
    %v2069 = vand.u32 %v2068, 4294901760
    %v2070 = vsub.f32 %v2068, %v2069
    %v2071 = vand.u32 %v2070, 4294901760
    %2072 = vmatpush.msra.mxu0 %v2071
    %v2073 = vand.u32 %v2006, 4294901760
    %2074 = vmatmul.f32.gmra.mxu0 %v2073
    %v2075 = vpop.f32.mrf.mxu0
    %v2076 = vadd.f32 %v2035, %v2075
    %2077 = vdwg.mxu0
    %2078 = vmatpush.msra.mxu0 0.0
    %2079 = vmatpush.msra.mxu0 0.0
    %2080 = vmatpush.msra.mxu0 0.0
    %2081 = vmatpush.msra.mxu0 0.0
    %2082 = vmatpush.msra.mxu0 0.0
    %2083 = vmatpush.msra.mxu0 0.0
    %2084 = vmatpush.msra.mxu0 0.0
    %2085 = vmatpush.msra.mxu0 0.0
    %2086 = vmatpush.msra.mxu0 0.0
    %2087 = vmatpush.msra.mxu0 0.0
    %2088 = vmatpush.msra.mxu0 0.0
    %2089 = vmatpush.msra.mxu0 0.0
    %v2090 = vand.u32 %v101, 4294901760
    %v2091 = vsub.f32 %v101, %v2090
    %2092 = vmatpush.msra.mxu0 %v2091
    %v2093 = vand.u32 %v100, 4294901760
    %v2094 = vsub.f32 %v100, %v2093
    %2095 = vmatpush.msra.mxu0 %v2094
    %v2096 = vand.u32 %v99, 4294901760
    %v2097 = vsub.f32 %v99, %v2096
    %2098 = vmatpush.msra.mxu0 %v2097
    %v2099 = vand.u32 %v98, 4294901760
    %v2100 = vsub.f32 %v98, %v2099
    %2101 = vmatpush.msra.mxu0 %v2100
    %v2102 = vand.u32 %v2006, 4294901760
    %v2103 = vsub.f32 %v2006, %v2102
    %2104 = vmatmul.f32.gmra.mxu0 %v2103
    %v2105 = vpop.f32.mrf.mxu0
    %v2106 = vadd.f32 %v2076, %v2105
    %2107 = vdwg.mxu0
    %2108 = vmatpush.msra.mxu0 0.0
    %2109 = vmatpush.msra.mxu0 0.0
    %2110 = vmatpush.msra.mxu0 0.0
    %2111 = vmatpush.msra.mxu0 0.0
    %2112 = vmatpush.msra.mxu0 0.0
    %2113 = vmatpush.msra.mxu0 0.0
    %2114 = vmatpush.msra.mxu0 0.0
    %2115 = vmatpush.msra.mxu0 0.0
    %2116 = vmatpush.msra.mxu0 0.0
    %2117 = vmatpush.msra.mxu0 0.0
    %2118 = vmatpush.msra.mxu0 0.0
    %2119 = vmatpush.msra.mxu0 0.0
    %v2120 = vand.u32 %v101, 4294901760
    %2121 = vmatpush.msra.mxu0 %v2120
    %v2122 = vand.u32 %v100, 4294901760
    %2123 = vmatpush.msra.mxu0 %v2122
    %v2124 = vand.u32 %v99, 4294901760
    %2125 = vmatpush.msra.mxu0 %v2124
    %v2126 = vand.u32 %v98, 4294901760
    %2127 = vmatpush.msra.mxu0 %v2126
    %v2128 = vand.u32 %v2006, 4294901760
    %v2129 = vsub.f32 %v2006, %v2128
    %v2130 = vand.u32 %v2129, 4294901760
    %2131 = vmatmul.f32.gmra.mxu0 %v2130
    %v2132 = vpop.f32.mrf.mxu0
    %v2133 = vadd.f32 %v2106, %v2132
    %2134 = vdwg.mxu0
    %2135 = vmatpush.msra.mxu0 0.0
    %2136 = vmatpush.msra.mxu0 0.0
    %2137 = vmatpush.msra.mxu0 0.0
    %2138 = vmatpush.msra.mxu0 0.0
    %2139 = vmatpush.msra.mxu0 0.0
    %2140 = vmatpush.msra.mxu0 0.0
    %2141 = vmatpush.msra.mxu0 0.0
    %2142 = vmatpush.msra.mxu0 0.0
    %2143 = vmatpush.msra.mxu0 0.0
    %2144 = vmatpush.msra.mxu0 0.0
    %2145 = vmatpush.msra.mxu0 0.0
    %2146 = vmatpush.msra.mxu0 0.0
    %v2147 = vand.u32 %v101, 4294901760
    %v2148 = vsub.f32 %v101, %v2147
    %v2149 = vand.u32 %v2148, 4294901760
    %2150 = vmatpush.msra.mxu0 %v2149
    %v2151 = vand.u32 %v100, 4294901760
    %v2152 = vsub.f32 %v100, %v2151
    %v2153 = vand.u32 %v2152, 4294901760
    %2154 = vmatpush.msra.mxu0 %v2153
    %v2155 = vand.u32 %v99, 4294901760
    %v2156 = vsub.f32 %v99, %v2155
    %v2157 = vand.u32 %v2156, 4294901760
    %2158 = vmatpush.msra.mxu0 %v2157
    %v2159 = vand.u32 %v98, 4294901760
    %v2160 = vsub.f32 %v98, %v2159
    %v2161 = vand.u32 %v2160, 4294901760
    %2162 = vmatpush.msra.mxu0 %v2161
    %v2163 = vand.u32 %v2006, 4294901760
    %2164 = vmatmul.f32.gmra.mxu0 %v2163
    %v2165 = vpop.f32.mrf.mxu0
    %v2166 = vadd.f32 %v2133, %v2165
    %2167 = vdwg.mxu0
    %2168 = vmatpush.msra.mxu0 0.0
    %2169 = vmatpush.msra.mxu0 0.0
    %2170 = vmatpush.msra.mxu0 0.0
    %2171 = vmatpush.msra.mxu0 0.0
    %2172 = vmatpush.msra.mxu0 0.0
    %2173 = vmatpush.msra.mxu0 0.0
    %2174 = vmatpush.msra.mxu0 0.0
    %2175 = vmatpush.msra.mxu0 0.0
    %2176 = vmatpush.msra.mxu0 0.0
    %2177 = vmatpush.msra.mxu0 0.0
    %2178 = vmatpush.msra.mxu0 0.0
    %2179 = vmatpush.msra.mxu0 0.0
    %v2180 = vand.u32 %v101, 4294901760
    %2181 = vmatpush.msra.mxu0 %v2180
    %v2182 = vand.u32 %v100, 4294901760
    %2183 = vmatpush.msra.mxu0 %v2182
    %v2184 = vand.u32 %v99, 4294901760
    %2185 = vmatpush.msra.mxu0 %v2184
    %v2186 = vand.u32 %v98, 4294901760
    %2187 = vmatpush.msra.mxu0 %v2186
    %v2188 = vand.u32 %v2006, 4294901760
    %2189 = vmatmul.f32.gmra.mxu0 %v2188
    %v2190 = vpop.f32.mrf.mxu0
    %v2191 = vadd.f32 %v2166, %v2190
    %2192 = vdwg.mxu0
    %v2193 = vadd.f32 %v714, %v2191
    %v2194 = vxor.u32 %v2193, 2147483648
    %v2195 = vmul.f32 %v2194, 1.442695
    %v2196 = vpow.pop %v2195
    %v2197 = vadd.f32 %v2196, 1.0
    %v2198 = vrcp.pop %v2197
    %v2199 = vmul.f32 %v2197, %v2198
    %v2200 = vsub.f32 1.0, %v2199
    %v2201 = vmul.f32 %v2198, %v2200
    %v2202 = vadd.f32 %v2198, %v2201
    %vm2203 = vweird.f32 %v2197
    %vm2204 = vweird.f32 %v2198
    %vm2205 = vmor %vm2203, %vm2204
    %v2206 = vsel %vm2205, %v2198, %v2202
    %v2207 = vand.u32 2147483647, %v2197
    %vm2208 = vcmp.eq.f32.partialorder %v2207, 8.507059e+37
    %v2209 = vand.u32 %v2197, 2147483648
    %v2210 = vor.u32 1.1754944e-38, %v2209
    %v2211 = vsel %vm2208, %v2210, %v2206
    %v2212 = vmul.f32 1.0, %v2211
    %v2213 = vtanh.pop %v2193
    %v2214 = vmul.f32 %v2212, %v1996
    %2216 = vrot.lane.b32.xlu0 %v2213, 64
    %v2217 = vpop.permute.xlu0 %2216
    %v2219 = vmul.f32 %v2212, %v2217
    %2221 = vrot.lane.b32.xlu0 %v2219, 32
    %v2222 = vpop.permute.xlu0 %2221
    %v2224 = vadd.f32 %v2214, %v2222
    %v2225 = vtanh.pop %v2224
    %2227 = vrot.lane.b32.xlu0 %v2225, 64
    %v2228 = vpop.permute.xlu0 %2227
    %v2230 = vmul.f32 %v2212, %v2228
    %2232 = vrot.lane.b32.xlu0 %v2230, 32
    %v2233 = vpop.permute.xlu0 %2232
    %v2234 = vsel %vm1320, %v2233, 0
    %2236 = vmatpush.msra.mxu0 0.0
    %2237 = vmatpush.msra.mxu0 0.0
    %2238 = vmatpush.msra.mxu0 0.0
    %2239 = vmatpush.msra.mxu0 0.0
    %2240 = vmatpush.msra.mxu0 0.0
    %2241 = vmatpush.msra.mxu0 0.0
    %2242 = vmatpush.msra.mxu0 0.0
    %2243 = vmatpush.msra.mxu0 0.0
    %2244 = vmatpush.msra.mxu0 0.0
    %2245 = vmatpush.msra.mxu0 0.0
    %2246 = vmatpush.msra.mxu0 0.0
    %2247 = vmatpush.msra.mxu0 0.0
    %v2248 = vand.u32 %v101, 4294901760
    %2249 = vmatpush.msra.mxu0 %v2248
    %v2250 = vand.u32 %v100, 4294901760
    %2251 = vmatpush.msra.mxu0 %v2250
    %v2252 = vand.u32 %v99, 4294901760
    %2253 = vmatpush.msra.mxu0 %v2252
    %v2254 = vand.u32 %v98, 4294901760
    %2255 = vmatpush.msra.mxu0 %v2254
    %v2256 = vand.u32 %v2234, 4294901760
    %v2257 = vsub.f32 %v2234, %v2256
    %v2258 = vand.u32 %v2257, 4294901760
    %v2259 = vsub.f32 %v2257, %v2258
    %v2260 = vand.u32 %v2259, 4294901760
    %2261 = vmatmul.f32.gmra.mxu0 %v2260
    %v2262 = vpop.f32.mrf.mxu0
    %v2263 = vadd.f32 0.0, %v2262
    %2264 = vdwg.mxu0
    %2265 = vmatpush.msra.mxu0 0.0
    %2266 = vmatpush.msra.mxu0 0.0
    %2267 = vmatpush.msra.mxu0 0.0
    %2268 = vmatpush.msra.mxu0 0.0
    %2269 = vmatpush.msra.mxu0 0.0
    %2270 = vmatpush.msra.mxu0 0.0
    %2271 = vmatpush.msra.mxu0 0.0
    %2272 = vmatpush.msra.mxu0 0.0
    %2273 = vmatpush.msra.mxu0 0.0
    %2274 = vmatpush.msra.mxu0 0.0
    %2275 = vmatpush.msra.mxu0 0.0
    %2276 = vmatpush.msra.mxu0 0.0
    %v2277 = vand.u32 %v101, 4294901760
    %v2278 = vsub.f32 %v101, %v2277
    %v2279 = vand.u32 %v2278, 4294901760
    %v2280 = vsub.f32 %v2278, %v2279
    %v2281 = vand.u32 %v2280, 4294901760
    %2282 = vmatpush.msra.mxu0 %v2281
    %v2283 = vand.u32 %v100, 4294901760
    %v2284 = vsub.f32 %v100, %v2283
    %v2285 = vand.u32 %v2284, 4294901760
    %v2286 = vsub.f32 %v2284, %v2285
    %v2287 = vand.u32 %v2286, 4294901760
    %2288 = vmatpush.msra.mxu0 %v2287
    %v2289 = vand.u32 %v99, 4294901760
    %v2290 = vsub.f32 %v99, %v2289
    %v2291 = vand.u32 %v2290, 4294901760
    %v2292 = vsub.f32 %v2290, %v2291
    %v2293 = vand.u32 %v2292, 4294901760
    %2294 = vmatpush.msra.mxu0 %v2293
    %v2295 = vand.u32 %v98, 4294901760
    %v2296 = vsub.f32 %v98, %v2295
    %v2297 = vand.u32 %v2296, 4294901760
    %v2298 = vsub.f32 %v2296, %v2297
    %v2299 = vand.u32 %v2298, 4294901760
    %2300 = vmatpush.msra.mxu0 %v2299
    %v2301 = vand.u32 %v2234, 4294901760
    %2302 = vmatmul.f32.gmra.mxu0 %v2301
    %v2303 = vpop.f32.mrf.mxu0
    %v2304 = vadd.f32 %v2263, %v2303
    %2305 = vdwg.mxu0
    %2306 = vmatpush.msra.mxu0 0.0
    %2307 = vmatpush.msra.mxu0 0.0
    %2308 = vmatpush.msra.mxu0 0.0
    %2309 = vmatpush.msra.mxu0 0.0
    %2310 = vmatpush.msra.mxu0 0.0
    %2311 = vmatpush.msra.mxu0 0.0
    %2312 = vmatpush.msra.mxu0 0.0
    %2313 = vmatpush.msra.mxu0 0.0
    %2314 = vmatpush.msra.mxu0 0.0
    %2315 = vmatpush.msra.mxu0 0.0
    %2316 = vmatpush.msra.mxu0 0.0
    %2317 = vmatpush.msra.mxu0 0.0
    %v2318 = vand.u32 %v101, 4294901760
    %v2319 = vsub.f32 %v101, %v2318
    %2320 = vmatpush.msra.mxu0 %v2319
    %v2321 = vand.u32 %v100, 4294901760
    %v2322 = vsub.f32 %v100, %v2321
    %2323 = vmatpush.msra.mxu0 %v2322
    %v2324 = vand.u32 %v99, 4294901760
    %v2325 = vsub.f32 %v99, %v2324
    %2326 = vmatpush.msra.mxu0 %v2325
    %v2327 = vand.u32 %v98, 4294901760
    %v2328 = vsub.f32 %v98, %v2327
    %2329 = vmatpush.msra.mxu0 %v2328
    %v2330 = vand.u32 %v2234, 4294901760
    %v2331 = vsub.f32 %v2234, %v2330
    %2332 = vmatmul.f32.gmra.mxu0 %v2331
    %v2333 = vpop.f32.mrf.mxu0
    %v2334 = vadd.f32 %v2304, %v2333
    %2335 = vdwg.mxu0
    %2336 = vmatpush.msra.mxu0 0.0
    %2337 = vmatpush.msra.mxu0 0.0
    %2338 = vmatpush.msra.mxu0 0.0
    %2339 = vmatpush.msra.mxu0 0.0
    %2340 = vmatpush.msra.mxu0 0.0
    %2341 = vmatpush.msra.mxu0 0.0
    %2342 = vmatpush.msra.mxu0 0.0
    %2343 = vmatpush.msra.mxu0 0.0
    %2344 = vmatpush.msra.mxu0 0.0
    %2345 = vmatpush.msra.mxu0 0.0
    %2346 = vmatpush.msra.mxu0 0.0
    %2347 = vmatpush.msra.mxu0 0.0
    %v2348 = vand.u32 %v101, 4294901760
    %2349 = vmatpush.msra.mxu0 %v2348
    %v2350 = vand.u32 %v100, 4294901760
    %2351 = vmatpush.msra.mxu0 %v2350
    %v2352 = vand.u32 %v99, 4294901760
    %2353 = vmatpush.msra.mxu0 %v2352
    %v2354 = vand.u32 %v98, 4294901760
    %2355 = vmatpush.msra.mxu0 %v2354
    %v2356 = vand.u32 %v2234, 4294901760
    %v2357 = vsub.f32 %v2234, %v2356
    %v2358 = vand.u32 %v2357, 4294901760
    %2359 = vmatmul.f32.gmra.mxu0 %v2358
    %v2360 = vpop.f32.mrf.mxu0
    %v2361 = vadd.f32 %v2334, %v2360
    %2362 = vdwg.mxu0
    %2363 = vmatpush.msra.mxu0 0.0
    %2364 = vmatpush.msra.mxu0 0.0
    %2365 = vmatpush.msra.mxu0 0.0
    %2366 = vmatpush.msra.mxu0 0.0
    %2367 = vmatpush.msra.mxu0 0.0
    %2368 = vmatpush.msra.mxu0 0.0
    %2369 = vmatpush.msra.mxu0 0.0
    %2370 = vmatpush.msra.mxu0 0.0
    %2371 = vmatpush.msra.mxu0 0.0
    %2372 = vmatpush.msra.mxu0 0.0
    %2373 = vmatpush.msra.mxu0 0.0
    %2374 = vmatpush.msra.mxu0 0.0
    %v2375 = vand.u32 %v101, 4294901760
    %v2376 = vsub.f32 %v101, %v2375
    %v2377 = vand.u32 %v2376, 4294901760
    %2378 = vmatpush.msra.mxu0 %v2377
    %v2379 = vand.u32 %v100, 4294901760
    %v2380 = vsub.f32 %v100, %v2379
    %v2381 = vand.u32 %v2380, 4294901760
    %2382 = vmatpush.msra.mxu0 %v2381
    %v2383 = vand.u32 %v99, 4294901760
    %v2384 = vsub.f32 %v99, %v2383
    %v2385 = vand.u32 %v2384, 4294901760
    %2386 = vmatpush.msra.mxu0 %v2385
    %v2387 = vand.u32 %v98, 4294901760
    %v2388 = vsub.f32 %v98, %v2387
    %v2389 = vand.u32 %v2388, 4294901760
    %2390 = vmatpush.msra.mxu0 %v2389
    %v2391 = vand.u32 %v2234, 4294901760
    %2392 = vmatmul.f32.gmra.mxu0 %v2391
    %v2393 = vpop.f32.mrf.mxu0
    %v2394 = vadd.f32 %v2361, %v2393
    %2395 = vdwg.mxu0
    %2396 = vmatpush.msra.mxu0 0.0
    %2397 = vmatpush.msra.mxu0 0.0
    %2398 = vmatpush.msra.mxu0 0.0
    %2399 = vmatpush.msra.mxu0 0.0
    %2400 = vmatpush.msra.mxu0 0.0
    %2401 = vmatpush.msra.mxu0 0.0
    %2402 = vmatpush.msra.mxu0 0.0
    %2403 = vmatpush.msra.mxu0 0.0
    %2404 = vmatpush.msra.mxu0 0.0
    %2405 = vmatpush.msra.mxu0 0.0
    %2406 = vmatpush.msra.mxu0 0.0
    %2407 = vmatpush.msra.mxu0 0.0
    %v2408 = vand.u32 %v101, 4294901760
    %2409 = vmatpush.msra.mxu0 %v2408
    %v2410 = vand.u32 %v100, 4294901760
    %2411 = vmatpush.msra.mxu0 %v2410
    %v2412 = vand.u32 %v99, 4294901760
    %2413 = vmatpush.msra.mxu0 %v2412
    %v2414 = vand.u32 %v98, 4294901760
    %2415 = vmatpush.msra.mxu0 %v2414
    %v2416 = vand.u32 %v2234, 4294901760
    %2417 = vmatmul.f32.gmra.mxu0 %v2416
    %v2418 = vpop.f32.mrf.mxu0
    %v2419 = vadd.f32 %v2394, %v2418
    %2420 = vdwg.mxu0
    %v2421 = vadd.f32 %v865, %v2419
    %v2422 = vxor.u32 %v2421, 2147483648
    %v2423 = vmul.f32 %v2422, 1.442695
    %v2424 = vpow.pop %v2423
    %v2425 = vadd.f32 %v2424, 1.0
    %v2426 = vrcp.pop %v2425
    %v2427 = vmul.f32 %v2425, %v2426
    %v2428 = vsub.f32 1.0, %v2427
    %v2429 = vmul.f32 %v2426, %v2428
    %v2430 = vadd.f32 %v2426, %v2429
    %vm2431 = vweird.f32 %v2425
    %vm2432 = vweird.f32 %v2426
    %vm2433 = vmor %vm2431, %vm2432
    %v2434 = vsel %vm2433, %v2426, %v2430
    %v2435 = vand.u32 2147483647, %v2425
    %vm2436 = vcmp.eq.f32.partialorder %v2435, 8.507059e+37
    %v2437 = vand.u32 %v2425, 2147483648
    %v2438 = vor.u32 1.1754944e-38, %v2437
    %v2439 = vsel %vm2436, %v2438, %v2434
    %v2440 = vmul.f32 1.0, %v2439
    %v2441 = vtanh.pop %v2421
    %v2442 = vmul.f32 %v2440, %v2224
    %2444 = vrot.lane.b32.xlu0 %v2441, 64
    %v2445 = vpop.permute.xlu0 %2444
    %v2447 = vmul.f32 %v2440, %v2445
    %2449 = vrot.lane.b32.xlu0 %v2447, 32
    %v2450 = vpop.permute.xlu0 %2449
    %v2452 = vadd.f32 %v2442, %v2450
    %v2453 = vtanh.pop %v2452
    %2455 = vrot.lane.b32.xlu0 %v2453, 64
    %v2456 = vpop.permute.xlu0 %2455
    %v2458 = vmul.f32 %v2440, %v2456
    %2460 = vrot.lane.b32.xlu0 %v2458, 32
    %v2461 = vpop.permute.xlu0 %2460
    %v2462 = vsel %vm1320, %v2461, 0
    %2464 = vmatpush.msra.mxu0 0.0
    %2465 = vmatpush.msra.mxu0 0.0
    %2466 = vmatpush.msra.mxu0 0.0
    %2467 = vmatpush.msra.mxu0 0.0
    %2468 = vmatpush.msra.mxu0 0.0
    %2469 = vmatpush.msra.mxu0 0.0
    %2470 = vmatpush.msra.mxu0 0.0
    %2471 = vmatpush.msra.mxu0 0.0
    %2472 = vmatpush.msra.mxu0 0.0
    %2473 = vmatpush.msra.mxu0 0.0
    %2474 = vmatpush.msra.mxu0 0.0
    %2475 = vmatpush.msra.mxu0 0.0
    %v2476 = vand.u32 %v101, 4294901760
    %2477 = vmatpush.msra.mxu0 %v2476
    %v2478 = vand.u32 %v100, 4294901760
    %2479 = vmatpush.msra.mxu0 %v2478
    %v2480 = vand.u32 %v99, 4294901760
    %2481 = vmatpush.msra.mxu0 %v2480
    %v2482 = vand.u32 %v98, 4294901760
    %2483 = vmatpush.msra.mxu0 %v2482
    %v2484 = vand.u32 %v2462, 4294901760
    %v2485 = vsub.f32 %v2462, %v2484
    %v2486 = vand.u32 %v2485, 4294901760
    %v2487 = vsub.f32 %v2485, %v2486
    %v2488 = vand.u32 %v2487, 4294901760
    %2489 = vmatmul.f32.gmra.mxu0 %v2488
    %v2490 = vpop.f32.mrf.mxu0
    %v2491 = vadd.f32 0.0, %v2490
    %2492 = vdwg.mxu0
    %2493 = vmatpush.msra.mxu0 0.0
    %2494 = vmatpush.msra.mxu0 0.0
    %2495 = vmatpush.msra.mxu0 0.0
    %2496 = vmatpush.msra.mxu0 0.0
    %2497 = vmatpush.msra.mxu0 0.0
    %2498 = vmatpush.msra.mxu0 0.0
    %2499 = vmatpush.msra.mxu0 0.0
    %2500 = vmatpush.msra.mxu0 0.0
    %2501 = vmatpush.msra.mxu0 0.0
    %2502 = vmatpush.msra.mxu0 0.0
    %2503 = vmatpush.msra.mxu0 0.0
    %2504 = vmatpush.msra.mxu0 0.0
    %v2505 = vand.u32 %v101, 4294901760
    %v2506 = vsub.f32 %v101, %v2505
    %v2507 = vand.u32 %v2506, 4294901760
    %v2508 = vsub.f32 %v2506, %v2507
    %v2509 = vand.u32 %v2508, 4294901760
    %2510 = vmatpush.msra.mxu0 %v2509
    %v2511 = vand.u32 %v100, 4294901760
    %v2512 = vsub.f32 %v100, %v2511
    %v2513 = vand.u32 %v2512, 4294901760
    %v2514 = vsub.f32 %v2512, %v2513
    %v2515 = vand.u32 %v2514, 4294901760
    %2516 = vmatpush.msra.mxu0 %v2515
    %v2517 = vand.u32 %v99, 4294901760
    %v2518 = vsub.f32 %v99, %v2517
    %v2519 = vand.u32 %v2518, 4294901760
    %v2520 = vsub.f32 %v2518, %v2519
    %v2521 = vand.u32 %v2520, 4294901760
    %2522 = vmatpush.msra.mxu0 %v2521
    %v2523 = vand.u32 %v98, 4294901760
    %v2524 = vsub.f32 %v98, %v2523
    %v2525 = vand.u32 %v2524, 4294901760
    %v2526 = vsub.f32 %v2524, %v2525
    %v2527 = vand.u32 %v2526, 4294901760
    %2528 = vmatpush.msra.mxu0 %v2527
    %v2529 = vand.u32 %v2462, 4294901760
    %2530 = vmatmul.f32.gmra.mxu0 %v2529
    %v2531 = vpop.f32.mrf.mxu0
    %v2532 = vadd.f32 %v2491, %v2531
    %2533 = vdwg.mxu0
    %2534 = vmatpush.msra.mxu0 0.0
    %2535 = vmatpush.msra.mxu0 0.0
    %2536 = vmatpush.msra.mxu0 0.0
    %2537 = vmatpush.msra.mxu0 0.0
    %2538 = vmatpush.msra.mxu0 0.0
    %2539 = vmatpush.msra.mxu0 0.0
    %2540 = vmatpush.msra.mxu0 0.0
    %2541 = vmatpush.msra.mxu0 0.0
    %2542 = vmatpush.msra.mxu0 0.0
    %2543 = vmatpush.msra.mxu0 0.0
    %2544 = vmatpush.msra.mxu0 0.0
    %2545 = vmatpush.msra.mxu0 0.0
    %v2546 = vand.u32 %v101, 4294901760
    %v2547 = vsub.f32 %v101, %v2546
    %2548 = vmatpush.msra.mxu0 %v2547
    %v2549 = vand.u32 %v100, 4294901760
    %v2550 = vsub.f32 %v100, %v2549
    %2551 = vmatpush.msra.mxu0 %v2550
    %v2552 = vand.u32 %v99, 4294901760
    %v2553 = vsub.f32 %v99, %v2552
    %2554 = vmatpush.msra.mxu0 %v2553
    %v2555 = vand.u32 %v98, 4294901760
    %v2556 = vsub.f32 %v98, %v2555
    %2557 = vmatpush.msra.mxu0 %v2556
    %v2558 = vand.u32 %v2462, 4294901760
    %v2559 = vsub.f32 %v2462, %v2558
    %2560 = vmatmul.f32.gmra.mxu0 %v2559
    %v2561 = vpop.f32.mrf.mxu0
    %v2562 = vadd.f32 %v2532, %v2561
    %2563 = vdwg.mxu0
    %2564 = vmatpush.msra.mxu0 0.0
    %2565 = vmatpush.msra.mxu0 0.0
    %2566 = vmatpush.msra.mxu0 0.0
    %2567 = vmatpush.msra.mxu0 0.0
    %2568 = vmatpush.msra.mxu0 0.0
    %2569 = vmatpush.msra.mxu0 0.0
    %2570 = vmatpush.msra.mxu0 0.0
    %2571 = vmatpush.msra.mxu0 0.0
    %2572 = vmatpush.msra.mxu0 0.0
    %2573 = vmatpush.msra.mxu0 0.0
    %2574 = vmatpush.msra.mxu0 0.0
    %2575 = vmatpush.msra.mxu0 0.0
    %v2576 = vand.u32 %v101, 4294901760
    %2577 = vmatpush.msra.mxu0 %v2576
    %v2578 = vand.u32 %v100, 4294901760
    %2579 = vmatpush.msra.mxu0 %v2578
    %v2580 = vand.u32 %v99, 4294901760
    %2581 = vmatpush.msra.mxu0 %v2580
    %v2582 = vand.u32 %v98, 4294901760
    %2583 = vmatpush.msra.mxu0 %v2582
    %v2584 = vand.u32 %v2462, 4294901760
    %v2585 = vsub.f32 %v2462, %v2584
    %v2586 = vand.u32 %v2585, 4294901760
    %2587 = vmatmul.f32.gmra.mxu0 %v2586
    %v2588 = vpop.f32.mrf.mxu0
    %v2589 = vadd.f32 %v2562, %v2588
    %2590 = vdwg.mxu0
    %2591 = vmatpush.msra.mxu0 0.0
    %2592 = vmatpush.msra.mxu0 0.0
    %2593 = vmatpush.msra.mxu0 0.0
    %2594 = vmatpush.msra.mxu0 0.0
    %2595 = vmatpush.msra.mxu0 0.0
    %2596 = vmatpush.msra.mxu0 0.0
    %2597 = vmatpush.msra.mxu0 0.0
    %2598 = vmatpush.msra.mxu0 0.0
    %2599 = vmatpush.msra.mxu0 0.0
    %2600 = vmatpush.msra.mxu0 0.0
    %2601 = vmatpush.msra.mxu0 0.0
    %2602 = vmatpush.msra.mxu0 0.0
    %v2603 = vand.u32 %v101, 4294901760
    %v2604 = vsub.f32 %v101, %v2603
    %v2605 = vand.u32 %v2604, 4294901760
    %2606 = vmatpush.msra.mxu0 %v2605
    %v2607 = vand.u32 %v100, 4294901760
    %v2608 = vsub.f32 %v100, %v2607
    %v2609 = vand.u32 %v2608, 4294901760
    %2610 = vmatpush.msra.mxu0 %v2609
    %v2611 = vand.u32 %v99, 4294901760
    %v2612 = vsub.f32 %v99, %v2611
    %v2613 = vand.u32 %v2612, 4294901760
    %2614 = vmatpush.msra.mxu0 %v2613
    %v2615 = vand.u32 %v98, 4294901760
    %v2616 = vsub.f32 %v98, %v2615
    %v2617 = vand.u32 %v2616, 4294901760
    %2618 = vmatpush.msra.mxu0 %v2617
    %v2619 = vand.u32 %v2462, 4294901760
    %2620 = vmatmul.f32.gmra.mxu0 %v2619
    %v2621 = vpop.f32.mrf.mxu0
    %v2622 = vadd.f32 %v2589, %v2621
    %2623 = vdwg.mxu0
    %2624 = vmatpush.msra.mxu0 0.0
    %2625 = vmatpush.msra.mxu0 0.0
    %2626 = vmatpush.msra.mxu0 0.0
    %2627 = vmatpush.msra.mxu0 0.0
    %2628 = vmatpush.msra.mxu0 0.0
    %2629 = vmatpush.msra.mxu0 0.0
    %2630 = vmatpush.msra.mxu0 0.0
    %2631 = vmatpush.msra.mxu0 0.0
    %2632 = vmatpush.msra.mxu0 0.0
    %2633 = vmatpush.msra.mxu0 0.0
    %2634 = vmatpush.msra.mxu0 0.0
    %2635 = vmatpush.msra.mxu0 0.0
    %v2636 = vand.u32 %v101, 4294901760
    %2637 = vmatpush.msra.mxu0 %v2636
    %v2638 = vand.u32 %v100, 4294901760
    %2639 = vmatpush.msra.mxu0 %v2638
    %v2640 = vand.u32 %v99, 4294901760
    %2641 = vmatpush.msra.mxu0 %v2640
    %v2642 = vand.u32 %v98, 4294901760
    %2643 = vmatpush.msra.mxu0 %v2642
    %v2644 = vand.u32 %v2462, 4294901760
    %2645 = vmatmul.f32.gmra.mxu0 %v2644
    %v2646 = vpop.f32.mrf.mxu0
    %v2647 = vadd.f32 %v2622, %v2646
    %2648 = vdwg.mxu0
    %v2649 = vadd.f32 %v1016, %v2647
    %v2650 = vxor.u32 %v2649, 2147483648
    %v2651 = vmul.f32 %v2650, 1.442695
    %v2652 = vpow.pop %v2651
    %v2653 = vadd.f32 %v2652, 1.0
    %v2654 = vrcp.pop %v2653
    %v2655 = vmul.f32 %v2653, %v2654
    %v2656 = vsub.f32 1.0, %v2655
    %v2657 = vmul.f32 %v2654, %v2656
    %v2658 = vadd.f32 %v2654, %v2657
    %vm2659 = vweird.f32 %v2653
    %vm2660 = vweird.f32 %v2654
    %vm2661 = vmor %vm2659, %vm2660
    %v2662 = vsel %vm2661, %v2654, %v2658
    %v2663 = vand.u32 2147483647, %v2653
    %vm2664 = vcmp.eq.f32.partialorder %v2663, 8.507059e+37
    %v2665 = vand.u32 %v2653, 2147483648
    %v2666 = vor.u32 1.1754944e-38, %v2665
    %v2667 = vsel %vm2664, %v2666, %v2662
    %v2668 = vmul.f32 1.0, %v2667
    %v2669 = vtanh.pop %v2649
    %v2670 = vmul.f32 %v2668, %v2452
    %2672 = vrot.lane.b32.xlu0 %v2669, 64
    %v2673 = vpop.permute.xlu0 %2672
    %v2675 = vmul.f32 %v2668, %v2673
    %2677 = vrot.lane.b32.xlu0 %v2675, 32
    %v2678 = vpop.permute.xlu0 %2677
    %v2680 = vadd.f32 %v2670, %v2678
    %v2681 = vtanh.pop %v2680
    %2683 = vrot.lane.b32.xlu0 %v2681, 64
    %v2684 = vpop.permute.xlu0 %2683
    %v2686 = vmul.f32 %v2668, %v2684
    %2688 = vrot.lane.b32.xlu0 %v2686, 32
    %v2689 = vpop.permute.xlu0 %2688
    %v2690 = vsel %vm1320, %v2689, 0
    %2692 = vmatpush.msra.mxu0 0.0
    %2693 = vmatpush.msra.mxu0 0.0
    %2694 = vmatpush.msra.mxu0 0.0
    %2695 = vmatpush.msra.mxu0 0.0
    %2696 = vmatpush.msra.mxu0 0.0
    %2697 = vmatpush.msra.mxu0 0.0
    %2698 = vmatpush.msra.mxu0 0.0
    %2699 = vmatpush.msra.mxu0 0.0
    %2700 = vmatpush.msra.mxu0 0.0
    %2701 = vmatpush.msra.mxu0 0.0
    %2702 = vmatpush.msra.mxu0 0.0
    %2703 = vmatpush.msra.mxu0 0.0
    %v2704 = vand.u32 %v101, 4294901760
    %2705 = vmatpush.msra.mxu0 %v2704
    %v2706 = vand.u32 %v100, 4294901760
    %2707 = vmatpush.msra.mxu0 %v2706
    %v2708 = vand.u32 %v99, 4294901760
    %2709 = vmatpush.msra.mxu0 %v2708
    %v2710 = vand.u32 %v98, 4294901760
    %2711 = vmatpush.msra.mxu0 %v2710
    %v2712 = vand.u32 %v2690, 4294901760
    %v2713 = vsub.f32 %v2690, %v2712
    %v2714 = vand.u32 %v2713, 4294901760
    %v2715 = vsub.f32 %v2713, %v2714
    %v2716 = vand.u32 %v2715, 4294901760
    %2717 = vmatmul.f32.gmra.mxu0 %v2716
    %v2718 = vpop.f32.mrf.mxu0
    %v2719 = vadd.f32 0.0, %v2718
    %2720 = vdwg.mxu0
    %2721 = vmatpush.msra.mxu0 0.0
    %2722 = vmatpush.msra.mxu0 0.0
    %2723 = vmatpush.msra.mxu0 0.0
    %2724 = vmatpush.msra.mxu0 0.0
    %2725 = vmatpush.msra.mxu0 0.0
    %2726 = vmatpush.msra.mxu0 0.0
    %2727 = vmatpush.msra.mxu0 0.0
    %2728 = vmatpush.msra.mxu0 0.0
    %2729 = vmatpush.msra.mxu0 0.0
    %2730 = vmatpush.msra.mxu0 0.0
    %2731 = vmatpush.msra.mxu0 0.0
    %2732 = vmatpush.msra.mxu0 0.0
    %v2733 = vand.u32 %v101, 4294901760
    %v2734 = vsub.f32 %v101, %v2733
    %v2735 = vand.u32 %v2734, 4294901760
    %v2736 = vsub.f32 %v2734, %v2735
    %v2737 = vand.u32 %v2736, 4294901760
    %2738 = vmatpush.msra.mxu0 %v2737
    %v2739 = vand.u32 %v100, 4294901760
    %v2740 = vsub.f32 %v100, %v2739
    %v2741 = vand.u32 %v2740, 4294901760
    %v2742 = vsub.f32 %v2740, %v2741
    %v2743 = vand.u32 %v2742, 4294901760
    %2744 = vmatpush.msra.mxu0 %v2743
    %v2745 = vand.u32 %v99, 4294901760
    %v2746 = vsub.f32 %v99, %v2745
    %v2747 = vand.u32 %v2746, 4294901760
    %v2748 = vsub.f32 %v2746, %v2747
    %v2749 = vand.u32 %v2748, 4294901760
    %2750 = vmatpush.msra.mxu0 %v2749
    %v2751 = vand.u32 %v98, 4294901760
    %v2752 = vsub.f32 %v98, %v2751
    %v2753 = vand.u32 %v2752, 4294901760
    %v2754 = vsub.f32 %v2752, %v2753
    %v2755 = vand.u32 %v2754, 4294901760
    %2756 = vmatpush.msra.mxu0 %v2755
    %v2757 = vand.u32 %v2690, 4294901760
    %2758 = vmatmul.f32.gmra.mxu0 %v2757
    %v2759 = vpop.f32.mrf.mxu0
    %v2760 = vadd.f32 %v2719, %v2759
    %2761 = vdwg.mxu0
    %2762 = vmatpush.msra.mxu0 0.0
    %2763 = vmatpush.msra.mxu0 0.0
    %2764 = vmatpush.msra.mxu0 0.0
    %2765 = vmatpush.msra.mxu0 0.0
    %2766 = vmatpush.msra.mxu0 0.0
    %2767 = vmatpush.msra.mxu0 0.0
    %2768 = vmatpush.msra.mxu0 0.0
    %2769 = vmatpush.msra.mxu0 0.0
    %2770 = vmatpush.msra.mxu0 0.0
    %2771 = vmatpush.msra.mxu0 0.0
    %2772 = vmatpush.msra.mxu0 0.0
    %2773 = vmatpush.msra.mxu0 0.0
    %v2774 = vand.u32 %v101, 4294901760
    %v2775 = vsub.f32 %v101, %v2774
    %2776 = vmatpush.msra.mxu0 %v2775
    %v2777 = vand.u32 %v100, 4294901760
    %v2778 = vsub.f32 %v100, %v2777
    %2779 = vmatpush.msra.mxu0 %v2778
    %v2780 = vand.u32 %v99, 4294901760
    %v2781 = vsub.f32 %v99, %v2780
    %2782 = vmatpush.msra.mxu0 %v2781
    %v2783 = vand.u32 %v98, 4294901760
    %v2784 = vsub.f32 %v98, %v2783
    %2785 = vmatpush.msra.mxu0 %v2784
    %v2786 = vand.u32 %v2690, 4294901760
    %v2787 = vsub.f32 %v2690, %v2786
    %2788 = vmatmul.f32.gmra.mxu0 %v2787
    %v2789 = vpop.f32.mrf.mxu0
    %v2790 = vadd.f32 %v2760, %v2789
    %2791 = vdwg.mxu0
    %2792 = vmatpush.msra.mxu0 0.0
    %2793 = vmatpush.msra.mxu0 0.0
    %2794 = vmatpush.msra.mxu0 0.0
    %2795 = vmatpush.msra.mxu0 0.0
    %2796 = vmatpush.msra.mxu0 0.0
    %2797 = vmatpush.msra.mxu0 0.0
    %2798 = vmatpush.msra.mxu0 0.0
    %2799 = vmatpush.msra.mxu0 0.0
    %2800 = vmatpush.msra.mxu0 0.0
    %2801 = vmatpush.msra.mxu0 0.0
    %2802 = vmatpush.msra.mxu0 0.0
    %2803 = vmatpush.msra.mxu0 0.0
    %v2804 = vand.u32 %v101, 4294901760
    %2805 = vmatpush.msra.mxu0 %v2804
    %v2806 = vand.u32 %v100, 4294901760
    %2807 = vmatpush.msra.mxu0 %v2806
    %v2808 = vand.u32 %v99, 4294901760
    %2809 = vmatpush.msra.mxu0 %v2808
    %v2810 = vand.u32 %v98, 4294901760
    %2811 = vmatpush.msra.mxu0 %v2810
    %v2812 = vand.u32 %v2690, 4294901760
    %v2813 = vsub.f32 %v2690, %v2812
    %v2814 = vand.u32 %v2813, 4294901760
    %2815 = vmatmul.f32.gmra.mxu0 %v2814
    %v2816 = vpop.f32.mrf.mxu0
    %v2817 = vadd.f32 %v2790, %v2816
    %2818 = vdwg.mxu0
    %2819 = vmatpush.msra.mxu0 0.0
    %2820 = vmatpush.msra.mxu0 0.0
    %2821 = vmatpush.msra.mxu0 0.0
    %2822 = vmatpush.msra.mxu0 0.0
    %2823 = vmatpush.msra.mxu0 0.0
    %2824 = vmatpush.msra.mxu0 0.0
    %2825 = vmatpush.msra.mxu0 0.0
    %2826 = vmatpush.msra.mxu0 0.0
    %2827 = vmatpush.msra.mxu0 0.0
    %2828 = vmatpush.msra.mxu0 0.0
    %2829 = vmatpush.msra.mxu0 0.0
    %2830 = vmatpush.msra.mxu0 0.0
    %v2831 = vand.u32 %v101, 4294901760
    %v2832 = vsub.f32 %v101, %v2831
    %v2833 = vand.u32 %v2832, 4294901760
    %2834 = vmatpush.msra.mxu0 %v2833
    %v2835 = vand.u32 %v100, 4294901760
    %v2836 = vsub.f32 %v100, %v2835
    %v2837 = vand.u32 %v2836, 4294901760
    %2838 = vmatpush.msra.mxu0 %v2837
    %v2839 = vand.u32 %v99, 4294901760
    %v2840 = vsub.f32 %v99, %v2839
    %v2841 = vand.u32 %v2840, 4294901760
    %2842 = vmatpush.msra.mxu0 %v2841
    %v2843 = vand.u32 %v98, 4294901760
    %v2844 = vsub.f32 %v98, %v2843
    %v2845 = vand.u32 %v2844, 4294901760
    %2846 = vmatpush.msra.mxu0 %v2845
    %v2847 = vand.u32 %v2690, 4294901760
    %2848 = vmatmul.f32.gmra.mxu0 %v2847
    %v2849 = vpop.f32.mrf.mxu0
    %v2850 = vadd.f32 %v2817, %v2849
    %2851 = vdwg.mxu0
    %2852 = vmatpush.msra.mxu0 0.0
    %2853 = vmatpush.msra.mxu0 0.0
    %2854 = vmatpush.msra.mxu0 0.0
    %2855 = vmatpush.msra.mxu0 0.0
    %2856 = vmatpush.msra.mxu0 0.0
    %2857 = vmatpush.msra.mxu0 0.0
    %2858 = vmatpush.msra.mxu0 0.0
    %2859 = vmatpush.msra.mxu0 0.0
    %2860 = vmatpush.msra.mxu0 0.0
    %2861 = vmatpush.msra.mxu0 0.0
    %2862 = vmatpush.msra.mxu0 0.0
    %2863 = vmatpush.msra.mxu0 0.0
    %v2864 = vand.u32 %v101, 4294901760
    %2865 = vmatpush.msra.mxu0 %v2864
    %v2866 = vand.u32 %v100, 4294901760
    %2867 = vmatpush.msra.mxu0 %v2866
    %v2868 = vand.u32 %v99, 4294901760
    %2869 = vmatpush.msra.mxu0 %v2868
    %v2870 = vand.u32 %v98, 4294901760
    %2871 = vmatpush.msra.mxu0 %v2870
    %v2872 = vand.u32 %v2690, 4294901760
    %2873 = vmatmul.f32.gmra.mxu0 %v2872
    %v2874 = vpop.f32.mrf.mxu0
    %v2875 = vadd.f32 %v2850, %v2874
    %2876 = vdwg.mxu0
    %v2877 = vadd.f32 %v1167, %v2875
    %v2878 = vxor.u32 %v2877, 2147483648
    %v2879 = vmul.f32 %v2878, 1.442695
    %v2880 = vpow.pop %v2879
    %v2881 = vadd.f32 %v2880, 1.0
    %v2882 = vrcp.pop %v2881
    %v2883 = vmul.f32 %v2881, %v2882
    %v2884 = vsub.f32 1.0, %v2883
    %v2885 = vmul.f32 %v2882, %v2884
    %v2886 = vadd.f32 %v2882, %v2885
    %vm2887 = vweird.f32 %v2881
    %vm2888 = vweird.f32 %v2882
    %vm2889 = vmor %vm2887, %vm2888
    %v2890 = vsel %vm2889, %v2882, %v2886
    %v2891 = vand.u32 2147483647, %v2881
    %vm2892 = vcmp.eq.f32.partialorder %v2891, 8.507059e+37
    %v2893 = vand.u32 %v2881, 2147483648
    %v2894 = vor.u32 1.1754944e-38, %v2893
    %v2895 = vsel %vm2892, %v2894, %v2890
    %v2896 = vmul.f32 1.0, %v2895
    %v2897 = vtanh.pop %v2877
    %v2898 = vmul.f32 %v2896, %v2680
    %2900 = vrot.lane.b32.xlu0 %v2897, 64
    %v2901 = vpop.permute.xlu0 %2900
    %v2903 = vmul.f32 %v2896, %v2901
    %2905 = vrot.lane.b32.xlu0 %v2903, 32
    %v2906 = vpop.permute.xlu0 %2905
    %v2908 = vadd.f32 %v2898, %v2906
    %v2909 = vtanh.pop %v2908
    %2911 = vrot.lane.b32.xlu0 %v2909, 64
    %v2912 = vpop.permute.xlu0 %2911
    %v2914 = vmul.f32 %v2896, %v2912
    %2916 = vrot.lane.b32.xlu0 %v2914, 32
    %v2917 = vpop.permute.xlu0 %2916
    %v2918 = vsel %vm1320, %v2917, 0
    %2920 = vmatpush.msra.mxu0 0.0
    %2921 = vmatpush.msra.mxu0 0.0
    %2922 = vmatpush.msra.mxu0 0.0
    %2923 = vmatpush.msra.mxu0 0.0
    %2924 = vmatpush.msra.mxu0 0.0
    %2925 = vmatpush.msra.mxu0 0.0
    %2926 = vmatpush.msra.mxu0 0.0
    %2927 = vmatpush.msra.mxu0 0.0
    %2928 = vmatpush.msra.mxu0 0.0
    %2929 = vmatpush.msra.mxu0 0.0
    %2930 = vmatpush.msra.mxu0 0.0
    %2931 = vmatpush.msra.mxu0 0.0
    %v2932 = vand.u32 %v101, 4294901760
    %2933 = vmatpush.msra.mxu0 %v2932
    %v2934 = vand.u32 %v100, 4294901760
    %2935 = vmatpush.msra.mxu0 %v2934
    %v2936 = vand.u32 %v99, 4294901760
    %2937 = vmatpush.msra.mxu0 %v2936
    %v2938 = vand.u32 %v98, 4294901760
    %2939 = vmatpush.msra.mxu0 %v2938
    %v2940 = vand.u32 %v2918, 4294901760
    %v2941 = vsub.f32 %v2918, %v2940
    %v2942 = vand.u32 %v2941, 4294901760
    %v2943 = vsub.f32 %v2941, %v2942
    %v2944 = vand.u32 %v2943, 4294901760
    %2945 = vmatmul.f32.gmra.mxu0 %v2944
    %v2946 = vpop.f32.mrf.mxu0
    %v2947 = vadd.f32 0.0, %v2946
    %2948 = vdwg.mxu0
    %2949 = vmatpush.msra.mxu0 0.0
    %2950 = vmatpush.msra.mxu0 0.0
    %2951 = vmatpush.msra.mxu0 0.0
    %2952 = vmatpush.msra.mxu0 0.0
    %2953 = vmatpush.msra.mxu0 0.0
    %2954 = vmatpush.msra.mxu0 0.0
    %2955 = vmatpush.msra.mxu0 0.0
    %2956 = vmatpush.msra.mxu0 0.0
    %2957 = vmatpush.msra.mxu0 0.0
    %2958 = vmatpush.msra.mxu0 0.0
    %2959 = vmatpush.msra.mxu0 0.0
    %2960 = vmatpush.msra.mxu0 0.0
    %v2961 = vand.u32 %v101, 4294901760
    %v2962 = vsub.f32 %v101, %v2961
    %v2963 = vand.u32 %v2962, 4294901760
    %v2964 = vsub.f32 %v2962, %v2963
    %v2965 = vand.u32 %v2964, 4294901760
    %2966 = vmatpush.msra.mxu0 %v2965
    %v2967 = vand.u32 %v100, 4294901760
    %v2968 = vsub.f32 %v100, %v2967
    %v2969 = vand.u32 %v2968, 4294901760
    %v2970 = vsub.f32 %v2968, %v2969
    %v2971 = vand.u32 %v2970, 4294901760
    %2972 = vmatpush.msra.mxu0 %v2971
    %v2973 = vand.u32 %v99, 4294901760
    %v2974 = vsub.f32 %v99, %v2973
    %v2975 = vand.u32 %v2974, 4294901760
    %v2976 = vsub.f32 %v2974, %v2975
    %v2977 = vand.u32 %v2976, 4294901760
    %2978 = vmatpush.msra.mxu0 %v2977
    %v2979 = vand.u32 %v98, 4294901760
    %v2980 = vsub.f32 %v98, %v2979
    %v2981 = vand.u32 %v2980, 4294901760
    %v2982 = vsub.f32 %v2980, %v2981
    %v2983 = vand.u32 %v2982, 4294901760
    %2984 = vmatpush.msra.mxu0 %v2983
    %v2985 = vand.u32 %v2918, 4294901760
    %2986 = vmatmul.f32.gmra.mxu0 %v2985
    %v2987 = vpop.f32.mrf.mxu0
    %v2988 = vadd.f32 %v2947, %v2987
    %2989 = vdwg.mxu0
    %2990 = vmatpush.msra.mxu0 0.0
    %2991 = vmatpush.msra.mxu0 0.0
    %2992 = vmatpush.msra.mxu0 0.0
    %2993 = vmatpush.msra.mxu0 0.0
    %2994 = vmatpush.msra.mxu0 0.0
    %2995 = vmatpush.msra.mxu0 0.0
    %2996 = vmatpush.msra.mxu0 0.0
    %2997 = vmatpush.msra.mxu0 0.0
    %2998 = vmatpush.msra.mxu0 0.0
    %2999 = vmatpush.msra.mxu0 0.0
    %3000 = vmatpush.msra.mxu0 0.0
    %3001 = vmatpush.msra.mxu0 0.0
    %v3002 = vand.u32 %v101, 4294901760
    %v3003 = vsub.f32 %v101, %v3002
    %3004 = vmatpush.msra.mxu0 %v3003
    %v3005 = vand.u32 %v100, 4294901760
    %v3006 = vsub.f32 %v100, %v3005
    %3007 = vmatpush.msra.mxu0 %v3006
    %v3008 = vand.u32 %v99, 4294901760
    %v3009 = vsub.f32 %v99, %v3008
    %3010 = vmatpush.msra.mxu0 %v3009
    %v3011 = vand.u32 %v98, 4294901760
    %v3012 = vsub.f32 %v98, %v3011
    %3013 = vmatpush.msra.mxu0 %v3012
    %v3014 = vand.u32 %v2918, 4294901760
    %v3015 = vsub.f32 %v2918, %v3014
    %3016 = vmatmul.f32.gmra.mxu0 %v3015
    %v3017 = vpop.f32.mrf.mxu0
    %v3018 = vadd.f32 %v2988, %v3017
    %3019 = vdwg.mxu0
    %3020 = vmatpush.msra.mxu0 0.0
    %3021 = vmatpush.msra.mxu0 0.0
    %3022 = vmatpush.msra.mxu0 0.0
    %3023 = vmatpush.msra.mxu0 0.0
    %3024 = vmatpush.msra.mxu0 0.0
    %3025 = vmatpush.msra.mxu0 0.0
    %3026 = vmatpush.msra.mxu0 0.0
    %3027 = vmatpush.msra.mxu0 0.0
    %3028 = vmatpush.msra.mxu0 0.0
    %3029 = vmatpush.msra.mxu0 0.0
    %3030 = vmatpush.msra.mxu0 0.0
    %3031 = vmatpush.msra.mxu0 0.0
    %v3032 = vand.u32 %v101, 4294901760
    %3033 = vmatpush.msra.mxu0 %v3032
    %v3034 = vand.u32 %v100, 4294901760
    %3035 = vmatpush.msra.mxu0 %v3034
    %v3036 = vand.u32 %v99, 4294901760
    %3037 = vmatpush.msra.mxu0 %v3036
    %v3038 = vand.u32 %v98, 4294901760
    %3039 = vmatpush.msra.mxu0 %v3038
    %v3040 = vand.u32 %v2918, 4294901760
    %v3041 = vsub.f32 %v2918, %v3040
    %v3042 = vand.u32 %v3041, 4294901760
    %3043 = vmatmul.f32.gmra.mxu0 %v3042
    %v3044 = vpop.f32.mrf.mxu0
    %v3045 = vadd.f32 %v3018, %v3044
    %3046 = vdwg.mxu0
    %3047 = vmatpush.msra.mxu0 0.0
    %3048 = vmatpush.msra.mxu0 0.0
    %3049 = vmatpush.msra.mxu0 0.0
    %3050 = vmatpush.msra.mxu0 0.0
    %3051 = vmatpush.msra.mxu0 0.0
    %3052 = vmatpush.msra.mxu0 0.0
    %3053 = vmatpush.msra.mxu0 0.0
    %3054 = vmatpush.msra.mxu0 0.0
    %3055 = vmatpush.msra.mxu0 0.0
    %3056 = vmatpush.msra.mxu0 0.0
    %3057 = vmatpush.msra.mxu0 0.0
    %3058 = vmatpush.msra.mxu0 0.0
    %v3059 = vand.u32 %v101, 4294901760
    %v3060 = vsub.f32 %v101, %v3059
    %v3061 = vand.u32 %v3060, 4294901760
    %3062 = vmatpush.msra.mxu0 %v3061
    %v3063 = vand.u32 %v100, 4294901760
    %v3064 = vsub.f32 %v100, %v3063
    %v3065 = vand.u32 %v3064, 4294901760
    %3066 = vmatpush.msra.mxu0 %v3065
    %v3067 = vand.u32 %v99, 4294901760
    %v3068 = vsub.f32 %v99, %v3067
    %v3069 = vand.u32 %v3068, 4294901760
    %3070 = vmatpush.msra.mxu0 %v3069
    %v3071 = vand.u32 %v98, 4294901760
    %v3072 = vsub.f32 %v98, %v3071
    %v3073 = vand.u32 %v3072, 4294901760
    %3074 = vmatpush.msra.mxu0 %v3073
    %v3075 = vand.u32 %v2918, 4294901760
    %3076 = vmatmul.f32.gmra.mxu0 %v3075
    %v3077 = vpop.f32.mrf.mxu0
    %v3078 = vadd.f32 %v3045, %v3077
    %3079 = vdwg.mxu0
    %3080 = vmatpush.msra.mxu0 0.0
    %3081 = vmatpush.msra.mxu0 0.0
    %3082 = vmatpush.msra.mxu0 0.0
    %3083 = vmatpush.msra.mxu0 0.0
    %3084 = vmatpush.msra.mxu0 0.0
    %3085 = vmatpush.msra.mxu0 0.0
    %3086 = vmatpush.msra.mxu0 0.0
    %3087 = vmatpush.msra.mxu0 0.0
    %3088 = vmatpush.msra.mxu0 0.0
    %3089 = vmatpush.msra.mxu0 0.0
    %3090 = vmatpush.msra.mxu0 0.0
    %3091 = vmatpush.msra.mxu0 0.0
    %v3092 = vand.u32 %v101, 4294901760
    %3093 = vmatpush.msra.mxu0 %v3092
    %v3094 = vand.u32 %v100, 4294901760
    %3095 = vmatpush.msra.mxu0 %v3094
    %v3096 = vand.u32 %v99, 4294901760
    %3097 = vmatpush.msra.mxu0 %v3096
    %v3098 = vand.u32 %v98, 4294901760
    %3099 = vmatpush.msra.mxu0 %v3098
    %v3100 = vand.u32 %v2918, 4294901760
    %3101 = vmatmul.f32.gmra.mxu0 %v3100
    %v3102 = vpop.f32.mrf.mxu0
    %v3103 = vadd.f32 %v3078, %v3102
    %3104 = vdwg.mxu0
    %v3105 = vadd.f32 %v1318, %v3103
    %v3106 = vxor.u32 %v3105, 2147483648
    %v3107 = vmul.f32 %v3106, 1.442695
    %v3108 = vpow.pop %v3107
    %v3109 = vadd.f32 %v3108, 1.0
    %v3110 = vrcp.pop %v3109
    %v3111 = vmul.f32 %v3109, %v3110
    %v3112 = vsub.f32 1.0, %v3111
    %v3113 = vmul.f32 %v3110, %v3112
    %v3114 = vadd.f32 %v3110, %v3113
    %vm3115 = vweird.f32 %v3109
    %vm3116 = vweird.f32 %v3110
    %vm3117 = vmor %vm3115, %vm3116
    %v3118 = vsel %vm3117, %v3110, %v3114
    %v3119 = vand.u32 2147483647, %v3109
    %vm3120 = vcmp.eq.f32.partialorder %v3119, 8.507059e+37
    %v3121 = vand.u32 %v3109, 2147483648
    %v3122 = vor.u32 1.1754944e-38, %v3121
    %v3123 = vsel %vm3120, %v3122, %v3118
    %v3124 = vmul.f32 1.0, %v3123
    %v3125 = vtanh.pop %v3105
    %v3126 = vmul.f32 %v3124, %v2908
    %3128 = vrot.lane.b32.xlu0 %v3125, 64
    %v3129 = vpop.permute.xlu0 %3128
    %v3131 = vmul.f32 %v3124, %v3129
    %3133 = vrot.lane.b32.xlu0 %v3131, 32
    %v3134 = vpop.permute.xlu0 %3133
    %v3136 = vadd.f32 %v3126, %v3134
    %v3137 = vtanh.pop %v3136
    %3139 = vrot.lane.b32.xlu0 %v3137, 64
    %v3140 = vpop.permute.xlu0 %3139
    %v3142 = vmul.f32 %v3124, %v3140
    %v3143 = vld [vmem:[#allocation2] sm:$0xff]
    %v3144 = vld [vmem:[#allocation2 + $0x8] sm:$0xff]
    %v3145 = vld [vmem:[#allocation2 + $0x10] sm:$0xff]
    %v3146 = vld [vmem:[#allocation2 + $0x18] sm:$0xff]
    %v3147 = vld [vmem:[#allocation5] sm:$0xff]
    %v3148 = vld [vmem:[#allocation5 + $0x8] sm:$0xff]
    %v3149 = vld [vmem:[#allocation5 + $0x10] sm:$0xff]
    %v3150 = vld [vmem:[#allocation5 + $0x18] sm:$0xff]
    %v3151 = vld [vmem:[%s6] sm:$0x1]
    %v3153 = vperm.slane %v3151, 0
    %3155 = vmatpush.msra.mxu0 0.0
    %3156 = vmatpush.msra.mxu0 0.0
    %3157 = vmatpush.msra.mxu0 0.0
    %3158 = vmatpush.msra.mxu0 0.0
    %3159 = vmatpush.msra.mxu0 0.0
    %3160 = vmatpush.msra.mxu0 0.0
    %3161 = vmatpush.msra.mxu0 0.0
    %3162 = vmatpush.msra.mxu0 0.0
    %3163 = vmatpush.msra.mxu0 0.0
    %3164 = vmatpush.msra.mxu0 0.0
    %3165 = vmatpush.msra.mxu0 0.0
    %3166 = vmatpush.msra.mxu0 0.0
    %v3167 = vand.u32 %v3146, 4294901760
    %3168 = vmatpush.msra.mxu0 %v3167
    %v3169 = vand.u32 %v3145, 4294901760
    %3170 = vmatpush.msra.mxu0 %v3169
    %v3171 = vand.u32 %v3144, 4294901760
    %3172 = vmatpush.msra.mxu0 %v3171
    %v3173 = vand.u32 %v3143, 4294901760
    %3174 = vmatpush.msra.mxu0 %v3173
    %v3175 = vand.u32 %v1550, 4294901760
    %v3176 = vsub.f32 %v1550, %v3175
    %v3177 = vand.u32 %v3176, 4294901760
    %v3178 = vsub.f32 %v3176, %v3177
    %v3179 = vand.u32 %v3178, 4294901760
    %3180 = vmatmul.f32.gmra.mxu0 %v3179
    %v3181 = vpop.f32.mrf.mxu0
    %v3182 = vadd.f32 %v3153, %v3181
    %3183 = vdwg.mxu0
    %3184 = vmatpush.msra.mxu0 0.0
    %3185 = vmatpush.msra.mxu0 0.0
    %3186 = vmatpush.msra.mxu0 0.0
    %3187 = vmatpush.msra.mxu0 0.0
    %3188 = vmatpush.msra.mxu0 0.0
    %3189 = vmatpush.msra.mxu0 0.0
    %3190 = vmatpush.msra.mxu0 0.0
    %3191 = vmatpush.msra.mxu0 0.0
    %3192 = vmatpush.msra.mxu0 0.0
    %3193 = vmatpush.msra.mxu0 0.0
    %3194 = vmatpush.msra.mxu0 0.0
    %3195 = vmatpush.msra.mxu0 0.0
    %v3196 = vand.u32 %v3146, 4294901760
    %v3197 = vsub.f32 %v3146, %v3196
    %v3198 = vand.u32 %v3197, 4294901760
    %v3199 = vsub.f32 %v3197, %v3198
    %v3200 = vand.u32 %v3199, 4294901760
    %3201 = vmatpush.msra.mxu0 %v3200
    %v3202 = vand.u32 %v3145, 4294901760
    %v3203 = vsub.f32 %v3145, %v3202
    %v3204 = vand.u32 %v3203, 4294901760
    %v3205 = vsub.f32 %v3203, %v3204
    %v3206 = vand.u32 %v3205, 4294901760
    %3207 = vmatpush.msra.mxu0 %v3206
    %v3208 = vand.u32 %v3144, 4294901760
    %v3209 = vsub.f32 %v3144, %v3208
    %v3210 = vand.u32 %v3209, 4294901760
    %v3211 = vsub.f32 %v3209, %v3210
    %v3212 = vand.u32 %v3211, 4294901760
    %3213 = vmatpush.msra.mxu0 %v3212
    %v3214 = vand.u32 %v3143, 4294901760
    %v3215 = vsub.f32 %v3143, %v3214
    %v3216 = vand.u32 %v3215, 4294901760
    %v3217 = vsub.f32 %v3215, %v3216
    %v3218 = vand.u32 %v3217, 4294901760
    %3219 = vmatpush.msra.mxu0 %v3218
    %v3220 = vand.u32 %v1550, 4294901760
    %3221 = vmatmul.f32.gmra.mxu0 %v3220
    %v3222 = vpop.f32.mrf.mxu0
    %v3223 = vadd.f32 %v3182, %v3222
    %3224 = vdwg.mxu0
    %3225 = vmatpush.msra.mxu0 0.0
    %3226 = vmatpush.msra.mxu0 0.0
    %3227 = vmatpush.msra.mxu0 0.0
    %3228 = vmatpush.msra.mxu0 0.0
    %3229 = vmatpush.msra.mxu0 0.0
    %3230 = vmatpush.msra.mxu0 0.0
    %3231 = vmatpush.msra.mxu0 0.0
    %3232 = vmatpush.msra.mxu0 0.0
    %3233 = vmatpush.msra.mxu0 0.0
    %3234 = vmatpush.msra.mxu0 0.0
    %3235 = vmatpush.msra.mxu0 0.0
    %3236 = vmatpush.msra.mxu0 0.0
    %v3237 = vand.u32 %v3146, 4294901760
    %v3238 = vsub.f32 %v3146, %v3237
    %3239 = vmatpush.msra.mxu0 %v3238
    %v3240 = vand.u32 %v3145, 4294901760
    %v3241 = vsub.f32 %v3145, %v3240
    %3242 = vmatpush.msra.mxu0 %v3241
    %v3243 = vand.u32 %v3144, 4294901760
    %v3244 = vsub.f32 %v3144, %v3243
    %3245 = vmatpush.msra.mxu0 %v3244
    %v3246 = vand.u32 %v3143, 4294901760
    %v3247 = vsub.f32 %v3143, %v3246
    %3248 = vmatpush.msra.mxu0 %v3247
    %v3249 = vand.u32 %v1550, 4294901760
    %v3250 = vsub.f32 %v1550, %v3249
    %3251 = vmatmul.f32.gmra.mxu0 %v3250
    %v3252 = vpop.f32.mrf.mxu0
    %v3253 = vadd.f32 %v3223, %v3252
    %3254 = vdwg.mxu0
    %3255 = vmatpush.msra.mxu0 0.0
    %3256 = vmatpush.msra.mxu0 0.0
    %3257 = vmatpush.msra.mxu0 0.0
    %3258 = vmatpush.msra.mxu0 0.0
    %3259 = vmatpush.msra.mxu0 0.0
    %3260 = vmatpush.msra.mxu0 0.0
    %3261 = vmatpush.msra.mxu0 0.0
    %3262 = vmatpush.msra.mxu0 0.0
    %3263 = vmatpush.msra.mxu0 0.0
    %3264 = vmatpush.msra.mxu0 0.0
    %3265 = vmatpush.msra.mxu0 0.0
    %3266 = vmatpush.msra.mxu0 0.0
    %v3267 = vand.u32 %v3146, 4294901760
    %3268 = vmatpush.msra.mxu0 %v3267
    %v3269 = vand.u32 %v3145, 4294901760
    %3270 = vmatpush.msra.mxu0 %v3269
    %v3271 = vand.u32 %v3144, 4294901760
    %3272 = vmatpush.msra.mxu0 %v3271
    %v3273 = vand.u32 %v3143, 4294901760
    %3274 = vmatpush.msra.mxu0 %v3273
    %v3275 = vand.u32 %v1550, 4294901760
    %v3276 = vsub.f32 %v1550, %v3275
    %v3277 = vand.u32 %v3276, 4294901760
    %3278 = vmatmul.f32.gmra.mxu0 %v3277
    %v3279 = vpop.f32.mrf.mxu0
    %v3280 = vadd.f32 %v3253, %v3279
    %3281 = vdwg.mxu0
    %3282 = vmatpush.msra.mxu0 0.0
    %3283 = vmatpush.msra.mxu0 0.0
    %3284 = vmatpush.msra.mxu0 0.0
    %3285 = vmatpush.msra.mxu0 0.0
    %3286 = vmatpush.msra.mxu0 0.0
    %3287 = vmatpush.msra.mxu0 0.0
    %3288 = vmatpush.msra.mxu0 0.0
    %3289 = vmatpush.msra.mxu0 0.0
    %3290 = vmatpush.msra.mxu0 0.0
    %3291 = vmatpush.msra.mxu0 0.0
    %3292 = vmatpush.msra.mxu0 0.0
    %3293 = vmatpush.msra.mxu0 0.0
    %v3294 = vand.u32 %v3146, 4294901760
    %v3295 = vsub.f32 %v3146, %v3294
    %v3296 = vand.u32 %v3295, 4294901760
    %3297 = vmatpush.msra.mxu0 %v3296
    %v3298 = vand.u32 %v3145, 4294901760
    %v3299 = vsub.f32 %v3145, %v3298
    %v3300 = vand.u32 %v3299, 4294901760
    %3301 = vmatpush.msra.mxu0 %v3300
    %v3302 = vand.u32 %v3144, 4294901760
    %v3303 = vsub.f32 %v3144, %v3302
    %v3304 = vand.u32 %v3303, 4294901760
    %3305 = vmatpush.msra.mxu0 %v3304
    %v3306 = vand.u32 %v3143, 4294901760
    %v3307 = vsub.f32 %v3143, %v3306
    %v3308 = vand.u32 %v3307, 4294901760
    %3309 = vmatpush.msra.mxu0 %v3308
    %v3310 = vand.u32 %v1550, 4294901760
    %3311 = vmatmul.f32.gmra.mxu0 %v3310
    %v3312 = vpop.f32.mrf.mxu0
    %v3313 = vadd.f32 %v3280, %v3312
    %3314 = vdwg.mxu0
    %3315 = vmatpush.msra.mxu0 0.0
    %3316 = vmatpush.msra.mxu0 0.0
    %3317 = vmatpush.msra.mxu0 0.0
    %3318 = vmatpush.msra.mxu0 0.0
    %3319 = vmatpush.msra.mxu0 0.0
    %3320 = vmatpush.msra.mxu0 0.0
    %3321 = vmatpush.msra.mxu0 0.0
    %3322 = vmatpush.msra.mxu0 0.0
    %3323 = vmatpush.msra.mxu0 0.0
    %3324 = vmatpush.msra.mxu0 0.0
    %3325 = vmatpush.msra.mxu0 0.0
    %3326 = vmatpush.msra.mxu0 0.0
    %v3327 = vand.u32 %v3146, 4294901760
    %3328 = vmatpush.msra.mxu0 %v3327
    %v3329 = vand.u32 %v3145, 4294901760
    %3330 = vmatpush.msra.mxu0 %v3329
    %v3331 = vand.u32 %v3144, 4294901760
    %3332 = vmatpush.msra.mxu0 %v3331
    %v3333 = vand.u32 %v3143, 4294901760
    %3334 = vmatpush.msra.mxu0 %v3333
    %v3335 = vand.u32 %v1550, 4294901760
    %3336 = vmatmul.f32.gmra.mxu0 %v3335
    %v3337 = vpop.f32.mrf.mxu0
    %v3338 = vadd.f32 %v3313, %v3337
    %3339 = vdwg.mxu0
    %3340 = vmatpush.msra.mxu0 0.0
    %3341 = vmatpush.msra.mxu0 0.0
    %3342 = vmatpush.msra.mxu0 0.0
    %3343 = vmatpush.msra.mxu0 0.0
    %3344 = vmatpush.msra.mxu0 0.0
    %3345 = vmatpush.msra.mxu0 0.0
    %3346 = vmatpush.msra.mxu0 0.0
    %3347 = vmatpush.msra.mxu0 0.0
    %3348 = vmatpush.msra.mxu0 0.0
    %3349 = vmatpush.msra.mxu0 0.0
    %3350 = vmatpush.msra.mxu0 0.0
    %3351 = vmatpush.msra.mxu0 0.0
    %v3352 = vand.u32 %v3146, 4294901760
    %3353 = vmatpush.msra.mxu0 %v3352
    %v3354 = vand.u32 %v3145, 4294901760
    %3355 = vmatpush.msra.mxu0 %v3354
    %v3356 = vand.u32 %v3144, 4294901760
    %3357 = vmatpush.msra.mxu0 %v3356
    %v3358 = vand.u32 %v3143, 4294901760
    %3359 = vmatpush.msra.mxu0 %v3358
    %v3360 = vand.u32 %v1778, 4294901760
    %v3361 = vsub.f32 %v1778, %v3360
    %v3362 = vand.u32 %v3361, 4294901760
    %v3363 = vsub.f32 %v3361, %v3362
    %v3364 = vand.u32 %v3363, 4294901760
    %3365 = vmatmul.f32.gmra.mxu0 %v3364
    %v3366 = vpop.f32.mrf.mxu0
    %v3367 = vadd.f32 %v3153, %v3366
    %3368 = vdwg.mxu0
    %3369 = vmatpush.msra.mxu0 0.0
    %3370 = vmatpush.msra.mxu0 0.0
    %3371 = vmatpush.msra.mxu0 0.0
    %3372 = vmatpush.msra.mxu0 0.0
    %3373 = vmatpush.msra.mxu0 0.0
    %3374 = vmatpush.msra.mxu0 0.0
    %3375 = vmatpush.msra.mxu0 0.0
    %3376 = vmatpush.msra.mxu0 0.0
    %3377 = vmatpush.msra.mxu0 0.0
    %3378 = vmatpush.msra.mxu0 0.0
    %3379 = vmatpush.msra.mxu0 0.0
    %3380 = vmatpush.msra.mxu0 0.0
    %v3381 = vand.u32 %v3146, 4294901760
    %v3382 = vsub.f32 %v3146, %v3381
    %v3383 = vand.u32 %v3382, 4294901760
    %v3384 = vsub.f32 %v3382, %v3383
    %v3385 = vand.u32 %v3384, 4294901760
    %3386 = vmatpush.msra.mxu0 %v3385
    %v3387 = vand.u32 %v3145, 4294901760
    %v3388 = vsub.f32 %v3145, %v3387
    %v3389 = vand.u32 %v3388, 4294901760
    %v3390 = vsub.f32 %v3388, %v3389
    %v3391 = vand.u32 %v3390, 4294901760
    %3392 = vmatpush.msra.mxu0 %v3391
    %v3393 = vand.u32 %v3144, 4294901760
    %v3394 = vsub.f32 %v3144, %v3393
    %v3395 = vand.u32 %v3394, 4294901760
    %v3396 = vsub.f32 %v3394, %v3395
    %v3397 = vand.u32 %v3396, 4294901760
    %3398 = vmatpush.msra.mxu0 %v3397
    %v3399 = vand.u32 %v3143, 4294901760
    %v3400 = vsub.f32 %v3143, %v3399
    %v3401 = vand.u32 %v3400, 4294901760
    %v3402 = vsub.f32 %v3400, %v3401
    %v3403 = vand.u32 %v3402, 4294901760
    %3404 = vmatpush.msra.mxu0 %v3403
    %v3405 = vand.u32 %v1778, 4294901760
    %3406 = vmatmul.f32.gmra.mxu0 %v3405
    %v3407 = vpop.f32.mrf.mxu0
    %v3408 = vadd.f32 %v3367, %v3407
    %3409 = vdwg.mxu0
    %3410 = vmatpush.msra.mxu0 0.0
    %3411 = vmatpush.msra.mxu0 0.0
    %3412 = vmatpush.msra.mxu0 0.0
    %3413 = vmatpush.msra.mxu0 0.0
    %3414 = vmatpush.msra.mxu0 0.0
    %3415 = vmatpush.msra.mxu0 0.0
    %3416 = vmatpush.msra.mxu0 0.0
    %3417 = vmatpush.msra.mxu0 0.0
    %3418 = vmatpush.msra.mxu0 0.0
    %3419 = vmatpush.msra.mxu0 0.0
    %3420 = vmatpush.msra.mxu0 0.0
    %3421 = vmatpush.msra.mxu0 0.0
    %v3422 = vand.u32 %v3146, 4294901760
    %v3423 = vsub.f32 %v3146, %v3422
    %3424 = vmatpush.msra.mxu0 %v3423
    %v3425 = vand.u32 %v3145, 4294901760
    %v3426 = vsub.f32 %v3145, %v3425
    %3427 = vmatpush.msra.mxu0 %v3426
    %v3428 = vand.u32 %v3144, 4294901760
    %v3429 = vsub.f32 %v3144, %v3428
    %3430 = vmatpush.msra.mxu0 %v3429
    %v3431 = vand.u32 %v3143, 4294901760
    %v3432 = vsub.f32 %v3143, %v3431
    %3433 = vmatpush.msra.mxu0 %v3432
    %v3434 = vand.u32 %v1778, 4294901760
    %v3435 = vsub.f32 %v1778, %v3434
    %3436 = vmatmul.f32.gmra.mxu0 %v3435
    %v3437 = vpop.f32.mrf.mxu0
    %v3438 = vadd.f32 %v3408, %v3437
    %3439 = vdwg.mxu0
    %3440 = vmatpush.msra.mxu0 0.0
    %3441 = vmatpush.msra.mxu0 0.0
    %3442 = vmatpush.msra.mxu0 0.0
    %3443 = vmatpush.msra.mxu0 0.0
    %3444 = vmatpush.msra.mxu0 0.0
    %3445 = vmatpush.msra.mxu0 0.0
    %3446 = vmatpush.msra.mxu0 0.0
    %3447 = vmatpush.msra.mxu0 0.0
    %3448 = vmatpush.msra.mxu0 0.0
    %3449 = vmatpush.msra.mxu0 0.0
    %3450 = vmatpush.msra.mxu0 0.0
    %3451 = vmatpush.msra.mxu0 0.0
    %v3452 = vand.u32 %v3146, 4294901760
    %3453 = vmatpush.msra.mxu0 %v3452
    %v3454 = vand.u32 %v3145, 4294901760
    %3455 = vmatpush.msra.mxu0 %v3454
    %v3456 = vand.u32 %v3144, 4294901760
    %3457 = vmatpush.msra.mxu0 %v3456
    %v3458 = vand.u32 %v3143, 4294901760
    %3459 = vmatpush.msra.mxu0 %v3458
    %v3460 = vand.u32 %v1778, 4294901760
    %v3461 = vsub.f32 %v1778, %v3460
    %v3462 = vand.u32 %v3461, 4294901760
    %3463 = vmatmul.f32.gmra.mxu0 %v3462
    %v3464 = vpop.f32.mrf.mxu0
    %v3465 = vadd.f32 %v3438, %v3464
    %3466 = vdwg.mxu0
    %3467 = vmatpush.msra.mxu0 0.0
    %3468 = vmatpush.msra.mxu0 0.0
    %3469 = vmatpush.msra.mxu0 0.0
    %3470 = vmatpush.msra.mxu0 0.0
    %3471 = vmatpush.msra.mxu0 0.0
    %3472 = vmatpush.msra.mxu0 0.0
    %3473 = vmatpush.msra.mxu0 0.0
    %3474 = vmatpush.msra.mxu0 0.0
    %3475 = vmatpush.msra.mxu0 0.0
    %3476 = vmatpush.msra.mxu0 0.0
    %3477 = vmatpush.msra.mxu0 0.0
    %3478 = vmatpush.msra.mxu0 0.0
    %v3479 = vand.u32 %v3146, 4294901760
    %v3480 = vsub.f32 %v3146, %v3479
    %v3481 = vand.u32 %v3480, 4294901760
    %3482 = vmatpush.msra.mxu0 %v3481
    %v3483 = vand.u32 %v3145, 4294901760
    %v3484 = vsub.f32 %v3145, %v3483
    %v3485 = vand.u32 %v3484, 4294901760
    %3486 = vmatpush.msra.mxu0 %v3485
    %v3487 = vand.u32 %v3144, 4294901760
    %v3488 = vsub.f32 %v3144, %v3487
    %v3489 = vand.u32 %v3488, 4294901760
    %3490 = vmatpush.msra.mxu0 %v3489
    %v3491 = vand.u32 %v3143, 4294901760
    %v3492 = vsub.f32 %v3143, %v3491
    %v3493 = vand.u32 %v3492, 4294901760
    %3494 = vmatpush.msra.mxu0 %v3493
    %v3495 = vand.u32 %v1778, 4294901760
    %3496 = vmatmul.f32.gmra.mxu0 %v3495
    %v3497 = vpop.f32.mrf.mxu0
    %v3498 = vadd.f32 %v3465, %v3497
    %3499 = vdwg.mxu0
    %3500 = vmatpush.msra.mxu0 0.0
    %3501 = vmatpush.msra.mxu0 0.0
    %3502 = vmatpush.msra.mxu0 0.0
    %3503 = vmatpush.msra.mxu0 0.0
    %3504 = vmatpush.msra.mxu0 0.0
    %3505 = vmatpush.msra.mxu0 0.0
    %3506 = vmatpush.msra.mxu0 0.0
    %3507 = vmatpush.msra.mxu0 0.0
    %3508 = vmatpush.msra.mxu0 0.0
    %3509 = vmatpush.msra.mxu0 0.0
    %3510 = vmatpush.msra.mxu0 0.0
    %3511 = vmatpush.msra.mxu0 0.0
    %v3512 = vand.u32 %v3146, 4294901760
    %3513 = vmatpush.msra.mxu0 %v3512
    %v3514 = vand.u32 %v3145, 4294901760
    %3515 = vmatpush.msra.mxu0 %v3514
    %v3516 = vand.u32 %v3144, 4294901760
    %3517 = vmatpush.msra.mxu0 %v3516
    %v3518 = vand.u32 %v3143, 4294901760
    %3519 = vmatpush.msra.mxu0 %v3518
    %v3520 = vand.u32 %v1778, 4294901760
    %3521 = vmatmul.f32.gmra.mxu0 %v3520
    %v3522 = vpop.f32.mrf.mxu0
    %v3523 = vadd.f32 %v3498, %v3522
    %3524 = vdwg.mxu0
    %3525 = vmatpush.msra.mxu0 0.0
    %3526 = vmatpush.msra.mxu0 0.0
    %3527 = vmatpush.msra.mxu0 0.0
    %3528 = vmatpush.msra.mxu0 0.0
    %3529 = vmatpush.msra.mxu0 0.0
    %3530 = vmatpush.msra.mxu0 0.0
    %3531 = vmatpush.msra.mxu0 0.0
    %3532 = vmatpush.msra.mxu0 0.0
    %3533 = vmatpush.msra.mxu0 0.0
    %3534 = vmatpush.msra.mxu0 0.0
    %3535 = vmatpush.msra.mxu0 0.0
    %3536 = vmatpush.msra.mxu0 0.0
    %v3537 = vand.u32 %v3146, 4294901760
    %3538 = vmatpush.msra.mxu0 %v3537
    %v3539 = vand.u32 %v3145, 4294901760
    %3540 = vmatpush.msra.mxu0 %v3539
    %v3541 = vand.u32 %v3144, 4294901760
    %3542 = vmatpush.msra.mxu0 %v3541
    %v3543 = vand.u32 %v3143, 4294901760
    %3544 = vmatpush.msra.mxu0 %v3543
    %v3545 = vand.u32 %v2006, 4294901760
    %v3546 = vsub.f32 %v2006, %v3545
    %v3547 = vand.u32 %v3546, 4294901760
    %v3548 = vsub.f32 %v3546, %v3547
    %v3549 = vand.u32 %v3548, 4294901760
    %3550 = vmatmul.f32.gmra.mxu0 %v3549
    %v3551 = vpop.f32.mrf.mxu0
    %v3552 = vadd.f32 %v3153, %v3551
    %3553 = vdwg.mxu0
    %3554 = vmatpush.msra.mxu0 0.0
    %3555 = vmatpush.msra.mxu0 0.0
    %3556 = vmatpush.msra.mxu0 0.0
    %3557 = vmatpush.msra.mxu0 0.0
    %3558 = vmatpush.msra.mxu0 0.0
    %3559 = vmatpush.msra.mxu0 0.0
    %3560 = vmatpush.msra.mxu0 0.0
    %3561 = vmatpush.msra.mxu0 0.0
    %3562 = vmatpush.msra.mxu0 0.0
    %3563 = vmatpush.msra.mxu0 0.0
    %3564 = vmatpush.msra.mxu0 0.0
    %3565 = vmatpush.msra.mxu0 0.0
    %v3566 = vand.u32 %v3146, 4294901760
    %v3567 = vsub.f32 %v3146, %v3566
    %v3568 = vand.u32 %v3567, 4294901760
    %v3569 = vsub.f32 %v3567, %v3568
    %v3570 = vand.u32 %v3569, 4294901760
    %3571 = vmatpush.msra.mxu0 %v3570
    %v3572 = vand.u32 %v3145, 4294901760
    %v3573 = vsub.f32 %v3145, %v3572
    %v3574 = vand.u32 %v3573, 4294901760
    %v3575 = vsub.f32 %v3573, %v3574
    %v3576 = vand.u32 %v3575, 4294901760
    %3577 = vmatpush.msra.mxu0 %v3576
    %v3578 = vand.u32 %v3144, 4294901760
    %v3579 = vsub.f32 %v3144, %v3578
    %v3580 = vand.u32 %v3579, 4294901760
    %v3581 = vsub.f32 %v3579, %v3580
    %v3582 = vand.u32 %v3581, 4294901760
    %3583 = vmatpush.msra.mxu0 %v3582
    %v3584 = vand.u32 %v3143, 4294901760
    %v3585 = vsub.f32 %v3143, %v3584
    %v3586 = vand.u32 %v3585, 4294901760
    %v3587 = vsub.f32 %v3585, %v3586
    %v3588 = vand.u32 %v3587, 4294901760
    %3589 = vmatpush.msra.mxu0 %v3588
    %v3590 = vand.u32 %v2006, 4294901760
    %3591 = vmatmul.f32.gmra.mxu0 %v3590
    %v3592 = vpop.f32.mrf.mxu0
    %v3593 = vadd.f32 %v3552, %v3592
    %3594 = vdwg.mxu0
    %3595 = vmatpush.msra.mxu0 0.0
    %3596 = vmatpush.msra.mxu0 0.0
    %3597 = vmatpush.msra.mxu0 0.0
    %3598 = vmatpush.msra.mxu0 0.0
    %3599 = vmatpush.msra.mxu0 0.0
    %3600 = vmatpush.msra.mxu0 0.0
    %3601 = vmatpush.msra.mxu0 0.0
    %3602 = vmatpush.msra.mxu0 0.0
    %3603 = vmatpush.msra.mxu0 0.0
    %3604 = vmatpush.msra.mxu0 0.0
    %3605 = vmatpush.msra.mxu0 0.0
    %3606 = vmatpush.msra.mxu0 0.0
    %v3607 = vand.u32 %v3146, 4294901760
    %v3608 = vsub.f32 %v3146, %v3607
    %3609 = vmatpush.msra.mxu0 %v3608
    %v3610 = vand.u32 %v3145, 4294901760
    %v3611 = vsub.f32 %v3145, %v3610
    %3612 = vmatpush.msra.mxu0 %v3611
    %v3613 = vand.u32 %v3144, 4294901760
    %v3614 = vsub.f32 %v3144, %v3613
    %3615 = vmatpush.msra.mxu0 %v3614
    %v3616 = vand.u32 %v3143, 4294901760
    %v3617 = vsub.f32 %v3143, %v3616
    %3618 = vmatpush.msra.mxu0 %v3617
    %v3619 = vand.u32 %v2006, 4294901760
    %v3620 = vsub.f32 %v2006, %v3619
    %3621 = vmatmul.f32.gmra.mxu0 %v3620
    %v3622 = vpop.f32.mrf.mxu0
    %v3623 = vadd.f32 %v3593, %v3622
    %3624 = vdwg.mxu0
    %3625 = vmatpush.msra.mxu0 0.0
    %3626 = vmatpush.msra.mxu0 0.0
    %3627 = vmatpush.msra.mxu0 0.0
    %3628 = vmatpush.msra.mxu0 0.0
    %3629 = vmatpush.msra.mxu0 0.0
    %3630 = vmatpush.msra.mxu0 0.0
    %3631 = vmatpush.msra.mxu0 0.0
    %3632 = vmatpush.msra.mxu0 0.0
    %3633 = vmatpush.msra.mxu0 0.0
    %3634 = vmatpush.msra.mxu0 0.0
    %3635 = vmatpush.msra.mxu0 0.0
    %3636 = vmatpush.msra.mxu0 0.0
    %v3637 = vand.u32 %v3146, 4294901760
    %3638 = vmatpush.msra.mxu0 %v3637
    %v3639 = vand.u32 %v3145, 4294901760
    %3640 = vmatpush.msra.mxu0 %v3639
    %v3641 = vand.u32 %v3144, 4294901760
    %3642 = vmatpush.msra.mxu0 %v3641
    %v3643 = vand.u32 %v3143, 4294901760
    %3644 = vmatpush.msra.mxu0 %v3643
    %v3645 = vand.u32 %v2006, 4294901760
    %v3646 = vsub.f32 %v2006, %v3645
    %v3647 = vand.u32 %v3646, 4294901760
    %3648 = vmatmul.f32.gmra.mxu0 %v3647
    %v3649 = vpop.f32.mrf.mxu0
    %v3650 = vadd.f32 %v3623, %v3649
    %3651 = vdwg.mxu0
    %3652 = vmatpush.msra.mxu0 0.0
    %3653 = vmatpush.msra.mxu0 0.0
    %3654 = vmatpush.msra.mxu0 0.0
    %3655 = vmatpush.msra.mxu0 0.0
    %3656 = vmatpush.msra.mxu0 0.0
    %3657 = vmatpush.msra.mxu0 0.0
    %3658 = vmatpush.msra.mxu0 0.0
    %3659 = vmatpush.msra.mxu0 0.0
    %3660 = vmatpush.msra.mxu0 0.0
    %3661 = vmatpush.msra.mxu0 0.0
    %3662 = vmatpush.msra.mxu0 0.0
    %3663 = vmatpush.msra.mxu0 0.0
    %v3664 = vand.u32 %v3146, 4294901760
    %v3665 = vsub.f32 %v3146, %v3664
    %v3666 = vand.u32 %v3665, 4294901760
    %3667 = vmatpush.msra.mxu0 %v3666
    %v3668 = vand.u32 %v3145, 4294901760
    %v3669 = vsub.f32 %v3145, %v3668
    %v3670 = vand.u32 %v3669, 4294901760
    %3671 = vmatpush.msra.mxu0 %v3670
    %v3672 = vand.u32 %v3144, 4294901760
    %v3673 = vsub.f32 %v3144, %v3672
    %v3674 = vand.u32 %v3673, 4294901760
    %3675 = vmatpush.msra.mxu0 %v3674
    %v3676 = vand.u32 %v3143, 4294901760
    %v3677 = vsub.f32 %v3143, %v3676
    %v3678 = vand.u32 %v3677, 4294901760
    %3679 = vmatpush.msra.mxu0 %v3678
    %v3680 = vand.u32 %v2006, 4294901760
    %3681 = vmatmul.f32.gmra.mxu0 %v3680
    %v3682 = vpop.f32.mrf.mxu0
    %v3683 = vadd.f32 %v3650, %v3682
    %3684 = vdwg.mxu0
    %3685 = vmatpush.msra.mxu0 0.0
    %3686 = vmatpush.msra.mxu0 0.0
    %3687 = vmatpush.msra.mxu0 0.0
    %3688 = vmatpush.msra.mxu0 0.0
    %3689 = vmatpush.msra.mxu0 0.0
    %3690 = vmatpush.msra.mxu0 0.0
    %3691 = vmatpush.msra.mxu0 0.0
    %3692 = vmatpush.msra.mxu0 0.0
    %3693 = vmatpush.msra.mxu0 0.0
    %3694 = vmatpush.msra.mxu0 0.0
    %3695 = vmatpush.msra.mxu0 0.0
    %3696 = vmatpush.msra.mxu0 0.0
    %v3697 = vand.u32 %v3146, 4294901760
    %3698 = vmatpush.msra.mxu0 %v3697
    %v3699 = vand.u32 %v3145, 4294901760
    %3700 = vmatpush.msra.mxu0 %v3699
    %v3701 = vand.u32 %v3144, 4294901760
    %3702 = vmatpush.msra.mxu0 %v3701
    %v3703 = vand.u32 %v3143, 4294901760
    %3704 = vmatpush.msra.mxu0 %v3703
    %v3705 = vand.u32 %v2006, 4294901760
    %3706 = vmatmul.f32.gmra.mxu0 %v3705
    %v3707 = vpop.f32.mrf.mxu0
    %v3708 = vadd.f32 %v3683, %v3707
    %3709 = vdwg.mxu0
    %3710 = vmatpush.msra.mxu0 0.0
    %3711 = vmatpush.msra.mxu0 0.0
    %3712 = vmatpush.msra.mxu0 0.0
    %3713 = vmatpush.msra.mxu0 0.0
    %3714 = vmatpush.msra.mxu0 0.0
    %3715 = vmatpush.msra.mxu0 0.0
    %3716 = vmatpush.msra.mxu0 0.0
    %3717 = vmatpush.msra.mxu0 0.0
    %3718 = vmatpush.msra.mxu0 0.0
    %3719 = vmatpush.msra.mxu0 0.0
    %3720 = vmatpush.msra.mxu0 0.0
    %3721 = vmatpush.msra.mxu0 0.0
    %v3722 = vand.u32 %v3146, 4294901760
    %3723 = vmatpush.msra.mxu0 %v3722
    %v3724 = vand.u32 %v3145, 4294901760
    %3725 = vmatpush.msra.mxu0 %v3724
    %v3726 = vand.u32 %v3144, 4294901760
    %3727 = vmatpush.msra.mxu0 %v3726
    %v3728 = vand.u32 %v3143, 4294901760
    %3729 = vmatpush.msra.mxu0 %v3728
    %v3730 = vand.u32 %v2234, 4294901760
    %v3731 = vsub.f32 %v2234, %v3730
    %v3732 = vand.u32 %v3731, 4294901760
    %v3733 = vsub.f32 %v3731, %v3732
    %v3734 = vand.u32 %v3733, 4294901760
    %3735 = vmatmul.f32.gmra.mxu0 %v3734
    %v3736 = vpop.f32.mrf.mxu0
    %v3737 = vadd.f32 %v3153, %v3736
    %3738 = vdwg.mxu0
    %3739 = vmatpush.msra.mxu0 0.0
    %3740 = vmatpush.msra.mxu0 0.0
    %3741 = vmatpush.msra.mxu0 0.0
    %3742 = vmatpush.msra.mxu0 0.0
    %3743 = vmatpush.msra.mxu0 0.0
    %3744 = vmatpush.msra.mxu0 0.0
    %3745 = vmatpush.msra.mxu0 0.0
    %3746 = vmatpush.msra.mxu0 0.0
    %3747 = vmatpush.msra.mxu0 0.0
    %3748 = vmatpush.msra.mxu0 0.0
    %3749 = vmatpush.msra.mxu0 0.0
    %3750 = vmatpush.msra.mxu0 0.0
    %v3751 = vand.u32 %v3146, 4294901760
    %v3752 = vsub.f32 %v3146, %v3751
    %v3753 = vand.u32 %v3752, 4294901760
    %v3754 = vsub.f32 %v3752, %v3753
    %v3755 = vand.u32 %v3754, 4294901760
    %3756 = vmatpush.msra.mxu0 %v3755
    %v3757 = vand.u32 %v3145, 4294901760
    %v3758 = vsub.f32 %v3145, %v3757
    %v3759 = vand.u32 %v3758, 4294901760
    %v3760 = vsub.f32 %v3758, %v3759
    %v3761 = vand.u32 %v3760, 4294901760
    %3762 = vmatpush.msra.mxu0 %v3761
    %v3763 = vand.u32 %v3144, 4294901760
    %v3764 = vsub.f32 %v3144, %v3763
    %v3765 = vand.u32 %v3764, 4294901760
    %v3766 = vsub.f32 %v3764, %v3765
    %v3767 = vand.u32 %v3766, 4294901760
    %3768 = vmatpush.msra.mxu0 %v3767
    %v3769 = vand.u32 %v3143, 4294901760
    %v3770 = vsub.f32 %v3143, %v3769
    %v3771 = vand.u32 %v3770, 4294901760
    %v3772 = vsub.f32 %v3770, %v3771
    %v3773 = vand.u32 %v3772, 4294901760
    %3774 = vmatpush.msra.mxu0 %v3773
    %v3775 = vand.u32 %v2234, 4294901760
    %3776 = vmatmul.f32.gmra.mxu0 %v3775
    %v3777 = vpop.f32.mrf.mxu0
    %v3778 = vadd.f32 %v3737, %v3777
    %3779 = vdwg.mxu0
    %3780 = vmatpush.msra.mxu0 0.0
    %3781 = vmatpush.msra.mxu0 0.0
    %3782 = vmatpush.msra.mxu0 0.0
    %3783 = vmatpush.msra.mxu0 0.0
    %3784 = vmatpush.msra.mxu0 0.0
    %3785 = vmatpush.msra.mxu0 0.0
    %3786 = vmatpush.msra.mxu0 0.0
    %3787 = vmatpush.msra.mxu0 0.0
    %3788 = vmatpush.msra.mxu0 0.0
    %3789 = vmatpush.msra.mxu0 0.0
    %3790 = vmatpush.msra.mxu0 0.0
    %3791 = vmatpush.msra.mxu0 0.0
    %v3792 = vand.u32 %v3146, 4294901760
    %v3793 = vsub.f32 %v3146, %v3792
    %3794 = vmatpush.msra.mxu0 %v3793
    %v3795 = vand.u32 %v3145, 4294901760
    %v3796 = vsub.f32 %v3145, %v3795
    %3797 = vmatpush.msra.mxu0 %v3796
    %v3798 = vand.u32 %v3144, 4294901760
    %v3799 = vsub.f32 %v3144, %v3798
    %3800 = vmatpush.msra.mxu0 %v3799
    %v3801 = vand.u32 %v3143, 4294901760
    %v3802 = vsub.f32 %v3143, %v3801
    %3803 = vmatpush.msra.mxu0 %v3802
    %v3804 = vand.u32 %v2234, 4294901760
    %v3805 = vsub.f32 %v2234, %v3804
    %3806 = vmatmul.f32.gmra.mxu0 %v3805
    %v3807 = vpop.f32.mrf.mxu0
    %v3808 = vadd.f32 %v3778, %v3807
    %3809 = vdwg.mxu0
    %3810 = vmatpush.msra.mxu0 0.0
    %3811 = vmatpush.msra.mxu0 0.0
    %3812 = vmatpush.msra.mxu0 0.0
    %3813 = vmatpush.msra.mxu0 0.0
    %3814 = vmatpush.msra.mxu0 0.0
    %3815 = vmatpush.msra.mxu0 0.0
    %3816 = vmatpush.msra.mxu0 0.0
    %3817 = vmatpush.msra.mxu0 0.0
    %3818 = vmatpush.msra.mxu0 0.0
    %3819 = vmatpush.msra.mxu0 0.0
    %3820 = vmatpush.msra.mxu0 0.0
    %3821 = vmatpush.msra.mxu0 0.0
    %v3822 = vand.u32 %v3146, 4294901760
    %3823 = vmatpush.msra.mxu0 %v3822
    %v3824 = vand.u32 %v3145, 4294901760
    %3825 = vmatpush.msra.mxu0 %v3824
    %v3826 = vand.u32 %v3144, 4294901760
    %3827 = vmatpush.msra.mxu0 %v3826
    %v3828 = vand.u32 %v3143, 4294901760
    %3829 = vmatpush.msra.mxu0 %v3828
    %v3830 = vand.u32 %v2234, 4294901760
    %v3831 = vsub.f32 %v2234, %v3830
    %v3832 = vand.u32 %v3831, 4294901760
    %3833 = vmatmul.f32.gmra.mxu0 %v3832
    %v3834 = vpop.f32.mrf.mxu0
    %v3835 = vadd.f32 %v3808, %v3834
    %3836 = vdwg.mxu0
    %3837 = vmatpush.msra.mxu0 0.0
    %3838 = vmatpush.msra.mxu0 0.0
    %3839 = vmatpush.msra.mxu0 0.0
    %3840 = vmatpush.msra.mxu0 0.0
    %3841 = vmatpush.msra.mxu0 0.0
    %3842 = vmatpush.msra.mxu0 0.0
    %3843 = vmatpush.msra.mxu0 0.0
    %3844 = vmatpush.msra.mxu0 0.0
    %3845 = vmatpush.msra.mxu0 0.0
    %3846 = vmatpush.msra.mxu0 0.0
    %3847 = vmatpush.msra.mxu0 0.0
    %3848 = vmatpush.msra.mxu0 0.0
    %v3849 = vand.u32 %v3146, 4294901760
    %v3850 = vsub.f32 %v3146, %v3849
    %v3851 = vand.u32 %v3850, 4294901760
    %3852 = vmatpush.msra.mxu0 %v3851
    %v3853 = vand.u32 %v3145, 4294901760
    %v3854 = vsub.f32 %v3145, %v3853
    %v3855 = vand.u32 %v3854, 4294901760
    %3856 = vmatpush.msra.mxu0 %v3855
    %v3857 = vand.u32 %v3144, 4294901760
    %v3858 = vsub.f32 %v3144, %v3857
    %v3859 = vand.u32 %v3858, 4294901760
    %3860 = vmatpush.msra.mxu0 %v3859
    %v3861 = vand.u32 %v3143, 4294901760
    %v3862 = vsub.f32 %v3143, %v3861
    %v3863 = vand.u32 %v3862, 4294901760
    %3864 = vmatpush.msra.mxu0 %v3863
    %v3865 = vand.u32 %v2234, 4294901760
    %3866 = vmatmul.f32.gmra.mxu0 %v3865
    %v3867 = vpop.f32.mrf.mxu0
    %v3868 = vadd.f32 %v3835, %v3867
    %3869 = vdwg.mxu0
    %3870 = vmatpush.msra.mxu0 0.0
    %3871 = vmatpush.msra.mxu0 0.0
    %3872 = vmatpush.msra.mxu0 0.0
    %3873 = vmatpush.msra.mxu0 0.0
    %3874 = vmatpush.msra.mxu0 0.0
    %3875 = vmatpush.msra.mxu0 0.0
    %3876 = vmatpush.msra.mxu0 0.0
    %3877 = vmatpush.msra.mxu0 0.0
    %3878 = vmatpush.msra.mxu0 0.0
    %3879 = vmatpush.msra.mxu0 0.0
    %3880 = vmatpush.msra.mxu0 0.0
    %3881 = vmatpush.msra.mxu0 0.0
    %v3882 = vand.u32 %v3146, 4294901760
    %3883 = vmatpush.msra.mxu0 %v3882
    %v3884 = vand.u32 %v3145, 4294901760
    %3885 = vmatpush.msra.mxu0 %v3884
    %v3886 = vand.u32 %v3144, 4294901760
    %3887 = vmatpush.msra.mxu0 %v3886
    %v3888 = vand.u32 %v3143, 4294901760
    %3889 = vmatpush.msra.mxu0 %v3888
    %v3890 = vand.u32 %v2234, 4294901760
    %3891 = vmatmul.f32.gmra.mxu0 %v3890
    %v3892 = vpop.f32.mrf.mxu0
    %v3893 = vadd.f32 %v3868, %v3892
    %3894 = vdwg.mxu0
    %3895 = vmatpush.msra.mxu0 0.0
    %3896 = vmatpush.msra.mxu0 0.0
    %3897 = vmatpush.msra.mxu0 0.0
    %3898 = vmatpush.msra.mxu0 0.0
    %3899 = vmatpush.msra.mxu0 0.0
    %3900 = vmatpush.msra.mxu0 0.0
    %3901 = vmatpush.msra.mxu0 0.0
    %3902 = vmatpush.msra.mxu0 0.0
    %3903 = vmatpush.msra.mxu0 0.0
    %3904 = vmatpush.msra.mxu0 0.0
    %3905 = vmatpush.msra.mxu0 0.0
    %3906 = vmatpush.msra.mxu0 0.0
    %v3907 = vand.u32 %v3146, 4294901760
    %3908 = vmatpush.msra.mxu0 %v3907
    %v3909 = vand.u32 %v3145, 4294901760
    %3910 = vmatpush.msra.mxu0 %v3909
    %v3911 = vand.u32 %v3144, 4294901760
    %3912 = vmatpush.msra.mxu0 %v3911
    %v3913 = vand.u32 %v3143, 4294901760
    %3914 = vmatpush.msra.mxu0 %v3913
    %v3915 = vand.u32 %v2462, 4294901760
    %v3916 = vsub.f32 %v2462, %v3915
    %v3917 = vand.u32 %v3916, 4294901760
    %v3918 = vsub.f32 %v3916, %v3917
    %v3919 = vand.u32 %v3918, 4294901760
    %3920 = vmatmul.f32.gmra.mxu0 %v3919
    %v3921 = vpop.f32.mrf.mxu0
    %v3922 = vadd.f32 %v3153, %v3921
    %3923 = vdwg.mxu0
    %3924 = vmatpush.msra.mxu0 0.0
    %3925 = vmatpush.msra.mxu0 0.0
    %3926 = vmatpush.msra.mxu0 0.0
    %3927 = vmatpush.msra.mxu0 0.0
    %3928 = vmatpush.msra.mxu0 0.0
    %3929 = vmatpush.msra.mxu0 0.0
    %3930 = vmatpush.msra.mxu0 0.0
    %3931 = vmatpush.msra.mxu0 0.0
    %3932 = vmatpush.msra.mxu0 0.0
    %3933 = vmatpush.msra.mxu0 0.0
    %3934 = vmatpush.msra.mxu0 0.0
    %3935 = vmatpush.msra.mxu0 0.0
    %v3936 = vand.u32 %v3146, 4294901760
    %v3937 = vsub.f32 %v3146, %v3936
    %v3938 = vand.u32 %v3937, 4294901760
    %v3939 = vsub.f32 %v3937, %v3938
    %v3940 = vand.u32 %v3939, 4294901760
    %3941 = vmatpush.msra.mxu0 %v3940
    %v3942 = vand.u32 %v3145, 4294901760
    %v3943 = vsub.f32 %v3145, %v3942
    %v3944 = vand.u32 %v3943, 4294901760
    %v3945 = vsub.f32 %v3943, %v3944
    %v3946 = vand.u32 %v3945, 4294901760
    %3947 = vmatpush.msra.mxu0 %v3946
    %v3948 = vand.u32 %v3144, 4294901760
    %v3949 = vsub.f32 %v3144, %v3948
    %v3950 = vand.u32 %v3949, 4294901760
    %v3951 = vsub.f32 %v3949, %v3950
    %v3952 = vand.u32 %v3951, 4294901760
    %3953 = vmatpush.msra.mxu0 %v3952
    %v3954 = vand.u32 %v3143, 4294901760
    %v3955 = vsub.f32 %v3143, %v3954
    %v3956 = vand.u32 %v3955, 4294901760
    %v3957 = vsub.f32 %v3955, %v3956
    %v3958 = vand.u32 %v3957, 4294901760
    %3959 = vmatpush.msra.mxu0 %v3958
    %v3960 = vand.u32 %v2462, 4294901760
    %3961 = vmatmul.f32.gmra.mxu0 %v3960
    %v3962 = vpop.f32.mrf.mxu0
    %v3963 = vadd.f32 %v3922, %v3962
    %3964 = vdwg.mxu0
    %3965 = vmatpush.msra.mxu0 0.0
    %3966 = vmatpush.msra.mxu0 0.0
    %3967 = vmatpush.msra.mxu0 0.0
    %3968 = vmatpush.msra.mxu0 0.0
    %3969 = vmatpush.msra.mxu0 0.0
    %3970 = vmatpush.msra.mxu0 0.0
    %3971 = vmatpush.msra.mxu0 0.0
    %3972 = vmatpush.msra.mxu0 0.0
    %3973 = vmatpush.msra.mxu0 0.0
    %3974 = vmatpush.msra.mxu0 0.0
    %3975 = vmatpush.msra.mxu0 0.0
    %3976 = vmatpush.msra.mxu0 0.0
    %v3977 = vand.u32 %v3146, 4294901760
    %v3978 = vsub.f32 %v3146, %v3977
    %3979 = vmatpush.msra.mxu0 %v3978
    %v3980 = vand.u32 %v3145, 4294901760
    %v3981 = vsub.f32 %v3145, %v3980
    %3982 = vmatpush.msra.mxu0 %v3981
    %v3983 = vand.u32 %v3144, 4294901760
    %v3984 = vsub.f32 %v3144, %v3983
    %3985 = vmatpush.msra.mxu0 %v3984
    %v3986 = vand.u32 %v3143, 4294901760
    %v3987 = vsub.f32 %v3143, %v3986
    %3988 = vmatpush.msra.mxu0 %v3987
    %v3989 = vand.u32 %v2462, 4294901760
    %v3990 = vsub.f32 %v2462, %v3989
    %3991 = vmatmul.f32.gmra.mxu0 %v3990
    %v3992 = vpop.f32.mrf.mxu0
    %v3993 = vadd.f32 %v3963, %v3992
    %3994 = vdwg.mxu0
    %3995 = vmatpush.msra.mxu0 0.0
    %3996 = vmatpush.msra.mxu0 0.0
    %3997 = vmatpush.msra.mxu0 0.0
    %3998 = vmatpush.msra.mxu0 0.0
    %3999 = vmatpush.msra.mxu0 0.0
    %4000 = vmatpush.msra.mxu0 0.0
    %4001 = vmatpush.msra.mxu0 0.0
    %4002 = vmatpush.msra.mxu0 0.0
    %4003 = vmatpush.msra.mxu0 0.0
    %4004 = vmatpush.msra.mxu0 0.0
    %4005 = vmatpush.msra.mxu0 0.0
    %4006 = vmatpush.msra.mxu0 0.0
    %v4007 = vand.u32 %v3146, 4294901760
    %4008 = vmatpush.msra.mxu0 %v4007
    %v4009 = vand.u32 %v3145, 4294901760
    %4010 = vmatpush.msra.mxu0 %v4009
    %v4011 = vand.u32 %v3144, 4294901760
    %4012 = vmatpush.msra.mxu0 %v4011
    %v4013 = vand.u32 %v3143, 4294901760
    %4014 = vmatpush.msra.mxu0 %v4013
    %v4015 = vand.u32 %v2462, 4294901760
    %v4016 = vsub.f32 %v2462, %v4015
    %v4017 = vand.u32 %v4016, 4294901760
    %4018 = vmatmul.f32.gmra.mxu0 %v4017
    %v4019 = vpop.f32.mrf.mxu0
    %v4020 = vadd.f32 %v3993, %v4019
    %4021 = vdwg.mxu0
    %4022 = vmatpush.msra.mxu0 0.0
    %4023 = vmatpush.msra.mxu0 0.0
    %4024 = vmatpush.msra.mxu0 0.0
    %4025 = vmatpush.msra.mxu0 0.0
    %4026 = vmatpush.msra.mxu0 0.0
    %4027 = vmatpush.msra.mxu0 0.0
    %4028 = vmatpush.msra.mxu0 0.0
    %4029 = vmatpush.msra.mxu0 0.0
    %4030 = vmatpush.msra.mxu0 0.0
    %4031 = vmatpush.msra.mxu0 0.0
    %4032 = vmatpush.msra.mxu0 0.0
    %4033 = vmatpush.msra.mxu0 0.0
    %v4034 = vand.u32 %v3146, 4294901760
    %v4035 = vsub.f32 %v3146, %v4034
    %v4036 = vand.u32 %v4035, 4294901760
    %4037 = vmatpush.msra.mxu0 %v4036
    %v4038 = vand.u32 %v3145, 4294901760
    %v4039 = vsub.f32 %v3145, %v4038
    %v4040 = vand.u32 %v4039, 4294901760
    %4041 = vmatpush.msra.mxu0 %v4040
    %v4042 = vand.u32 %v3144, 4294901760
    %v4043 = vsub.f32 %v3144, %v4042
    %v4044 = vand.u32 %v4043, 4294901760
    %4045 = vmatpush.msra.mxu0 %v4044
    %v4046 = vand.u32 %v3143, 4294901760
    %v4047 = vsub.f32 %v3143, %v4046
    %v4048 = vand.u32 %v4047, 4294901760
    %4049 = vmatpush.msra.mxu0 %v4048
    %v4050 = vand.u32 %v2462, 4294901760
    %4051 = vmatmul.f32.gmra.mxu0 %v4050
    %v4052 = vpop.f32.mrf.mxu0
    %v4053 = vadd.f32 %v4020, %v4052
    %4054 = vdwg.mxu0
    %4055 = vmatpush.msra.mxu0 0.0
    %4056 = vmatpush.msra.mxu0 0.0
    %4057 = vmatpush.msra.mxu0 0.0
    %4058 = vmatpush.msra.mxu0 0.0
    %4059 = vmatpush.msra.mxu0 0.0
    %4060 = vmatpush.msra.mxu0 0.0
    %4061 = vmatpush.msra.mxu0 0.0
    %4062 = vmatpush.msra.mxu0 0.0
    %4063 = vmatpush.msra.mxu0 0.0
    %4064 = vmatpush.msra.mxu0 0.0
    %4065 = vmatpush.msra.mxu0 0.0
    %4066 = vmatpush.msra.mxu0 0.0
    %v4067 = vand.u32 %v3146, 4294901760
    %4068 = vmatpush.msra.mxu0 %v4067
    %v4069 = vand.u32 %v3145, 4294901760
    %4070 = vmatpush.msra.mxu0 %v4069
    %v4071 = vand.u32 %v3144, 4294901760
    %4072 = vmatpush.msra.mxu0 %v4071
    %v4073 = vand.u32 %v3143, 4294901760
    %4074 = vmatpush.msra.mxu0 %v4073
    %v4075 = vand.u32 %v2462, 4294901760
    %4076 = vmatmul.f32.gmra.mxu0 %v4075
    %v4077 = vpop.f32.mrf.mxu0
    %v4078 = vadd.f32 %v4053, %v4077
    %4079 = vdwg.mxu0
    %4080 = vmatpush.msra.mxu0 0.0
    %4081 = vmatpush.msra.mxu0 0.0
    %4082 = vmatpush.msra.mxu0 0.0
    %4083 = vmatpush.msra.mxu0 0.0
    %4084 = vmatpush.msra.mxu0 0.0
    %4085 = vmatpush.msra.mxu0 0.0
    %4086 = vmatpush.msra.mxu0 0.0
    %4087 = vmatpush.msra.mxu0 0.0
    %4088 = vmatpush.msra.mxu0 0.0
    %4089 = vmatpush.msra.mxu0 0.0
    %4090 = vmatpush.msra.mxu0 0.0
    %4091 = vmatpush.msra.mxu0 0.0
    %v4092 = vand.u32 %v3146, 4294901760
    %4093 = vmatpush.msra.mxu0 %v4092
    %v4094 = vand.u32 %v3145, 4294901760
    %4095 = vmatpush.msra.mxu0 %v4094
    %v4096 = vand.u32 %v3144, 4294901760
    %4097 = vmatpush.msra.mxu0 %v4096
    %v4098 = vand.u32 %v3143, 4294901760
    %4099 = vmatpush.msra.mxu0 %v4098
    %v4100 = vand.u32 %v2690, 4294901760
    %v4101 = vsub.f32 %v2690, %v4100
    %v4102 = vand.u32 %v4101, 4294901760
    %v4103 = vsub.f32 %v4101, %v4102
    %v4104 = vand.u32 %v4103, 4294901760
    %4105 = vmatmul.f32.gmra.mxu0 %v4104
    %v4106 = vpop.f32.mrf.mxu0
    %v4107 = vadd.f32 %v3153, %v4106
    %4108 = vdwg.mxu0
    %4109 = vmatpush.msra.mxu0 0.0
    %4110 = vmatpush.msra.mxu0 0.0
    %4111 = vmatpush.msra.mxu0 0.0
    %4112 = vmatpush.msra.mxu0 0.0
    %4113 = vmatpush.msra.mxu0 0.0
    %4114 = vmatpush.msra.mxu0 0.0
    %4115 = vmatpush.msra.mxu0 0.0
    %4116 = vmatpush.msra.mxu0 0.0
    %4117 = vmatpush.msra.mxu0 0.0
    %4118 = vmatpush.msra.mxu0 0.0
    %4119 = vmatpush.msra.mxu0 0.0
    %4120 = vmatpush.msra.mxu0 0.0
    %v4121 = vand.u32 %v3146, 4294901760
    %v4122 = vsub.f32 %v3146, %v4121
    %v4123 = vand.u32 %v4122, 4294901760
    %v4124 = vsub.f32 %v4122, %v4123
    %v4125 = vand.u32 %v4124, 4294901760
    %4126 = vmatpush.msra.mxu0 %v4125
    %v4127 = vand.u32 %v3145, 4294901760
    %v4128 = vsub.f32 %v3145, %v4127
    %v4129 = vand.u32 %v4128, 4294901760
    %v4130 = vsub.f32 %v4128, %v4129
    %v4131 = vand.u32 %v4130, 4294901760
    %4132 = vmatpush.msra.mxu0 %v4131
    %v4133 = vand.u32 %v3144, 4294901760
    %v4134 = vsub.f32 %v3144, %v4133
    %v4135 = vand.u32 %v4134, 4294901760
    %v4136 = vsub.f32 %v4134, %v4135
    %v4137 = vand.u32 %v4136, 4294901760
    %4138 = vmatpush.msra.mxu0 %v4137
    %v4139 = vand.u32 %v3143, 4294901760
    %v4140 = vsub.f32 %v3143, %v4139
    %v4141 = vand.u32 %v4140, 4294901760
    %v4142 = vsub.f32 %v4140, %v4141
    %v4143 = vand.u32 %v4142, 4294901760
    %4144 = vmatpush.msra.mxu0 %v4143
    %v4145 = vand.u32 %v2690, 4294901760
    %4146 = vmatmul.f32.gmra.mxu0 %v4145
    %v4147 = vpop.f32.mrf.mxu0
    %v4148 = vadd.f32 %v4107, %v4147
    %4149 = vdwg.mxu0
    %4150 = vmatpush.msra.mxu0 0.0
    %4151 = vmatpush.msra.mxu0 0.0
    %4152 = vmatpush.msra.mxu0 0.0
    %4153 = vmatpush.msra.mxu0 0.0
    %4154 = vmatpush.msra.mxu0 0.0
    %4155 = vmatpush.msra.mxu0 0.0
    %4156 = vmatpush.msra.mxu0 0.0
    %4157 = vmatpush.msra.mxu0 0.0
    %4158 = vmatpush.msra.mxu0 0.0
    %4159 = vmatpush.msra.mxu0 0.0
    %4160 = vmatpush.msra.mxu0 0.0
    %4161 = vmatpush.msra.mxu0 0.0
    %v4162 = vand.u32 %v3146, 4294901760
    %v4163 = vsub.f32 %v3146, %v4162
    %4164 = vmatpush.msra.mxu0 %v4163
    %v4165 = vand.u32 %v3145, 4294901760
    %v4166 = vsub.f32 %v3145, %v4165
    %4167 = vmatpush.msra.mxu0 %v4166
    %v4168 = vand.u32 %v3144, 4294901760
    %v4169 = vsub.f32 %v3144, %v4168
    %4170 = vmatpush.msra.mxu0 %v4169
    %v4171 = vand.u32 %v3143, 4294901760
    %v4172 = vsub.f32 %v3143, %v4171
    %4173 = vmatpush.msra.mxu0 %v4172
    %v4174 = vand.u32 %v2690, 4294901760
    %v4175 = vsub.f32 %v2690, %v4174
    %4176 = vmatmul.f32.gmra.mxu0 %v4175
    %v4177 = vpop.f32.mrf.mxu0
    %v4178 = vadd.f32 %v4148, %v4177
    %4179 = vdwg.mxu0
    %4180 = vmatpush.msra.mxu0 0.0
    %4181 = vmatpush.msra.mxu0 0.0
    %4182 = vmatpush.msra.mxu0 0.0
    %4183 = vmatpush.msra.mxu0 0.0
    %4184 = vmatpush.msra.mxu0 0.0
    %4185 = vmatpush.msra.mxu0 0.0
    %4186 = vmatpush.msra.mxu0 0.0
    %4187 = vmatpush.msra.mxu0 0.0
    %4188 = vmatpush.msra.mxu0 0.0
    %4189 = vmatpush.msra.mxu0 0.0
    %4190 = vmatpush.msra.mxu0 0.0
    %4191 = vmatpush.msra.mxu0 0.0
    %v4192 = vand.u32 %v3146, 4294901760
    %4193 = vmatpush.msra.mxu0 %v4192
    %v4194 = vand.u32 %v3145, 4294901760
    %4195 = vmatpush.msra.mxu0 %v4194
    %v4196 = vand.u32 %v3144, 4294901760
    %4197 = vmatpush.msra.mxu0 %v4196
    %v4198 = vand.u32 %v3143, 4294901760
    %4199 = vmatpush.msra.mxu0 %v4198
    %v4200 = vand.u32 %v2690, 4294901760
    %v4201 = vsub.f32 %v2690, %v4200
    %v4202 = vand.u32 %v4201, 4294901760
    %4203 = vmatmul.f32.gmra.mxu0 %v4202
    %v4204 = vpop.f32.mrf.mxu0
    %v4205 = vadd.f32 %v4178, %v4204
    %4206 = vdwg.mxu0
    %4207 = vmatpush.msra.mxu0 0.0
    %4208 = vmatpush.msra.mxu0 0.0
    %4209 = vmatpush.msra.mxu0 0.0
    %4210 = vmatpush.msra.mxu0 0.0
    %4211 = vmatpush.msra.mxu0 0.0
    %4212 = vmatpush.msra.mxu0 0.0
    %4213 = vmatpush.msra.mxu0 0.0
    %4214 = vmatpush.msra.mxu0 0.0
    %4215 = vmatpush.msra.mxu0 0.0
    %4216 = vmatpush.msra.mxu0 0.0
    %4217 = vmatpush.msra.mxu0 0.0
    %4218 = vmatpush.msra.mxu0 0.0
    %v4219 = vand.u32 %v3146, 4294901760
    %v4220 = vsub.f32 %v3146, %v4219
    %v4221 = vand.u32 %v4220, 4294901760
    %4222 = vmatpush.msra.mxu0 %v4221
    %v4223 = vand.u32 %v3145, 4294901760
    %v4224 = vsub.f32 %v3145, %v4223
    %v4225 = vand.u32 %v4224, 4294901760
    %4226 = vmatpush.msra.mxu0 %v4225
    %v4227 = vand.u32 %v3144, 4294901760
    %v4228 = vsub.f32 %v3144, %v4227
    %v4229 = vand.u32 %v4228, 4294901760
    %4230 = vmatpush.msra.mxu0 %v4229
    %v4231 = vand.u32 %v3143, 4294901760
    %v4232 = vsub.f32 %v3143, %v4231
    %v4233 = vand.u32 %v4232, 4294901760
    %4234 = vmatpush.msra.mxu0 %v4233
    %v4235 = vand.u32 %v2690, 4294901760
    %4236 = vmatmul.f32.gmra.mxu0 %v4235
    %v4237 = vpop.f32.mrf.mxu0
    %v4238 = vadd.f32 %v4205, %v4237
    %4239 = vdwg.mxu0
    %4240 = vmatpush.msra.mxu0 0.0
    %4241 = vmatpush.msra.mxu0 0.0
    %4242 = vmatpush.msra.mxu0 0.0
    %4243 = vmatpush.msra.mxu0 0.0
    %4244 = vmatpush.msra.mxu0 0.0
    %4245 = vmatpush.msra.mxu0 0.0
    %4246 = vmatpush.msra.mxu0 0.0
    %4247 = vmatpush.msra.mxu0 0.0
    %4248 = vmatpush.msra.mxu0 0.0
    %4249 = vmatpush.msra.mxu0 0.0
    %4250 = vmatpush.msra.mxu0 0.0
    %4251 = vmatpush.msra.mxu0 0.0
    %v4252 = vand.u32 %v3146, 4294901760
    %4253 = vmatpush.msra.mxu0 %v4252
    %v4254 = vand.u32 %v3145, 4294901760
    %4255 = vmatpush.msra.mxu0 %v4254
    %v4256 = vand.u32 %v3144, 4294901760
    %4257 = vmatpush.msra.mxu0 %v4256
    %v4258 = vand.u32 %v3143, 4294901760
    %4259 = vmatpush.msra.mxu0 %v4258
    %v4260 = vand.u32 %v2690, 4294901760
    %4261 = vmatmul.f32.gmra.mxu0 %v4260
    %v4262 = vpop.f32.mrf.mxu0
    %v4263 = vadd.f32 %v4238, %v4262
    %4264 = vdwg.mxu0
    %4265 = vmatpush.msra.mxu0 0.0
    %4266 = vmatpush.msra.mxu0 0.0
    %4267 = vmatpush.msra.mxu0 0.0
    %4268 = vmatpush.msra.mxu0 0.0
    %4269 = vmatpush.msra.mxu0 0.0
    %4270 = vmatpush.msra.mxu0 0.0
    %4271 = vmatpush.msra.mxu0 0.0
    %4272 = vmatpush.msra.mxu0 0.0
    %4273 = vmatpush.msra.mxu0 0.0
    %4274 = vmatpush.msra.mxu0 0.0
    %4275 = vmatpush.msra.mxu0 0.0
    %4276 = vmatpush.msra.mxu0 0.0
    %v4277 = vand.u32 %v3146, 4294901760
    %4278 = vmatpush.msra.mxu0 %v4277
    %v4279 = vand.u32 %v3145, 4294901760
    %4280 = vmatpush.msra.mxu0 %v4279
    %v4281 = vand.u32 %v3144, 4294901760
    %4282 = vmatpush.msra.mxu0 %v4281
    %v4283 = vand.u32 %v3143, 4294901760
    %4284 = vmatpush.msra.mxu0 %v4283
    %v4285 = vand.u32 %v2918, 4294901760
    %v4286 = vsub.f32 %v2918, %v4285
    %v4287 = vand.u32 %v4286, 4294901760
    %v4288 = vsub.f32 %v4286, %v4287
    %v4289 = vand.u32 %v4288, 4294901760
    %4290 = vmatmul.f32.gmra.mxu0 %v4289
    %v4291 = vpop.f32.mrf.mxu0
    %v4292 = vadd.f32 %v3153, %v4291
    %4293 = vdwg.mxu0
    %4294 = vmatpush.msra.mxu0 0.0
    %4295 = vmatpush.msra.mxu0 0.0
    %4296 = vmatpush.msra.mxu0 0.0
    %4297 = vmatpush.msra.mxu0 0.0
    %4298 = vmatpush.msra.mxu0 0.0
    %4299 = vmatpush.msra.mxu0 0.0
    %4300 = vmatpush.msra.mxu0 0.0
    %4301 = vmatpush.msra.mxu0 0.0
    %4302 = vmatpush.msra.mxu0 0.0
    %4303 = vmatpush.msra.mxu0 0.0
    %4304 = vmatpush.msra.mxu0 0.0
    %4305 = vmatpush.msra.mxu0 0.0
    %v4306 = vand.u32 %v3146, 4294901760
    %v4307 = vsub.f32 %v3146, %v4306
    %v4308 = vand.u32 %v4307, 4294901760
    %v4309 = vsub.f32 %v4307, %v4308
    %v4310 = vand.u32 %v4309, 4294901760
    %4311 = vmatpush.msra.mxu0 %v4310
    %v4312 = vand.u32 %v3145, 4294901760
    %v4313 = vsub.f32 %v3145, %v4312
    %v4314 = vand.u32 %v4313, 4294901760
    %v4315 = vsub.f32 %v4313, %v4314
    %v4316 = vand.u32 %v4315, 4294901760
    %4317 = vmatpush.msra.mxu0 %v4316
    %v4318 = vand.u32 %v3144, 4294901760
    %v4319 = vsub.f32 %v3144, %v4318
    %v4320 = vand.u32 %v4319, 4294901760
    %v4321 = vsub.f32 %v4319, %v4320
    %v4322 = vand.u32 %v4321, 4294901760
    %4323 = vmatpush.msra.mxu0 %v4322
    %v4324 = vand.u32 %v3143, 4294901760
    %v4325 = vsub.f32 %v3143, %v4324
    %v4326 = vand.u32 %v4325, 4294901760
    %v4327 = vsub.f32 %v4325, %v4326
    %v4328 = vand.u32 %v4327, 4294901760
    %4329 = vmatpush.msra.mxu0 %v4328
    %v4330 = vand.u32 %v2918, 4294901760
    %4331 = vmatmul.f32.gmra.mxu0 %v4330
    %v4332 = vpop.f32.mrf.mxu0
    %v4333 = vadd.f32 %v4292, %v4332
    %4334 = vdwg.mxu0
    %4335 = vmatpush.msra.mxu0 0.0
    %4336 = vmatpush.msra.mxu0 0.0
    %4337 = vmatpush.msra.mxu0 0.0
    %4338 = vmatpush.msra.mxu0 0.0
    %4339 = vmatpush.msra.mxu0 0.0
    %4340 = vmatpush.msra.mxu0 0.0
    %4341 = vmatpush.msra.mxu0 0.0
    %4342 = vmatpush.msra.mxu0 0.0
    %4343 = vmatpush.msra.mxu0 0.0
    %4344 = vmatpush.msra.mxu0 0.0
    %4345 = vmatpush.msra.mxu0 0.0
    %4346 = vmatpush.msra.mxu0 0.0
    %v4347 = vand.u32 %v3146, 4294901760
    %v4348 = vsub.f32 %v3146, %v4347
    %4349 = vmatpush.msra.mxu0 %v4348
    %v4350 = vand.u32 %v3145, 4294901760
    %v4351 = vsub.f32 %v3145, %v4350
    %4352 = vmatpush.msra.mxu0 %v4351
    %v4353 = vand.u32 %v3144, 4294901760
    %v4354 = vsub.f32 %v3144, %v4353
    %4355 = vmatpush.msra.mxu0 %v4354
    %v4356 = vand.u32 %v3143, 4294901760
    %v4357 = vsub.f32 %v3143, %v4356
    %4358 = vmatpush.msra.mxu0 %v4357
    %v4359 = vand.u32 %v2918, 4294901760
    %v4360 = vsub.f32 %v2918, %v4359
    %4361 = vmatmul.f32.gmra.mxu0 %v4360
    %v4362 = vpop.f32.mrf.mxu0
    %v4363 = vadd.f32 %v4333, %v4362
    %4364 = vdwg.mxu0
    %4365 = vmatpush.msra.mxu0 0.0
    %4366 = vmatpush.msra.mxu0 0.0
    %4367 = vmatpush.msra.mxu0 0.0
    %4368 = vmatpush.msra.mxu0 0.0
    %4369 = vmatpush.msra.mxu0 0.0
    %4370 = vmatpush.msra.mxu0 0.0
    %4371 = vmatpush.msra.mxu0 0.0
    %4372 = vmatpush.msra.mxu0 0.0
    %4373 = vmatpush.msra.mxu0 0.0
    %4374 = vmatpush.msra.mxu0 0.0
    %4375 = vmatpush.msra.mxu0 0.0
    %4376 = vmatpush.msra.mxu0 0.0
    %v4377 = vand.u32 %v3146, 4294901760
    %4378 = vmatpush.msra.mxu0 %v4377
    %v4379 = vand.u32 %v3145, 4294901760
    %4380 = vmatpush.msra.mxu0 %v4379
    %v4381 = vand.u32 %v3144, 4294901760
    %4382 = vmatpush.msra.mxu0 %v4381
    %v4383 = vand.u32 %v3143, 4294901760
    %4384 = vmatpush.msra.mxu0 %v4383
    %v4385 = vand.u32 %v2918, 4294901760
    %v4386 = vsub.f32 %v2918, %v4385
    %v4387 = vand.u32 %v4386, 4294901760
    %4388 = vmatmul.f32.gmra.mxu0 %v4387
    %v4389 = vpop.f32.mrf.mxu0
    %v4390 = vadd.f32 %v4363, %v4389
    %4391 = vdwg.mxu0
    %4392 = vmatpush.msra.mxu0 0.0
    %4393 = vmatpush.msra.mxu0 0.0
    %4394 = vmatpush.msra.mxu0 0.0
    %4395 = vmatpush.msra.mxu0 0.0
    %4396 = vmatpush.msra.mxu0 0.0
    %4397 = vmatpush.msra.mxu0 0.0
    %4398 = vmatpush.msra.mxu0 0.0
    %4399 = vmatpush.msra.mxu0 0.0
    %4400 = vmatpush.msra.mxu0 0.0
    %4401 = vmatpush.msra.mxu0 0.0
    %4402 = vmatpush.msra.mxu0 0.0
    %4403 = vmatpush.msra.mxu0 0.0
    %v4404 = vand.u32 %v3146, 4294901760
    %v4405 = vsub.f32 %v3146, %v4404
    %v4406 = vand.u32 %v4405, 4294901760
    %4407 = vmatpush.msra.mxu0 %v4406
    %v4408 = vand.u32 %v3145, 4294901760
    %v4409 = vsub.f32 %v3145, %v4408
    %v4410 = vand.u32 %v4409, 4294901760
    %4411 = vmatpush.msra.mxu0 %v4410
    %v4412 = vand.u32 %v3144, 4294901760
    %v4413 = vsub.f32 %v3144, %v4412
    %v4414 = vand.u32 %v4413, 4294901760
    %4415 = vmatpush.msra.mxu0 %v4414
    %v4416 = vand.u32 %v3143, 4294901760
    %v4417 = vsub.f32 %v3143, %v4416
    %v4418 = vand.u32 %v4417, 4294901760
    %4419 = vmatpush.msra.mxu0 %v4418
    %v4420 = vand.u32 %v2918, 4294901760
    %4421 = vmatmul.f32.gmra.mxu0 %v4420
    %v4422 = vpop.f32.mrf.mxu0
    %v4423 = vadd.f32 %v4390, %v4422
    %4424 = vdwg.mxu0
    %4425 = vmatpush.msra.mxu0 0.0
    %4426 = vmatpush.msra.mxu0 0.0
    %4427 = vmatpush.msra.mxu0 0.0
    %4428 = vmatpush.msra.mxu0 0.0
    %4429 = vmatpush.msra.mxu0 0.0
    %4430 = vmatpush.msra.mxu0 0.0
    %4431 = vmatpush.msra.mxu0 0.0
    %4432 = vmatpush.msra.mxu0 0.0
    %4433 = vmatpush.msra.mxu0 0.0
    %4434 = vmatpush.msra.mxu0 0.0
    %4435 = vmatpush.msra.mxu0 0.0
    %4436 = vmatpush.msra.mxu0 0.0
    %v4437 = vand.u32 %v3146, 4294901760
    %4438 = vmatpush.msra.mxu0 %v4437
    %v4439 = vand.u32 %v3145, 4294901760
    %4440 = vmatpush.msra.mxu0 %v4439
    %v4441 = vand.u32 %v3144, 4294901760
    %4442 = vmatpush.msra.mxu0 %v4441
    %v4443 = vand.u32 %v3143, 4294901760
    %4444 = vmatpush.msra.mxu0 %v4443
    %v4445 = vand.u32 %v2918, 4294901760
    %4446 = vmatmul.f32.gmra.mxu0 %v4445
    %v4447 = vpop.f32.mrf.mxu0
    %v4448 = vadd.f32 %v4423, %v4447
    %4449 = vdwg.mxu0
    %4451 = vrot.lane.b32.xlu0 %v3142, 32
    %v4452 = vpop.permute.xlu0 %4451
    %v4453 = vsel %vm1320, %v4452, 0
    %4455 = vmatpush.msra.mxu0 0.0
    %4456 = vmatpush.msra.mxu0 0.0
    %4457 = vmatpush.msra.mxu0 0.0
    %4458 = vmatpush.msra.mxu0 0.0
    %4459 = vmatpush.msra.mxu0 0.0
    %4460 = vmatpush.msra.mxu0 0.0
    %4461 = vmatpush.msra.mxu0 0.0
    %4462 = vmatpush.msra.mxu0 0.0
    %4463 = vmatpush.msra.mxu0 0.0
    %4464 = vmatpush.msra.mxu0 0.0
    %4465 = vmatpush.msra.mxu0 0.0
    %4466 = vmatpush.msra.mxu0 0.0
    %v4467 = vand.u32 %v3146, 4294901760
    %4468 = vmatpush.msra.mxu0 %v4467
    %v4469 = vand.u32 %v3145, 4294901760
    %4470 = vmatpush.msra.mxu0 %v4469
    %v4471 = vand.u32 %v3144, 4294901760
    %4472 = vmatpush.msra.mxu0 %v4471
    %v4473 = vand.u32 %v3143, 4294901760
    %4474 = vmatpush.msra.mxu0 %v4473
    %v4475 = vand.u32 %v4453, 4294901760
    %v4476 = vsub.f32 %v4453, %v4475
    %v4477 = vand.u32 %v4476, 4294901760
    %v4478 = vsub.f32 %v4476, %v4477
    %v4479 = vand.u32 %v4478, 4294901760
    %4480 = vmatmul.f32.gmra.mxu0 %v4479
    %v4481 = vpop.f32.mrf.mxu0
    %v4482 = vadd.f32 %v3153, %v4481
    %4483 = vdwg.mxu0
    %4484 = vmatpush.msra.mxu0 0.0
    %4485 = vmatpush.msra.mxu0 0.0
    %4486 = vmatpush.msra.mxu0 0.0
    %4487 = vmatpush.msra.mxu0 0.0
    %4488 = vmatpush.msra.mxu0 0.0
    %4489 = vmatpush.msra.mxu0 0.0
    %4490 = vmatpush.msra.mxu0 0.0
    %4491 = vmatpush.msra.mxu0 0.0
    %4492 = vmatpush.msra.mxu0 0.0
    %4493 = vmatpush.msra.mxu0 0.0
    %4494 = vmatpush.msra.mxu0 0.0
    %4495 = vmatpush.msra.mxu0 0.0
    %v4496 = vand.u32 %v3146, 4294901760
    %v4497 = vsub.f32 %v3146, %v4496
    %v4498 = vand.u32 %v4497, 4294901760
    %v4499 = vsub.f32 %v4497, %v4498
    %v4500 = vand.u32 %v4499, 4294901760
    %4501 = vmatpush.msra.mxu0 %v4500
    %v4502 = vand.u32 %v3145, 4294901760
    %v4503 = vsub.f32 %v3145, %v4502
    %v4504 = vand.u32 %v4503, 4294901760
    %v4505 = vsub.f32 %v4503, %v4504
    %v4506 = vand.u32 %v4505, 4294901760
    %4507 = vmatpush.msra.mxu0 %v4506
    %v4508 = vand.u32 %v3144, 4294901760
    %v4509 = vsub.f32 %v3144, %v4508
    %v4510 = vand.u32 %v4509, 4294901760
    %v4511 = vsub.f32 %v4509, %v4510
    %v4512 = vand.u32 %v4511, 4294901760
    %4513 = vmatpush.msra.mxu0 %v4512
    %v4514 = vand.u32 %v3143, 4294901760
    %v4515 = vsub.f32 %v3143, %v4514
    %v4516 = vand.u32 %v4515, 4294901760
    %v4517 = vsub.f32 %v4515, %v4516
    %v4518 = vand.u32 %v4517, 4294901760
    %4519 = vmatpush.msra.mxu0 %v4518
    %v4520 = vand.u32 %v4453, 4294901760
    %4521 = vmatmul.f32.gmra.mxu0 %v4520
    %v4522 = vpop.f32.mrf.mxu0
    %v4523 = vadd.f32 %v4482, %v4522
    %4524 = vdwg.mxu0
    %4525 = vmatpush.msra.mxu0 0.0
    %4526 = vmatpush.msra.mxu0 0.0
    %4527 = vmatpush.msra.mxu0 0.0
    %4528 = vmatpush.msra.mxu0 0.0
    %4529 = vmatpush.msra.mxu0 0.0
    %4530 = vmatpush.msra.mxu0 0.0
    %4531 = vmatpush.msra.mxu0 0.0
    %4532 = vmatpush.msra.mxu0 0.0
    %4533 = vmatpush.msra.mxu0 0.0
    %4534 = vmatpush.msra.mxu0 0.0
    %4535 = vmatpush.msra.mxu0 0.0
    %4536 = vmatpush.msra.mxu0 0.0
    %v4537 = vand.u32 %v3146, 4294901760
    %v4538 = vsub.f32 %v3146, %v4537
    %4539 = vmatpush.msra.mxu0 %v4538
    %v4540 = vand.u32 %v3145, 4294901760
    %v4541 = vsub.f32 %v3145, %v4540
    %4542 = vmatpush.msra.mxu0 %v4541
    %v4543 = vand.u32 %v3144, 4294901760
    %v4544 = vsub.f32 %v3144, %v4543
    %4545 = vmatpush.msra.mxu0 %v4544
    %v4546 = vand.u32 %v3143, 4294901760
    %v4547 = vsub.f32 %v3143, %v4546
    %4548 = vmatpush.msra.mxu0 %v4547
    %v4549 = vand.u32 %v4453, 4294901760
    %v4550 = vsub.f32 %v4453, %v4549
    %4551 = vmatmul.f32.gmra.mxu0 %v4550
    %v4552 = vpop.f32.mrf.mxu0
    %v4553 = vadd.f32 %v4523, %v4552
    %4554 = vdwg.mxu0
    %4555 = vmatpush.msra.mxu0 0.0
    %4556 = vmatpush.msra.mxu0 0.0
    %4557 = vmatpush.msra.mxu0 0.0
    %4558 = vmatpush.msra.mxu0 0.0
    %4559 = vmatpush.msra.mxu0 0.0
    %4560 = vmatpush.msra.mxu0 0.0
    %4561 = vmatpush.msra.mxu0 0.0
    %4562 = vmatpush.msra.mxu0 0.0
    %4563 = vmatpush.msra.mxu0 0.0
    %4564 = vmatpush.msra.mxu0 0.0
    %4565 = vmatpush.msra.mxu0 0.0
    %4566 = vmatpush.msra.mxu0 0.0
    %v4567 = vand.u32 %v3146, 4294901760
    %4568 = vmatpush.msra.mxu0 %v4567
    %v4569 = vand.u32 %v3145, 4294901760
    %4570 = vmatpush.msra.mxu0 %v4569
    %v4571 = vand.u32 %v3144, 4294901760
    %4572 = vmatpush.msra.mxu0 %v4571
    %v4573 = vand.u32 %v3143, 4294901760
    %4574 = vmatpush.msra.mxu0 %v4573
    %v4575 = vand.u32 %v4453, 4294901760
    %v4576 = vsub.f32 %v4453, %v4575
    %v4577 = vand.u32 %v4576, 4294901760
    %4578 = vmatmul.f32.gmra.mxu0 %v4577
    %v4579 = vpop.f32.mrf.mxu0
    %v4580 = vadd.f32 %v4553, %v4579
    %4581 = vdwg.mxu0
    %4582 = vmatpush.msra.mxu0 0.0
    %4583 = vmatpush.msra.mxu0 0.0
    %4584 = vmatpush.msra.mxu0 0.0
    %4585 = vmatpush.msra.mxu0 0.0
    %4586 = vmatpush.msra.mxu0 0.0
    %4587 = vmatpush.msra.mxu0 0.0
    %4588 = vmatpush.msra.mxu0 0.0
    %4589 = vmatpush.msra.mxu0 0.0
    %4590 = vmatpush.msra.mxu0 0.0
    %4591 = vmatpush.msra.mxu0 0.0
    %4592 = vmatpush.msra.mxu0 0.0
    %4593 = vmatpush.msra.mxu0 0.0
    %v4594 = vand.u32 %v3146, 4294901760
    %v4595 = vsub.f32 %v3146, %v4594
    %v4596 = vand.u32 %v4595, 4294901760
    %4597 = vmatpush.msra.mxu0 %v4596
    %v4598 = vand.u32 %v3145, 4294901760
    %v4599 = vsub.f32 %v3145, %v4598
    %v4600 = vand.u32 %v4599, 4294901760
    %4601 = vmatpush.msra.mxu0 %v4600
    %v4602 = vand.u32 %v3144, 4294901760
    %v4603 = vsub.f32 %v3144, %v4602
    %v4604 = vand.u32 %v4603, 4294901760
    %4605 = vmatpush.msra.mxu0 %v4604
    %v4606 = vand.u32 %v3143, 4294901760
    %v4607 = vsub.f32 %v3143, %v4606
    %v4608 = vand.u32 %v4607, 4294901760
    %4609 = vmatpush.msra.mxu0 %v4608
    %v4610 = vand.u32 %v4453, 4294901760
    %4611 = vmatmul.f32.gmra.mxu0 %v4610
    %v4612 = vpop.f32.mrf.mxu0
    %v4613 = vadd.f32 %v4580, %v4612
    %4614 = vdwg.mxu0
    %4615 = vmatpush.msra.mxu0 0.0
    %4616 = vmatpush.msra.mxu0 0.0
    %4617 = vmatpush.msra.mxu0 0.0
    %4618 = vmatpush.msra.mxu0 0.0
    %4619 = vmatpush.msra.mxu0 0.0
    %4620 = vmatpush.msra.mxu0 0.0
    %4621 = vmatpush.msra.mxu0 0.0
    %4622 = vmatpush.msra.mxu0 0.0
    %4623 = vmatpush.msra.mxu0 0.0
    %4624 = vmatpush.msra.mxu0 0.0
    %4625 = vmatpush.msra.mxu0 0.0
    %4626 = vmatpush.msra.mxu0 0.0
    %v4627 = vand.u32 %v3146, 4294901760
    %4628 = vmatpush.msra.mxu0 %v4627
    %v4629 = vand.u32 %v3145, 4294901760
    %4630 = vmatpush.msra.mxu0 %v4629
    %v4631 = vand.u32 %v3144, 4294901760
    %4632 = vmatpush.msra.mxu0 %v4631
    %v4633 = vand.u32 %v3143, 4294901760
    %4634 = vmatpush.msra.mxu0 %v4633
    %v4635 = vand.u32 %v4453, 4294901760
    %4636 = vmatmul.f32.gmra.mxu0 %v4635
    %v4637 = vpop.f32.mrf.mxu0
    %v4638 = vadd.f32 %v4613, %v4637
    %4639 = vdwg.mxu0
    %4640 = vmatpush.msra.mxu0 0.0
    %4641 = vmatpush.msra.mxu0 0.0
    %4642 = vmatpush.msra.mxu0 0.0
    %4643 = vmatpush.msra.mxu0 0.0
    %4644 = vmatpush.msra.mxu0 0.0
    %4645 = vmatpush.msra.mxu0 0.0
    %4646 = vmatpush.msra.mxu0 0.0
    %4647 = vmatpush.msra.mxu0 0.0
    %4648 = vmatpush.msra.mxu0 0.0
    %4649 = vmatpush.msra.mxu0 0.0
    %4650 = vmatpush.msra.mxu0 0.0
    %4651 = vmatpush.msra.mxu0 0.0
    %v4652 = vand.u32 %v3150, 4294901760
    %4653 = vmatpush.msra.mxu0 %v4652
    %v4654 = vand.u32 %v3149, 4294901760
    %4655 = vmatpush.msra.mxu0 %v4654
    %v4656 = vand.u32 %v3148, 4294901760
    %4657 = vmatpush.msra.mxu0 %v4656
    %v4658 = vand.u32 %v3147, 4294901760
    %4659 = vmatpush.msra.mxu0 %v4658
    %v4660 = vand.u32 %v1322, 4294901760
    %v4661 = vsub.f32 %v1322, %v4660
    %v4662 = vand.u32 %v4661, 4294901760
    %v4663 = vsub.f32 %v4661, %v4662
    %v4664 = vand.u32 %v4663, 4294901760
    %4665 = vmatmul.f32.gmra.mxu0 %v4664
    %v4666 = vpop.f32.mrf.mxu0
    %v4667 = vadd.f32 0.0, %v4666
    %4668 = vdwg.mxu0
    %4669 = vmatpush.msra.mxu0 0.0
    %4670 = vmatpush.msra.mxu0 0.0
    %4671 = vmatpush.msra.mxu0 0.0
    %4672 = vmatpush.msra.mxu0 0.0
    %4673 = vmatpush.msra.mxu0 0.0
    %4674 = vmatpush.msra.mxu0 0.0
    %4675 = vmatpush.msra.mxu0 0.0
    %4676 = vmatpush.msra.mxu0 0.0
    %4677 = vmatpush.msra.mxu0 0.0
    %4678 = vmatpush.msra.mxu0 0.0
    %4679 = vmatpush.msra.mxu0 0.0
    %4680 = vmatpush.msra.mxu0 0.0
    %v4681 = vand.u32 %v3150, 4294901760
    %v4682 = vsub.f32 %v3150, %v4681
    %v4683 = vand.u32 %v4682, 4294901760
    %v4684 = vsub.f32 %v4682, %v4683
    %v4685 = vand.u32 %v4684, 4294901760
    %4686 = vmatpush.msra.mxu0 %v4685
    %v4687 = vand.u32 %v3149, 4294901760
    %v4688 = vsub.f32 %v3149, %v4687
    %v4689 = vand.u32 %v4688, 4294901760
    %v4690 = vsub.f32 %v4688, %v4689
    %v4691 = vand.u32 %v4690, 4294901760
    %4692 = vmatpush.msra.mxu0 %v4691
    %v4693 = vand.u32 %v3148, 4294901760
    %v4694 = vsub.f32 %v3148, %v4693
    %v4695 = vand.u32 %v4694, 4294901760
    %v4696 = vsub.f32 %v4694, %v4695
    %v4697 = vand.u32 %v4696, 4294901760
    %4698 = vmatpush.msra.mxu0 %v4697
    %v4699 = vand.u32 %v3147, 4294901760
    %v4700 = vsub.f32 %v3147, %v4699
    %v4701 = vand.u32 %v4700, 4294901760
    %v4702 = vsub.f32 %v4700, %v4701
    %v4703 = vand.u32 %v4702, 4294901760
    %4704 = vmatpush.msra.mxu0 %v4703
    %v4705 = vand.u32 %v1322, 4294901760
    %4706 = vmatmul.f32.gmra.mxu0 %v4705
    %v4707 = vpop.f32.mrf.mxu0
    %v4708 = vadd.f32 %v4667, %v4707
    %4709 = vdwg.mxu0
    %4710 = vmatpush.msra.mxu0 0.0
    %4711 = vmatpush.msra.mxu0 0.0
    %4712 = vmatpush.msra.mxu0 0.0
    %4713 = vmatpush.msra.mxu0 0.0
    %4714 = vmatpush.msra.mxu0 0.0
    %4715 = vmatpush.msra.mxu0 0.0
    %4716 = vmatpush.msra.mxu0 0.0
    %4717 = vmatpush.msra.mxu0 0.0
    %4718 = vmatpush.msra.mxu0 0.0
    %4719 = vmatpush.msra.mxu0 0.0
    %4720 = vmatpush.msra.mxu0 0.0
    %4721 = vmatpush.msra.mxu0 0.0
    %v4722 = vand.u32 %v3150, 4294901760
    %v4723 = vsub.f32 %v3150, %v4722
    %4724 = vmatpush.msra.mxu0 %v4723
    %v4725 = vand.u32 %v3149, 4294901760
    %v4726 = vsub.f32 %v3149, %v4725
    %4727 = vmatpush.msra.mxu0 %v4726
    %v4728 = vand.u32 %v3148, 4294901760
    %v4729 = vsub.f32 %v3148, %v4728
    %4730 = vmatpush.msra.mxu0 %v4729
    %v4731 = vand.u32 %v3147, 4294901760
    %v4732 = vsub.f32 %v3147, %v4731
    %4733 = vmatpush.msra.mxu0 %v4732
    %v4734 = vand.u32 %v1322, 4294901760
    %v4735 = vsub.f32 %v1322, %v4734
    %4736 = vmatmul.f32.gmra.mxu0 %v4735
    %v4737 = vpop.f32.mrf.mxu0
    %v4738 = vadd.f32 %v4708, %v4737
    %4739 = vdwg.mxu0
    %4740 = vmatpush.msra.mxu0 0.0
    %4741 = vmatpush.msra.mxu0 0.0
    %4742 = vmatpush.msra.mxu0 0.0
    %4743 = vmatpush.msra.mxu0 0.0
    %4744 = vmatpush.msra.mxu0 0.0
    %4745 = vmatpush.msra.mxu0 0.0
    %4746 = vmatpush.msra.mxu0 0.0
    %4747 = vmatpush.msra.mxu0 0.0
    %4748 = vmatpush.msra.mxu0 0.0
    %4749 = vmatpush.msra.mxu0 0.0
    %4750 = vmatpush.msra.mxu0 0.0
    %4751 = vmatpush.msra.mxu0 0.0
    %v4752 = vand.u32 %v3150, 4294901760
    %4753 = vmatpush.msra.mxu0 %v4752
    %v4754 = vand.u32 %v3149, 4294901760
    %4755 = vmatpush.msra.mxu0 %v4754
    %v4756 = vand.u32 %v3148, 4294901760
    %4757 = vmatpush.msra.mxu0 %v4756
    %v4758 = vand.u32 %v3147, 4294901760
    %4759 = vmatpush.msra.mxu0 %v4758
    %v4760 = vand.u32 %v1322, 4294901760
    %v4761 = vsub.f32 %v1322, %v4760
    %v4762 = vand.u32 %v4761, 4294901760
    %4763 = vmatmul.f32.gmra.mxu0 %v4762
    %v4764 = vpop.f32.mrf.mxu0
    %v4765 = vadd.f32 %v4738, %v4764
    %4766 = vdwg.mxu0
    %4767 = vmatpush.msra.mxu0 0.0
    %4768 = vmatpush.msra.mxu0 0.0
    %4769 = vmatpush.msra.mxu0 0.0
    %4770 = vmatpush.msra.mxu0 0.0
    %4771 = vmatpush.msra.mxu0 0.0
    %4772 = vmatpush.msra.mxu0 0.0
    %4773 = vmatpush.msra.mxu0 0.0
    %4774 = vmatpush.msra.mxu0 0.0
    %4775 = vmatpush.msra.mxu0 0.0
    %4776 = vmatpush.msra.mxu0 0.0
    %4777 = vmatpush.msra.mxu0 0.0
    %4778 = vmatpush.msra.mxu0 0.0
    %v4779 = vand.u32 %v3150, 4294901760
    %v4780 = vsub.f32 %v3150, %v4779
    %v4781 = vand.u32 %v4780, 4294901760
    %4782 = vmatpush.msra.mxu0 %v4781
    %v4783 = vand.u32 %v3149, 4294901760
    %v4784 = vsub.f32 %v3149, %v4783
    %v4785 = vand.u32 %v4784, 4294901760
    %4786 = vmatpush.msra.mxu0 %v4785
    %v4787 = vand.u32 %v3148, 4294901760
    %v4788 = vsub.f32 %v3148, %v4787
    %v4789 = vand.u32 %v4788, 4294901760
    %4790 = vmatpush.msra.mxu0 %v4789
    %v4791 = vand.u32 %v3147, 4294901760
    %v4792 = vsub.f32 %v3147, %v4791
    %v4793 = vand.u32 %v4792, 4294901760
    %4794 = vmatpush.msra.mxu0 %v4793
    %v4795 = vand.u32 %v1322, 4294901760
    %4796 = vmatmul.f32.gmra.mxu0 %v4795
    %v4797 = vpop.f32.mrf.mxu0
    %v4798 = vadd.f32 %v4765, %v4797
    %4799 = vdwg.mxu0
    %4800 = vmatpush.msra.mxu0 0.0
    %4801 = vmatpush.msra.mxu0 0.0
    %4802 = vmatpush.msra.mxu0 0.0
    %4803 = vmatpush.msra.mxu0 0.0
    %4804 = vmatpush.msra.mxu0 0.0
    %4805 = vmatpush.msra.mxu0 0.0
    %4806 = vmatpush.msra.mxu0 0.0
    %4807 = vmatpush.msra.mxu0 0.0
    %4808 = vmatpush.msra.mxu0 0.0
    %4809 = vmatpush.msra.mxu0 0.0
    %4810 = vmatpush.msra.mxu0 0.0
    %4811 = vmatpush.msra.mxu0 0.0
    %v4812 = vand.u32 %v3150, 4294901760
    %4813 = vmatpush.msra.mxu0 %v4812
    %v4814 = vand.u32 %v3149, 4294901760
    %4815 = vmatpush.msra.mxu0 %v4814
    %v4816 = vand.u32 %v3148, 4294901760
    %4817 = vmatpush.msra.mxu0 %v4816
    %v4818 = vand.u32 %v3147, 4294901760
    %4819 = vmatpush.msra.mxu0 %v4818
    %v4820 = vand.u32 %v1322, 4294901760
    %4821 = vmatmul.f32.gmra.mxu0 %v4820
    %v4822 = vpop.f32.mrf.mxu0
    %v4823 = vadd.f32 %v4798, %v4822
    %4824 = vdwg.mxu0
    %v4825 = vadd.f32 %v3338, %v4823
    %v4826 = vxor.u32 %v4825, 2147483648
    %v4827 = vmul.f32 %v4826, 1.442695
    %v4828 = vpow.pop %v4827
    %v4829 = vadd.f32 %v4828, 1.0
    %v4830 = vrcp.pop %v4829
    %v4831 = vmul.f32 %v4829, %v4830
    %v4832 = vsub.f32 1.0, %v4831
    %v4833 = vmul.f32 %v4830, %v4832
    %v4834 = vadd.f32 %v4830, %v4833
    %vm4835 = vweird.f32 %v4829
    %vm4836 = vweird.f32 %v4830
    %vm4837 = vmor %vm4835, %vm4836
    %v4838 = vsel %vm4837, %v4830, %v4834
    %v4839 = vand.u32 2147483647, %v4829
    %vm4840 = vcmp.eq.f32.partialorder %v4839, 8.507059e+37
    %v4841 = vand.u32 %v4829, 2147483648
    %v4842 = vor.u32 1.1754944e-38, %v4841
    %v4843 = vsel %vm4840, %v4842, %v4838
    %v4844 = vmul.f32 1.0, %v4843
    %v4845 = vtanh.pop %v4825
    %v4846 = vmul.f32 %v4844, 0.0
    %4848 = vrot.lane.b32.xlu0 %v4845, 64
    %v4849 = vpop.permute.xlu0 %4848
    %v4851 = vmul.f32 %v4844, %v4849
    %4853 = vrot.lane.b32.xlu0 %v4851, 32
    %v4854 = vpop.permute.xlu0 %4853
    %v4856 = vadd.f32 %v4846, %v4854
    %v4857 = vtanh.pop %v4856
    %4859 = vrot.lane.b32.xlu0 %v4857, 64
    %v4860 = vpop.permute.xlu0 %4859
    %v4862 = vmul.f32 %v4844, %v4860
    %4864 = vrot.lane.b32.xlu0 %v4862, 32
    %v4865 = vpop.permute.xlu0 %4864
    %v4866 = vsel %vm1320, %v4865, 0
    %4868 = vmatpush.msra.mxu0 0.0
    %4869 = vmatpush.msra.mxu0 0.0
    %4870 = vmatpush.msra.mxu0 0.0
    %4871 = vmatpush.msra.mxu0 0.0
    %4872 = vmatpush.msra.mxu0 0.0
    %4873 = vmatpush.msra.mxu0 0.0
    %4874 = vmatpush.msra.mxu0 0.0
    %4875 = vmatpush.msra.mxu0 0.0
    %4876 = vmatpush.msra.mxu0 0.0
    %4877 = vmatpush.msra.mxu0 0.0
    %4878 = vmatpush.msra.mxu0 0.0
    %4879 = vmatpush.msra.mxu0 0.0
    %v4880 = vand.u32 %v3150, 4294901760
    %4881 = vmatpush.msra.mxu0 %v4880
    %v4882 = vand.u32 %v3149, 4294901760
    %4883 = vmatpush.msra.mxu0 %v4882
    %v4884 = vand.u32 %v3148, 4294901760
    %4885 = vmatpush.msra.mxu0 %v4884
    %v4886 = vand.u32 %v3147, 4294901760
    %4887 = vmatpush.msra.mxu0 %v4886
    %v4888 = vand.u32 %v4866, 4294901760
    %v4889 = vsub.f32 %v4866, %v4888
    %v4890 = vand.u32 %v4889, 4294901760
    %v4891 = vsub.f32 %v4889, %v4890
    %v4892 = vand.u32 %v4891, 4294901760
    %4893 = vmatmul.f32.gmra.mxu0 %v4892
    %v4894 = vpop.f32.mrf.mxu0
    %v4895 = vadd.f32 0.0, %v4894
    %4896 = vdwg.mxu0
    %4897 = vmatpush.msra.mxu0 0.0
    %4898 = vmatpush.msra.mxu0 0.0
    %4899 = vmatpush.msra.mxu0 0.0
    %4900 = vmatpush.msra.mxu0 0.0
    %4901 = vmatpush.msra.mxu0 0.0
    %4902 = vmatpush.msra.mxu0 0.0
    %4903 = vmatpush.msra.mxu0 0.0
    %4904 = vmatpush.msra.mxu0 0.0
    %4905 = vmatpush.msra.mxu0 0.0
    %4906 = vmatpush.msra.mxu0 0.0
    %4907 = vmatpush.msra.mxu0 0.0
    %4908 = vmatpush.msra.mxu0 0.0
    %v4909 = vand.u32 %v3150, 4294901760
    %v4910 = vsub.f32 %v3150, %v4909
    %v4911 = vand.u32 %v4910, 4294901760
    %v4912 = vsub.f32 %v4910, %v4911
    %v4913 = vand.u32 %v4912, 4294901760
    %4914 = vmatpush.msra.mxu0 %v4913
    %v4915 = vand.u32 %v3149, 4294901760
    %v4916 = vsub.f32 %v3149, %v4915
    %v4917 = vand.u32 %v4916, 4294901760
    %v4918 = vsub.f32 %v4916, %v4917
    %v4919 = vand.u32 %v4918, 4294901760
    %4920 = vmatpush.msra.mxu0 %v4919
    %v4921 = vand.u32 %v3148, 4294901760
    %v4922 = vsub.f32 %v3148, %v4921
    %v4923 = vand.u32 %v4922, 4294901760
    %v4924 = vsub.f32 %v4922, %v4923
    %v4925 = vand.u32 %v4924, 4294901760
    %4926 = vmatpush.msra.mxu0 %v4925
    %v4927 = vand.u32 %v3147, 4294901760
    %v4928 = vsub.f32 %v3147, %v4927
    %v4929 = vand.u32 %v4928, 4294901760
    %v4930 = vsub.f32 %v4928, %v4929
    %v4931 = vand.u32 %v4930, 4294901760
    %4932 = vmatpush.msra.mxu0 %v4931
    %v4933 = vand.u32 %v4866, 4294901760
    %4934 = vmatmul.f32.gmra.mxu0 %v4933
    %v4935 = vpop.f32.mrf.mxu0
    %v4936 = vadd.f32 %v4895, %v4935
    %4937 = vdwg.mxu0
    %4938 = vmatpush.msra.mxu0 0.0
    %4939 = vmatpush.msra.mxu0 0.0
    %4940 = vmatpush.msra.mxu0 0.0
    %4941 = vmatpush.msra.mxu0 0.0
    %4942 = vmatpush.msra.mxu0 0.0
    %4943 = vmatpush.msra.mxu0 0.0
    %4944 = vmatpush.msra.mxu0 0.0
    %4945 = vmatpush.msra.mxu0 0.0
    %4946 = vmatpush.msra.mxu0 0.0
    %4947 = vmatpush.msra.mxu0 0.0
    %4948 = vmatpush.msra.mxu0 0.0
    %4949 = vmatpush.msra.mxu0 0.0
    %v4950 = vand.u32 %v3150, 4294901760
    %v4951 = vsub.f32 %v3150, %v4950
    %4952 = vmatpush.msra.mxu0 %v4951
    %v4953 = vand.u32 %v3149, 4294901760
    %v4954 = vsub.f32 %v3149, %v4953
    %4955 = vmatpush.msra.mxu0 %v4954
    %v4956 = vand.u32 %v3148, 4294901760
    %v4957 = vsub.f32 %v3148, %v4956
    %4958 = vmatpush.msra.mxu0 %v4957
    %v4959 = vand.u32 %v3147, 4294901760
    %v4960 = vsub.f32 %v3147, %v4959
    %4961 = vmatpush.msra.mxu0 %v4960
    %v4962 = vand.u32 %v4866, 4294901760
    %v4963 = vsub.f32 %v4866, %v4962
    %4964 = vmatmul.f32.gmra.mxu0 %v4963
    %v4965 = vpop.f32.mrf.mxu0
    %v4966 = vadd.f32 %v4936, %v4965
    %4967 = vdwg.mxu0
    %4968 = vmatpush.msra.mxu0 0.0
    %4969 = vmatpush.msra.mxu0 0.0
    %4970 = vmatpush.msra.mxu0 0.0
    %4971 = vmatpush.msra.mxu0 0.0
    %4972 = vmatpush.msra.mxu0 0.0
    %4973 = vmatpush.msra.mxu0 0.0
    %4974 = vmatpush.msra.mxu0 0.0
    %4975 = vmatpush.msra.mxu0 0.0
    %4976 = vmatpush.msra.mxu0 0.0
    %4977 = vmatpush.msra.mxu0 0.0
    %4978 = vmatpush.msra.mxu0 0.0
    %4979 = vmatpush.msra.mxu0 0.0
    %v4980 = vand.u32 %v3150, 4294901760
    %4981 = vmatpush.msra.mxu0 %v4980
    %v4982 = vand.u32 %v3149, 4294901760
    %4983 = vmatpush.msra.mxu0 %v4982
    %v4984 = vand.u32 %v3148, 4294901760
    %4985 = vmatpush.msra.mxu0 %v4984
    %v4986 = vand.u32 %v3147, 4294901760
    %4987 = vmatpush.msra.mxu0 %v4986
    %v4988 = vand.u32 %v4866, 4294901760
    %v4989 = vsub.f32 %v4866, %v4988
    %v4990 = vand.u32 %v4989, 4294901760
    %4991 = vmatmul.f32.gmra.mxu0 %v4990
    %v4992 = vpop.f32.mrf.mxu0
    %v4993 = vadd.f32 %v4966, %v4992
    %4994 = vdwg.mxu0
    %4995 = vmatpush.msra.mxu0 0.0
    %4996 = vmatpush.msra.mxu0 0.0
    %4997 = vmatpush.msra.mxu0 0.0
    %4998 = vmatpush.msra.mxu0 0.0
    %4999 = vmatpush.msra.mxu0 0.0
    %5000 = vmatpush.msra.mxu0 0.0
    %5001 = vmatpush.msra.mxu0 0.0
    %5002 = vmatpush.msra.mxu0 0.0
    %5003 = vmatpush.msra.mxu0 0.0
    %5004 = vmatpush.msra.mxu0 0.0
    %5005 = vmatpush.msra.mxu0 0.0
    %5006 = vmatpush.msra.mxu0 0.0
    %v5007 = vand.u32 %v3150, 4294901760
    %v5008 = vsub.f32 %v3150, %v5007
    %v5009 = vand.u32 %v5008, 4294901760
    %5010 = vmatpush.msra.mxu0 %v5009
    %v5011 = vand.u32 %v3149, 4294901760
    %v5012 = vsub.f32 %v3149, %v5011
    %v5013 = vand.u32 %v5012, 4294901760
    %5014 = vmatpush.msra.mxu0 %v5013
    %v5015 = vand.u32 %v3148, 4294901760
    %v5016 = vsub.f32 %v3148, %v5015
    %v5017 = vand.u32 %v5016, 4294901760
    %5018 = vmatpush.msra.mxu0 %v5017
    %v5019 = vand.u32 %v3147, 4294901760
    %v5020 = vsub.f32 %v3147, %v5019
    %v5021 = vand.u32 %v5020, 4294901760
    %5022 = vmatpush.msra.mxu0 %v5021
    %v5023 = vand.u32 %v4866, 4294901760
    %5024 = vmatmul.f32.gmra.mxu0 %v5023
    %v5025 = vpop.f32.mrf.mxu0
    %v5026 = vadd.f32 %v4993, %v5025
    %5027 = vdwg.mxu0
    %5028 = vmatpush.msra.mxu0 0.0
    %5029 = vmatpush.msra.mxu0 0.0
    %5030 = vmatpush.msra.mxu0 0.0
    %5031 = vmatpush.msra.mxu0 0.0
    %5032 = vmatpush.msra.mxu0 0.0
    %5033 = vmatpush.msra.mxu0 0.0
    %5034 = vmatpush.msra.mxu0 0.0
    %5035 = vmatpush.msra.mxu0 0.0
    %5036 = vmatpush.msra.mxu0 0.0
    %5037 = vmatpush.msra.mxu0 0.0
    %5038 = vmatpush.msra.mxu0 0.0
    %5039 = vmatpush.msra.mxu0 0.0
    %v5040 = vand.u32 %v3150, 4294901760
    %5041 = vmatpush.msra.mxu0 %v5040
    %v5042 = vand.u32 %v3149, 4294901760
    %5043 = vmatpush.msra.mxu0 %v5042
    %v5044 = vand.u32 %v3148, 4294901760
    %5045 = vmatpush.msra.mxu0 %v5044
    %v5046 = vand.u32 %v3147, 4294901760
    %5047 = vmatpush.msra.mxu0 %v5046
    %v5048 = vand.u32 %v4866, 4294901760
    %5049 = vmatmul.f32.gmra.mxu0 %v5048
    %v5050 = vpop.f32.mrf.mxu0
    %v5051 = vadd.f32 %v5026, %v5050
    %5052 = vdwg.mxu0
    %v5053 = vadd.f32 %v3523, %v5051
    %v5054 = vxor.u32 %v5053, 2147483648
    %v5055 = vmul.f32 %v5054, 1.442695
    %v5056 = vpow.pop %v5055
    %v5057 = vadd.f32 %v5056, 1.0
    %v5058 = vrcp.pop %v5057
    %v5059 = vmul.f32 %v5057, %v5058
    %v5060 = vsub.f32 1.0, %v5059
    %v5061 = vmul.f32 %v5058, %v5060
    %v5062 = vadd.f32 %v5058, %v5061
    %vm5063 = vweird.f32 %v5057
    %vm5064 = vweird.f32 %v5058
    %vm5065 = vmor %vm5063, %vm5064
    %v5066 = vsel %vm5065, %v5058, %v5062
    %v5067 = vand.u32 2147483647, %v5057
    %vm5068 = vcmp.eq.f32.partialorder %v5067, 8.507059e+37
    %v5069 = vand.u32 %v5057, 2147483648
    %v5070 = vor.u32 1.1754944e-38, %v5069
    %v5071 = vsel %vm5068, %v5070, %v5066
    %v5072 = vmul.f32 1.0, %v5071
    %v5073 = vtanh.pop %v5053
    %v5074 = vmul.f32 %v5072, %v4856
    %5076 = vrot.lane.b32.xlu0 %v5073, 64
    %v5077 = vpop.permute.xlu0 %5076
    %v5079 = vmul.f32 %v5072, %v5077
    %5081 = vrot.lane.b32.xlu0 %v5079, 32
    %v5082 = vpop.permute.xlu0 %5081
    %v5084 = vadd.f32 %v5074, %v5082
    %v5085 = vtanh.pop %v5084
    %5087 = vrot.lane.b32.xlu0 %v5085, 64
    %v5088 = vpop.permute.xlu0 %5087
    %v5090 = vmul.f32 %v5072, %v5088
    %5092 = vrot.lane.b32.xlu0 %v5090, 32
    %v5093 = vpop.permute.xlu0 %5092
    %v5094 = vsel %vm1320, %v5093, 0
    %5096 = vmatpush.msra.mxu0 0.0
    %5097 = vmatpush.msra.mxu0 0.0
    %5098 = vmatpush.msra.mxu0 0.0
    %5099 = vmatpush.msra.mxu0 0.0
    %5100 = vmatpush.msra.mxu0 0.0
    %5101 = vmatpush.msra.mxu0 0.0
    %5102 = vmatpush.msra.mxu0 0.0
    %5103 = vmatpush.msra.mxu0 0.0
    %5104 = vmatpush.msra.mxu0 0.0
    %5105 = vmatpush.msra.mxu0 0.0
    %5106 = vmatpush.msra.mxu0 0.0
    %5107 = vmatpush.msra.mxu0 0.0
    %v5108 = vand.u32 %v3150, 4294901760
    %5109 = vmatpush.msra.mxu0 %v5108
    %v5110 = vand.u32 %v3149, 4294901760
    %5111 = vmatpush.msra.mxu0 %v5110
    %v5112 = vand.u32 %v3148, 4294901760
    %5113 = vmatpush.msra.mxu0 %v5112
    %v5114 = vand.u32 %v3147, 4294901760
    %5115 = vmatpush.msra.mxu0 %v5114
    %v5116 = vand.u32 %v5094, 4294901760
    %v5117 = vsub.f32 %v5094, %v5116
    %v5118 = vand.u32 %v5117, 4294901760
    %v5119 = vsub.f32 %v5117, %v5118
    %v5120 = vand.u32 %v5119, 4294901760
    %5121 = vmatmul.f32.gmra.mxu0 %v5120
    %v5122 = vpop.f32.mrf.mxu0
    %v5123 = vadd.f32 0.0, %v5122
    %5124 = vdwg.mxu0
    %5125 = vmatpush.msra.mxu0 0.0
    %5126 = vmatpush.msra.mxu0 0.0
    %5127 = vmatpush.msra.mxu0 0.0
    %5128 = vmatpush.msra.mxu0 0.0
    %5129 = vmatpush.msra.mxu0 0.0
    %5130 = vmatpush.msra.mxu0 0.0
    %5131 = vmatpush.msra.mxu0 0.0
    %5132 = vmatpush.msra.mxu0 0.0
    %5133 = vmatpush.msra.mxu0 0.0
    %5134 = vmatpush.msra.mxu0 0.0
    %5135 = vmatpush.msra.mxu0 0.0
    %5136 = vmatpush.msra.mxu0 0.0
    %v5137 = vand.u32 %v3150, 4294901760
    %v5138 = vsub.f32 %v3150, %v5137
    %v5139 = vand.u32 %v5138, 4294901760
    %v5140 = vsub.f32 %v5138, %v5139
    %v5141 = vand.u32 %v5140, 4294901760
    %5142 = vmatpush.msra.mxu0 %v5141
    %v5143 = vand.u32 %v3149, 4294901760
    %v5144 = vsub.f32 %v3149, %v5143
    %v5145 = vand.u32 %v5144, 4294901760
    %v5146 = vsub.f32 %v5144, %v5145
    %v5147 = vand.u32 %v5146, 4294901760
    %5148 = vmatpush.msra.mxu0 %v5147
    %v5149 = vand.u32 %v3148, 4294901760
    %v5150 = vsub.f32 %v3148, %v5149
    %v5151 = vand.u32 %v5150, 4294901760
    %v5152 = vsub.f32 %v5150, %v5151
    %v5153 = vand.u32 %v5152, 4294901760
    %5154 = vmatpush.msra.mxu0 %v5153
    %v5155 = vand.u32 %v3147, 4294901760
    %v5156 = vsub.f32 %v3147, %v5155
    %v5157 = vand.u32 %v5156, 4294901760
    %v5158 = vsub.f32 %v5156, %v5157
    %v5159 = vand.u32 %v5158, 4294901760
    %5160 = vmatpush.msra.mxu0 %v5159
    %v5161 = vand.u32 %v5094, 4294901760
    %5162 = vmatmul.f32.gmra.mxu0 %v5161
    %v5163 = vpop.f32.mrf.mxu0
    %v5164 = vadd.f32 %v5123, %v5163
    %5165 = vdwg.mxu0
    %5166 = vmatpush.msra.mxu0 0.0
    %5167 = vmatpush.msra.mxu0 0.0
    %5168 = vmatpush.msra.mxu0 0.0
    %5169 = vmatpush.msra.mxu0 0.0
    %5170 = vmatpush.msra.mxu0 0.0
    %5171 = vmatpush.msra.mxu0 0.0
    %5172 = vmatpush.msra.mxu0 0.0
    %5173 = vmatpush.msra.mxu0 0.0
    %5174 = vmatpush.msra.mxu0 0.0
    %5175 = vmatpush.msra.mxu0 0.0
    %5176 = vmatpush.msra.mxu0 0.0
    %5177 = vmatpush.msra.mxu0 0.0
    %v5178 = vand.u32 %v3150, 4294901760
    %v5179 = vsub.f32 %v3150, %v5178
    %5180 = vmatpush.msra.mxu0 %v5179
    %v5181 = vand.u32 %v3149, 4294901760
    %v5182 = vsub.f32 %v3149, %v5181
    %5183 = vmatpush.msra.mxu0 %v5182
    %v5184 = vand.u32 %v3148, 4294901760
    %v5185 = vsub.f32 %v3148, %v5184
    %5186 = vmatpush.msra.mxu0 %v5185
    %v5187 = vand.u32 %v3147, 4294901760
    %v5188 = vsub.f32 %v3147, %v5187
    %5189 = vmatpush.msra.mxu0 %v5188
    %v5190 = vand.u32 %v5094, 4294901760
    %v5191 = vsub.f32 %v5094, %v5190
    %5192 = vmatmul.f32.gmra.mxu0 %v5191
    %v5193 = vpop.f32.mrf.mxu0
    %v5194 = vadd.f32 %v5164, %v5193
    %5195 = vdwg.mxu0
    %5196 = vmatpush.msra.mxu0 0.0
    %5197 = vmatpush.msra.mxu0 0.0
    %5198 = vmatpush.msra.mxu0 0.0
    %5199 = vmatpush.msra.mxu0 0.0
    %5200 = vmatpush.msra.mxu0 0.0
    %5201 = vmatpush.msra.mxu0 0.0
    %5202 = vmatpush.msra.mxu0 0.0
    %5203 = vmatpush.msra.mxu0 0.0
    %5204 = vmatpush.msra.mxu0 0.0
    %5205 = vmatpush.msra.mxu0 0.0
    %5206 = vmatpush.msra.mxu0 0.0
    %5207 = vmatpush.msra.mxu0 0.0
    %v5208 = vand.u32 %v3150, 4294901760
    %5209 = vmatpush.msra.mxu0 %v5208
    %v5210 = vand.u32 %v3149, 4294901760
    %5211 = vmatpush.msra.mxu0 %v5210
    %v5212 = vand.u32 %v3148, 4294901760
    %5213 = vmatpush.msra.mxu0 %v5212
    %v5214 = vand.u32 %v3147, 4294901760
    %5215 = vmatpush.msra.mxu0 %v5214
    %v5216 = vand.u32 %v5094, 4294901760
    %v5217 = vsub.f32 %v5094, %v5216
    %v5218 = vand.u32 %v5217, 4294901760
    %5219 = vmatmul.f32.gmra.mxu0 %v5218
    %v5220 = vpop.f32.mrf.mxu0
    %v5221 = vadd.f32 %v5194, %v5220
    %5222 = vdwg.mxu0
    %5223 = vmatpush.msra.mxu0 0.0
    %5224 = vmatpush.msra.mxu0 0.0
    %5225 = vmatpush.msra.mxu0 0.0
    %5226 = vmatpush.msra.mxu0 0.0
    %5227 = vmatpush.msra.mxu0 0.0
    %5228 = vmatpush.msra.mxu0 0.0
    %5229 = vmatpush.msra.mxu0 0.0
    %5230 = vmatpush.msra.mxu0 0.0
    %5231 = vmatpush.msra.mxu0 0.0
    %5232 = vmatpush.msra.mxu0 0.0
    %5233 = vmatpush.msra.mxu0 0.0
    %5234 = vmatpush.msra.mxu0 0.0
    %v5235 = vand.u32 %v3150, 4294901760
    %v5236 = vsub.f32 %v3150, %v5235
    %v5237 = vand.u32 %v5236, 4294901760
    %5238 = vmatpush.msra.mxu0 %v5237
    %v5239 = vand.u32 %v3149, 4294901760
    %v5240 = vsub.f32 %v3149, %v5239
    %v5241 = vand.u32 %v5240, 4294901760
    %5242 = vmatpush.msra.mxu0 %v5241
    %v5243 = vand.u32 %v3148, 4294901760
    %v5244 = vsub.f32 %v3148, %v5243
    %v5245 = vand.u32 %v5244, 4294901760
    %5246 = vmatpush.msra.mxu0 %v5245
    %v5247 = vand.u32 %v3147, 4294901760
    %v5248 = vsub.f32 %v3147, %v5247
    %v5249 = vand.u32 %v5248, 4294901760
    %5250 = vmatpush.msra.mxu0 %v5249
    %v5251 = vand.u32 %v5094, 4294901760
    %5252 = vmatmul.f32.gmra.mxu0 %v5251
    %v5253 = vpop.f32.mrf.mxu0
    %v5254 = vadd.f32 %v5221, %v5253
    %5255 = vdwg.mxu0
    %5256 = vmatpush.msra.mxu0 0.0
    %5257 = vmatpush.msra.mxu0 0.0
    %5258 = vmatpush.msra.mxu0 0.0
    %5259 = vmatpush.msra.mxu0 0.0
    %5260 = vmatpush.msra.mxu0 0.0
    %5261 = vmatpush.msra.mxu0 0.0
    %5262 = vmatpush.msra.mxu0 0.0
    %5263 = vmatpush.msra.mxu0 0.0
    %5264 = vmatpush.msra.mxu0 0.0
    %5265 = vmatpush.msra.mxu0 0.0
    %5266 = vmatpush.msra.mxu0 0.0
    %5267 = vmatpush.msra.mxu0 0.0
    %v5268 = vand.u32 %v3150, 4294901760
    %5269 = vmatpush.msra.mxu0 %v5268
    %v5270 = vand.u32 %v3149, 4294901760
    %5271 = vmatpush.msra.mxu0 %v5270
    %v5272 = vand.u32 %v3148, 4294901760
    %5273 = vmatpush.msra.mxu0 %v5272
    %v5274 = vand.u32 %v3147, 4294901760
    %5275 = vmatpush.msra.mxu0 %v5274
    %v5276 = vand.u32 %v5094, 4294901760
    %5277 = vmatmul.f32.gmra.mxu0 %v5276
    %v5278 = vpop.f32.mrf.mxu0
    %v5279 = vadd.f32 %v5254, %v5278
    %5280 = vdwg.mxu0
    %v5281 = vadd.f32 %v3708, %v5279
    %v5282 = vxor.u32 %v5281, 2147483648
    %v5283 = vmul.f32 %v5282, 1.442695
    %v5284 = vpow.pop %v5283
    %v5285 = vadd.f32 %v5284, 1.0
    %v5286 = vrcp.pop %v5285
    %v5287 = vmul.f32 %v5285, %v5286
    %v5288 = vsub.f32 1.0, %v5287
    %v5289 = vmul.f32 %v5286, %v5288
    %v5290 = vadd.f32 %v5286, %v5289
    %vm5291 = vweird.f32 %v5285
    %vm5292 = vweird.f32 %v5286
    %vm5293 = vmor %vm5291, %vm5292
    %v5294 = vsel %vm5293, %v5286, %v5290
    %v5295 = vand.u32 2147483647, %v5285
    %vm5296 = vcmp.eq.f32.partialorder %v5295, 8.507059e+37
    %v5297 = vand.u32 %v5285, 2147483648
    %v5298 = vor.u32 1.1754944e-38, %v5297
    %v5299 = vsel %vm5296, %v5298, %v5294
    %v5300 = vmul.f32 1.0, %v5299
    %v5301 = vtanh.pop %v5281
    %v5302 = vmul.f32 %v5300, %v5084
    %5304 = vrot.lane.b32.xlu0 %v5301, 64
    %v5305 = vpop.permute.xlu0 %5304
    %v5307 = vmul.f32 %v5300, %v5305
    %5309 = vrot.lane.b32.xlu0 %v5307, 32
    %v5310 = vpop.permute.xlu0 %5309
    %v5312 = vadd.f32 %v5302, %v5310
    %v5313 = vtanh.pop %v5312
    %5315 = vrot.lane.b32.xlu0 %v5313, 64
    %v5316 = vpop.permute.xlu0 %5315
    %v5318 = vmul.f32 %v5300, %v5316
    %5320 = vrot.lane.b32.xlu0 %v5318, 32
    %v5321 = vpop.permute.xlu0 %5320
    %v5322 = vsel %vm1320, %v5321, 0
    %5324 = vmatpush.msra.mxu0 0.0
    %5325 = vmatpush.msra.mxu0 0.0
    %5326 = vmatpush.msra.mxu0 0.0
    %5327 = vmatpush.msra.mxu0 0.0
    %5328 = vmatpush.msra.mxu0 0.0
    %5329 = vmatpush.msra.mxu0 0.0
    %5330 = vmatpush.msra.mxu0 0.0
    %5331 = vmatpush.msra.mxu0 0.0
    %5332 = vmatpush.msra.mxu0 0.0
    %5333 = vmatpush.msra.mxu0 0.0
    %5334 = vmatpush.msra.mxu0 0.0
    %5335 = vmatpush.msra.mxu0 0.0
    %v5336 = vand.u32 %v3150, 4294901760
    %5337 = vmatpush.msra.mxu0 %v5336
    %v5338 = vand.u32 %v3149, 4294901760
    %5339 = vmatpush.msra.mxu0 %v5338
    %v5340 = vand.u32 %v3148, 4294901760
    %5341 = vmatpush.msra.mxu0 %v5340
    %v5342 = vand.u32 %v3147, 4294901760
    %5343 = vmatpush.msra.mxu0 %v5342
    %v5344 = vand.u32 %v5322, 4294901760
    %v5345 = vsub.f32 %v5322, %v5344
    %v5346 = vand.u32 %v5345, 4294901760
    %v5347 = vsub.f32 %v5345, %v5346
    %v5348 = vand.u32 %v5347, 4294901760
    %5349 = vmatmul.f32.gmra.mxu0 %v5348
    %v5350 = vpop.f32.mrf.mxu0
    %v5351 = vadd.f32 0.0, %v5350
    %5352 = vdwg.mxu0
    %5353 = vmatpush.msra.mxu0 0.0
    %5354 = vmatpush.msra.mxu0 0.0
    %5355 = vmatpush.msra.mxu0 0.0
    %5356 = vmatpush.msra.mxu0 0.0
    %5357 = vmatpush.msra.mxu0 0.0
    %5358 = vmatpush.msra.mxu0 0.0
    %5359 = vmatpush.msra.mxu0 0.0
    %5360 = vmatpush.msra.mxu0 0.0
    %5361 = vmatpush.msra.mxu0 0.0
    %5362 = vmatpush.msra.mxu0 0.0
    %5363 = vmatpush.msra.mxu0 0.0
    %5364 = vmatpush.msra.mxu0 0.0
    %v5365 = vand.u32 %v3150, 4294901760
    %v5366 = vsub.f32 %v3150, %v5365
    %v5367 = vand.u32 %v5366, 4294901760
    %v5368 = vsub.f32 %v5366, %v5367
    %v5369 = vand.u32 %v5368, 4294901760
    %5370 = vmatpush.msra.mxu0 %v5369
    %v5371 = vand.u32 %v3149, 4294901760
    %v5372 = vsub.f32 %v3149, %v5371
    %v5373 = vand.u32 %v5372, 4294901760
    %v5374 = vsub.f32 %v5372, %v5373
    %v5375 = vand.u32 %v5374, 4294901760
    %5376 = vmatpush.msra.mxu0 %v5375
    %v5377 = vand.u32 %v3148, 4294901760
    %v5378 = vsub.f32 %v3148, %v5377
    %v5379 = vand.u32 %v5378, 4294901760
    %v5380 = vsub.f32 %v5378, %v5379
    %v5381 = vand.u32 %v5380, 4294901760
    %5382 = vmatpush.msra.mxu0 %v5381
    %v5383 = vand.u32 %v3147, 4294901760
    %v5384 = vsub.f32 %v3147, %v5383
    %v5385 = vand.u32 %v5384, 4294901760
    %v5386 = vsub.f32 %v5384, %v5385
    %v5387 = vand.u32 %v5386, 4294901760
    %5388 = vmatpush.msra.mxu0 %v5387
    %v5389 = vand.u32 %v5322, 4294901760
    %5390 = vmatmul.f32.gmra.mxu0 %v5389
    %v5391 = vpop.f32.mrf.mxu0
    %v5392 = vadd.f32 %v5351, %v5391
    %5393 = vdwg.mxu0
    %5394 = vmatpush.msra.mxu0 0.0
    %5395 = vmatpush.msra.mxu0 0.0
    %5396 = vmatpush.msra.mxu0 0.0
    %5397 = vmatpush.msra.mxu0 0.0
    %5398 = vmatpush.msra.mxu0 0.0
    %5399 = vmatpush.msra.mxu0 0.0
    %5400 = vmatpush.msra.mxu0 0.0
    %5401 = vmatpush.msra.mxu0 0.0
    %5402 = vmatpush.msra.mxu0 0.0
    %5403 = vmatpush.msra.mxu0 0.0
    %5404 = vmatpush.msra.mxu0 0.0
    %5405 = vmatpush.msra.mxu0 0.0
    %v5406 = vand.u32 %v3150, 4294901760
    %v5407 = vsub.f32 %v3150, %v5406
    %5408 = vmatpush.msra.mxu0 %v5407
    %v5409 = vand.u32 %v3149, 4294901760
    %v5410 = vsub.f32 %v3149, %v5409
    %5411 = vmatpush.msra.mxu0 %v5410
    %v5412 = vand.u32 %v3148, 4294901760
    %v5413 = vsub.f32 %v3148, %v5412
    %5414 = vmatpush.msra.mxu0 %v5413
    %v5415 = vand.u32 %v3147, 4294901760
    %v5416 = vsub.f32 %v3147, %v5415
    %5417 = vmatpush.msra.mxu0 %v5416
    %v5418 = vand.u32 %v5322, 4294901760
    %v5419 = vsub.f32 %v5322, %v5418
    %5420 = vmatmul.f32.gmra.mxu0 %v5419
    %v5421 = vpop.f32.mrf.mxu0
    %v5422 = vadd.f32 %v5392, %v5421
    %5423 = vdwg.mxu0
    %5424 = vmatpush.msra.mxu0 0.0
    %5425 = vmatpush.msra.mxu0 0.0
    %5426 = vmatpush.msra.mxu0 0.0
    %5427 = vmatpush.msra.mxu0 0.0
    %5428 = vmatpush.msra.mxu0 0.0
    %5429 = vmatpush.msra.mxu0 0.0
    %5430 = vmatpush.msra.mxu0 0.0
    %5431 = vmatpush.msra.mxu0 0.0
    %5432 = vmatpush.msra.mxu0 0.0
    %5433 = vmatpush.msra.mxu0 0.0
    %5434 = vmatpush.msra.mxu0 0.0
    %5435 = vmatpush.msra.mxu0 0.0
    %v5436 = vand.u32 %v3150, 4294901760
    %5437 = vmatpush.msra.mxu0 %v5436
    %v5438 = vand.u32 %v3149, 4294901760
    %5439 = vmatpush.msra.mxu0 %v5438
    %v5440 = vand.u32 %v3148, 4294901760
    %5441 = vmatpush.msra.mxu0 %v5440
    %v5442 = vand.u32 %v3147, 4294901760
    %5443 = vmatpush.msra.mxu0 %v5442
    %v5444 = vand.u32 %v5322, 4294901760
    %v5445 = vsub.f32 %v5322, %v5444
    %v5446 = vand.u32 %v5445, 4294901760
    %5447 = vmatmul.f32.gmra.mxu0 %v5446
    %v5448 = vpop.f32.mrf.mxu0
    %v5449 = vadd.f32 %v5422, %v5448
    %5450 = vdwg.mxu0
    %5451 = vmatpush.msra.mxu0 0.0
    %5452 = vmatpush.msra.mxu0 0.0
    %5453 = vmatpush.msra.mxu0 0.0
    %5454 = vmatpush.msra.mxu0 0.0
    %5455 = vmatpush.msra.mxu0 0.0
    %5456 = vmatpush.msra.mxu0 0.0
    %5457 = vmatpush.msra.mxu0 0.0
    %5458 = vmatpush.msra.mxu0 0.0
    %5459 = vmatpush.msra.mxu0 0.0
    %5460 = vmatpush.msra.mxu0 0.0
    %5461 = vmatpush.msra.mxu0 0.0
    %5462 = vmatpush.msra.mxu0 0.0
    %v5463 = vand.u32 %v3150, 4294901760
    %v5464 = vsub.f32 %v3150, %v5463
    %v5465 = vand.u32 %v5464, 4294901760
    %5466 = vmatpush.msra.mxu0 %v5465
    %v5467 = vand.u32 %v3149, 4294901760
    %v5468 = vsub.f32 %v3149, %v5467
    %v5469 = vand.u32 %v5468, 4294901760
    %5470 = vmatpush.msra.mxu0 %v5469
    %v5471 = vand.u32 %v3148, 4294901760
    %v5472 = vsub.f32 %v3148, %v5471
    %v5473 = vand.u32 %v5472, 4294901760
    %5474 = vmatpush.msra.mxu0 %v5473
    %v5475 = vand.u32 %v3147, 4294901760
    %v5476 = vsub.f32 %v3147, %v5475
    %v5477 = vand.u32 %v5476, 4294901760
    %5478 = vmatpush.msra.mxu0 %v5477
    %v5479 = vand.u32 %v5322, 4294901760
    %5480 = vmatmul.f32.gmra.mxu0 %v5479
    %v5481 = vpop.f32.mrf.mxu0
    %v5482 = vadd.f32 %v5449, %v5481
    %5483 = vdwg.mxu0
    %5484 = vmatpush.msra.mxu0 0.0
    %5485 = vmatpush.msra.mxu0 0.0
    %5486 = vmatpush.msra.mxu0 0.0
    %5487 = vmatpush.msra.mxu0 0.0
    %5488 = vmatpush.msra.mxu0 0.0
    %5489 = vmatpush.msra.mxu0 0.0
    %5490 = vmatpush.msra.mxu0 0.0
    %5491 = vmatpush.msra.mxu0 0.0
    %5492 = vmatpush.msra.mxu0 0.0
    %5493 = vmatpush.msra.mxu0 0.0
    %5494 = vmatpush.msra.mxu0 0.0
    %5495 = vmatpush.msra.mxu0 0.0
    %v5496 = vand.u32 %v3150, 4294901760
    %5497 = vmatpush.msra.mxu0 %v5496
    %v5498 = vand.u32 %v3149, 4294901760
    %5499 = vmatpush.msra.mxu0 %v5498
    %v5500 = vand.u32 %v3148, 4294901760
    %5501 = vmatpush.msra.mxu0 %v5500
    %v5502 = vand.u32 %v3147, 4294901760
    %5503 = vmatpush.msra.mxu0 %v5502
    %v5504 = vand.u32 %v5322, 4294901760
    %5505 = vmatmul.f32.gmra.mxu0 %v5504
    %v5506 = vpop.f32.mrf.mxu0
    %v5507 = vadd.f32 %v5482, %v5506
    %5508 = vdwg.mxu0
    %v5509 = vadd.f32 %v3893, %v5507
    %v5510 = vxor.u32 %v5509, 2147483648
    %v5511 = vmul.f32 %v5510, 1.442695
    %v5512 = vpow.pop %v5511
    %v5513 = vadd.f32 %v5512, 1.0
    %v5514 = vrcp.pop %v5513
    %v5515 = vmul.f32 %v5513, %v5514
    %v5516 = vsub.f32 1.0, %v5515
    %v5517 = vmul.f32 %v5514, %v5516
    %v5518 = vadd.f32 %v5514, %v5517
    %vm5519 = vweird.f32 %v5513
    %vm5520 = vweird.f32 %v5514
    %vm5521 = vmor %vm5519, %vm5520
    %v5522 = vsel %vm5521, %v5514, %v5518
    %v5523 = vand.u32 2147483647, %v5513
    %vm5524 = vcmp.eq.f32.partialorder %v5523, 8.507059e+37
    %v5525 = vand.u32 %v5513, 2147483648
    %v5526 = vor.u32 1.1754944e-38, %v5525
    %v5527 = vsel %vm5524, %v5526, %v5522
    %v5528 = vmul.f32 1.0, %v5527
    %v5529 = vtanh.pop %v5509
    %v5530 = vmul.f32 %v5528, %v5312
    %5532 = vrot.lane.b32.xlu0 %v5529, 64
    %v5533 = vpop.permute.xlu0 %5532
    %v5535 = vmul.f32 %v5528, %v5533
    %5537 = vrot.lane.b32.xlu0 %v5535, 32
    %v5538 = vpop.permute.xlu0 %5537
    %v5540 = vadd.f32 %v5530, %v5538
    %v5541 = vtanh.pop %v5540
    %5543 = vrot.lane.b32.xlu0 %v5541, 64
    %v5544 = vpop.permute.xlu0 %5543
    %v5546 = vmul.f32 %v5528, %v5544
    %5548 = vrot.lane.b32.xlu0 %v5546, 32
    %v5549 = vpop.permute.xlu0 %5548
    %v5550 = vsel %vm1320, %v5549, 0
    %5552 = vmatpush.msra.mxu0 0.0
    %5553 = vmatpush.msra.mxu0 0.0
    %5554 = vmatpush.msra.mxu0 0.0
    %5555 = vmatpush.msra.mxu0 0.0
    %5556 = vmatpush.msra.mxu0 0.0
    %5557 = vmatpush.msra.mxu0 0.0
    %5558 = vmatpush.msra.mxu0 0.0
    %5559 = vmatpush.msra.mxu0 0.0
    %5560 = vmatpush.msra.mxu0 0.0
    %5561 = vmatpush.msra.mxu0 0.0
    %5562 = vmatpush.msra.mxu0 0.0
    %5563 = vmatpush.msra.mxu0 0.0
    %v5564 = vand.u32 %v3150, 4294901760
    %5565 = vmatpush.msra.mxu0 %v5564
    %v5566 = vand.u32 %v3149, 4294901760
    %5567 = vmatpush.msra.mxu0 %v5566
    %v5568 = vand.u32 %v3148, 4294901760
    %5569 = vmatpush.msra.mxu0 %v5568
    %v5570 = vand.u32 %v3147, 4294901760
    %5571 = vmatpush.msra.mxu0 %v5570
    %v5572 = vand.u32 %v5550, 4294901760
    %v5573 = vsub.f32 %v5550, %v5572
    %v5574 = vand.u32 %v5573, 4294901760
    %v5575 = vsub.f32 %v5573, %v5574
    %v5576 = vand.u32 %v5575, 4294901760
    %5577 = vmatmul.f32.gmra.mxu0 %v5576
    %v5578 = vpop.f32.mrf.mxu0
    %v5579 = vadd.f32 0.0, %v5578
    %5580 = vdwg.mxu0
    %5581 = vmatpush.msra.mxu0 0.0
    %5582 = vmatpush.msra.mxu0 0.0
    %5583 = vmatpush.msra.mxu0 0.0
    %5584 = vmatpush.msra.mxu0 0.0
    %5585 = vmatpush.msra.mxu0 0.0
    %5586 = vmatpush.msra.mxu0 0.0
    %5587 = vmatpush.msra.mxu0 0.0
    %5588 = vmatpush.msra.mxu0 0.0
    %5589 = vmatpush.msra.mxu0 0.0
    %5590 = vmatpush.msra.mxu0 0.0
    %5591 = vmatpush.msra.mxu0 0.0
    %5592 = vmatpush.msra.mxu0 0.0
    %v5593 = vand.u32 %v3150, 4294901760
    %v5594 = vsub.f32 %v3150, %v5593
    %v5595 = vand.u32 %v5594, 4294901760
    %v5596 = vsub.f32 %v5594, %v5595
    %v5597 = vand.u32 %v5596, 4294901760
    %5598 = vmatpush.msra.mxu0 %v5597
    %v5599 = vand.u32 %v3149, 4294901760
    %v5600 = vsub.f32 %v3149, %v5599
    %v5601 = vand.u32 %v5600, 4294901760
    %v5602 = vsub.f32 %v5600, %v5601
    %v5603 = vand.u32 %v5602, 4294901760
    %5604 = vmatpush.msra.mxu0 %v5603
    %v5605 = vand.u32 %v3148, 4294901760
    %v5606 = vsub.f32 %v3148, %v5605
    %v5607 = vand.u32 %v5606, 4294901760
    %v5608 = vsub.f32 %v5606, %v5607
    %v5609 = vand.u32 %v5608, 4294901760
    %5610 = vmatpush.msra.mxu0 %v5609
    %v5611 = vand.u32 %v3147, 4294901760
    %v5612 = vsub.f32 %v3147, %v5611
    %v5613 = vand.u32 %v5612, 4294901760
    %v5614 = vsub.f32 %v5612, %v5613
    %v5615 = vand.u32 %v5614, 4294901760
    %5616 = vmatpush.msra.mxu0 %v5615
    %v5617 = vand.u32 %v5550, 4294901760
    %5618 = vmatmul.f32.gmra.mxu0 %v5617
    %v5619 = vpop.f32.mrf.mxu0
    %v5620 = vadd.f32 %v5579, %v5619
    %5621 = vdwg.mxu0
    %5622 = vmatpush.msra.mxu0 0.0
    %5623 = vmatpush.msra.mxu0 0.0
    %5624 = vmatpush.msra.mxu0 0.0
    %5625 = vmatpush.msra.mxu0 0.0
    %5626 = vmatpush.msra.mxu0 0.0
    %5627 = vmatpush.msra.mxu0 0.0
    %5628 = vmatpush.msra.mxu0 0.0
    %5629 = vmatpush.msra.mxu0 0.0
    %5630 = vmatpush.msra.mxu0 0.0
    %5631 = vmatpush.msra.mxu0 0.0
    %5632 = vmatpush.msra.mxu0 0.0
    %5633 = vmatpush.msra.mxu0 0.0
    %v5634 = vand.u32 %v3150, 4294901760
    %v5635 = vsub.f32 %v3150, %v5634
    %5636 = vmatpush.msra.mxu0 %v5635
    %v5637 = vand.u32 %v3149, 4294901760
    %v5638 = vsub.f32 %v3149, %v5637
    %5639 = vmatpush.msra.mxu0 %v5638
    %v5640 = vand.u32 %v3148, 4294901760
    %v5641 = vsub.f32 %v3148, %v5640
    %5642 = vmatpush.msra.mxu0 %v5641
    %v5643 = vand.u32 %v3147, 4294901760
    %v5644 = vsub.f32 %v3147, %v5643
    %5645 = vmatpush.msra.mxu0 %v5644
    %v5646 = vand.u32 %v5550, 4294901760
    %v5647 = vsub.f32 %v5550, %v5646
    %5648 = vmatmul.f32.gmra.mxu0 %v5647
    %v5649 = vpop.f32.mrf.mxu0
    %v5650 = vadd.f32 %v5620, %v5649
    %5651 = vdwg.mxu0
    %5652 = vmatpush.msra.mxu0 0.0
    %5653 = vmatpush.msra.mxu0 0.0
    %5654 = vmatpush.msra.mxu0 0.0
    %5655 = vmatpush.msra.mxu0 0.0
    %5656 = vmatpush.msra.mxu0 0.0
    %5657 = vmatpush.msra.mxu0 0.0
    %5658 = vmatpush.msra.mxu0 0.0
    %5659 = vmatpush.msra.mxu0 0.0
    %5660 = vmatpush.msra.mxu0 0.0
    %5661 = vmatpush.msra.mxu0 0.0
    %5662 = vmatpush.msra.mxu0 0.0
    %5663 = vmatpush.msra.mxu0 0.0
    %v5664 = vand.u32 %v3150, 4294901760
    %5665 = vmatpush.msra.mxu0 %v5664
    %v5666 = vand.u32 %v3149, 4294901760
    %5667 = vmatpush.msra.mxu0 %v5666
    %v5668 = vand.u32 %v3148, 4294901760
    %5669 = vmatpush.msra.mxu0 %v5668
    %v5670 = vand.u32 %v3147, 4294901760
    %5671 = vmatpush.msra.mxu0 %v5670
    %v5672 = vand.u32 %v5550, 4294901760
    %v5673 = vsub.f32 %v5550, %v5672
    %v5674 = vand.u32 %v5673, 4294901760
    %5675 = vmatmul.f32.gmra.mxu0 %v5674
    %v5676 = vpop.f32.mrf.mxu0
    %v5677 = vadd.f32 %v5650, %v5676
    %5678 = vdwg.mxu0
    %5679 = vmatpush.msra.mxu0 0.0
    %5680 = vmatpush.msra.mxu0 0.0
    %5681 = vmatpush.msra.mxu0 0.0
    %5682 = vmatpush.msra.mxu0 0.0
    %5683 = vmatpush.msra.mxu0 0.0
    %5684 = vmatpush.msra.mxu0 0.0
    %5685 = vmatpush.msra.mxu0 0.0
    %5686 = vmatpush.msra.mxu0 0.0
    %5687 = vmatpush.msra.mxu0 0.0
    %5688 = vmatpush.msra.mxu0 0.0
    %5689 = vmatpush.msra.mxu0 0.0
    %5690 = vmatpush.msra.mxu0 0.0
    %v5691 = vand.u32 %v3150, 4294901760
    %v5692 = vsub.f32 %v3150, %v5691
    %v5693 = vand.u32 %v5692, 4294901760
    %5694 = vmatpush.msra.mxu0 %v5693
    %v5695 = vand.u32 %v3149, 4294901760
    %v5696 = vsub.f32 %v3149, %v5695
    %v5697 = vand.u32 %v5696, 4294901760
    %5698 = vmatpush.msra.mxu0 %v5697
    %v5699 = vand.u32 %v3148, 4294901760
    %v5700 = vsub.f32 %v3148, %v5699
    %v5701 = vand.u32 %v5700, 4294901760
    %5702 = vmatpush.msra.mxu0 %v5701
    %v5703 = vand.u32 %v3147, 4294901760
    %v5704 = vsub.f32 %v3147, %v5703
    %v5705 = vand.u32 %v5704, 4294901760
    %5706 = vmatpush.msra.mxu0 %v5705
    %v5707 = vand.u32 %v5550, 4294901760
    %5708 = vmatmul.f32.gmra.mxu0 %v5707
    %v5709 = vpop.f32.mrf.mxu0
    %v5710 = vadd.f32 %v5677, %v5709
    %5711 = vdwg.mxu0
    %5712 = vmatpush.msra.mxu0 0.0
    %5713 = vmatpush.msra.mxu0 0.0
    %5714 = vmatpush.msra.mxu0 0.0
    %5715 = vmatpush.msra.mxu0 0.0
    %5716 = vmatpush.msra.mxu0 0.0
    %5717 = vmatpush.msra.mxu0 0.0
    %5718 = vmatpush.msra.mxu0 0.0
    %5719 = vmatpush.msra.mxu0 0.0
    %5720 = vmatpush.msra.mxu0 0.0
    %5721 = vmatpush.msra.mxu0 0.0
    %5722 = vmatpush.msra.mxu0 0.0
    %5723 = vmatpush.msra.mxu0 0.0
    %v5724 = vand.u32 %v3150, 4294901760
    %5725 = vmatpush.msra.mxu0 %v5724
    %v5726 = vand.u32 %v3149, 4294901760
    %5727 = vmatpush.msra.mxu0 %v5726
    %v5728 = vand.u32 %v3148, 4294901760
    %5729 = vmatpush.msra.mxu0 %v5728
    %v5730 = vand.u32 %v3147, 4294901760
    %5731 = vmatpush.msra.mxu0 %v5730
    %v5732 = vand.u32 %v5550, 4294901760
    %5733 = vmatmul.f32.gmra.mxu0 %v5732
    %v5734 = vpop.f32.mrf.mxu0
    %v5735 = vadd.f32 %v5710, %v5734
    %5736 = vdwg.mxu0
    %v5737 = vadd.f32 %v4078, %v5735
    %v5738 = vxor.u32 %v5737, 2147483648
    %v5739 = vmul.f32 %v5738, 1.442695
    %v5740 = vpow.pop %v5739
    %v5741 = vadd.f32 %v5740, 1.0
    %v5742 = vrcp.pop %v5741
    %v5743 = vmul.f32 %v5741, %v5742
    %v5744 = vsub.f32 1.0, %v5743
    %v5745 = vmul.f32 %v5742, %v5744
    %v5746 = vadd.f32 %v5742, %v5745
    %vm5747 = vweird.f32 %v5741
    %vm5748 = vweird.f32 %v5742
    %vm5749 = vmor %vm5747, %vm5748
    %v5750 = vsel %vm5749, %v5742, %v5746
    %v5751 = vand.u32 2147483647, %v5741
    %vm5752 = vcmp.eq.f32.partialorder %v5751, 8.507059e+37
    %v5753 = vand.u32 %v5741, 2147483648
    %v5754 = vor.u32 1.1754944e-38, %v5753
    %v5755 = vsel %vm5752, %v5754, %v5750
    %v5756 = vmul.f32 1.0, %v5755
    %v5757 = vtanh.pop %v5737
    %v5758 = vmul.f32 %v5756, %v5540
    %5760 = vrot.lane.b32.xlu0 %v5757, 64
    %v5761 = vpop.permute.xlu0 %5760
    %v5763 = vmul.f32 %v5756, %v5761
    %5765 = vrot.lane.b32.xlu0 %v5763, 32
    %v5766 = vpop.permute.xlu0 %5765
    %v5768 = vadd.f32 %v5758, %v5766
    %v5769 = vtanh.pop %v5768
    %5771 = vrot.lane.b32.xlu0 %v5769, 64
    %v5772 = vpop.permute.xlu0 %5771
    %v5774 = vmul.f32 %v5756, %v5772
    %5776 = vrot.lane.b32.xlu0 %v5774, 32
    %v5777 = vpop.permute.xlu0 %5776
    %v5778 = vsel %vm1320, %v5777, 0
    %5780 = vmatpush.msra.mxu0 0.0
    %5781 = vmatpush.msra.mxu0 0.0
    %5782 = vmatpush.msra.mxu0 0.0
    %5783 = vmatpush.msra.mxu0 0.0
    %5784 = vmatpush.msra.mxu0 0.0
    %5785 = vmatpush.msra.mxu0 0.0
    %5786 = vmatpush.msra.mxu0 0.0
    %5787 = vmatpush.msra.mxu0 0.0
    %5788 = vmatpush.msra.mxu0 0.0
    %5789 = vmatpush.msra.mxu0 0.0
    %5790 = vmatpush.msra.mxu0 0.0
    %5791 = vmatpush.msra.mxu0 0.0
    %v5792 = vand.u32 %v3150, 4294901760
    %5793 = vmatpush.msra.mxu0 %v5792
    %v5794 = vand.u32 %v3149, 4294901760
    %5795 = vmatpush.msra.mxu0 %v5794
    %v5796 = vand.u32 %v3148, 4294901760
    %5797 = vmatpush.msra.mxu0 %v5796
    %v5798 = vand.u32 %v3147, 4294901760
    %5799 = vmatpush.msra.mxu0 %v5798
    %v5800 = vand.u32 %v5778, 4294901760
    %v5801 = vsub.f32 %v5778, %v5800
    %v5802 = vand.u32 %v5801, 4294901760
    %v5803 = vsub.f32 %v5801, %v5802
    %v5804 = vand.u32 %v5803, 4294901760
    %5805 = vmatmul.f32.gmra.mxu0 %v5804
    %v5806 = vpop.f32.mrf.mxu0
    %v5807 = vadd.f32 0.0, %v5806
    %5808 = vdwg.mxu0
    %5809 = vmatpush.msra.mxu0 0.0
    %5810 = vmatpush.msra.mxu0 0.0
    %5811 = vmatpush.msra.mxu0 0.0
    %5812 = vmatpush.msra.mxu0 0.0
    %5813 = vmatpush.msra.mxu0 0.0
    %5814 = vmatpush.msra.mxu0 0.0
    %5815 = vmatpush.msra.mxu0 0.0
    %5816 = vmatpush.msra.mxu0 0.0
    %5817 = vmatpush.msra.mxu0 0.0
    %5818 = vmatpush.msra.mxu0 0.0
    %5819 = vmatpush.msra.mxu0 0.0
    %5820 = vmatpush.msra.mxu0 0.0
    %v5821 = vand.u32 %v3150, 4294901760
    %v5822 = vsub.f32 %v3150, %v5821
    %v5823 = vand.u32 %v5822, 4294901760
    %v5824 = vsub.f32 %v5822, %v5823
    %v5825 = vand.u32 %v5824, 4294901760
    %5826 = vmatpush.msra.mxu0 %v5825
    %v5827 = vand.u32 %v3149, 4294901760
    %v5828 = vsub.f32 %v3149, %v5827
    %v5829 = vand.u32 %v5828, 4294901760
    %v5830 = vsub.f32 %v5828, %v5829
    %v5831 = vand.u32 %v5830, 4294901760
    %5832 = vmatpush.msra.mxu0 %v5831
    %v5833 = vand.u32 %v3148, 4294901760
    %v5834 = vsub.f32 %v3148, %v5833
    %v5835 = vand.u32 %v5834, 4294901760
    %v5836 = vsub.f32 %v5834, %v5835
    %v5837 = vand.u32 %v5836, 4294901760
    %5838 = vmatpush.msra.mxu0 %v5837
    %v5839 = vand.u32 %v3147, 4294901760
    %v5840 = vsub.f32 %v3147, %v5839
    %v5841 = vand.u32 %v5840, 4294901760
    %v5842 = vsub.f32 %v5840, %v5841
    %v5843 = vand.u32 %v5842, 4294901760
    %5844 = vmatpush.msra.mxu0 %v5843
    %v5845 = vand.u32 %v5778, 4294901760
    %5846 = vmatmul.f32.gmra.mxu0 %v5845
    %v5847 = vpop.f32.mrf.mxu0
    %v5848 = vadd.f32 %v5807, %v5847
    %5849 = vdwg.mxu0
    %5850 = vmatpush.msra.mxu0 0.0
    %5851 = vmatpush.msra.mxu0 0.0
    %5852 = vmatpush.msra.mxu0 0.0
    %5853 = vmatpush.msra.mxu0 0.0
    %5854 = vmatpush.msra.mxu0 0.0
    %5855 = vmatpush.msra.mxu0 0.0
    %5856 = vmatpush.msra.mxu0 0.0
    %5857 = vmatpush.msra.mxu0 0.0
    %5858 = vmatpush.msra.mxu0 0.0
    %5859 = vmatpush.msra.mxu0 0.0
    %5860 = vmatpush.msra.mxu0 0.0
    %5861 = vmatpush.msra.mxu0 0.0
    %v5862 = vand.u32 %v3150, 4294901760
    %v5863 = vsub.f32 %v3150, %v5862
    %5864 = vmatpush.msra.mxu0 %v5863
    %v5865 = vand.u32 %v3149, 4294901760
    %v5866 = vsub.f32 %v3149, %v5865
    %5867 = vmatpush.msra.mxu0 %v5866
    %v5868 = vand.u32 %v3148, 4294901760
    %v5869 = vsub.f32 %v3148, %v5868
    %5870 = vmatpush.msra.mxu0 %v5869
    %v5871 = vand.u32 %v3147, 4294901760
    %v5872 = vsub.f32 %v3147, %v5871
    %5873 = vmatpush.msra.mxu0 %v5872
    %v5874 = vand.u32 %v5778, 4294901760
    %v5875 = vsub.f32 %v5778, %v5874
    %5876 = vmatmul.f32.gmra.mxu0 %v5875
    %v5877 = vpop.f32.mrf.mxu0
    %v5878 = vadd.f32 %v5848, %v5877
    %5879 = vdwg.mxu0
    %5880 = vmatpush.msra.mxu0 0.0
    %5881 = vmatpush.msra.mxu0 0.0
    %5882 = vmatpush.msra.mxu0 0.0
    %5883 = vmatpush.msra.mxu0 0.0
    %5884 = vmatpush.msra.mxu0 0.0
    %5885 = vmatpush.msra.mxu0 0.0
    %5886 = vmatpush.msra.mxu0 0.0
    %5887 = vmatpush.msra.mxu0 0.0
    %5888 = vmatpush.msra.mxu0 0.0
    %5889 = vmatpush.msra.mxu0 0.0
    %5890 = vmatpush.msra.mxu0 0.0
    %5891 = vmatpush.msra.mxu0 0.0
    %v5892 = vand.u32 %v3150, 4294901760
    %5893 = vmatpush.msra.mxu0 %v5892
    %v5894 = vand.u32 %v3149, 4294901760
    %5895 = vmatpush.msra.mxu0 %v5894
    %v5896 = vand.u32 %v3148, 4294901760
    %5897 = vmatpush.msra.mxu0 %v5896
    %v5898 = vand.u32 %v3147, 4294901760
    %5899 = vmatpush.msra.mxu0 %v5898
    %v5900 = vand.u32 %v5778, 4294901760
    %v5901 = vsub.f32 %v5778, %v5900
    %v5902 = vand.u32 %v5901, 4294901760
    %5903 = vmatmul.f32.gmra.mxu0 %v5902
    %v5904 = vpop.f32.mrf.mxu0
    %v5905 = vadd.f32 %v5878, %v5904
    %5906 = vdwg.mxu0
    %5907 = vmatpush.msra.mxu0 0.0
    %5908 = vmatpush.msra.mxu0 0.0
    %5909 = vmatpush.msra.mxu0 0.0
    %5910 = vmatpush.msra.mxu0 0.0
    %5911 = vmatpush.msra.mxu0 0.0
    %5912 = vmatpush.msra.mxu0 0.0
    %5913 = vmatpush.msra.mxu0 0.0
    %5914 = vmatpush.msra.mxu0 0.0
    %5915 = vmatpush.msra.mxu0 0.0
    %5916 = vmatpush.msra.mxu0 0.0
    %5917 = vmatpush.msra.mxu0 0.0
    %5918 = vmatpush.msra.mxu0 0.0
    %v5919 = vand.u32 %v3150, 4294901760
    %v5920 = vsub.f32 %v3150, %v5919
    %v5921 = vand.u32 %v5920, 4294901760
    %5922 = vmatpush.msra.mxu0 %v5921
    %v5923 = vand.u32 %v3149, 4294901760
    %v5924 = vsub.f32 %v3149, %v5923
    %v5925 = vand.u32 %v5924, 4294901760
    %5926 = vmatpush.msra.mxu0 %v5925
    %v5927 = vand.u32 %v3148, 4294901760
    %v5928 = vsub.f32 %v3148, %v5927
    %v5929 = vand.u32 %v5928, 4294901760
    %5930 = vmatpush.msra.mxu0 %v5929
    %v5931 = vand.u32 %v3147, 4294901760
    %v5932 = vsub.f32 %v3147, %v5931
    %v5933 = vand.u32 %v5932, 4294901760
    %5934 = vmatpush.msra.mxu0 %v5933
    %v5935 = vand.u32 %v5778, 4294901760
    %5936 = vmatmul.f32.gmra.mxu0 %v5935
    %v5937 = vpop.f32.mrf.mxu0
    %v5938 = vadd.f32 %v5905, %v5937
    %5939 = vdwg.mxu0
    %5940 = vmatpush.msra.mxu0 0.0
    %5941 = vmatpush.msra.mxu0 0.0
    %5942 = vmatpush.msra.mxu0 0.0
    %5943 = vmatpush.msra.mxu0 0.0
    %5944 = vmatpush.msra.mxu0 0.0
    %5945 = vmatpush.msra.mxu0 0.0
    %5946 = vmatpush.msra.mxu0 0.0
    %5947 = vmatpush.msra.mxu0 0.0
    %5948 = vmatpush.msra.mxu0 0.0
    %5949 = vmatpush.msra.mxu0 0.0
    %5950 = vmatpush.msra.mxu0 0.0
    %5951 = vmatpush.msra.mxu0 0.0
    %v5952 = vand.u32 %v3150, 4294901760
    %5953 = vmatpush.msra.mxu0 %v5952
    %v5954 = vand.u32 %v3149, 4294901760
    %5955 = vmatpush.msra.mxu0 %v5954
    %v5956 = vand.u32 %v3148, 4294901760
    %5957 = vmatpush.msra.mxu0 %v5956
    %v5958 = vand.u32 %v3147, 4294901760
    %5959 = vmatpush.msra.mxu0 %v5958
    %v5960 = vand.u32 %v5778, 4294901760
    %5961 = vmatmul.f32.gmra.mxu0 %v5960
    %v5962 = vpop.f32.mrf.mxu0
    %v5963 = vadd.f32 %v5938, %v5962
    %5964 = vdwg.mxu0
    %v5965 = vadd.f32 %v4263, %v5963
    %v5966 = vxor.u32 %v5965, 2147483648
    %v5967 = vmul.f32 %v5966, 1.442695
    %v5968 = vpow.pop %v5967
    %v5969 = vadd.f32 %v5968, 1.0
    %v5970 = vrcp.pop %v5969
    %v5971 = vmul.f32 %v5969, %v5970
    %v5972 = vsub.f32 1.0, %v5971
    %v5973 = vmul.f32 %v5970, %v5972
    %v5974 = vadd.f32 %v5970, %v5973
    %vm5975 = vweird.f32 %v5969
    %vm5976 = vweird.f32 %v5970
    %vm5977 = vmor %vm5975, %vm5976
    %v5978 = vsel %vm5977, %v5970, %v5974
    %v5979 = vand.u32 2147483647, %v5969
    %vm5980 = vcmp.eq.f32.partialorder %v5979, 8.507059e+37
    %v5981 = vand.u32 %v5969, 2147483648
    %v5982 = vor.u32 1.1754944e-38, %v5981
    %v5983 = vsel %vm5980, %v5982, %v5978
    %v5984 = vmul.f32 1.0, %v5983
    %v5985 = vtanh.pop %v5965
    %v5986 = vmul.f32 %v5984, %v5768
    %5988 = vrot.lane.b32.xlu0 %v5985, 64
    %v5989 = vpop.permute.xlu0 %5988
    %v5991 = vmul.f32 %v5984, %v5989
    %5993 = vrot.lane.b32.xlu0 %v5991, 32
    %v5994 = vpop.permute.xlu0 %5993
    %v5996 = vadd.f32 %v5986, %v5994
    %v5997 = vtanh.pop %v5996
    %5999 = vrot.lane.b32.xlu0 %v5997, 64
    %v6000 = vpop.permute.xlu0 %5999
    %v6002 = vmul.f32 %v5984, %v6000
    %6004 = vrot.lane.b32.xlu0 %v6002, 32
    %v6005 = vpop.permute.xlu0 %6004
    %v6006 = vsel %vm1320, %v6005, 0
    %6008 = vmatpush.msra.mxu0 0.0
    %6009 = vmatpush.msra.mxu0 0.0
    %6010 = vmatpush.msra.mxu0 0.0
    %6011 = vmatpush.msra.mxu0 0.0
    %6012 = vmatpush.msra.mxu0 0.0
    %6013 = vmatpush.msra.mxu0 0.0
    %6014 = vmatpush.msra.mxu0 0.0
    %6015 = vmatpush.msra.mxu0 0.0
    %6016 = vmatpush.msra.mxu0 0.0
    %6017 = vmatpush.msra.mxu0 0.0
    %6018 = vmatpush.msra.mxu0 0.0
    %6019 = vmatpush.msra.mxu0 0.0
    %v6020 = vand.u32 %v3150, 4294901760
    %6021 = vmatpush.msra.mxu0 %v6020
    %v6022 = vand.u32 %v3149, 4294901760
    %6023 = vmatpush.msra.mxu0 %v6022
    %v6024 = vand.u32 %v3148, 4294901760
    %6025 = vmatpush.msra.mxu0 %v6024
    %v6026 = vand.u32 %v3147, 4294901760
    %6027 = vmatpush.msra.mxu0 %v6026
    %v6028 = vand.u32 %v6006, 4294901760
    %v6029 = vsub.f32 %v6006, %v6028
    %v6030 = vand.u32 %v6029, 4294901760
    %v6031 = vsub.f32 %v6029, %v6030
    %v6032 = vand.u32 %v6031, 4294901760
    %6033 = vmatmul.f32.gmra.mxu0 %v6032
    %v6034 = vpop.f32.mrf.mxu0
    %v6035 = vadd.f32 0.0, %v6034
    %6036 = vdwg.mxu0
    %6037 = vmatpush.msra.mxu0 0.0
    %6038 = vmatpush.msra.mxu0 0.0
    %6039 = vmatpush.msra.mxu0 0.0
    %6040 = vmatpush.msra.mxu0 0.0
    %6041 = vmatpush.msra.mxu0 0.0
    %6042 = vmatpush.msra.mxu0 0.0
    %6043 = vmatpush.msra.mxu0 0.0
    %6044 = vmatpush.msra.mxu0 0.0
    %6045 = vmatpush.msra.mxu0 0.0
    %6046 = vmatpush.msra.mxu0 0.0
    %6047 = vmatpush.msra.mxu0 0.0
    %6048 = vmatpush.msra.mxu0 0.0
    %v6049 = vand.u32 %v3150, 4294901760
    %v6050 = vsub.f32 %v3150, %v6049
    %v6051 = vand.u32 %v6050, 4294901760
    %v6052 = vsub.f32 %v6050, %v6051
    %v6053 = vand.u32 %v6052, 4294901760
    %6054 = vmatpush.msra.mxu0 %v6053
    %v6055 = vand.u32 %v3149, 4294901760
    %v6056 = vsub.f32 %v3149, %v6055
    %v6057 = vand.u32 %v6056, 4294901760
    %v6058 = vsub.f32 %v6056, %v6057
    %v6059 = vand.u32 %v6058, 4294901760
    %6060 = vmatpush.msra.mxu0 %v6059
    %v6061 = vand.u32 %v3148, 4294901760
    %v6062 = vsub.f32 %v3148, %v6061
    %v6063 = vand.u32 %v6062, 4294901760
    %v6064 = vsub.f32 %v6062, %v6063
    %v6065 = vand.u32 %v6064, 4294901760
    %6066 = vmatpush.msra.mxu0 %v6065
    %v6067 = vand.u32 %v3147, 4294901760
    %v6068 = vsub.f32 %v3147, %v6067
    %v6069 = vand.u32 %v6068, 4294901760
    %v6070 = vsub.f32 %v6068, %v6069
    %v6071 = vand.u32 %v6070, 4294901760
    %6072 = vmatpush.msra.mxu0 %v6071
    %v6073 = vand.u32 %v6006, 4294901760
    %6074 = vmatmul.f32.gmra.mxu0 %v6073
    %v6075 = vpop.f32.mrf.mxu0
    %v6076 = vadd.f32 %v6035, %v6075
    %6077 = vdwg.mxu0
    %6078 = vmatpush.msra.mxu0 0.0
    %6079 = vmatpush.msra.mxu0 0.0
    %6080 = vmatpush.msra.mxu0 0.0
    %6081 = vmatpush.msra.mxu0 0.0
    %6082 = vmatpush.msra.mxu0 0.0
    %6083 = vmatpush.msra.mxu0 0.0
    %6084 = vmatpush.msra.mxu0 0.0
    %6085 = vmatpush.msra.mxu0 0.0
    %6086 = vmatpush.msra.mxu0 0.0
    %6087 = vmatpush.msra.mxu0 0.0
    %6088 = vmatpush.msra.mxu0 0.0
    %6089 = vmatpush.msra.mxu0 0.0
    %v6090 = vand.u32 %v3150, 4294901760
    %v6091 = vsub.f32 %v3150, %v6090
    %6092 = vmatpush.msra.mxu0 %v6091
    %v6093 = vand.u32 %v3149, 4294901760
    %v6094 = vsub.f32 %v3149, %v6093
    %6095 = vmatpush.msra.mxu0 %v6094
    %v6096 = vand.u32 %v3148, 4294901760
    %v6097 = vsub.f32 %v3148, %v6096
    %6098 = vmatpush.msra.mxu0 %v6097
    %v6099 = vand.u32 %v3147, 4294901760
    %v6100 = vsub.f32 %v3147, %v6099
    %6101 = vmatpush.msra.mxu0 %v6100
    %v6102 = vand.u32 %v6006, 4294901760
    %v6103 = vsub.f32 %v6006, %v6102
    %6104 = vmatmul.f32.gmra.mxu0 %v6103
    %v6105 = vpop.f32.mrf.mxu0
    %v6106 = vadd.f32 %v6076, %v6105
    %6107 = vdwg.mxu0
    %6108 = vmatpush.msra.mxu0 0.0
    %6109 = vmatpush.msra.mxu0 0.0
    %6110 = vmatpush.msra.mxu0 0.0
    %6111 = vmatpush.msra.mxu0 0.0
    %6112 = vmatpush.msra.mxu0 0.0
    %6113 = vmatpush.msra.mxu0 0.0
    %6114 = vmatpush.msra.mxu0 0.0
    %6115 = vmatpush.msra.mxu0 0.0
    %6116 = vmatpush.msra.mxu0 0.0
    %6117 = vmatpush.msra.mxu0 0.0
    %6118 = vmatpush.msra.mxu0 0.0
    %6119 = vmatpush.msra.mxu0 0.0
    %v6120 = vand.u32 %v3150, 4294901760
    %6121 = vmatpush.msra.mxu0 %v6120
    %v6122 = vand.u32 %v3149, 4294901760
    %6123 = vmatpush.msra.mxu0 %v6122
    %v6124 = vand.u32 %v3148, 4294901760
    %6125 = vmatpush.msra.mxu0 %v6124
    %v6126 = vand.u32 %v3147, 4294901760
    %6127 = vmatpush.msra.mxu0 %v6126
    %v6128 = vand.u32 %v6006, 4294901760
    %v6129 = vsub.f32 %v6006, %v6128
    %v6130 = vand.u32 %v6129, 4294901760
    %6131 = vmatmul.f32.gmra.mxu0 %v6130
    %v6132 = vpop.f32.mrf.mxu0
    %v6133 = vadd.f32 %v6106, %v6132
    %6134 = vdwg.mxu0
    %6135 = vmatpush.msra.mxu0 0.0
    %6136 = vmatpush.msra.mxu0 0.0
    %6137 = vmatpush.msra.mxu0 0.0
    %6138 = vmatpush.msra.mxu0 0.0
    %6139 = vmatpush.msra.mxu0 0.0
    %6140 = vmatpush.msra.mxu0 0.0
    %6141 = vmatpush.msra.mxu0 0.0
    %6142 = vmatpush.msra.mxu0 0.0
    %6143 = vmatpush.msra.mxu0 0.0
    %6144 = vmatpush.msra.mxu0 0.0
    %6145 = vmatpush.msra.mxu0 0.0
    %6146 = vmatpush.msra.mxu0 0.0
    %v6147 = vand.u32 %v3150, 4294901760
    %v6148 = vsub.f32 %v3150, %v6147
    %v6149 = vand.u32 %v6148, 4294901760
    %6150 = vmatpush.msra.mxu0 %v6149
    %v6151 = vand.u32 %v3149, 4294901760
    %v6152 = vsub.f32 %v3149, %v6151
    %v6153 = vand.u32 %v6152, 4294901760
    %6154 = vmatpush.msra.mxu0 %v6153
    %v6155 = vand.u32 %v3148, 4294901760
    %v6156 = vsub.f32 %v3148, %v6155
    %v6157 = vand.u32 %v6156, 4294901760
    %6158 = vmatpush.msra.mxu0 %v6157
    %v6159 = vand.u32 %v3147, 4294901760
    %v6160 = vsub.f32 %v3147, %v6159
    %v6161 = vand.u32 %v6160, 4294901760
    %6162 = vmatpush.msra.mxu0 %v6161
    %v6163 = vand.u32 %v6006, 4294901760
    %6164 = vmatmul.f32.gmra.mxu0 %v6163
    %v6165 = vpop.f32.mrf.mxu0
    %v6166 = vadd.f32 %v6133, %v6165
    %6167 = vdwg.mxu0
    %6168 = vmatpush.msra.mxu0 0.0
    %6169 = vmatpush.msra.mxu0 0.0
    %6170 = vmatpush.msra.mxu0 0.0
    %6171 = vmatpush.msra.mxu0 0.0
    %6172 = vmatpush.msra.mxu0 0.0
    %6173 = vmatpush.msra.mxu0 0.0
    %6174 = vmatpush.msra.mxu0 0.0
    %6175 = vmatpush.msra.mxu0 0.0
    %6176 = vmatpush.msra.mxu0 0.0
    %6177 = vmatpush.msra.mxu0 0.0
    %6178 = vmatpush.msra.mxu0 0.0
    %6179 = vmatpush.msra.mxu0 0.0
    %v6180 = vand.u32 %v3150, 4294901760
    %6181 = vmatpush.msra.mxu0 %v6180
    %v6182 = vand.u32 %v3149, 4294901760
    %6183 = vmatpush.msra.mxu0 %v6182
    %v6184 = vand.u32 %v3148, 4294901760
    %6185 = vmatpush.msra.mxu0 %v6184
    %v6186 = vand.u32 %v3147, 4294901760
    %6187 = vmatpush.msra.mxu0 %v6186
    %v6188 = vand.u32 %v6006, 4294901760
    %6189 = vmatmul.f32.gmra.mxu0 %v6188
    %v6190 = vpop.f32.mrf.mxu0
    %v6191 = vadd.f32 %v6166, %v6190
    %6192 = vdwg.mxu0
    %v6193 = vadd.f32 %v4448, %v6191
    %v6194 = vxor.u32 %v6193, 2147483648
    %v6195 = vmul.f32 %v6194, 1.442695
    %v6196 = vpow.pop %v6195
    %v6197 = vadd.f32 %v6196, 1.0
    %v6198 = vrcp.pop %v6197
    %v6199 = vmul.f32 %v6197, %v6198
    %v6200 = vsub.f32 1.0, %v6199
    %v6201 = vmul.f32 %v6198, %v6200
    %v6202 = vadd.f32 %v6198, %v6201
    %vm6203 = vweird.f32 %v6197
    %vm6204 = vweird.f32 %v6198
    %vm6205 = vmor %vm6203, %vm6204
    %v6206 = vsel %vm6205, %v6198, %v6202
    %v6207 = vand.u32 2147483647, %v6197
    %vm6208 = vcmp.eq.f32.partialorder %v6207, 8.507059e+37
    %v6209 = vand.u32 %v6197, 2147483648
    %v6210 = vor.u32 1.1754944e-38, %v6209
    %v6211 = vsel %vm6208, %v6210, %v6206
    %v6212 = vmul.f32 1.0, %v6211
    %v6213 = vtanh.pop %v6193
    %v6214 = vmul.f32 %v6212, %v5996
    %6216 = vrot.lane.b32.xlu0 %v6213, 64
    %v6217 = vpop.permute.xlu0 %6216
    %v6219 = vmul.f32 %v6212, %v6217
    %6221 = vrot.lane.b32.xlu0 %v6219, 32
    %v6222 = vpop.permute.xlu0 %6221
    %v6224 = vadd.f32 %v6214, %v6222
    %v6225 = vtanh.pop %v6224
    %6227 = vrot.lane.b32.xlu0 %v6225, 64
    %v6228 = vpop.permute.xlu0 %6227
    %v6230 = vmul.f32 %v6212, %v6228
    %6232 = vrot.lane.b32.xlu0 %v6230, 32
    %v6233 = vpop.permute.xlu0 %6232
    %v6234 = vsel %vm1320, %v6233, 0
    %6236 = vmatpush.msra.mxu0 0.0
    %6237 = vmatpush.msra.mxu0 0.0
    %6238 = vmatpush.msra.mxu0 0.0
    %6239 = vmatpush.msra.mxu0 0.0
    %6240 = vmatpush.msra.mxu0 0.0
    %6241 = vmatpush.msra.mxu0 0.0
    %6242 = vmatpush.msra.mxu0 0.0
    %6243 = vmatpush.msra.mxu0 0.0
    %6244 = vmatpush.msra.mxu0 0.0
    %6245 = vmatpush.msra.mxu0 0.0
    %6246 = vmatpush.msra.mxu0 0.0
    %6247 = vmatpush.msra.mxu0 0.0
    %v6248 = vand.u32 %v3150, 4294901760
    %6249 = vmatpush.msra.mxu0 %v6248
    %v6250 = vand.u32 %v3149, 4294901760
    %6251 = vmatpush.msra.mxu0 %v6250
    %v6252 = vand.u32 %v3148, 4294901760
    %6253 = vmatpush.msra.mxu0 %v6252
    %v6254 = vand.u32 %v3147, 4294901760
    %6255 = vmatpush.msra.mxu0 %v6254
    %v6256 = vand.u32 %v6234, 4294901760
    %v6257 = vsub.f32 %v6234, %v6256
    %v6258 = vand.u32 %v6257, 4294901760
    %v6259 = vsub.f32 %v6257, %v6258
    %v6260 = vand.u32 %v6259, 4294901760
    %6261 = vmatmul.f32.gmra.mxu0 %v6260
    %v6262 = vpop.f32.mrf.mxu0
    %v6263 = vadd.f32 0.0, %v6262
    %6264 = vdwg.mxu0
    %6265 = vmatpush.msra.mxu0 0.0
    %6266 = vmatpush.msra.mxu0 0.0
    %6267 = vmatpush.msra.mxu0 0.0
    %6268 = vmatpush.msra.mxu0 0.0
    %6269 = vmatpush.msra.mxu0 0.0
    %6270 = vmatpush.msra.mxu0 0.0
    %6271 = vmatpush.msra.mxu0 0.0
    %6272 = vmatpush.msra.mxu0 0.0
    %6273 = vmatpush.msra.mxu0 0.0
    %6274 = vmatpush.msra.mxu0 0.0
    %6275 = vmatpush.msra.mxu0 0.0
    %6276 = vmatpush.msra.mxu0 0.0
    %v6277 = vand.u32 %v3150, 4294901760
    %v6278 = vsub.f32 %v3150, %v6277
    %v6279 = vand.u32 %v6278, 4294901760
    %v6280 = vsub.f32 %v6278, %v6279
    %v6281 = vand.u32 %v6280, 4294901760
    %6282 = vmatpush.msra.mxu0 %v6281
    %v6283 = vand.u32 %v3149, 4294901760
    %v6284 = vsub.f32 %v3149, %v6283
    %v6285 = vand.u32 %v6284, 4294901760
    %v6286 = vsub.f32 %v6284, %v6285
    %v6287 = vand.u32 %v6286, 4294901760
    %6288 = vmatpush.msra.mxu0 %v6287
    %v6289 = vand.u32 %v3148, 4294901760
    %v6290 = vsub.f32 %v3148, %v6289
    %v6291 = vand.u32 %v6290, 4294901760
    %v6292 = vsub.f32 %v6290, %v6291
    %v6293 = vand.u32 %v6292, 4294901760
    %6294 = vmatpush.msra.mxu0 %v6293
    %v6295 = vand.u32 %v3147, 4294901760
    %v6296 = vsub.f32 %v3147, %v6295
    %v6297 = vand.u32 %v6296, 4294901760
    %v6298 = vsub.f32 %v6296, %v6297
    %v6299 = vand.u32 %v6298, 4294901760
    %6300 = vmatpush.msra.mxu0 %v6299
    %v6301 = vand.u32 %v6234, 4294901760
    %6302 = vmatmul.f32.gmra.mxu0 %v6301
    %v6303 = vpop.f32.mrf.mxu0
    %v6304 = vadd.f32 %v6263, %v6303
    %6305 = vdwg.mxu0
    %6306 = vmatpush.msra.mxu0 0.0
    %6307 = vmatpush.msra.mxu0 0.0
    %6308 = vmatpush.msra.mxu0 0.0
    %6309 = vmatpush.msra.mxu0 0.0
    %6310 = vmatpush.msra.mxu0 0.0
    %6311 = vmatpush.msra.mxu0 0.0
    %6312 = vmatpush.msra.mxu0 0.0
    %6313 = vmatpush.msra.mxu0 0.0
    %6314 = vmatpush.msra.mxu0 0.0
    %6315 = vmatpush.msra.mxu0 0.0
    %6316 = vmatpush.msra.mxu0 0.0
    %6317 = vmatpush.msra.mxu0 0.0
    %v6318 = vand.u32 %v3150, 4294901760
    %v6319 = vsub.f32 %v3150, %v6318
    %6320 = vmatpush.msra.mxu0 %v6319
    %v6321 = vand.u32 %v3149, 4294901760
    %v6322 = vsub.f32 %v3149, %v6321
    %6323 = vmatpush.msra.mxu0 %v6322
    %v6324 = vand.u32 %v3148, 4294901760
    %v6325 = vsub.f32 %v3148, %v6324
    %6326 = vmatpush.msra.mxu0 %v6325
    %v6327 = vand.u32 %v3147, 4294901760
    %v6328 = vsub.f32 %v3147, %v6327
    %6329 = vmatpush.msra.mxu0 %v6328
    %v6330 = vand.u32 %v6234, 4294901760
    %v6331 = vsub.f32 %v6234, %v6330
    %6332 = vmatmul.f32.gmra.mxu0 %v6331
    %v6333 = vpop.f32.mrf.mxu0
    %v6334 = vadd.f32 %v6304, %v6333
    %6335 = vdwg.mxu0
    %6336 = vmatpush.msra.mxu0 0.0
    %6337 = vmatpush.msra.mxu0 0.0
    %6338 = vmatpush.msra.mxu0 0.0
    %6339 = vmatpush.msra.mxu0 0.0
    %6340 = vmatpush.msra.mxu0 0.0
    %6341 = vmatpush.msra.mxu0 0.0
    %6342 = vmatpush.msra.mxu0 0.0
    %6343 = vmatpush.msra.mxu0 0.0
    %6344 = vmatpush.msra.mxu0 0.0
    %6345 = vmatpush.msra.mxu0 0.0
    %6346 = vmatpush.msra.mxu0 0.0
    %6347 = vmatpush.msra.mxu0 0.0
    %v6348 = vand.u32 %v3150, 4294901760
    %6349 = vmatpush.msra.mxu0 %v6348
    %v6350 = vand.u32 %v3149, 4294901760
    %6351 = vmatpush.msra.mxu0 %v6350
    %v6352 = vand.u32 %v3148, 4294901760
    %6353 = vmatpush.msra.mxu0 %v6352
    %v6354 = vand.u32 %v3147, 4294901760
    %6355 = vmatpush.msra.mxu0 %v6354
    %v6356 = vand.u32 %v6234, 4294901760
    %v6357 = vsub.f32 %v6234, %v6356
    %v6358 = vand.u32 %v6357, 4294901760
    %6359 = vmatmul.f32.gmra.mxu0 %v6358
    %v6360 = vpop.f32.mrf.mxu0
    %v6361 = vadd.f32 %v6334, %v6360
    %6362 = vdwg.mxu0
    %6363 = vmatpush.msra.mxu0 0.0
    %6364 = vmatpush.msra.mxu0 0.0
    %6365 = vmatpush.msra.mxu0 0.0
    %6366 = vmatpush.msra.mxu0 0.0
    %6367 = vmatpush.msra.mxu0 0.0
    %6368 = vmatpush.msra.mxu0 0.0
    %6369 = vmatpush.msra.mxu0 0.0
    %6370 = vmatpush.msra.mxu0 0.0
    %6371 = vmatpush.msra.mxu0 0.0
    %6372 = vmatpush.msra.mxu0 0.0
    %6373 = vmatpush.msra.mxu0 0.0
    %6374 = vmatpush.msra.mxu0 0.0
    %v6375 = vand.u32 %v3150, 4294901760
    %v6376 = vsub.f32 %v3150, %v6375
    %v6377 = vand.u32 %v6376, 4294901760
    %6378 = vmatpush.msra.mxu0 %v6377
    %v6379 = vand.u32 %v3149, 4294901760
    %v6380 = vsub.f32 %v3149, %v6379
    %v6381 = vand.u32 %v6380, 4294901760
    %6382 = vmatpush.msra.mxu0 %v6381
    %v6383 = vand.u32 %v3148, 4294901760
    %v6384 = vsub.f32 %v3148, %v6383
    %v6385 = vand.u32 %v6384, 4294901760
    %6386 = vmatpush.msra.mxu0 %v6385
    %v6387 = vand.u32 %v3147, 4294901760
    %v6388 = vsub.f32 %v3147, %v6387
    %v6389 = vand.u32 %v6388, 4294901760
    %6390 = vmatpush.msra.mxu0 %v6389
    %v6391 = vand.u32 %v6234, 4294901760
    %6392 = vmatmul.f32.gmra.mxu0 %v6391
    %v6393 = vpop.f32.mrf.mxu0
    %v6394 = vadd.f32 %v6361, %v6393
    %6395 = vdwg.mxu0
    %6396 = vmatpush.msra.mxu0 0.0
    %6397 = vmatpush.msra.mxu0 0.0
    %6398 = vmatpush.msra.mxu0 0.0
    %6399 = vmatpush.msra.mxu0 0.0
    %6400 = vmatpush.msra.mxu0 0.0
    %6401 = vmatpush.msra.mxu0 0.0
    %6402 = vmatpush.msra.mxu0 0.0
    %6403 = vmatpush.msra.mxu0 0.0
    %6404 = vmatpush.msra.mxu0 0.0
    %6405 = vmatpush.msra.mxu0 0.0
    %6406 = vmatpush.msra.mxu0 0.0
    %6407 = vmatpush.msra.mxu0 0.0
    %v6408 = vand.u32 %v3150, 4294901760
    %6409 = vmatpush.msra.mxu0 %v6408
    %v6410 = vand.u32 %v3149, 4294901760
    %6411 = vmatpush.msra.mxu0 %v6410
    %v6412 = vand.u32 %v3148, 4294901760
    %6413 = vmatpush.msra.mxu0 %v6412
    %v6414 = vand.u32 %v3147, 4294901760
    %6415 = vmatpush.msra.mxu0 %v6414
    %v6416 = vand.u32 %v6234, 4294901760
    %6417 = vmatmul.f32.gmra.mxu0 %v6416
    %v6418 = vpop.f32.mrf.mxu0
    %v6419 = vadd.f32 %v6394, %v6418
    %6420 = vdwg.mxu0
    %v6421 = vadd.f32 %v4638, %v6419
    %v6422 = vxor.u32 %v6421, 2147483648
    %v6423 = vmul.f32 %v6422, 1.442695
    %v6424 = vpow.pop %v6423
    %v6425 = vadd.f32 %v6424, 1.0
    %v6426 = vrcp.pop %v6425
    %v6427 = vmul.f32 %v6425, %v6426
    %v6428 = vsub.f32 1.0, %v6427
    %v6429 = vmul.f32 %v6426, %v6428
    %v6430 = vadd.f32 %v6426, %v6429
    %vm6431 = vweird.f32 %v6425
    %vm6432 = vweird.f32 %v6426
    %vm6433 = vmor %vm6431, %vm6432
    %v6434 = vsel %vm6433, %v6426, %v6430
    %v6435 = vand.u32 2147483647, %v6425
    %vm6436 = vcmp.eq.f32.partialorder %v6435, 8.507059e+37
    %v6437 = vand.u32 %v6425, 2147483648
    %v6438 = vor.u32 1.1754944e-38, %v6437
    %v6439 = vsel %vm6436, %v6438, %v6434
    %v6440 = vmul.f32 1.0, %v6439
    %v6441 = vtanh.pop %v6421
    %v6442 = vmul.f32 %v6440, %v6224
    %6444 = vrot.lane.b32.xlu0 %v6441, 64
    %v6445 = vpop.permute.xlu0 %6444
    %v6447 = vmul.f32 %v6440, %v6445
    %6449 = vrot.lane.b32.xlu0 %v6447, 32
    %v6450 = vpop.permute.xlu0 %6449
    %v6452 = vadd.f32 %v6442, %v6450
    %v6453 = vtanh.pop %v6452
    %6455 = vrot.lane.b32.xlu0 %v6453, 64
    %v6456 = vpop.permute.xlu0 %6455
    %v6458 = vmul.f32 %v6440, %v6456
    %6460 = vrot.lane.b32.xlu0 %v6458, 32
    %v6461 = vpop.permute.xlu0 %6460
    %vm6463 = vcmask 254976
    %6464 = vst.msk [vmem:[#allocation9] sm:$0x3] %vm6463, %v6461
    %v6465 = vld [vmem:[#allocation7] sm:$0xff]
    %v6466 = vld [vmem:[#allocation7 + $0x8] sm:$0xff]
    %v6467 = vld [vmem:[#allocation7 + $0x10] sm:$0xff]
    %v6468 = vld [vmem:[#allocation7 + $0x18] sm:$0xff]
    %v6469 = vld [vmem:[%s8] sm:$0x1]
    %v6470 = vld [vmem:[%s9] sm:$0xff]
    %v6471 = vld [vmem:[%s9 + $0x8] sm:$0xff]
    %v6472 = vld [vmem:[%s9 + $0x10] sm:$0xff]
    %v6473 = vld [vmem:[%s9 + $0x18] sm:$0xff]
    %v6474 = vld [vmem:[%s10] sm:$0x1]
    %v6475 = vld [vmem:[%s11] sm:$0xff]
    %v6476 = vld [vmem:[%s11 + $0x8] sm:$0xff]
    %v6477 = vld [vmem:[%s12] sm:$0x1]
    %v6479 = vperm.slane %v6469, 0
    %v6481 = vsel %vm1320, %v6461, 0
    %6483 = vmatpush.msra.mxu0 0.0
    %6484 = vmatpush.msra.mxu0 0.0
    %6485 = vmatpush.msra.mxu0 0.0
    %6486 = vmatpush.msra.mxu0 0.0
    %6487 = vmatpush.msra.mxu0 0.0
    %6488 = vmatpush.msra.mxu0 0.0
    %6489 = vmatpush.msra.mxu0 0.0
    %6490 = vmatpush.msra.mxu0 0.0
    %6491 = vmatpush.msra.mxu0 0.0
    %6492 = vmatpush.msra.mxu0 0.0
    %6493 = vmatpush.msra.mxu0 0.0
    %6494 = vmatpush.msra.mxu0 0.0
    %v6495 = vand.u32 %v6468, 4294901760
    %6496 = vmatpush.msra.mxu0 %v6495
    %v6497 = vand.u32 %v6467, 4294901760
    %6498 = vmatpush.msra.mxu0 %v6497
    %v6499 = vand.u32 %v6466, 4294901760
    %6500 = vmatpush.msra.mxu0 %v6499
    %v6501 = vand.u32 %v6465, 4294901760
    %6502 = vmatpush.msra.mxu0 %v6501
    %v6503 = vand.u32 %v6481, 4294901760
    %v6504 = vsub.f32 %v6481, %v6503
    %v6505 = vand.u32 %v6504, 4294901760
    %v6506 = vsub.f32 %v6504, %v6505
    %v6507 = vand.u32 %v6506, 4294901760
    %6508 = vmatmul.f32.gmra.mxu0 %v6507
    %v6509 = vpop.f32.mrf.mxu0
    %v6510 = vadd.f32 %v6479, %v6509
    %6511 = vdwg.mxu0
    %6512 = vmatpush.msra.mxu0 0.0
    %6513 = vmatpush.msra.mxu0 0.0
    %6514 = vmatpush.msra.mxu0 0.0
    %6515 = vmatpush.msra.mxu0 0.0
    %6516 = vmatpush.msra.mxu0 0.0
    %6517 = vmatpush.msra.mxu0 0.0
    %6518 = vmatpush.msra.mxu0 0.0
    %6519 = vmatpush.msra.mxu0 0.0
    %6520 = vmatpush.msra.mxu0 0.0
    %6521 = vmatpush.msra.mxu0 0.0
    %6522 = vmatpush.msra.mxu0 0.0
    %6523 = vmatpush.msra.mxu0 0.0
    %v6524 = vand.u32 %v6468, 4294901760
    %v6525 = vsub.f32 %v6468, %v6524
    %v6526 = vand.u32 %v6525, 4294901760
    %v6527 = vsub.f32 %v6525, %v6526
    %v6528 = vand.u32 %v6527, 4294901760
    %6529 = vmatpush.msra.mxu0 %v6528
    %v6530 = vand.u32 %v6467, 4294901760
    %v6531 = vsub.f32 %v6467, %v6530
    %v6532 = vand.u32 %v6531, 4294901760
    %v6533 = vsub.f32 %v6531, %v6532
    %v6534 = vand.u32 %v6533, 4294901760
    %6535 = vmatpush.msra.mxu0 %v6534
    %v6536 = vand.u32 %v6466, 4294901760
    %v6537 = vsub.f32 %v6466, %v6536
    %v6538 = vand.u32 %v6537, 4294901760
    %v6539 = vsub.f32 %v6537, %v6538
    %v6540 = vand.u32 %v6539, 4294901760
    %6541 = vmatpush.msra.mxu0 %v6540
    %v6542 = vand.u32 %v6465, 4294901760
    %v6543 = vsub.f32 %v6465, %v6542
    %v6544 = vand.u32 %v6543, 4294901760
    %v6545 = vsub.f32 %v6543, %v6544
    %v6546 = vand.u32 %v6545, 4294901760
    %6547 = vmatpush.msra.mxu0 %v6546
    %v6548 = vand.u32 %v6481, 4294901760
    %6549 = vmatmul.f32.gmra.mxu0 %v6548
    %v6550 = vpop.f32.mrf.mxu0
    %v6551 = vadd.f32 %v6510, %v6550
    %6552 = vdwg.mxu0
    %6553 = vmatpush.msra.mxu0 0.0
    %6554 = vmatpush.msra.mxu0 0.0
    %6555 = vmatpush.msra.mxu0 0.0
    %6556 = vmatpush.msra.mxu0 0.0
    %6557 = vmatpush.msra.mxu0 0.0
    %6558 = vmatpush.msra.mxu0 0.0
    %6559 = vmatpush.msra.mxu0 0.0
    %6560 = vmatpush.msra.mxu0 0.0
    %6561 = vmatpush.msra.mxu0 0.0
    %6562 = vmatpush.msra.mxu0 0.0
    %6563 = vmatpush.msra.mxu0 0.0
    %6564 = vmatpush.msra.mxu0 0.0
    %v6565 = vand.u32 %v6468, 4294901760
    %v6566 = vsub.f32 %v6468, %v6565
    %6567 = vmatpush.msra.mxu0 %v6566
    %v6568 = vand.u32 %v6467, 4294901760
    %v6569 = vsub.f32 %v6467, %v6568
    %6570 = vmatpush.msra.mxu0 %v6569
    %v6571 = vand.u32 %v6466, 4294901760
    %v6572 = vsub.f32 %v6466, %v6571
    %6573 = vmatpush.msra.mxu0 %v6572
    %v6574 = vand.u32 %v6465, 4294901760
    %v6575 = vsub.f32 %v6465, %v6574
    %6576 = vmatpush.msra.mxu0 %v6575
    %v6577 = vand.u32 %v6481, 4294901760
    %v6578 = vsub.f32 %v6481, %v6577
    %6579 = vmatmul.f32.gmra.mxu0 %v6578
    %v6580 = vpop.f32.mrf.mxu0
    %v6581 = vadd.f32 %v6551, %v6580
    %6582 = vdwg.mxu0
    %6583 = vmatpush.msra.mxu0 0.0
    %6584 = vmatpush.msra.mxu0 0.0
    %6585 = vmatpush.msra.mxu0 0.0
    %6586 = vmatpush.msra.mxu0 0.0
    %6587 = vmatpush.msra.mxu0 0.0
    %6588 = vmatpush.msra.mxu0 0.0
    %6589 = vmatpush.msra.mxu0 0.0
    %6590 = vmatpush.msra.mxu0 0.0
    %6591 = vmatpush.msra.mxu0 0.0
    %6592 = vmatpush.msra.mxu0 0.0
    %6593 = vmatpush.msra.mxu0 0.0
    %6594 = vmatpush.msra.mxu0 0.0
    %v6595 = vand.u32 %v6468, 4294901760
    %6596 = vmatpush.msra.mxu0 %v6595
    %v6597 = vand.u32 %v6467, 4294901760
    %6598 = vmatpush.msra.mxu0 %v6597
    %v6599 = vand.u32 %v6466, 4294901760
    %6600 = vmatpush.msra.mxu0 %v6599
    %v6601 = vand.u32 %v6465, 4294901760
    %6602 = vmatpush.msra.mxu0 %v6601
    %v6603 = vand.u32 %v6481, 4294901760
    %v6604 = vsub.f32 %v6481, %v6603
    %v6605 = vand.u32 %v6604, 4294901760
    %6606 = vmatmul.f32.gmra.mxu0 %v6605
    %v6607 = vpop.f32.mrf.mxu0
    %v6608 = vadd.f32 %v6581, %v6607
    %6609 = vdwg.mxu0
    %6610 = vmatpush.msra.mxu0 0.0
    %6611 = vmatpush.msra.mxu0 0.0
    %6612 = vmatpush.msra.mxu0 0.0
    %6613 = vmatpush.msra.mxu0 0.0
    %6614 = vmatpush.msra.mxu0 0.0
    %6615 = vmatpush.msra.mxu0 0.0
    %6616 = vmatpush.msra.mxu0 0.0
    %6617 = vmatpush.msra.mxu0 0.0
    %6618 = vmatpush.msra.mxu0 0.0
    %6619 = vmatpush.msra.mxu0 0.0
    %6620 = vmatpush.msra.mxu0 0.0
    %6621 = vmatpush.msra.mxu0 0.0
    %v6622 = vand.u32 %v6468, 4294901760
    %v6623 = vsub.f32 %v6468, %v6622
    %v6624 = vand.u32 %v6623, 4294901760
    %6625 = vmatpush.msra.mxu0 %v6624
    %v6626 = vand.u32 %v6467, 4294901760
    %v6627 = vsub.f32 %v6467, %v6626
    %v6628 = vand.u32 %v6627, 4294901760
    %6629 = vmatpush.msra.mxu0 %v6628
    %v6630 = vand.u32 %v6466, 4294901760
    %v6631 = vsub.f32 %v6466, %v6630
    %v6632 = vand.u32 %v6631, 4294901760
    %6633 = vmatpush.msra.mxu0 %v6632
    %v6634 = vand.u32 %v6465, 4294901760
    %v6635 = vsub.f32 %v6465, %v6634
    %v6636 = vand.u32 %v6635, 4294901760
    %6637 = vmatpush.msra.mxu0 %v6636
    %v6638 = vand.u32 %v6481, 4294901760
    %6639 = vmatmul.f32.gmra.mxu0 %v6638
    %v6640 = vpop.f32.mrf.mxu0
    %v6641 = vadd.f32 %v6608, %v6640
    %6642 = vdwg.mxu0
    %6643 = vmatpush.msra.mxu0 0.0
    %6644 = vmatpush.msra.mxu0 0.0
    %6645 = vmatpush.msra.mxu0 0.0
    %6646 = vmatpush.msra.mxu0 0.0
    %6647 = vmatpush.msra.mxu0 0.0
    %6648 = vmatpush.msra.mxu0 0.0
    %6649 = vmatpush.msra.mxu0 0.0
    %6650 = vmatpush.msra.mxu0 0.0
    %6651 = vmatpush.msra.mxu0 0.0
    %6652 = vmatpush.msra.mxu0 0.0
    %6653 = vmatpush.msra.mxu0 0.0
    %6654 = vmatpush.msra.mxu0 0.0
    %v6655 = vand.u32 %v6468, 4294901760
    %6656 = vmatpush.msra.mxu0 %v6655
    %v6657 = vand.u32 %v6467, 4294901760
    %6658 = vmatpush.msra.mxu0 %v6657
    %v6659 = vand.u32 %v6466, 4294901760
    %6660 = vmatpush.msra.mxu0 %v6659
    %v6661 = vand.u32 %v6465, 4294901760
    %6662 = vmatpush.msra.mxu0 %v6661
    %v6663 = vand.u32 %v6481, 4294901760
    %6664 = vmatmul.f32.gmra.mxu0 %v6663
    %v6665 = vpop.f32.mrf.mxu0
    %v6666 = vadd.f32 %v6641, %v6665
    %6667 = vdwg.mxu0
    %v6668 = vmax.f32 %v6666, 0.0
    %v6670 = vperm.slane %v6474, 0
    %v6673 = vsel %vm1320, %v6668, 0
    %6675 = vmatpush.msra.mxu0 0.0
    %6676 = vmatpush.msra.mxu0 0.0
    %6677 = vmatpush.msra.mxu0 0.0
    %6678 = vmatpush.msra.mxu0 0.0
    %6679 = vmatpush.msra.mxu0 0.0
    %6680 = vmatpush.msra.mxu0 0.0
    %6681 = vmatpush.msra.mxu0 0.0
    %6682 = vmatpush.msra.mxu0 0.0
    %6683 = vmatpush.msra.mxu0 0.0
    %6684 = vmatpush.msra.mxu0 0.0
    %6685 = vmatpush.msra.mxu0 0.0
    %6686 = vmatpush.msra.mxu0 0.0
    %v6687 = vand.u32 %v6473, 4294901760
    %6688 = vmatpush.msra.mxu0 %v6687
    %v6689 = vand.u32 %v6472, 4294901760
    %6690 = vmatpush.msra.mxu0 %v6689
    %v6691 = vand.u32 %v6471, 4294901760
    %6692 = vmatpush.msra.mxu0 %v6691
    %v6693 = vand.u32 %v6470, 4294901760
    %6694 = vmatpush.msra.mxu0 %v6693
    %v6695 = vand.u32 %v6673, 4294901760
    %v6696 = vsub.f32 %v6673, %v6695
    %v6697 = vand.u32 %v6696, 4294901760
    %v6698 = vsub.f32 %v6696, %v6697
    %v6699 = vand.u32 %v6698, 4294901760
    %6700 = vmatmul.f32.gmra.mxu0 %v6699
    %v6701 = vpop.f32.mrf.mxu0
    %v6702 = vadd.f32 %v6670, %v6701
    %6703 = vdwg.mxu0
    %6704 = vmatpush.msra.mxu0 0.0
    %6705 = vmatpush.msra.mxu0 0.0
    %6706 = vmatpush.msra.mxu0 0.0
    %6707 = vmatpush.msra.mxu0 0.0
    %6708 = vmatpush.msra.mxu0 0.0
    %6709 = vmatpush.msra.mxu0 0.0
    %6710 = vmatpush.msra.mxu0 0.0
    %6711 = vmatpush.msra.mxu0 0.0
    %6712 = vmatpush.msra.mxu0 0.0
    %6713 = vmatpush.msra.mxu0 0.0
    %6714 = vmatpush.msra.mxu0 0.0
    %6715 = vmatpush.msra.mxu0 0.0
    %v6716 = vand.u32 %v6473, 4294901760
    %v6717 = vsub.f32 %v6473, %v6716
    %v6718 = vand.u32 %v6717, 4294901760
    %v6719 = vsub.f32 %v6717, %v6718
    %v6720 = vand.u32 %v6719, 4294901760
    %6721 = vmatpush.msra.mxu0 %v6720
    %v6722 = vand.u32 %v6472, 4294901760
    %v6723 = vsub.f32 %v6472, %v6722
    %v6724 = vand.u32 %v6723, 4294901760
    %v6725 = vsub.f32 %v6723, %v6724
    %v6726 = vand.u32 %v6725, 4294901760
    %6727 = vmatpush.msra.mxu0 %v6726
    %v6728 = vand.u32 %v6471, 4294901760
    %v6729 = vsub.f32 %v6471, %v6728
    %v6730 = vand.u32 %v6729, 4294901760
    %v6731 = vsub.f32 %v6729, %v6730
    %v6732 = vand.u32 %v6731, 4294901760
    %6733 = vmatpush.msra.mxu0 %v6732
    %v6734 = vand.u32 %v6470, 4294901760
    %v6735 = vsub.f32 %v6470, %v6734
    %v6736 = vand.u32 %v6735, 4294901760
    %v6737 = vsub.f32 %v6735, %v6736
    %v6738 = vand.u32 %v6737, 4294901760
    %6739 = vmatpush.msra.mxu0 %v6738
    %v6740 = vand.u32 %v6673, 4294901760
    %6741 = vmatmul.f32.gmra.mxu0 %v6740
    %v6742 = vpop.f32.mrf.mxu0
    %v6743 = vadd.f32 %v6702, %v6742
    %6744 = vdwg.mxu0
    %6745 = vmatpush.msra.mxu0 0.0
    %6746 = vmatpush.msra.mxu0 0.0
    %6747 = vmatpush.msra.mxu0 0.0
    %6748 = vmatpush.msra.mxu0 0.0
    %6749 = vmatpush.msra.mxu0 0.0
    %6750 = vmatpush.msra.mxu0 0.0
    %6751 = vmatpush.msra.mxu0 0.0
    %6752 = vmatpush.msra.mxu0 0.0
    %6753 = vmatpush.msra.mxu0 0.0
    %6754 = vmatpush.msra.mxu0 0.0
    %6755 = vmatpush.msra.mxu0 0.0
    %6756 = vmatpush.msra.mxu0 0.0
    %v6757 = vand.u32 %v6473, 4294901760
    %v6758 = vsub.f32 %v6473, %v6757
    %6759 = vmatpush.msra.mxu0 %v6758
    %v6760 = vand.u32 %v6472, 4294901760
    %v6761 = vsub.f32 %v6472, %v6760
    %6762 = vmatpush.msra.mxu0 %v6761
    %v6763 = vand.u32 %v6471, 4294901760
    %v6764 = vsub.f32 %v6471, %v6763
    %6765 = vmatpush.msra.mxu0 %v6764
    %v6766 = vand.u32 %v6470, 4294901760
    %v6767 = vsub.f32 %v6470, %v6766
    %6768 = vmatpush.msra.mxu0 %v6767
    %v6769 = vand.u32 %v6673, 4294901760
    %v6770 = vsub.f32 %v6673, %v6769
    %6771 = vmatmul.f32.gmra.mxu0 %v6770
    %v6772 = vpop.f32.mrf.mxu0
    %v6773 = vadd.f32 %v6743, %v6772
    %6774 = vdwg.mxu0
    %6775 = vmatpush.msra.mxu0 0.0
    %6776 = vmatpush.msra.mxu0 0.0
    %6777 = vmatpush.msra.mxu0 0.0
    %6778 = vmatpush.msra.mxu0 0.0
    %6779 = vmatpush.msra.mxu0 0.0
    %6780 = vmatpush.msra.mxu0 0.0
    %6781 = vmatpush.msra.mxu0 0.0
    %6782 = vmatpush.msra.mxu0 0.0
    %6783 = vmatpush.msra.mxu0 0.0
    %6784 = vmatpush.msra.mxu0 0.0
    %6785 = vmatpush.msra.mxu0 0.0
    %6786 = vmatpush.msra.mxu0 0.0
    %v6787 = vand.u32 %v6473, 4294901760
    %6788 = vmatpush.msra.mxu0 %v6787
    %v6789 = vand.u32 %v6472, 4294901760
    %6790 = vmatpush.msra.mxu0 %v6789
    %v6791 = vand.u32 %v6471, 4294901760
    %6792 = vmatpush.msra.mxu0 %v6791
    %v6793 = vand.u32 %v6470, 4294901760
    %6794 = vmatpush.msra.mxu0 %v6793
    %v6795 = vand.u32 %v6673, 4294901760
    %v6796 = vsub.f32 %v6673, %v6795
    %v6797 = vand.u32 %v6796, 4294901760
    %6798 = vmatmul.f32.gmra.mxu0 %v6797
    %v6799 = vpop.f32.mrf.mxu0
    %v6800 = vadd.f32 %v6773, %v6799
    %6801 = vdwg.mxu0
    %6802 = vmatpush.msra.mxu0 0.0
    %6803 = vmatpush.msra.mxu0 0.0
    %6804 = vmatpush.msra.mxu0 0.0
    %6805 = vmatpush.msra.mxu0 0.0
    %6806 = vmatpush.msra.mxu0 0.0
    %6807 = vmatpush.msra.mxu0 0.0
    %6808 = vmatpush.msra.mxu0 0.0
    %6809 = vmatpush.msra.mxu0 0.0
    %6810 = vmatpush.msra.mxu0 0.0
    %6811 = vmatpush.msra.mxu0 0.0
    %6812 = vmatpush.msra.mxu0 0.0
    %6813 = vmatpush.msra.mxu0 0.0
    %v6814 = vand.u32 %v6473, 4294901760
    %v6815 = vsub.f32 %v6473, %v6814
    %v6816 = vand.u32 %v6815, 4294901760
    %6817 = vmatpush.msra.mxu0 %v6816
    %v6818 = vand.u32 %v6472, 4294901760
    %v6819 = vsub.f32 %v6472, %v6818
    %v6820 = vand.u32 %v6819, 4294901760
    %6821 = vmatpush.msra.mxu0 %v6820
    %v6822 = vand.u32 %v6471, 4294901760
    %v6823 = vsub.f32 %v6471, %v6822
    %v6824 = vand.u32 %v6823, 4294901760
    %6825 = vmatpush.msra.mxu0 %v6824
    %v6826 = vand.u32 %v6470, 4294901760
    %v6827 = vsub.f32 %v6470, %v6826
    %v6828 = vand.u32 %v6827, 4294901760
    %6829 = vmatpush.msra.mxu0 %v6828
    %v6830 = vand.u32 %v6673, 4294901760
    %6831 = vmatmul.f32.gmra.mxu0 %v6830
    %v6832 = vpop.f32.mrf.mxu0
    %v6833 = vadd.f32 %v6800, %v6832
    %6834 = vdwg.mxu0
    %6835 = vmatpush.msra.mxu0 0.0
    %6836 = vmatpush.msra.mxu0 0.0
    %6837 = vmatpush.msra.mxu0 0.0
    %6838 = vmatpush.msra.mxu0 0.0
    %6839 = vmatpush.msra.mxu0 0.0
    %6840 = vmatpush.msra.mxu0 0.0
    %6841 = vmatpush.msra.mxu0 0.0
    %6842 = vmatpush.msra.mxu0 0.0
    %6843 = vmatpush.msra.mxu0 0.0
    %6844 = vmatpush.msra.mxu0 0.0
    %6845 = vmatpush.msra.mxu0 0.0
    %6846 = vmatpush.msra.mxu0 0.0
    %v6847 = vand.u32 %v6473, 4294901760
    %6848 = vmatpush.msra.mxu0 %v6847
    %v6849 = vand.u32 %v6472, 4294901760
    %6850 = vmatpush.msra.mxu0 %v6849
    %v6851 = vand.u32 %v6471, 4294901760
    %6852 = vmatpush.msra.mxu0 %v6851
    %v6853 = vand.u32 %v6470, 4294901760
    %6854 = vmatpush.msra.mxu0 %v6853
    %v6855 = vand.u32 %v6673, 4294901760
    %6856 = vmatmul.f32.gmra.mxu0 %v6855
    %v6857 = vpop.f32.mrf.mxu0
    %v6858 = vadd.f32 %v6833, %v6857
    %6859 = vdwg.mxu0
    %v6860 = vmax.f32 %v6858, 0.0
    %v6862 = vperm.slane %v6477, 0
    %vm6864 = vcmask 130048
    %v6866 = vsel %vm6864, %v6860, 0
    %6868 = vmatpush.msra.mxu0 0.0
    %6869 = vmatpush.msra.mxu0 0.0
    %6870 = vmatpush.msra.mxu0 0.0
    %6871 = vmatpush.msra.mxu0 0.0
    %6872 = vmatpush.msra.mxu0 0.0
    %6873 = vmatpush.msra.mxu0 0.0
    %6874 = vmatpush.msra.mxu0 0.0
    %6875 = vmatpush.msra.mxu0 0.0
    %6876 = vmatpush.msra.mxu0 0.0
    %6877 = vmatpush.msra.mxu0 0.0
    %6878 = vmatpush.msra.mxu0 0.0
    %6879 = vmatpush.msra.mxu0 0.0
    %6880 = vmatpush.msra.mxu0 0.0
    %6881 = vmatpush.msra.mxu0 0.0
    %v6882 = vand.u32 %v6476, 4294901760
    %6883 = vmatpush.msra.mxu0 %v6882
    %v6884 = vand.u32 %v6475, 4294901760
    %6885 = vmatpush.msra.mxu0 %v6884
    %v6886 = vand.u32 %v6866, 4294901760
    %v6887 = vsub.f32 %v6866, %v6886
    %v6888 = vand.u32 %v6887, 4294901760
    %v6889 = vsub.f32 %v6887, %v6888
    %v6890 = vand.u32 %v6889, 4294901760
    %6891 = vmatmul.f32.gmra.mxu0 %v6890
    %v6892 = vpop.f32.mrf.mxu0
    %v6893 = vadd.f32 %v6862, %v6892
    %6894 = vdwg.mxu0
    %6895 = vmatpush.msra.mxu0 0.0
    %6896 = vmatpush.msra.mxu0 0.0
    %6897 = vmatpush.msra.mxu0 0.0
    %6898 = vmatpush.msra.mxu0 0.0
    %6899 = vmatpush.msra.mxu0 0.0
    %6900 = vmatpush.msra.mxu0 0.0
    %6901 = vmatpush.msra.mxu0 0.0
    %6902 = vmatpush.msra.mxu0 0.0
    %6903 = vmatpush.msra.mxu0 0.0
    %6904 = vmatpush.msra.mxu0 0.0
    %6905 = vmatpush.msra.mxu0 0.0
    %6906 = vmatpush.msra.mxu0 0.0
    %6907 = vmatpush.msra.mxu0 0.0
    %6908 = vmatpush.msra.mxu0 0.0
    %v6909 = vand.u32 %v6476, 4294901760
    %v6910 = vsub.f32 %v6476, %v6909
    %v6911 = vand.u32 %v6910, 4294901760
    %v6912 = vsub.f32 %v6910, %v6911
    %v6913 = vand.u32 %v6912, 4294901760
    %6914 = vmatpush.msra.mxu0 %v6913
    %v6915 = vand.u32 %v6475, 4294901760
    %v6916 = vsub.f32 %v6475, %v6915
    %v6917 = vand.u32 %v6916, 4294901760
    %v6918 = vsub.f32 %v6916, %v6917
    %v6919 = vand.u32 %v6918, 4294901760
    %6920 = vmatpush.msra.mxu0 %v6919
    %v6921 = vand.u32 %v6866, 4294901760
    %6922 = vmatmul.f32.gmra.mxu0 %v6921
    %v6923 = vpop.f32.mrf.mxu0
    %v6924 = vadd.f32 %v6893, %v6923
    %6925 = vdwg.mxu0
    %6926 = vmatpush.msra.mxu0 0.0
    %6927 = vmatpush.msra.mxu0 0.0
    %6928 = vmatpush.msra.mxu0 0.0
    %6929 = vmatpush.msra.mxu0 0.0
    %6930 = vmatpush.msra.mxu0 0.0
    %6931 = vmatpush.msra.mxu0 0.0
    %6932 = vmatpush.msra.mxu0 0.0
    %6933 = vmatpush.msra.mxu0 0.0
    %6934 = vmatpush.msra.mxu0 0.0
    %6935 = vmatpush.msra.mxu0 0.0
    %6936 = vmatpush.msra.mxu0 0.0
    %6937 = vmatpush.msra.mxu0 0.0
    %6938 = vmatpush.msra.mxu0 0.0
    %6939 = vmatpush.msra.mxu0 0.0
    %v6940 = vand.u32 %v6476, 4294901760
    %v6941 = vsub.f32 %v6476, %v6940
    %6942 = vmatpush.msra.mxu0 %v6941
    %v6943 = vand.u32 %v6475, 4294901760
    %v6944 = vsub.f32 %v6475, %v6943
    %6945 = vmatpush.msra.mxu0 %v6944
    %v6946 = vand.u32 %v6866, 4294901760
    %v6947 = vsub.f32 %v6866, %v6946
    %6948 = vmatmul.f32.gmra.mxu0 %v6947
    %v6949 = vpop.f32.mrf.mxu0
    %v6950 = vadd.f32 %v6924, %v6949
    %6951 = vdwg.mxu0
    %6952 = vmatpush.msra.mxu0 0.0
    %6953 = vmatpush.msra.mxu0 0.0
    %6954 = vmatpush.msra.mxu0 0.0
    %6955 = vmatpush.msra.mxu0 0.0
    %6956 = vmatpush.msra.mxu0 0.0
    %6957 = vmatpush.msra.mxu0 0.0
    %6958 = vmatpush.msra.mxu0 0.0
    %6959 = vmatpush.msra.mxu0 0.0
    %6960 = vmatpush.msra.mxu0 0.0
    %6961 = vmatpush.msra.mxu0 0.0
    %6962 = vmatpush.msra.mxu0 0.0
    %6963 = vmatpush.msra.mxu0 0.0
    %6964 = vmatpush.msra.mxu0 0.0
    %6965 = vmatpush.msra.mxu0 0.0
    %v6966 = vand.u32 %v6476, 4294901760
    %6967 = vmatpush.msra.mxu0 %v6966
    %v6968 = vand.u32 %v6475, 4294901760
    %6969 = vmatpush.msra.mxu0 %v6968
    %v6970 = vand.u32 %v6866, 4294901760
    %v6971 = vsub.f32 %v6866, %v6970
    %v6972 = vand.u32 %v6971, 4294901760
    %6973 = vmatmul.f32.gmra.mxu0 %v6972
    %v6974 = vpop.f32.mrf.mxu0
    %v6975 = vadd.f32 %v6950, %v6974
    %6976 = vdwg.mxu0
    %6977 = vmatpush.msra.mxu0 0.0
    %6978 = vmatpush.msra.mxu0 0.0
    %6979 = vmatpush.msra.mxu0 0.0
    %6980 = vmatpush.msra.mxu0 0.0
    %6981 = vmatpush.msra.mxu0 0.0
    %6982 = vmatpush.msra.mxu0 0.0
    %6983 = vmatpush.msra.mxu0 0.0
    %6984 = vmatpush.msra.mxu0 0.0
    %6985 = vmatpush.msra.mxu0 0.0
    %6986 = vmatpush.msra.mxu0 0.0
    %6987 = vmatpush.msra.mxu0 0.0
    %6988 = vmatpush.msra.mxu0 0.0
    %6989 = vmatpush.msra.mxu0 0.0
    %6990 = vmatpush.msra.mxu0 0.0
    %v6991 = vand.u32 %v6476, 4294901760
    %v6992 = vsub.f32 %v6476, %v6991
    %v6993 = vand.u32 %v6992, 4294901760
    %6994 = vmatpush.msra.mxu0 %v6993
    %v6995 = vand.u32 %v6475, 4294901760
    %v6996 = vsub.f32 %v6475, %v6995
    %v6997 = vand.u32 %v6996, 4294901760
    %6998 = vmatpush.msra.mxu0 %v6997
    %v6999 = vand.u32 %v6866, 4294901760
    %7000 = vmatmul.f32.gmra.mxu0 %v6999
    %v7001 = vpop.f32.mrf.mxu0
    %v7002 = vadd.f32 %v6975, %v7001
    %7003 = vdwg.mxu0
    %7004 = vmatpush.msra.mxu0 0.0
    %7005 = vmatpush.msra.mxu0 0.0
    %7006 = vmatpush.msra.mxu0 0.0
    %7007 = vmatpush.msra.mxu0 0.0
    %7008 = vmatpush.msra.mxu0 0.0
    %7009 = vmatpush.msra.mxu0 0.0
    %7010 = vmatpush.msra.mxu0 0.0
    %7011 = vmatpush.msra.mxu0 0.0
    %7012 = vmatpush.msra.mxu0 0.0
    %7013 = vmatpush.msra.mxu0 0.0
    %7014 = vmatpush.msra.mxu0 0.0
    %7015 = vmatpush.msra.mxu0 0.0
    %7016 = vmatpush.msra.mxu0 0.0
    %7017 = vmatpush.msra.mxu0 0.0
    %v7018 = vand.u32 %v6476, 4294901760
    %7019 = vmatpush.msra.mxu0 %v7018
    %v7020 = vand.u32 %v6475, 4294901760
    %7021 = vmatpush.msra.mxu0 %v7020
    %v7022 = vand.u32 %v6866, 4294901760
    %7023 = vmatmul.f32.gmra.mxu0 %v7022
    %v7024 = vpop.f32.mrf.mxu0
    %v7025 = vadd.f32 %v7002, %v7024
    %7026 = vdwg.mxu0
    %vm7027 = vcmask 82944
    %7028 = vst.msk [vmem:[#allocation8] sm:$0x3] %vm7027, %v7025
    // Predicated region
    $region66: #{tpu_custom_call.1} parent=1 // pred_check
      _
    $region67: #{tpu_custom_call.1} parent=1 // pred_check_branch
      %7030 = sbr.rel (0) target = $region69
    $region68: #{tpu_custom_call.1} parent=1 // pred_region
      %7032 = vsyncadd [#allocation4], 0
      %s7034 = sshll.u32 [#allocation8], 4
      %s7035 = int_to_ptr.vmem [resolvable:$true] %s7034
      %s7036 = sshll.u32 %s13, 4
      %s7037 = int_to_ptr.hbm [resolvable:$true] %s7036
      %7039 = dma.vmem_to_hbm [thread:$0]  %s7035, 32, %s7037, [#allocation4]
    $region69: #{tpu_custom_call.1} parent=1 // pred_fallthru
      _
    // Predicated region
    $region70: #{tpu_custom_call.1} parent=1 // pred_check
      _
    $region71: #{tpu_custom_call.1} parent=1 // pred_check_branch
      %7041 = sbr.rel (0) target = $region73
    $region72: #{tpu_custom_call.1} parent=1 // pred_region
      %7043 = vsyncadd [#allocation10], 0
      %s7045 = sshll.u32 [#allocation9], 4
      %s7046 = int_to_ptr.vmem [resolvable:$true] %s7045
      %s7047 = sshll.u32 %s14, 4
      %s7048 = int_to_ptr.hbm [resolvable:$true] %s7047
      %7050 = dma.vmem_to_hbm [thread:$0]  %s7046, 32, %s7048, [#allocation10]
    $region73: #{tpu_custom_call.1} parent=1 // pred_fallthru
      _
    // Predicated region
    $region74: #{tpu_custom_call.1} parent=1 // pred_check
      _
    $region75: #{tpu_custom_call.1} parent=1 // pred_check_branch
      %7052 = sbr.rel (0) target = $region77
    $region76: #{tpu_custom_call.1} parent=1 // pred_region
      %7054 = dma.done [#allocation4], 32
    $region77: #{tpu_custom_call.1} parent=1 // pred_fallthru
      _
    // Predicated region
    $region78: #{tpu_custom_call.1} parent=1 // pred_check
      _
    $region79: #{tpu_custom_call.1} parent=1 // pred_check_branch
      %7056 = sbr.rel (0) target = $region81
    $region80: #{tpu_custom_call.1} parent=1 // pred_region
      %7058 = dma.done [#allocation10], 32
    $region81: #{tpu_custom_call.1} parent=1 // pred_fallthru
      _
    %7059 = vsyncpa [#allocation3], 1
    %7060 = vsyncpa [#allocation6], 1
    %7061 = vsyncpa [#allocation4], 1
    %7062 = vsyncpa [#allocation10], 1

</llo_original>
